<compile_context>
chip_gen: v7x
topology: tpu7x:2x2x1
jax: 0.10.0
libtpu: 0.0.40
codegen_flags: <defaults>
</compile_context>

<pallas_src>
import jax
import jax.numpy as jnp
from jax.experimental import pallas as pl
from jax.experimental.pallas import tpu as pltpu


# ---------------------------------------------------------------------------
# Fused LeNet forward kernel (grid over batch tiles).
# ---------------------------------------------------------------------------
def _lenet_kernel(xcol_ref, wblob_ref, bblob_ref, out_ref):
    f32, bf16 = jnp.float32, jnp.bfloat16
    BT = out_ref.shape[0]

    # Packed weights (bf16) / biases (f32); row offsets are multiples of 8.
    w1 = wblob_ref[0:100, 0:24]        # conv1, block-diag over the 4 phases
    w2 = wblob_ref[104:254, 0:16]      # conv2 im2col, K ordered (ki, kj, ic)
    wf1 = wblob_ref[256:656, 0:120]    # fc1, K ordered (hw, c)
    wf2 = wblob_ref[656:776, 0:84]
    wf3 = wblob_ref[776:860, :]        # [84, 128], columns >= 10 are zero
    b1 = bblob_ref[0:1, 0:24]
    b2 = bblob_ref[1:2, 0:16]
    bf1 = bblob_ref[2:3, 0:120]
    bf2 = bblob_ref[3:4, 0:84]
    bf3 = bblob_ref[4:5, :]            # [1, 128]

    # ---- conv1 + bias + ReLU + 2x2 max-pool: ONE MXU matmul ----------------
    # xcol rows are ordered (b, pooling-corner pc, i, j); lanes are
    # (phase r = 2*ri+rj, tap).  w1 is block-diagonal so output lane r*6+oc is
    # the conv1 response of pooled-output phase r.
    a1 = jnp.dot(xcol_ref[...], w1, preferred_element_type=f32)  # [BT*196, 24]
    a1 = a1.reshape(BT, 4, 7, 7, 24)
    a1 = jnp.maximum(jnp.maximum(a1[:, 0], a1[:, 1]),
                     jnp.maximum(a1[:, 2], a1[:, 3]))            # pool corners
    a1 = jnp.maximum(a1 + b1.reshape(1, 1, 1, 24), 0.0)          # [BT, 7, 7, 24]
    # lane group r = 2*ri+rj of a1[b, i, j, :] holds pooled conv1 activation
    # A[b, 2i+ri, 2j+rj, 0:6] (channel-last).

    # ---- conv2 + bias + ReLU + 2x2 max-pool: 4 K=150 MXU matmuls -----------
    pooled2 = None
    for ch in range(2):
        for cw in range(2):
            pieces = []
            for ki in range(5):
                for kj in range(5):
                    ri, qi = (ch + ki) % 2, (ch + ki) // 2
                    rj, qj = (cw + kj) % 2, (cw + kj) // 2
                    rr = 2 * ri + rj
                    pieces.append(
                        a1[:, qi:qi + 5, qj:qj + 5, 6 * rr:6 * rr + 6])
            patch = jnp.concatenate(pieces, axis=-1)             # [BT, 5, 5, 150]
            patch = patch.reshape(BT * 25, 150).astype(bf16)
            acc = jnp.dot(patch, w2, preferred_element_type=f32)  # [BT*25, 16]
            pooled2 = acc if pooled2 is None else jnp.maximum(pooled2, acc)
    a2 = jnp.maximum(pooled2 + b2, 0.0)                          # [BT*25, 16]

    # ---- flatten (b, hw, c) -> (b, 400) (cheap lane concat, no row gathers) -
    a2r = a2.reshape(BT, 25, 16)
    a2f = jnp.concatenate([a2r[:, hw, :] for hw in range(25)], axis=-1)  # [BT,400]

    # ---- fc1 / fc2 / fc3: three single matmuls; fc3 padded to 128 lanes ----
    h1 = jnp.maximum(
        jnp.dot(a2f.astype(bf16), wf1, preferred_element_type=f32) + bf1, 0.0)
    h2 = jnp.maximum(
        jnp.dot(h1.astype(bf16), wf2, preferred_element_type=f32) + bf2, 0.0)
    out_ref[...] = jnp.dot(h2.astype(bf16), wf3,
                           preferred_element_type=f32) + bf3


# ---------------------------------------------------------------------------
# One-time weight re-layout / packing (kept out of the per-call path).
# ---------------------------------------------------------------------------
def prepare_params(params):
    f32, bf16 = jnp.float32, jnp.bfloat16

    # conv1: per-tap weights, block-diagonal over the 4 pooled phases -> [100, 24]
    w1 = params["conv1_w"].astype(f32).reshape(6, 25).T            # [25(tap), 6(oc)]
    w1blk = jnp.zeros((100, 24), f32)
    for r in range(4):
        w1blk = w1blk.at[25 * r:25 * (r + 1), 6 * r:6 * (r + 1)].set(w1)

    # conv2: im2col weights, K ordered (ki, kj, ic) -> [150, 16]
    w2 = params["conv2_w"].astype(f32).transpose(2, 3, 1, 0).reshape(150, 16)

    # fc1: input features reordered to (hw, c) to match the kernel layout -> [400, 120]
    wf1 = (params["fc1_w"].astype(f32).reshape(120, 16, 25)
           .transpose(2, 1, 0).reshape(400, 120))
    wf2 = params["fc2_w"].astype(f32).T                            # [120, 84]
    wf3 = jnp.zeros((84, 128), f32).at[:, :10].set(params["fc3_w"].astype(f32).T)

    def _pad(w, rows):
        return jnp.zeros((rows, 128), f32).at[:w.shape[0], :w.shape[1]].set(w)

    # One bf16 weight blob (row offsets multiples of 8):
    #   [0,100) conv1 | [104,254) conv2 | [256,656) fc1 | [656,776) fc2 | [776,860) fc3
    wblob = jnp.concatenate(
        [_pad(w1blk, 104), _pad(w2, 152), _pad(wf1, 400), _pad(wf2, 120),
         _pad(wf3, 88)], axis=0).astype(bf16)                      # [864, 128]

    # One f32 bias blob, one bias per row.
    bblob = jnp.zeros((8, 128), f32)
    bblob = bblob.at[0, :24].set(jnp.tile(params["conv1_b"].astype(f32), 4))
    bblob = bblob.at[1, :16].set(params["conv2_b"].astype(f32))
    bblob = bblob.at[2, :120].set(params["fc1_b"].astype(f32))
    bblob = bblob.at[3, :84].set(params["fc2_b"].astype(f32))
    bblob = bblob.at[4, :10].set(params["fc3_b"].astype(f32))
    return dict(wblob=wblob, bblob=bblob)


# ---------------------------------------------------------------------------
# XLA-side conv1 im2col (pure slices + transpose/reshape; runs once per call).
# ---------------------------------------------------------------------------
def _build_xcol(x):
    """x: [B, 1, 32, 32] -> [B, 4, 7, 7, 100] bf16 conv1 im2col patches.

    Entry [b, pc, i, j, r*25 + ki*5 + kj] (pc = 2*pc_h + pc_w, r = 2*ri + rj)
    holds x[b, 0, 4i + 2ri + pc_h + ki, 4j + 2rj + pc_w + kj]: the conv1 input
    tap for pooled-output phase (ri, rj), position (i, j), pool corner (pc_h, pc_w).
    """
    B = x.shape[0]
    xs = x[:, 0].astype(jnp.float32)                               # [B, 32, 32]
    patches = jnp.stack(
        [xs[:, ki:ki + 28, kj:kj + 28] for ki in range(5) for kj in range(5)],
        axis=1)                                                    # [B, 25, 28, 28]
    p8 = patches.reshape(B, 25, 7, 2, 2, 7, 2, 2)   # [b, t, i, ri, pch, j, rj, pcw]
    xcol = p8.transpose(0, 4, 7, 2, 5, 3, 6, 1)     # [b, pch, pcw, i, j, ri, rj, t]
    return xcol.reshape(B, 4, 7, 7, 100).astype(jnp.bfloat16)


@jax.jit
def net_forward(prepped, x):
    B = x.shape[0]
    assert x.shape[1:] == (1, 32, 32)
    xcol = _build_xcol(x)                           # [B, 4, 7, 7, 100] bf16

    # Batch tiling: one grid step per batch tile (parallel across TCs on v7x).
    BT = B if B <= 128 else 128
    Bp = ((B + BT - 1) // BT) * BT
    if Bp != B:
        xcol = jnp.pad(xcol, ((0, Bp - B), (0, 0), (0, 0), (0, 0), (0, 0)))
    xcol = xcol.reshape(Bp * 196, 100)              # rows ordered (b, pc, i, j)
    grid = (Bp // BT,)

    out = pl.pallas_call(
        _lenet_kernel,
        out_shape=jax.ShapeDtypeStruct((Bp, 128), jnp.float32),
        grid=grid,
        in_specs=[
            pl.BlockSpec((BT * 196, 100), lambda b: (b, 0)),
            pl.BlockSpec((864, 128), lambda b: (0, 0)),
            pl.BlockSpec((8, 128), lambda b: (0, 0)),
        ],
        out_specs=pl.BlockSpec((BT, 128), lambda b: (b, 0)),
        compiler_params=pltpu.CompilerParams(
            dimension_semantics=("parallel",)),
    )(xcol, prepped["wblob"], prepped["bblob"])
    return out[:B, :10]


# ---------------------------------------------------------------------------
# Parameters (deterministic, PyTorch-default-style uniform init)
# ---------------------------------------------------------------------------
def init_params(key):
    ks = jax.random.split(key, 10)

    def u(k, shape, fan_in):
        bound = 1.0 / jnp.sqrt(jnp.float32(fan_in))
        return jax.random.uniform(k, shape, jnp.float32, -bound, bound)

    return {
        "conv1_w": u(ks[0], (6, 1, 5, 5), 1 * 5 * 5),
        "conv1_b": u(ks[1], (6,), 1 * 5 * 5),
        "conv2_w": u(ks[2], (16, 6, 5, 5), 6 * 5 * 5),
        "conv2_b": u(ks[3], (16,), 6 * 5 * 5),
        "fc1_w": u(ks[4], (120, 16 * 5 * 5), 16 * 5 * 5),
        "fc1_b": u(ks[5], (120,), 16 * 5 * 5),
        "fc2_w": u(ks[6], (84, 120), 120),
        "fc2_b": u(ks[7], (84,), 120),
        "fc3_w": u(ks[8], (10, 84), 84),
        "fc3_b": u(ks[9], (10,), 84),
    }


# ---------------------------------------------------------------------------
# Pure-JAX reference (matches Net.forward) for a sanity check.
# ---------------------------------------------------------------------------
def _reference_forward(params, x):
    def conv_relu(x, w, b):
        y = jax.lax.conv_general_dilated(
            x, w, window_strides=(1, 1), padding="VALID",
            dimension_numbers=("NCHW", "OIHW", "NCHW"))
        return jnp.maximum(y + b[None, :, None, None], 0.0)

    def pool(x):
        return jax.lax.reduce_window(x, -jnp.inf, jax.lax.max,
                                     (1, 1, 2, 2), (1, 1, 2, 2), "VALID")

    x = pool(conv_relu(x, params["conv1_w"], params["conv1_b"]))
    x = pool(conv_relu(x, params["conv2_w"], params["conv2_b"]))
    x = x.reshape(x.shape[0], -1)
    x = jnp.maximum(x @ params["fc1_w"].T + params["fc1_b"], 0.0)
    x = jnp.maximum(x @ params["fc2_w"].T + params["fc2_b"], 0.0)
    return x @ params["fc3_w"].T + params["fc3_b"]


if __name__ == "__main__":
    key = jax.random.PRNGKey(0)
    pkey, xkey = jax.random.split(key)
    params = init_params(pkey)
    prepped = prepare_params(params)
    # LeNet geometry requires 1x32x32 inputs so that flatten == 16*5*5.
    x = jax.random.normal(xkey, (2, 1, 32, 32), dtype=jnp.float32)

    out = jax.block_until_ready(net_forward(prepped, x))
    assert out.shape == (2, 10), out.shape
    assert out.dtype == jnp.float32

    ref = jax.block_until_ready(_reference_forward(params, x))
    err = float(jnp.max(jnp.abs(out - ref)))
    assert err < 2.5e-2, f"max abs err vs reference: {err}"
    print("KERNEL_OK")
</pallas_src>

<mosaic_0001>
module attributes {stable_mosaic.version = 11 : i64} {
  func.func @_lenet_kernel(%arg0: i32, %arg1: memref<392x100xbf16, #tpu.memory_space<vmem>>, %arg2: memref<864x128xbf16, #tpu.memory_space<vmem>>, %arg3: memref<8x128xf32, #tpu.memory_space<vmem>>, %arg4: memref<2x128xf32, #tpu.memory_space<vmem>>) attributes {dimension_semantics = [#tpu.dimension_semantics<parallel>], iteration_bounds = array<i64: 1>, scalar_prefetch = 0 : i64, scratch_operands = 0 : i64, tpu.core_type = #tpu.core_type<tc>, window_params = [{transform_indices = @transform_0, window_bounds = array<i64: 392, 100>}, {pipeline_mode = #tpu.pipeline_mode<synchronous>, transform_indices = @transform_1, window_bounds = array<i64: 864, 128>}, {pipeline_mode = #tpu.pipeline_mode<synchronous>, transform_indices = @transform_2, window_bounds = array<i64: 8, 128>}, {transform_indices = @transform_3, window_bounds = array<i64: 2, 128>}]} {
    %c0 = arith.constant 0 : index
    %c0_0 = arith.constant 0 : index
    %0 = vector.load %arg2[%c0, %c0_0] : memref<864x128xbf16, #tpu.memory_space<vmem>>, vector<100x24xbf16>
    %c104 = arith.constant 104 : index
    %c0_1 = arith.constant 0 : index
    %1 = vector.load %arg2[%c104, %c0_1] : memref<864x128xbf16, #tpu.memory_space<vmem>>, vector<150x16xbf16>
    %c256 = arith.constant 256 : index
    %c0_2 = arith.constant 0 : index
    %2 = vector.load %arg2[%c256, %c0_2] : memref<864x128xbf16, #tpu.memory_space<vmem>>, vector<400x120xbf16>
    %c656 = arith.constant 656 : index
    %c0_3 = arith.constant 0 : index
    %3 = vector.load %arg2[%c656, %c0_3] : memref<864x128xbf16, #tpu.memory_space<vmem>>, vector<120x84xbf16>
    %c776 = arith.constant 776 : index
    %c0_4 = arith.constant 0 : index
    %4 = vector.load %arg2[%c776, %c0_4] : memref<864x128xbf16, #tpu.memory_space<vmem>>, vector<84x128xbf16>
    %c0_5 = arith.constant 0 : index
    %c0_6 = arith.constant 0 : index
    %5 = vector.load %arg3[%c0_5, %c0_6] : memref<8x128xf32, #tpu.memory_space<vmem>>, vector<1x24xf32>
    %c1 = arith.constant 1 : index
    %c0_7 = arith.constant 0 : index
    %6 = vector.load %arg3[%c1, %c0_7] : memref<8x128xf32, #tpu.memory_space<vmem>>, vector<1x16xf32>
    %c2 = arith.constant 2 : index
    %c0_8 = arith.constant 0 : index
    %7 = vector.load %arg3[%c2, %c0_8] : memref<8x128xf32, #tpu.memory_space<vmem>>, vector<1x120xf32>
    %c3 = arith.constant 3 : index
    %c0_9 = arith.constant 0 : index
    %8 = vector.load %arg3[%c3, %c0_9] : memref<8x128xf32, #tpu.memory_space<vmem>>, vector<1x84xf32>
    %c4 = arith.constant 4 : index
    %c0_10 = arith.constant 0 : index
    %9 = vector.load %arg3[%c4, %c0_10] : memref<8x128xf32, #tpu.memory_space<vmem>>, vector<1x128xf32>
    %c0_11 = arith.constant 0 : index
    %c0_12 = arith.constant 0 : index
    %10 = vector.load %arg1[%c0_11, %c0_12] : memref<392x100xbf16, #tpu.memory_space<vmem>>, vector<392x100xbf16>
    %cst = arith.constant dense<0.000000e+00> : vector<392x24xf32>
    %11 = tpu.matmul %10, %0, %cst {dimension_numbers = #tpu.dot_dimension_numbers<[1], [0], [0], [1], [0, 0, 1, 1], [], []>} : vector<392x100xbf16>, vector<100x24xbf16>, vector<392x24xf32> -> vector<392x24xf32>
    %12 = vector.shape_cast %11 : vector<392x24xf32> to vector<2x4x7x7x24xf32>
    %13 = vector.extract_strided_slice %12 {offsets = [0, 0, 0, 0, 0], sizes = [2, 1, 7, 7, 24], strides = [1, 1, 1, 1, 1]} : vector<2x4x7x7x24xf32> to vector<2x1x7x7x24xf32>
    %14 = vector.shape_cast %13 : vector<2x1x7x7x24xf32> to vector<2x7x7x24xf32>
    %15 = vector.extract_strided_slice %12 {offsets = [0, 1, 0, 0, 0], sizes = [2, 1, 7, 7, 24], strides = [1, 1, 1, 1, 1]} : vector<2x4x7x7x24xf32> to vector<2x1x7x7x24xf32>
    %16 = vector.shape_cast %15 : vector<2x1x7x7x24xf32> to vector<2x7x7x24xf32>
    %17 = arith.maximumf %14, %16 : vector<2x7x7x24xf32>
    %18 = vector.extract_strided_slice %12 {offsets = [0, 2, 0, 0, 0], sizes = [2, 1, 7, 7, 24], strides = [1, 1, 1, 1, 1]} : vector<2x4x7x7x24xf32> to vector<2x1x7x7x24xf32>
    %19 = vector.shape_cast %18 : vector<2x1x7x7x24xf32> to vector<2x7x7x24xf32>
    %20 = vector.extract_strided_slice %12 {offsets = [0, 3, 0, 0, 0], sizes = [2, 1, 7, 7, 24], strides = [1, 1, 1, 1, 1]} : vector<2x4x7x7x24xf32> to vector<2x1x7x7x24xf32>
    %21 = vector.shape_cast %20 : vector<2x1x7x7x24xf32> to vector<2x7x7x24xf32>
    %22 = arith.maximumf %19, %21 : vector<2x7x7x24xf32>
    %23 = arith.maximumf %17, %22 : vector<2x7x7x24xf32>
    %24 = vector.shape_cast %5 : vector<1x24xf32> to vector<1x1x1x24xf32>
    %25 = vector.broadcast %24 : vector<1x1x1x24xf32> to vector<2x7x7x24xf32>
    %26 = arith.addf %23, %25 : vector<2x7x7x24xf32>
    %cst_13 = arith.constant 0.000000e+00 : f32
    %27 = vector.broadcast %cst_13 : f32 to vector<2x7x7x24xf32>
    %28 = arith.maximumf %26, %27 : vector<2x7x7x24xf32>
    %29 = vector.extract_strided_slice %28 {offsets = [0, 0, 0, 0], sizes = [2, 5, 5, 6], strides = [1, 1, 1, 1]} : vector<2x7x7x24xf32> to vector<2x5x5x6xf32>
    %30 = vector.extract_strided_slice %28 {offsets = [0, 0, 0, 6], sizes = [2, 5, 5, 6], strides = [1, 1, 1, 1]} : vector<2x7x7x24xf32> to vector<2x5x5x6xf32>
    %31 = vector.extract_strided_slice %28 {offsets = [0, 0, 1, 0], sizes = [2, 5, 5, 6], strides = [1, 1, 1, 1]} : vector<2x7x7x24xf32> to vector<2x5x5x6xf32>
    %32 = vector.extract_strided_slice %28 {offsets = [0, 0, 1, 6], sizes = [2, 5, 5, 6], strides = [1, 1, 1, 1]} : vector<2x7x7x24xf32> to vector<2x5x5x6xf32>
    %33 = vector.extract_strided_slice %28 {offsets = [0, 0, 2, 0], sizes = [2, 5, 5, 6], strides = [1, 1, 1, 1]} : vector<2x7x7x24xf32> to vector<2x5x5x6xf32>
    %34 = vector.extract_strided_slice %28 {offsets = [0, 0, 0, 12], sizes = [2, 5, 5, 6], strides = [1, 1, 1, 1]} : vector<2x7x7x24xf32> to vector<2x5x5x6xf32>
    %35 = vector.extract_strided_slice %28 {offsets = [0, 0, 0, 18], sizes = [2, 5, 5, 6], strides = [1, 1, 1, 1]} : vector<2x7x7x24xf32> to vector<2x5x5x6xf32>
    %36 = vector.extract_strided_slice %28 {offsets = [0, 0, 1, 12], sizes = [2, 5, 5, 6], strides = [1, 1, 1, 1]} : vector<2x7x7x24xf32> to vector<2x5x5x6xf32>
    %37 = vector.extract_strided_slice %28 {offsets = [0, 0, 1, 18], sizes = [2, 5, 5, 6], strides = [1, 1, 1, 1]} : vector<2x7x7x24xf32> to vector<2x5x5x6xf32>
    %38 = vector.extract_strided_slice %28 {offsets = [0, 0, 2, 12], sizes = [2, 5, 5, 6], strides = [1, 1, 1, 1]} : vector<2x7x7x24xf32> to vector<2x5x5x6xf32>
    %39 = vector.extract_strided_slice %28 {offsets = [0, 1, 0, 0], sizes = [2, 5, 5, 6], strides = [1, 1, 1, 1]} : vector<2x7x7x24xf32> to vector<2x5x5x6xf32>
    %40 = vector.extract_strided_slice %28 {offsets = [0, 1, 0, 6], sizes = [2, 5, 5, 6], strides = [1, 1, 1, 1]} : vector<2x7x7x24xf32> to vector<2x5x5x6xf32>
    %41 = vector.extract_strided_slice %28 {offsets = [0, 1, 1, 0], sizes = [2, 5, 5, 6], strides = [1, 1, 1, 1]} : vector<2x7x7x24xf32> to vector<2x5x5x6xf32>
    %42 = vector.extract_strided_slice %28 {offsets = [0, 1, 1, 6], sizes = [2, 5, 5, 6], strides = [1, 1, 1, 1]} : vector<2x7x7x24xf32> to vector<2x5x5x6xf32>
    %43 = vector.extract_strided_slice %28 {offsets = [0, 1, 2, 0], sizes = [2, 5, 5, 6], strides = [1, 1, 1, 1]} : vector<2x7x7x24xf32> to vector<2x5x5x6xf32>
    %44 = vector.extract_strided_slice %28 {offsets = [0, 1, 0, 12], sizes = [2, 5, 5, 6], strides = [1, 1, 1, 1]} : vector<2x7x7x24xf32> to vector<2x5x5x6xf32>
    %45 = vector.extract_strided_slice %28 {offsets = [0, 1, 0, 18], sizes = [2, 5, 5, 6], strides = [1, 1, 1, 1]} : vector<2x7x7x24xf32> to vector<2x5x5x6xf32>
    %46 = vector.extract_strided_slice %28 {offsets = [0, 1, 1, 12], sizes = [2, 5, 5, 6], strides = [1, 1, 1, 1]} : vector<2x7x7x24xf32> to vector<2x5x5x6xf32>
    %47 = vector.extract_strided_slice %28 {offsets = [0, 1, 1, 18], sizes = [2, 5, 5, 6], strides = [1, 1, 1, 1]} : vector<2x7x7x24xf32> to vector<2x5x5x6xf32>
    %48 = vector.extract_strided_slice %28 {offsets = [0, 1, 2, 12], sizes = [2, 5, 5, 6], strides = [1, 1, 1, 1]} : vector<2x7x7x24xf32> to vector<2x5x5x6xf32>
    %49 = vector.extract_strided_slice %28 {offsets = [0, 2, 0, 0], sizes = [2, 5, 5, 6], strides = [1, 1, 1, 1]} : vector<2x7x7x24xf32> to vector<2x5x5x6xf32>
    %50 = vector.extract_strided_slice %28 {offsets = [0, 2, 0, 6], sizes = [2, 5, 5, 6], strides = [1, 1, 1, 1]} : vector<2x7x7x24xf32> to vector<2x5x5x6xf32>
    %51 = vector.extract_strided_slice %28 {offsets = [0, 2, 1, 0], sizes = [2, 5, 5, 6], strides = [1, 1, 1, 1]} : vector<2x7x7x24xf32> to vector<2x5x5x6xf32>
    %52 = vector.extract_strided_slice %28 {offsets = [0, 2, 1, 6], sizes = [2, 5, 5, 6], strides = [1, 1, 1, 1]} : vector<2x7x7x24xf32> to vector<2x5x5x6xf32>
    %53 = vector.extract_strided_slice %28 {offsets = [0, 2, 2, 0], sizes = [2, 5, 5, 6], strides = [1, 1, 1, 1]} : vector<2x7x7x24xf32> to vector<2x5x5x6xf32>
    %54 = tpu.concatenate %29, %30, %31, %32, %33, %34, %35, %36, %37, %38, %39, %40, %41, %42, %43, %44 in 3 : vector<2x5x5x6xf32>, vector<2x5x5x6xf32>, vector<2x5x5x6xf32>, vector<2x5x5x6xf32>, vector<2x5x5x6xf32>, vector<2x5x5x6xf32>, vector<2x5x5x6xf32>, vector<2x5x5x6xf32>, vector<2x5x5x6xf32>, vector<2x5x5x6xf32>, vector<2x5x5x6xf32>, vector<2x5x5x6xf32>, vector<2x5x5x6xf32>, vector<2x5x5x6xf32>, vector<2x5x5x6xf32>, vector<2x5x5x6xf32> -> vector<2x5x5x96xf32>
    %55 = tpu.concatenate %45, %46, %47, %48, %49, %50, %51, %52, %53 in 3 : vector<2x5x5x6xf32>, vector<2x5x5x6xf32>, vector<2x5x5x6xf32>, vector<2x5x5x6xf32>, vector<2x5x5x6xf32>, vector<2x5x5x6xf32>, vector<2x5x5x6xf32>, vector<2x5x5x6xf32>, vector<2x5x5x6xf32> -> vector<2x5x5x54xf32>
    %56 = tpu.concatenate %54, %55 in 3 : vector<2x5x5x96xf32>, vector<2x5x5x54xf32> -> vector<2x5x5x150xf32>
    %57 = vector.shape_cast %56 : vector<2x5x5x150xf32> to vector<50x150xf32>
    %58 = arith.truncf %57 : vector<50x150xf32> to vector<50x150xbf16>
    %cst_14 = arith.constant dense<0.000000e+00> : vector<50x16xf32>
    %59 = tpu.matmul %58, %1, %cst_14 {dimension_numbers = #tpu.dot_dimension_numbers<[1], [0], [0], [1], [0, 0, 1, 1], [], []>} : vector<50x150xbf16>, vector<150x16xbf16>, vector<50x16xf32> -> vector<50x16xf32>
    %60 = vector.extract_strided_slice %28 {offsets = [0, 0, 0, 6], sizes = [2, 5, 5, 6], strides = [1, 1, 1, 1]} : vector<2x7x7x24xf32> to vector<2x5x5x6xf32>
    %61 = vector.extract_strided_slice %28 {offsets = [0, 0, 1, 0], sizes = [2, 5, 5, 6], strides = [1, 1, 1, 1]} : vector<2x7x7x24xf32> to vector<2x5x5x6xf32>
    %62 = vector.extract_strided_slice %28 {offsets = [0, 0, 1, 6], sizes = [2, 5, 5, 6], strides = [1, 1, 1, 1]} : vector<2x7x7x24xf32> to vector<2x5x5x6xf32>
    %63 = vector.extract_strided_slice %28 {offsets = [0, 0, 2, 0], sizes = [2, 5, 5, 6], strides = [1, 1, 1, 1]} : vector<2x7x7x24xf32> to vector<2x5x5x6xf32>
    %64 = vector.extract_strided_slice %28 {offsets = [0, 0, 2, 6], sizes = [2, 5, 5, 6], strides = [1, 1, 1, 1]} : vector<2x7x7x24xf32> to vector<2x5x5x6xf32>
    %65 = vector.extract_strided_slice %28 {offsets = [0, 0, 0, 18], sizes = [2, 5, 5, 6], strides = [1, 1, 1, 1]} : vector<2x7x7x24xf32> to vector<2x5x5x6xf32>
    %66 = vector.extract_strided_slice %28 {offsets = [0, 0, 1, 12], sizes = [2, 5, 5, 6], strides = [1, 1, 1, 1]} : vector<2x7x7x24xf32> to vector<2x5x5x6xf32>
    %67 = vector.extract_strided_slice %28 {offsets = [0, 0, 1, 18], sizes = [2, 5, 5, 6], strides = [1, 1, 1, 1]} : vector<2x7x7x24xf32> to vector<2x5x5x6xf32>
    %68 = vector.extract_strided_slice %28 {offsets = [0, 0, 2, 12], sizes = [2, 5, 5, 6], strides = [1, 1, 1, 1]} : vector<2x7x7x24xf32> to vector<2x5x5x6xf32>
    %69 = vector.extract_strided_slice %28 {offsets = [0, 0, 2, 18], sizes = [2, 5, 5, 6], strides = [1, 1, 1, 1]} : vector<2x7x7x24xf32> to vector<2x5x5x6xf32>
    %70 = vector.extract_strided_slice %28 {offsets = [0, 1, 0, 6], sizes = [2, 5, 5, 6], strides = [1, 1, 1, 1]} : vector<2x7x7x24xf32> to vector<2x5x5x6xf32>
    %71 = vector.extract_strided_slice %28 {offsets = [0, 1, 1, 0], sizes = [2, 5, 5, 6], strides = [1, 1, 1, 1]} : vector<2x7x7x24xf32> to vector<2x5x5x6xf32>
    %72 = vector.extract_strided_slice %28 {offsets = [0, 1, 1, 6], sizes = [2, 5, 5, 6], strides = [1, 1, 1, 1]} : vector<2x7x7x24xf32> to vector<2x5x5x6xf32>
    %73 = vector.extract_strided_slice %28 {offsets = [0, 1, 2, 0], sizes = [2, 5, 5, 6], strides = [1, 1, 1, 1]} : vector<2x7x7x24xf32> to vector<2x5x5x6xf32>
    %74 = vector.extract_strided_slice %28 {offsets = [0, 1, 2, 6], sizes = [2, 5, 5, 6], strides = [1, 1, 1, 1]} : vector<2x7x7x24xf32> to vector<2x5x5x6xf32>
    %75 = vector.extract_strided_slice %28 {offsets = [0, 1, 0, 18], sizes = [2, 5, 5, 6], strides = [1, 1, 1, 1]} : vector<2x7x7x24xf32> to vector<2x5x5x6xf32>
    %76 = vector.extract_strided_slice %28 {offsets = [0, 1, 1, 12], sizes = [2, 5, 5, 6], strides = [1, 1, 1, 1]} : vector<2x7x7x24xf32> to vector<2x5x5x6xf32>
    %77 = vector.extract_strided_slice %28 {offsets = [0, 1, 1, 18], sizes = [2, 5, 5, 6], strides = [1, 1, 1, 1]} : vector<2x7x7x24xf32> to vector<2x5x5x6xf32>
    %78 = vector.extract_strided_slice %28 {offsets = [0, 1, 2, 12], sizes = [2, 5, 5, 6], strides = [1, 1, 1, 1]} : vector<2x7x7x24xf32> to vector<2x5x5x6xf32>
    %79 = vector.extract_strided_slice %28 {offsets = [0, 1, 2, 18], sizes = [2, 5, 5, 6], strides = [1, 1, 1, 1]} : vector<2x7x7x24xf32> to vector<2x5x5x6xf32>
    %80 = vector.extract_strided_slice %28 {offsets = [0, 2, 0, 6], sizes = [2, 5, 5, 6], strides = [1, 1, 1, 1]} : vector<2x7x7x24xf32> to vector<2x5x5x6xf32>
    %81 = vector.extract_strided_slice %28 {offsets = [0, 2, 1, 0], sizes = [2, 5, 5, 6], strides = [1, 1, 1, 1]} : vector<2x7x7x24xf32> to vector<2x5x5x6xf32>
    %82 = vector.extract_strided_slice %28 {offsets = [0, 2, 1, 6], sizes = [2, 5, 5, 6], strides = [1, 1, 1, 1]} : vector<2x7x7x24xf32> to vector<2x5x5x6xf32>
    %83 = vector.extract_strided_slice %28 {offsets = [0, 2, 2, 0], sizes = [2, 5, 5, 6], strides = [1, 1, 1, 1]} : vector<2x7x7x24xf32> to vector<2x5x5x6xf32>
    %84 = vector.extract_strided_slice %28 {offsets = [0, 2, 2, 6], sizes = [2, 5, 5, 6], strides = [1, 1, 1, 1]} : vector<2x7x7x24xf32> to vector<2x5x5x6xf32>
    %85 = tpu.concatenate %60, %61, %62, %63, %64, %65, %66, %67, %68, %69, %70, %71, %72, %73, %74, %75 in 3 : vector<2x5x5x6xf32>, vector<2x5x5x6xf32>, vector<2x5x5x6xf32>, vector<2x5x5x6xf32>, vector<2x5x5x6xf32>, vector<2x5x5x6xf32>, vector<2x5x5x6xf32>, vector<2x5x5x6xf32>, vector<2x5x5x6xf32>, vector<2x5x5x6xf32>, vector<2x5x5x6xf32>, vector<2x5x5x6xf32>, vector<2x5x5x6xf32>, vector<2x5x5x6xf32>, vector<2x5x5x6xf32>, vector<2x5x5x6xf32> -> vector<2x5x5x96xf32>
    %86 = tpu.concatenate %76, %77, %78, %79, %80, %81, %82, %83, %84 in 3 : vector<2x5x5x6xf32>, vector<2x5x5x6xf32>, vector<2x5x5x6xf32>, vector<2x5x5x6xf32>, vector<2x5x5x6xf32>, vector<2x5x5x6xf32>, vector<2x5x5x6xf32>, vector<2x5x5x6xf32>, vector<2x5x5x6xf32> -> vector<2x5x5x54xf32>
    %87 = tpu.concatenate %85, %86 in 3 : vector<2x5x5x96xf32>, vector<2x5x5x54xf32> -> vector<2x5x5x150xf32>
    %88 = vector.shape_cast %87 : vector<2x5x5x150xf32> to vector<50x150xf32>
    %89 = arith.truncf %88 : vector<50x150xf32> to vector<50x150xbf16>
    %cst_15 = arith.constant dense<0.000000e+00> : vector<50x16xf32>
    %90 = tpu.matmul %89, %1, %cst_15 {dimension_numbers = #tpu.dot_dimension_numbers<[1], [0], [0], [1], [0, 0, 1, 1], [], []>} : vector<50x150xbf16>, vector<150x16xbf16>, vector<50x16xf32> -> vector<50x16xf32>
    %91 = arith.maximumf %59, %90 : vector<50x16xf32>
    %92 = vector.extract_strided_slice %28 {offsets = [0, 0, 0, 12], sizes = [2, 5, 5, 6], strides = [1, 1, 1, 1]} : vector<2x7x7x24xf32> to vector<2x5x5x6xf32>
    %93 = vector.extract_strided_slice %28 {offsets = [0, 0, 0, 18], sizes = [2, 5, 5, 6], strides = [1, 1, 1, 1]} : vector<2x7x7x24xf32> to vector<2x5x5x6xf32>
    %94 = vector.extract_strided_slice %28 {offsets = [0, 0, 1, 12], sizes = [2, 5, 5, 6], strides = [1, 1, 1, 1]} : vector<2x7x7x24xf32> to vector<2x5x5x6xf32>
    %95 = vector.extract_strided_slice %28 {offsets = [0, 0, 1, 18], sizes = [2, 5, 5, 6], strides = [1, 1, 1, 1]} : vector<2x7x7x24xf32> to vector<2x5x5x6xf32>
    %96 = vector.extract_strided_slice %28 {offsets = [0, 0, 2, 12], sizes = [2, 5, 5, 6], strides = [1, 1, 1, 1]} : vector<2x7x7x24xf32> to vector<2x5x5x6xf32>
    %97 = vector.extract_strided_slice %28 {offsets = [0, 1, 0, 0], sizes = [2, 5, 5, 6], strides = [1, 1, 1, 1]} : vector<2x7x7x24xf32> to vector<2x5x5x6xf32>
    %98 = vector.extract_strided_slice %28 {offsets = [0, 1, 0, 6], sizes = [2, 5, 5, 6], strides = [1, 1, 1, 1]} : vector<2x7x7x24xf32> to vector<2x5x5x6xf32>
    %99 = vector.extract_strided_slice %28 {offsets = [0, 1, 1, 0], sizes = [2, 5, 5, 6], strides = [1, 1, 1, 1]} : vector<2x7x7x24xf32> to vector<2x5x5x6xf32>
    %100 = vector.extract_strided_slice %28 {offsets = [0, 1, 1, 6], sizes = [2, 5, 5, 6], strides = [1, 1, 1, 1]} : vector<2x7x7x24xf32> to vector<2x5x5x6xf32>
    %101 = vector.extract_strided_slice %28 {offsets = [0, 1, 2, 0], sizes = [2, 5, 5, 6], strides = [1, 1, 1, 1]} : vector<2x7x7x24xf32> to vector<2x5x5x6xf32>
    %102 = vector.extract_strided_slice %28 {offsets = [0, 1, 0, 12], sizes = [2, 5, 5, 6], strides = [1, 1, 1, 1]} : vector<2x7x7x24xf32> to vector<2x5x5x6xf32>
    %103 = vector.extract_strided_slice %28 {offsets = [0, 1, 0, 18], sizes = [2, 5, 5, 6], strides = [1, 1, 1, 1]} : vector<2x7x7x24xf32> to vector<2x5x5x6xf32>
    %104 = vector.extract_strided_slice %28 {offsets = [0, 1, 1, 12], sizes = [2, 5, 5, 6], strides = [1, 1, 1, 1]} : vector<2x7x7x24xf32> to vector<2x5x5x6xf32>
    %105 = vector.extract_strided_slice %28 {offsets = [0, 1, 1, 18], sizes = [2, 5, 5, 6], strides = [1, 1, 1, 1]} : vector<2x7x7x24xf32> to vector<2x5x5x6xf32>
    %106 = vector.extract_strided_slice %28 {offsets = [0, 1, 2, 12], sizes = [2, 5, 5, 6], strides = [1, 1, 1, 1]} : vector<2x7x7x24xf32> to vector<2x5x5x6xf32>
    %107 = vector.extract_strided_slice %28 {offsets = [0, 2, 0, 0], sizes = [2, 5, 5, 6], strides = [1, 1, 1, 1]} : vector<2x7x7x24xf32> to vector<2x5x5x6xf32>
    %108 = vector.extract_strided_slice %28 {offsets = [0, 2, 0, 6], sizes = [2, 5, 5, 6], strides = [1, 1, 1, 1]} : vector<2x7x7x24xf32> to vector<2x5x5x6xf32>
    %109 = vector.extract_strided_slice %28 {offsets = [0, 2, 1, 0], sizes = [2, 5, 5, 6], strides = [1, 1, 1, 1]} : vector<2x7x7x24xf32> to vector<2x5x5x6xf32>
    %110 = vector.extract_strided_slice %28 {offsets = [0, 2, 1, 6], sizes = [2, 5, 5, 6], strides = [1, 1, 1, 1]} : vector<2x7x7x24xf32> to vector<2x5x5x6xf32>
    %111 = vector.extract_strided_slice %28 {offsets = [0, 2, 2, 0], sizes = [2, 5, 5, 6], strides = [1, 1, 1, 1]} : vector<2x7x7x24xf32> to vector<2x5x5x6xf32>
    %112 = vector.extract_strided_slice %28 {offsets = [0, 2, 0, 12], sizes = [2, 5, 5, 6], strides = [1, 1, 1, 1]} : vector<2x7x7x24xf32> to vector<2x5x5x6xf32>
    %113 = vector.extract_strided_slice %28 {offsets = [0, 2, 0, 18], sizes = [2, 5, 5, 6], strides = [1, 1, 1, 1]} : vector<2x7x7x24xf32> to vector<2x5x5x6xf32>
    %114 = vector.extract_strided_slice %28 {offsets = [0, 2, 1, 12], sizes = [2, 5, 5, 6], strides = [1, 1, 1, 1]} : vector<2x7x7x24xf32> to vector<2x5x5x6xf32>
    %115 = vector.extract_strided_slice %28 {offsets = [0, 2, 1, 18], sizes = [2, 5, 5, 6], strides = [1, 1, 1, 1]} : vector<2x7x7x24xf32> to vector<2x5x5x6xf32>
    %116 = vector.extract_strided_slice %28 {offsets = [0, 2, 2, 12], sizes = [2, 5, 5, 6], strides = [1, 1, 1, 1]} : vector<2x7x7x24xf32> to vector<2x5x5x6xf32>
    %117 = tpu.concatenate %92, %93, %94, %95, %96, %97, %98, %99, %100, %101, %102, %103, %104, %105, %106, %107 in 3 : vector<2x5x5x6xf32>, vector<2x5x5x6xf32>, vector<2x5x5x6xf32>, vector<2x5x5x6xf32>, vector<2x5x5x6xf32>, vector<2x5x5x6xf32>, vector<2x5x5x6xf32>, vector<2x5x5x6xf32>, vector<2x5x5x6xf32>, vector<2x5x5x6xf32>, vector<2x5x5x6xf32>, vector<2x5x5x6xf32>, vector<2x5x5x6xf32>, vector<2x5x5x6xf32>, vector<2x5x5x6xf32>, vector<2x5x5x6xf32> -> vector<2x5x5x96xf32>
    %118 = tpu.concatenate %108, %109, %110, %111, %112, %113, %114, %115, %116 in 3 : vector<2x5x5x6xf32>, vector<2x5x5x6xf32>, vector<2x5x5x6xf32>, vector<2x5x5x6xf32>, vector<2x5x5x6xf32>, vector<2x5x5x6xf32>, vector<2x5x5x6xf32>, vector<2x5x5x6xf32>, vector<2x5x5x6xf32> -> vector<2x5x5x54xf32>
    %119 = tpu.concatenate %117, %118 in 3 : vector<2x5x5x96xf32>, vector<2x5x5x54xf32> -> vector<2x5x5x150xf32>
    %120 = vector.shape_cast %119 : vector<2x5x5x150xf32> to vector<50x150xf32>
    %121 = arith.truncf %120 : vector<50x150xf32> to vector<50x150xbf16>
    %cst_16 = arith.constant dense<0.000000e+00> : vector<50x16xf32>
    %122 = tpu.matmul %121, %1, %cst_16 {dimension_numbers = #tpu.dot_dimension_numbers<[1], [0], [0], [1], [0, 0, 1, 1], [], []>} : vector<50x150xbf16>, vector<150x16xbf16>, vector<50x16xf32> -> vector<50x16xf32>
    %123 = arith.maximumf %91, %122 : vector<50x16xf32>
    %124 = vector.extract_strided_slice %28 {offsets = [0, 0, 0, 18], sizes = [2, 5, 5, 6], strides = [1, 1, 1, 1]} : vector<2x7x7x24xf32> to vector<2x5x5x6xf32>
    %125 = vector.extract_strided_slice %28 {offsets = [0, 0, 1, 12], sizes = [2, 5, 5, 6], strides = [1, 1, 1, 1]} : vector<2x7x7x24xf32> to vector<2x5x5x6xf32>
    %126 = vector.extract_strided_slice %28 {offsets = [0, 0, 1, 18], sizes = [2, 5, 5, 6], strides = [1, 1, 1, 1]} : vector<2x7x7x24xf32> to vector<2x5x5x6xf32>
    %127 = vector.extract_strided_slice %28 {offsets = [0, 0, 2, 12], sizes = [2, 5, 5, 6], strides = [1, 1, 1, 1]} : vector<2x7x7x24xf32> to vector<2x5x5x6xf32>
    %128 = vector.extract_strided_slice %28 {offsets = [0, 0, 2, 18], sizes = [2, 5, 5, 6], strides = [1, 1, 1, 1]} : vector<2x7x7x24xf32> to vector<2x5x5x6xf32>
    %129 = vector.extract_strided_slice %28 {offsets = [0, 1, 0, 6], sizes = [2, 5, 5, 6], strides = [1, 1, 1, 1]} : vector<2x7x7x24xf32> to vector<2x5x5x6xf32>
    %130 = vector.extract_strided_slice %28 {offsets = [0, 1, 1, 0], sizes = [2, 5, 5, 6], strides = [1, 1, 1, 1]} : vector<2x7x7x24xf32> to vector<2x5x5x6xf32>
    %131 = vector.extract_strided_slice %28 {offsets = [0, 1, 1, 6], sizes = [2, 5, 5, 6], strides = [1, 1, 1, 1]} : vector<2x7x7x24xf32> to vector<2x5x5x6xf32>
    %132 = vector.extract_strided_slice %28 {offsets = [0, 1, 2, 0], sizes = [2, 5, 5, 6], strides = [1, 1, 1, 1]} : vector<2x7x7x24xf32> to vector<2x5x5x6xf32>
    %133 = vector.extract_strided_slice %28 {offsets = [0, 1, 2, 6], sizes = [2, 5, 5, 6], strides = [1, 1, 1, 1]} : vector<2x7x7x24xf32> to vector<2x5x5x6xf32>
    %134 = vector.extract_strided_slice %28 {offsets = [0, 1, 0, 18], sizes = [2, 5, 5, 6], strides = [1, 1, 1, 1]} : vector<2x7x7x24xf32> to vector<2x5x5x6xf32>
    %135 = vector.extract_strided_slice %28 {offsets = [0, 1, 1, 12], sizes = [2, 5, 5, 6], strides = [1, 1, 1, 1]} : vector<2x7x7x24xf32> to vector<2x5x5x6xf32>
    %136 = vector.extract_strided_slice %28 {offsets = [0, 1, 1, 18], sizes = [2, 5, 5, 6], strides = [1, 1, 1, 1]} : vector<2x7x7x24xf32> to vector<2x5x5x6xf32>
    %137 = vector.extract_strided_slice %28 {offsets = [0, 1, 2, 12], sizes = [2, 5, 5, 6], strides = [1, 1, 1, 1]} : vector<2x7x7x24xf32> to vector<2x5x5x6xf32>
    %138 = vector.extract_strided_slice %28 {offsets = [0, 1, 2, 18], sizes = [2, 5, 5, 6], strides = [1, 1, 1, 1]} : vector<2x7x7x24xf32> to vector<2x5x5x6xf32>
    %139 = vector.extract_strided_slice %28 {offsets = [0, 2, 0, 6], sizes = [2, 5, 5, 6], strides = [1, 1, 1, 1]} : vector<2x7x7x24xf32> to vector<2x5x5x6xf32>
    %140 = vector.extract_strided_slice %28 {offsets = [0, 2, 1, 0], sizes = [2, 5, 5, 6], strides = [1, 1, 1, 1]} : vector<2x7x7x24xf32> to vector<2x5x5x6xf32>
    %141 = vector.extract_strided_slice %28 {offsets = [0, 2, 1, 6], sizes = [2, 5, 5, 6], strides = [1, 1, 1, 1]} : vector<2x7x7x24xf32> to vector<2x5x5x6xf32>
    %142 = vector.extract_strided_slice %28 {offsets = [0, 2, 2, 0], sizes = [2, 5, 5, 6], strides = [1, 1, 1, 1]} : vector<2x7x7x24xf32> to vector<2x5x5x6xf32>
    %143 = vector.extract_strided_slice %28 {offsets = [0, 2, 2, 6], sizes = [2, 5, 5, 6], strides = [1, 1, 1, 1]} : vector<2x7x7x24xf32> to vector<2x5x5x6xf32>
    %144 = vector.extract_strided_slice %28 {offsets = [0, 2, 0, 18], sizes = [2, 5, 5, 6], strides = [1, 1, 1, 1]} : vector<2x7x7x24xf32> to vector<2x5x5x6xf32>
    %145 = vector.extract_strided_slice %28 {offsets = [0, 2, 1, 12], sizes = [2, 5, 5, 6], strides = [1, 1, 1, 1]} : vector<2x7x7x24xf32> to vector<2x5x5x6xf32>
    %146 = vector.extract_strided_slice %28 {offsets = [0, 2, 1, 18], sizes = [2, 5, 5, 6], strides = [1, 1, 1, 1]} : vector<2x7x7x24xf32> to vector<2x5x5x6xf32>
    %147 = vector.extract_strided_slice %28 {offsets = [0, 2, 2, 12], sizes = [2, 5, 5, 6], strides = [1, 1, 1, 1]} : vector<2x7x7x24xf32> to vector<2x5x5x6xf32>
    %148 = vector.extract_strided_slice %28 {offsets = [0, 2, 2, 18], sizes = [2, 5, 5, 6], strides = [1, 1, 1, 1]} : vector<2x7x7x24xf32> to vector<2x5x5x6xf32>
    %149 = tpu.concatenate %124, %125, %126, %127, %128, %129, %130, %131, %132, %133, %134, %135, %136, %137, %138, %139 in 3 : vector<2x5x5x6xf32>, vector<2x5x5x6xf32>, vector<2x5x5x6xf32>, vector<2x5x5x6xf32>, vector<2x5x5x6xf32>, vector<2x5x5x6xf32>, vector<2x5x5x6xf32>, vector<2x5x5x6xf32>, vector<2x5x5x6xf32>, vector<2x5x5x6xf32>, vector<2x5x5x6xf32>, vector<2x5x5x6xf32>, vector<2x5x5x6xf32>, vector<2x5x5x6xf32>, vector<2x5x5x6xf32>, vector<2x5x5x6xf32> -> vector<2x5x5x96xf32>
    %150 = tpu.concatenate %140, %141, %142, %143, %144, %145, %146, %147, %148 in 3 : vector<2x5x5x6xf32>, vector<2x5x5x6xf32>, vector<2x5x5x6xf32>, vector<2x5x5x6xf32>, vector<2x5x5x6xf32>, vector<2x5x5x6xf32>, vector<2x5x5x6xf32>, vector<2x5x5x6xf32>, vector<2x5x5x6xf32> -> vector<2x5x5x54xf32>
    %151 = tpu.concatenate %149, %150 in 3 : vector<2x5x5x96xf32>, vector<2x5x5x54xf32> -> vector<2x5x5x150xf32>
    %152 = vector.shape_cast %151 : vector<2x5x5x150xf32> to vector<50x150xf32>
    %153 = arith.truncf %152 : vector<50x150xf32> to vector<50x150xbf16>
    %cst_17 = arith.constant dense<0.000000e+00> : vector<50x16xf32>
    %154 = tpu.matmul %153, %1, %cst_17 {dimension_numbers = #tpu.dot_dimension_numbers<[1], [0], [0], [1], [0, 0, 1, 1], [], []>} : vector<50x150xbf16>, vector<150x16xbf16>, vector<50x16xf32> -> vector<50x16xf32>
    %155 = arith.maximumf %123, %154 : vector<50x16xf32>
    %156 = vector.broadcast %6 : vector<1x16xf32> to vector<50x16xf32>
    %157 = arith.addf %155, %156 : vector<50x16xf32>
    %cst_18 = arith.constant 0.000000e+00 : f32
    %158 = vector.broadcast %cst_18 : f32 to vector<50x16xf32>
    %159 = arith.maximumf %157, %158 : vector<50x16xf32>
    %160 = vector.shape_cast %159 : vector<50x16xf32> to vector<2x25x16xf32>
    %161 = vector.extract_strided_slice %160 {offsets = [0, 0, 0], sizes = [2, 1, 16], strides = [1, 1, 1]} : vector<2x25x16xf32> to vector<2x1x16xf32>
    %162 = vector.shape_cast %161 : vector<2x1x16xf32> to vector<2x16xf32>
    %163 = vector.extract_strided_slice %160 {offsets = [0, 1, 0], sizes = [2, 1, 16], strides = [1, 1, 1]} : vector<2x25x16xf32> to vector<2x1x16xf32>
    %164 = vector.shape_cast %163 : vector<2x1x16xf32> to vector<2x16xf32>
    %165 = vector.extract_strided_slice %160 {offsets = [0, 2, 0], sizes = [2, 1, 16], strides = [1, 1, 1]} : vector<2x25x16xf32> to vector<2x1x16xf32>
    %166 = vector.shape_cast %165 : vector<2x1x16xf32> to vector<2x16xf32>
    %167 = vector.extract_strided_slice %160 {offsets = [0, 3, 0], sizes = [2, 1, 16], strides = [1, 1, 1]} : vector<2x25x16xf32> to vector<2x1x16xf32>
    %168 = vector.shape_cast %167 : vector<2x1x16xf32> to vector<2x16xf32>
    %169 = vector.extract_strided_slice %160 {offsets = [0, 4, 0], sizes = [2, 1, 16], strides = [1, 1, 1]} : vector<2x25x16xf32> to vector<2x1x16xf32>
    %170 = vector.shape_cast %169 : vector<2x1x16xf32> to vector<2x16xf32>
    %171 = vector.extract_strided_slice %160 {offsets = [0, 5, 0], sizes = [2, 1, 16], strides = [1, 1, 1]} : vector<2x25x16xf32> to vector<2x1x16xf32>
    %172 = vector.shape_cast %171 : vector<2x1x16xf32> to vector<2x16xf32>
    %173 = vector.extract_strided_slice %160 {offsets = [0, 6, 0], sizes = [2, 1, 16], strides = [1, 1, 1]} : vector<2x25x16xf32> to vector<2x1x16xf32>
    %174 = vector.shape_cast %173 : vector<2x1x16xf32> to vector<2x16xf32>
    %175 = vector.extract_strided_slice %160 {offsets = [0, 7, 0], sizes = [2, 1, 16], strides = [1, 1, 1]} : vector<2x25x16xf32> to vector<2x1x16xf32>
    %176 = vector.shape_cast %175 : vector<2x1x16xf32> to vector<2x16xf32>
    %177 = vector.extract_strided_slice %160 {offsets = [0, 8, 0], sizes = [2, 1, 16], strides = [1, 1, 1]} : vector<2x25x16xf32> to vector<2x1x16xf32>
    %178 = vector.shape_cast %177 : vector<2x1x16xf32> to vector<2x16xf32>
    %179 = vector.extract_strided_slice %160 {offsets = [0, 9, 0], sizes = [2, 1, 16], strides = [1, 1, 1]} : vector<2x25x16xf32> to vector<2x1x16xf32>
    %180 = vector.shape_cast %179 : vector<2x1x16xf32> to vector<2x16xf32>
    %181 = vector.extract_strided_slice %160 {offsets = [0, 10, 0], sizes = [2, 1, 16], strides = [1, 1, 1]} : vector<2x25x16xf32> to vector<2x1x16xf32>
    %182 = vector.shape_cast %181 : vector<2x1x16xf32> to vector<2x16xf32>
    %183 = vector.extract_strided_slice %160 {offsets = [0, 11, 0], sizes = [2, 1, 16], strides = [1, 1, 1]} : vector<2x25x16xf32> to vector<2x1x16xf32>
    %184 = vector.shape_cast %183 : vector<2x1x16xf32> to vector<2x16xf32>
    %185 = vector.extract_strided_slice %160 {offsets = [0, 12, 0], sizes = [2, 1, 16], strides = [1, 1, 1]} : vector<2x25x16xf32> to vector<2x1x16xf32>
    %186 = vector.shape_cast %185 : vector<2x1x16xf32> to vector<2x16xf32>
    %187 = vector.extract_strided_slice %160 {offsets = [0, 13, 0], sizes = [2, 1, 16], strides = [1, 1, 1]} : vector<2x25x16xf32> to vector<2x1x16xf32>
    %188 = vector.shape_cast %187 : vector<2x1x16xf32> to vector<2x16xf32>
    %189 = vector.extract_strided_slice %160 {offsets = [0, 14, 0], sizes = [2, 1, 16], strides = [1, 1, 1]} : vector<2x25x16xf32> to vector<2x1x16xf32>
    %190 = vector.shape_cast %189 : vector<2x1x16xf32> to vector<2x16xf32>
    %191 = vector.extract_strided_slice %160 {offsets = [0, 15, 0], sizes = [2, 1, 16], strides = [1, 1, 1]} : vector<2x25x16xf32> to vector<2x1x16xf32>
    %192 = vector.shape_cast %191 : vector<2x1x16xf32> to vector<2x16xf32>
    %193 = vector.extract_strided_slice %160 {offsets = [0, 16, 0], sizes = [2, 1, 16], strides = [1, 1, 1]} : vector<2x25x16xf32> to vector<2x1x16xf32>
    %194 = vector.shape_cast %193 : vector<2x1x16xf32> to vector<2x16xf32>
    %195 = vector.extract_strided_slice %160 {offsets = [0, 17, 0], sizes = [2, 1, 16], strides = [1, 1, 1]} : vector<2x25x16xf32> to vector<2x1x16xf32>
    %196 = vector.shape_cast %195 : vector<2x1x16xf32> to vector<2x16xf32>
    %197 = vector.extract_strided_slice %160 {offsets = [0, 18, 0], sizes = [2, 1, 16], strides = [1, 1, 1]} : vector<2x25x16xf32> to vector<2x1x16xf32>
    %198 = vector.shape_cast %197 : vector<2x1x16xf32> to vector<2x16xf32>
    %199 = vector.extract_strided_slice %160 {offsets = [0, 19, 0], sizes = [2, 1, 16], strides = [1, 1, 1]} : vector<2x25x16xf32> to vector<2x1x16xf32>
    %200 = vector.shape_cast %199 : vector<2x1x16xf32> to vector<2x16xf32>
    %201 = vector.extract_strided_slice %160 {offsets = [0, 20, 0], sizes = [2, 1, 16], strides = [1, 1, 1]} : vector<2x25x16xf32> to vector<2x1x16xf32>
    %202 = vector.shape_cast %201 : vector<2x1x16xf32> to vector<2x16xf32>
    %203 = vector.extract_strided_slice %160 {offsets = [0, 21, 0], sizes = [2, 1, 16], strides = [1, 1, 1]} : vector<2x25x16xf32> to vector<2x1x16xf32>
    %204 = vector.shape_cast %203 : vector<2x1x16xf32> to vector<2x16xf32>
    %205 = vector.extract_strided_slice %160 {offsets = [0, 22, 0], sizes = [2, 1, 16], strides = [1, 1, 1]} : vector<2x25x16xf32> to vector<2x1x16xf32>
    %206 = vector.shape_cast %205 : vector<2x1x16xf32> to vector<2x16xf32>
    %207 = vector.extract_strided_slice %160 {offsets = [0, 23, 0], sizes = [2, 1, 16], strides = [1, 1, 1]} : vector<2x25x16xf32> to vector<2x1x16xf32>
    %208 = vector.shape_cast %207 : vector<2x1x16xf32> to vector<2x16xf32>
    %209 = vector.extract_strided_slice %160 {offsets = [0, 24, 0], sizes = [2, 1, 16], strides = [1, 1, 1]} : vector<2x25x16xf32> to vector<2x1x16xf32>
    %210 = vector.shape_cast %209 : vector<2x1x16xf32> to vector<2x16xf32>
    %211 = tpu.concatenate %162, %164, %166, %168, %170, %172, %174, %176, %178, %180, %182, %184, %186, %188, %190, %192 in 1 : vector<2x16xf32>, vector<2x16xf32>, vector<2x16xf32>, vector<2x16xf32>, vector<2x16xf32>, vector<2x16xf32>, vector<2x16xf32>, vector<2x16xf32>, vector<2x16xf32>, vector<2x16xf32>, vector<2x16xf32>, vector<2x16xf32>, vector<2x16xf32>, vector<2x16xf32>, vector<2x16xf32>, vector<2x16xf32> -> vector<2x256xf32>
    %212 = tpu.concatenate %194, %196, %198, %200, %202, %204, %206, %208, %210 in 1 : vector<2x16xf32>, vector<2x16xf32>, vector<2x16xf32>, vector<2x16xf32>, vector<2x16xf32>, vector<2x16xf32>, vector<2x16xf32>, vector<2x16xf32>, vector<2x16xf32> -> vector<2x144xf32>
    %213 = tpu.concatenate %211, %212 in 1 : vector<2x256xf32>, vector<2x144xf32> -> vector<2x400xf32>
    %214 = arith.truncf %213 : vector<2x400xf32> to vector<2x400xbf16>
    %cst_19 = arith.constant dense<0.000000e+00> : vector<2x120xf32>
    %215 = tpu.matmul %214, %2, %cst_19 {dimension_numbers = #tpu.dot_dimension_numbers<[1], [0], [0], [1], [0, 0, 1, 1], [], []>} : vector<2x400xbf16>, vector<400x120xbf16>, vector<2x120xf32> -> vector<2x120xf32>
    %216 = vector.broadcast %7 : vector<1x120xf32> to vector<2x120xf32>
    %217 = arith.addf %215, %216 : vector<2x120xf32>
    %cst_20 = arith.constant 0.000000e+00 : f32
    %218 = vector.broadcast %cst_20 : f32 to vector<2x120xf32>
    %219 = arith.maximumf %217, %218 : vector<2x120xf32>
    %220 = arith.truncf %219 : vector<2x120xf32> to vector<2x120xbf16>
    %cst_21 = arith.constant dense<0.000000e+00> : vector<2x84xf32>
    %221 = tpu.matmul %220, %3, %cst_21 {dimension_numbers = #tpu.dot_dimension_numbers<[1], [0], [0], [1], [0, 0, 1, 1], [], []>} : vector<2x120xbf16>, vector<120x84xbf16>, vector<2x84xf32> -> vector<2x84xf32>
    %222 = vector.broadcast %8 : vector<1x84xf32> to vector<2x84xf32>
    %223 = arith.addf %221, %222 : vector<2x84xf32>
    %cst_22 = arith.constant 0.000000e+00 : f32
    %224 = vector.broadcast %cst_22 : f32 to vector<2x84xf32>
    %225 = arith.maximumf %223, %224 : vector<2x84xf32>
    %226 = arith.truncf %225 : vector<2x84xf32> to vector<2x84xbf16>
    %cst_23 = arith.constant dense<0.000000e+00> : vector<2x128xf32>
    %227 = tpu.matmul %226, %4, %cst_23 {dimension_numbers = #tpu.dot_dimension_numbers<[1], [0], [0], [1], [0, 0, 1, 1], [], []>} : vector<2x84xbf16>, vector<84x128xbf16>, vector<2x128xf32> -> vector<2x128xf32>
    %228 = vector.broadcast %9 : vector<1x128xf32> to vector<2x128xf32>
    %229 = arith.addf %227, %228 : vector<2x128xf32>
    %c0_24 = arith.constant 0 : index
    %c0_25 = arith.constant 0 : index
    %230 = vector.load %arg4[%c0_24, %c0_25] : memref<2x128xf32, #tpu.memory_space<vmem>>, vector<2x128xf32>
    tpu.vector_store %arg4[%c0_24, %c0_25], %229 {strides = array<i32>} : memref<2x128xf32, #tpu.memory_space<vmem>>, vector<2x128xf32>,
    return
  }
  func.func @transform_0(%arg0: i32) -> (i32, i32) {
    %c0_i32 = arith.constant 0 : i32
    %c0_i32_0 = arith.constant 0 : i32
    return %arg0, %c0_i32 : i32, i32
  }
  func.func @transform_1(%arg0: i32) -> (i32, i32) {
    %c0_i32 = arith.constant 0 : i32
    %c0_i32_0 = arith.constant 0 : i32
    %c0_i32_1 = arith.constant 0 : i32
    return %c0_i32, %c0_i32_0 : i32, i32
  }
  func.func @transform_2(%arg0: i32) -> (i32, i32) {
    %c0_i32 = arith.constant 0 : i32
    %c0_i32_0 = arith.constant 0 : i32
    %c0_i32_1 = arith.constant 0 : i32
    return %c0_i32, %c0_i32_0 : i32, i32
  }
  func.func @transform_3(%arg0: i32) -> (i32, i32) {
    %c0_i32 = arith.constant 0 : i32
    %c0_i32_0 = arith.constant 0 : i32
    return %arg0, %c0_i32 : i32, i32
  }
}

</mosaic_0001>

<llo_original>
// kernel: net_forward.1
$region0: #{net_forward.1}
  #allocation0 [shape = 'u32[]', space=smem, size = 0x4, offset = 0x4, fixed_abs, tag = 'smem constant byte address 0x4 - core index']
  #allocation1 [shape = 'u32[144,128]{1,0:T(1,128)}', space=vmem, size = 0x12000, scoped, tag = 'internal scratch']
  %s0 = inlined_call_operand.vmem [shape: bf16[392,100], index: 0, kind: input, shape index: {}]
  %s1 = inlined_call_operand.vmem [shape: bf16[864,128], index: 1, kind: input, shape index: {}]
  %s2 = inlined_call_operand.vmem [shape: f32[8,128], index: 2, kind: input, shape index: {}]
  %s3 = inlined_call_operand.hbm [shape: f32[2,128], index: 3, kind: output, shape index: {}]
  %s4 = sld [smem:[#allocation0]]
  $region22: #{net_forward.1} parent=0
    _
  %s6 = ssub.s32 1, %s4
  %s7 = scalar_select 0, %s6, %s4
  $region1: #{net_forward.1} parent=0
    #allocation2 [shape = 'u8[1024]{0}', space=vmem, size = 0x400, scoped, tag = 'output window, operand 0, single buffered']
    #allocation3 [shape = 's32[1]{0}', space=sflag, size = 0x4, scoped, tag = 'scoped memory for net_forward.1']
    %8 = vsyncpa [#allocation3], 0
    // Predicated region
    $region2: #{net_forward.1} parent=1 // pred_check
      _
    $region3: #{net_forward.1} parent=1 // pred_check_branch
      %10 = sbr.rel (0) target = $region5
    $region4: #{net_forward.1} parent=1 // pred_region
      _
    $region5: #{net_forward.1} parent=1 // pred_fallthru
      _
    // Predicated region
    $region6: #{net_forward.1} parent=1 // pred_check
      _
    $region7: #{net_forward.1} parent=1 // pred_check_branch
      %12 = sbr.rel (0) target = $region9
    $region8: #{net_forward.1} parent=1 // pred_region
      _
    $region9: #{net_forward.1} parent=1 // pred_fallthru
      _
    // Predicated region
    $region10: #{net_forward.1} parent=1 // pred_check
      _
    $region11: #{net_forward.1} parent=1 // pred_check_branch
      %14 = sbr.rel (0) target = $region13
    $region12: #{net_forward.1} parent=1 // pred_region
      _
    $region13: #{net_forward.1} parent=1 // pred_fallthru
      _
    %v16 = vld [vmem:[%s1] sm:$0xf]
    %v17 = vld [vmem:[%s1 + $0x4] sm:$0xf]
    %v18 = vld [vmem:[%s1 + $0x8] sm:$0xf]
    %v19 = vld [vmem:[%s1 + $0xc] sm:$0xf]
    %v20 = vld [vmem:[%s1 + $0x10] sm:$0xf]
    %v21 = vld [vmem:[%s1 + $0x14] sm:$0xf]
    %v22 = vld [vmem:[%s1 + $0x18] sm:$0xf]
    %v23 = vld [vmem:[%s1 + $0x1c] sm:$0xf]
    %v24 = vld [vmem:[%s1 + $0x20] sm:$0xf]
    %v25 = vld [vmem:[%s1 + $0x24] sm:$0xf]
    %v26 = vld [vmem:[%s1 + $0x28] sm:$0xf]
    %v27 = vld [vmem:[%s1 + $0x2c] sm:$0xf]
    %v28 = vld [vmem:[%s1 + $0x30] sm:$0x3]
    %v29 = vld [vmem:[%s1 + $0x34] sm:$0xf]
    %v30 = vld [vmem:[%s1 + $0x38] sm:$0xf]
    %v31 = vld [vmem:[%s1 + $0x3c] sm:$0xf]
    %v32 = vld [vmem:[%s1 + $0x40] sm:$0xf]
    %v33 = vld [vmem:[%s1 + $0x44] sm:$0xf]
    %v34 = vld [vmem:[%s1 + $0x48] sm:$0xf]
    %v35 = vld [vmem:[%s1 + $0x4c] sm:$0xf]
    %v36 = vld [vmem:[%s1 + $0x50] sm:$0xf]
    %v37 = vld [vmem:[%s1 + $0x54] sm:$0xf]
    %v38 = vld [vmem:[%s1 + $0x58] sm:$0xf]
    %v39 = vld [vmem:[%s1 + $0x5c] sm:$0xf]
    %v40 = vld [vmem:[%s1 + $0x60] sm:$0xf]
    %v41 = vld [vmem:[%s1 + $0x64] sm:$0xf]
    %v42 = vld [vmem:[%s1 + $0x68] sm:$0xf]
    %v43 = vld [vmem:[%s1 + $0x6c] sm:$0xf]
    %v44 = vld [vmem:[%s1 + $0x70] sm:$0xf]
    %v45 = vld [vmem:[%s1 + $0x74] sm:$0xf]
    %v46 = vld [vmem:[%s1 + $0x78] sm:$0xf]
    %v47 = vld [vmem:[%s1 + $0x7c] sm:$0x7]
    %v48 = vld [vmem:[%s1 + $0x80] sm:$0xf]
    %v49 = vld [vmem:[%s1 + $0x84] sm:$0xf]
    %v50 = vld [vmem:[%s1 + $0x88] sm:$0xf]
    %v51 = vld [vmem:[%s1 + $0x8c] sm:$0xf]
    %v52 = vld [vmem:[%s1 + $0x90] sm:$0xf]
    %v53 = vld [vmem:[%s1 + $0x94] sm:$0xf]
    %v54 = vld [vmem:[%s1 + $0x98] sm:$0xf]
    %v55 = vld [vmem:[%s1 + $0x9c] sm:$0xf]
    %v56 = vld [vmem:[%s1 + $0xa0] sm:$0xf]
    %v57 = vld [vmem:[%s1 + $0xa4] sm:$0xf]
    %v58 = vld [vmem:[%s1 + $0xa8] sm:$0xf]
    %v59 = vld [vmem:[%s1 + $0xac] sm:$0xf]
    %v60 = vld [vmem:[%s1 + $0xb0] sm:$0xf]
    %v61 = vld [vmem:[%s1 + $0xb4] sm:$0xf]
    %v62 = vld [vmem:[%s1 + $0xb8] sm:$0xf]
    %v63 = vld [vmem:[%s1 + $0xbc] sm:$0xf]
    %v64 = vld [vmem:[%s1 + $0xc0] sm:$0xf]
    %v65 = vld [vmem:[%s1 + $0xc4] sm:$0xf]
    %v66 = vld [vmem:[%s1 + $0xc8] sm:$0xf]
    %v67 = vld [vmem:[%s1 + $0xcc] sm:$0xf]
    %v68 = vld [vmem:[%s1 + $0xd0] sm:$0xf]
    %v69 = vld [vmem:[%s1 + $0xd4] sm:$0xf]
    %v70 = vld [vmem:[%s1 + $0xd8] sm:$0xf]
    %v71 = vld [vmem:[%s1 + $0xdc] sm:$0xf]
    %v72 = vld [vmem:[%s1 + $0xe0] sm:$0xf]
    %v73 = vld [vmem:[%s1 + $0xe4] sm:$0xf]
    %v74 = vld [vmem:[%s1 + $0xe8] sm:$0xf]
    %v75 = vld [vmem:[%s1 + $0xec] sm:$0xf]
    %v76 = vld [vmem:[%s1 + $0xf0] sm:$0xf]
    %v77 = vld [vmem:[%s1 + $0xf4] sm:$0xf]
    %v78 = vld [vmem:[%s1 + $0xf8] sm:$0xf]
    %v79 = vld [vmem:[%s1 + $0xfc] sm:$0xf]
    %v80 = vld [vmem:[%s1 + $0x100] sm:$0xf]
    %v81 = vld [vmem:[%s1 + $0x104] sm:$0xf]
    %v82 = vld [vmem:[%s1 + $0x108] sm:$0xf]
    %v83 = vld [vmem:[%s1 + $0x10c] sm:$0xf]
    %v84 = vld [vmem:[%s1 + $0x110] sm:$0xf]
    %v85 = vld [vmem:[%s1 + $0x114] sm:$0xf]
    %v86 = vld [vmem:[%s1 + $0x118] sm:$0xf]
    %v87 = vld [vmem:[%s1 + $0x11c] sm:$0xf]
    %v88 = vld [vmem:[%s1 + $0x120] sm:$0xf]
    %v89 = vld [vmem:[%s1 + $0x124] sm:$0xf]
    %v90 = vld [vmem:[%s1 + $0x128] sm:$0xf]
    %v91 = vld [vmem:[%s1 + $0x12c] sm:$0xf]
    %v92 = vld [vmem:[%s1 + $0x130] sm:$0xf]
    %v93 = vld [vmem:[%s1 + $0x134] sm:$0xf]
    %v94 = vld [vmem:[%s1 + $0x138] sm:$0xf]
    %v95 = vld [vmem:[%s1 + $0x13c] sm:$0xf]
    %v96 = vld [vmem:[%s1 + $0x140] sm:$0xf]
    %v97 = vld [vmem:[%s1 + $0x144] sm:$0xf]
    %v98 = vld [vmem:[%s1 + $0x148] sm:$0xf]
    %v99 = vld [vmem:[%s1 + $0x14c] sm:$0xf]
    %v100 = vld [vmem:[%s1 + $0x150] sm:$0xf]
    %v101 = vld [vmem:[%s1 + $0x154] sm:$0xf]
    %v102 = vld [vmem:[%s1 + $0x158] sm:$0xf]
    %v103 = vld [vmem:[%s1 + $0x15c] sm:$0xf]
    %v104 = vld [vmem:[%s1 + $0x160] sm:$0xf]
    %v105 = vld [vmem:[%s1 + $0x164] sm:$0xf]
    %v106 = vld [vmem:[%s1 + $0x168] sm:$0xf]
    %v107 = vld [vmem:[%s1 + $0x16c] sm:$0xf]
    %v108 = vld [vmem:[%s1 + $0x170] sm:$0xf]
    %v109 = vld [vmem:[%s1 + $0x174] sm:$0xf]
    %v110 = vld [vmem:[%s1 + $0x178] sm:$0xf]
    %v111 = vld [vmem:[%s1 + $0x17c] sm:$0xf]
    %v112 = vld [vmem:[%s1 + $0x180] sm:$0xf]
    %v113 = vld [vmem:[%s1 + $0x184] sm:$0xf]
    %v114 = vld [vmem:[%s1 + $0x188] sm:$0xf]
    %v115 = vld [vmem:[%s1 + $0x18c] sm:$0xf]
    %v116 = vld [vmem:[%s1 + $0x190] sm:$0xf]
    %v117 = vld [vmem:[%s1 + $0x194] sm:$0xf]
    %v118 = vld [vmem:[%s1 + $0x198] sm:$0xf]
    %v119 = vld [vmem:[%s1 + $0x19c] sm:$0xf]
    %v120 = vld [vmem:[%s1 + $0x1a0] sm:$0xf]
    %v121 = vld [vmem:[%s1 + $0x1a4] sm:$0xf]
    %v122 = vld [vmem:[%s1 + $0x1a8] sm:$0xf]
    %v123 = vld [vmem:[%s1 + $0x1ac] sm:$0x3]
    %v124 = vld [vmem:[%s2] sm:$0x1]
    %v125 = vld [vmem:[%s2 + $0x1] sm:$0x1]
    %v126 = vld [vmem:[%s2 + $0x2] sm:$0x1]
    %v127 = vld [vmem:[%s2 + $0x3] sm:$0x1]
    %v128 = vld [vmem:[%s2 + $0x4] sm:$0x1]
    %v129 = vld [vmem:[%s0] sm:$0xf]
    %v130 = vld [vmem:[%s0 + $0x4] sm:$0xf]
    %v131 = vld [vmem:[%s0 + $0x8] sm:$0xf]
    %v132 = vld [vmem:[%s0 + $0xc] sm:$0xf]
    %v133 = vld [vmem:[%s0 + $0x10] sm:$0xf]
    %v134 = vld [vmem:[%s0 + $0x14] sm:$0xf]
    %v135 = vld [vmem:[%s0 + $0x18] sm:$0xf]
    %v136 = vld [vmem:[%s0 + $0x1c] sm:$0xf]
    %v137 = vld [vmem:[%s0 + $0x20] sm:$0xf]
    %v138 = vld [vmem:[%s0 + $0x24] sm:$0xf]
    %v139 = vld [vmem:[%s0 + $0x28] sm:$0xf]
    %v140 = vld [vmem:[%s0 + $0x2c] sm:$0xf]
    %v141 = vld [vmem:[%s0 + $0x30] sm:$0xf]
    %v142 = vld [vmem:[%s0 + $0x34] sm:$0xf]
    %v143 = vld [vmem:[%s0 + $0x38] sm:$0xf]
    %v144 = vld [vmem:[%s0 + $0x3c] sm:$0xf]
    %v145 = vld [vmem:[%s0 + $0x40] sm:$0xf]
    %v146 = vld [vmem:[%s0 + $0x44] sm:$0xf]
    %v147 = vld [vmem:[%s0 + $0x48] sm:$0xf]
    %v148 = vld [vmem:[%s0 + $0x4c] sm:$0xf]
    %v149 = vld [vmem:[%s0 + $0x50] sm:$0xf]
    %v150 = vld [vmem:[%s0 + $0x54] sm:$0xf]
    %v151 = vld [vmem:[%s0 + $0x58] sm:$0xf]
    %v152 = vld [vmem:[%s0 + $0x5c] sm:$0xf]
    %v153 = vld [vmem:[%s0 + $0x60] sm:$0xf]
    %v154 = vld [vmem:[%s0 + $0x64] sm:$0xf]
    %v155 = vld [vmem:[%s0 + $0x68] sm:$0xf]
    %v156 = vld [vmem:[%s0 + $0x6c] sm:$0xf]
    %v157 = vld [vmem:[%s0 + $0x70] sm:$0xf]
    %v158 = vld [vmem:[%s0 + $0x74] sm:$0xf]
    %v159 = vld [vmem:[%s0 + $0x78] sm:$0xf]
    %v160 = vld [vmem:[%s0 + $0x7c] sm:$0xf]
    %v161 = vld [vmem:[%s0 + $0x80] sm:$0xf]
    %v162 = vld [vmem:[%s0 + $0x84] sm:$0xf]
    %v163 = vld [vmem:[%s0 + $0x88] sm:$0xf]
    %v164 = vld [vmem:[%s0 + $0x8c] sm:$0xf]
    %v165 = vld [vmem:[%s0 + $0x90] sm:$0xf]
    %v166 = vld [vmem:[%s0 + $0x94] sm:$0xf]
    %v167 = vld [vmem:[%s0 + $0x98] sm:$0xf]
    %v168 = vld [vmem:[%s0 + $0x9c] sm:$0xf]
    %v169 = vld [vmem:[%s0 + $0xa0] sm:$0xf]
    %v170 = vld [vmem:[%s0 + $0xa4] sm:$0xf]
    %v171 = vld [vmem:[%s0 + $0xa8] sm:$0xf]
    %v172 = vld [vmem:[%s0 + $0xac] sm:$0xf]
    %v173 = vld [vmem:[%s0 + $0xb0] sm:$0xf]
    %v174 = vld [vmem:[%s0 + $0xb4] sm:$0xf]
    %v175 = vld [vmem:[%s0 + $0xb8] sm:$0xf]
    %v176 = vld [vmem:[%s0 + $0xbc] sm:$0xf]
    %v177 = vld [vmem:[%s0 + $0xc0] sm:$0xf]
    %v227 = vunpack.c.l.b16 %v129
    %v228 = vunpack.c.l.b16 %v130
    %v229 = vunpack.c.l.b16 %v131
    %v230 = vunpack.c.l.b16 %v132
    %v231 = vunpack.c.l.b16 %v133
    %v232 = vunpack.c.l.b16 %v134
    %v233 = vunpack.c.l.b16 %v135
    %v234 = vunpack.c.l.b16 %v136
    %v235 = vunpack.c.l.b16 %v137
    %v236 = vunpack.c.l.b16 %v138
    %v237 = vunpack.c.l.b16 %v139
    %v238 = vunpack.c.l.b16 %v140
    %v239 = vunpack.c.l.b16 %v141
    %v240 = vunpack.c.l.b16 %v142
    %v241 = vunpack.c.l.b16 %v143
    %v242 = vunpack.c.l.b16 %v144
    %v243 = vunpack.c.l.b16 %v145
    %v244 = vunpack.c.l.b16 %v146
    %v245 = vunpack.c.l.b16 %v147
    %v246 = vunpack.c.l.b16 %v148
    %v247 = vunpack.c.l.b16 %v149
    %v248 = vunpack.c.l.b16 %v150
    %v249 = vunpack.c.l.b16 %v151
    %v250 = vunpack.c.l.b16 %v152
    %v251 = vunpack.c.l.b16 %v153
    %v252 = vunpack.c.l.b16 %v154
    %v253 = vunpack.c.l.b16 %v155
    %v254 = vunpack.c.l.b16 %v156
    %v255 = vunpack.c.l.b16 %v157
    %v256 = vunpack.c.l.b16 %v158
    %v257 = vunpack.c.l.b16 %v159
    %v258 = vunpack.c.l.b16 %v160
    %v259 = vunpack.c.l.b16 %v161
    %v260 = vunpack.c.l.b16 %v162
    %v261 = vunpack.c.l.b16 %v163
    %v262 = vunpack.c.l.b16 %v164
    %v263 = vunpack.c.l.b16 %v165
    %v264 = vunpack.c.l.b16 %v166
    %v265 = vunpack.c.l.b16 %v167
    %v266 = vunpack.c.l.b16 %v168
    %v267 = vunpack.c.l.b16 %v169
    %v268 = vunpack.c.l.b16 %v170
    %v269 = vunpack.c.l.b16 %v171
    %v270 = vunpack.c.l.b16 %v172
    %v271 = vunpack.c.l.b16 %v173
    %v272 = vunpack.c.l.b16 %v174
    %v273 = vunpack.c.l.b16 %v175
    %v274 = vunpack.c.l.b16 %v176
    %v275 = vunpack.c.l.b16 %v177
    %v276 = vpack.c.b16 %v228, %v227
    %v277 = vpack.c.b16 %v230, %v229
    %v278 = vpack.c.b16 %v232, %v231
    %v279 = vpack.c.b16 %v234, %v233
    %v280 = vpack.c.b16 %v236, %v235
    %v281 = vpack.c.b16 %v238, %v237
    %v282 = vpack.c.b16 %v240, %v239
    %v283 = vpack.c.b16 %v242, %v241
    %v284 = vpack.c.b16 %v244, %v243
    %v285 = vpack.c.b16 %v246, %v245
    %v286 = vpack.c.b16 %v248, %v247
    %v287 = vpack.c.b16 %v250, %v249
    %v288 = vpack.c.b16 %v252, %v251
    %v289 = vpack.c.b16 %v254, %v253
    %v290 = vpack.c.b16 %v256, %v255
    %v291 = vpack.c.b16 %v258, %v257
    %v292 = vpack.c.b16 %v260, %v259
    %v293 = vpack.c.b16 %v262, %v261
    %v294 = vpack.c.b16 %v264, %v263
    %v295 = vpack.c.b16 %v266, %v265
    %v296 = vpack.c.b16 %v268, %v267
    %v297 = vpack.c.b16 %v270, %v269
    %v298 = vpack.c.b16 %v272, %v271
    %v299 = vpack.c.b16 %v274, %v273
    %v300 = vpack.c.b16 %v275, %v275
    %v314 = vunpack.c.l.b16 %v16
    %v315 = vunpack.c.l.b16 %v17
    %v316 = vunpack.c.l.b16 %v18
    %v317 = vunpack.c.l.b16 %v19
    %v318 = vunpack.c.l.b16 %v20
    %v319 = vunpack.c.l.b16 %v21
    %v320 = vunpack.c.l.b16 %v22
    %v321 = vunpack.c.l.b16 %v23
    %v322 = vunpack.c.l.b16 %v24
    %v323 = vunpack.c.l.b16 %v25
    %v324 = vunpack.c.l.b16 %v26
    %v325 = vunpack.c.l.b16 %v27
    %v326 = vunpack.c.l.b16 %v28
    %v327 = vpack.c.b16 %v315, %v314
    %v328 = vpack.c.b16 %v317, %v316
    %v329 = vpack.c.b16 %v319, %v318
    %v330 = vpack.c.b16 %v321, %v320
    %v331 = vpack.c.b16 %v323, %v322
    %v332 = vpack.c.b16 %v325, %v324
    %v333 = vpack.c.b16 %v326, %v326
    %vm340 = vcmask 818176
    %v342 = vsel %vm340, %v276, 0
    %v345 = vsel %vm340, %v277, 0
    %v348 = vsel %vm340, %v278, 0
    %v351 = vsel %vm340, %v279, 0
    %v354 = vsel %vm340, %v280, 0
    %v357 = vsel %vm340, %v281, 0
    %v360 = vsel %vm340, %v282, 0
    %v363 = vsel %vm340, %v283, 0
    %v366 = vsel %vm340, %v284, 0
    %v369 = vsel %vm340, %v285, 0
    %v372 = vsel %vm340, %v286, 0
    %v375 = vsel %vm340, %v287, 0
    %v378 = vsel %vm340, %v288, 0
    %v381 = vsel %vm340, %v289, 0
    %v384 = vsel %vm340, %v290, 0
    %v387 = vsel %vm340, %v291, 0
    %v390 = vsel %vm340, %v292, 0
    %v393 = vsel %vm340, %v293, 0
    %v396 = vsel %vm340, %v294, 0
    %v399 = vsel %vm340, %v295, 0
    %v402 = vsel %vm340, %v296, 0
    %v405 = vsel %vm340, %v297, 0
    %v408 = vsel %vm340, %v298, 0
    %v411 = vsel %vm340, %v299, 0
    %v414 = vsel %vm340, %v300, 0
    %vm416 = vcmask 1041408
    %v418 = vsel %vm416, %v333, 0
    %420 = vmatprep.subr.bf16.mxu0 0
    %421 = vmatpush1.bf16.msra.mxu0 %v327
    %422 = vmatprep.subr.bf16.mxu0 0
    %423 = vmatpush1.bf16.msra.mxu0 %v328
    %424 = vmatprep.subr.bf16.mxu0 0
    %425 = vmatpush1.bf16.msra.mxu0 %v329
    %426 = vmatprep.subr.bf16.mxu0 0
    %427 = vmatpush1.bf16.msra.mxu0 %v330
    %428 = vmatprep.subr.bf16.mxu0 0
    %429 = vmatpush1.bf16.msra.mxu0 %v331
    %430 = vmatprep.subr.bf16.mxu0 0
    %431 = vmatpush1.bf16.msra.mxu0 %v332
    %432 = vmatprep.subr.bf16.mxu0 0
    %433 = vmatpush1.bf16.msra.mxu0 %v418
    %434 = vmatprep.subr.bf16.mxu0 0
    %435 = vmatpush1.bf16.msra.mxu0 0
    %436 = vmatprep.subr.bf16.mxu0 0
    %437 = vmatpush1.bf16.msra.mxu0 0
    %438 = vmatprep.subr.bf16.mxu0 0
    %439 = vmatpush1.bf16.msra.mxu0 0
    %440 = vmatprep.subr.bf16.mxu0 0
    %441 = vmatpush1.bf16.msra.mxu0 0
    %442 = vmatprep.subr.bf16.mxu0 0
    %443 = vmatpush1.bf16.msra.mxu0 0
    %444 = vmatprep.subr.bf16.mxu0 0
    %445 = vmatpush1.bf16.msra.mxu0 0
    %446 = vmatprep.subr.bf16.mxu0 0
    %447 = vmatpush1.bf16.msra.mxu0 0
    %448 = vmatprep.subr.bf16.mxu0 0
    %449 = vmatpush1.bf16.msra.mxu0 0
    %450 = vmatprep.subr.bf16.mxu0 0
    %451 = vmatpush1.bf16.msra.mxu0 0
    %452 = vmatprep.mubr.bf16.mxu0 0
    %453 = vmatmul.mubr.bf16.gmra.mrb[0].mxu0 %v342
    %v454 = vpop.f32.mrb[0].mxu0
    %v455 = vadd.f32 0.0, %v454
    %v456 = vpop.f32.mrb[0].mxu0
    %v457 = vpop.f32.mrb[0].mxu0
    %v458 = vadd.f32 0.0, %v457
    %v459 = vpop.f32.mrb[0].mxu0
    %460 = vmatprep.mubr.bf16.mxu0 0
    %461 = vmatmul.mubr.bf16.gmra.mrb[0].mxu0 %v345
    %v462 = vpop.f32.mrb[0].mxu0
    %v463 = vadd.f32 0.0, %v462
    %v464 = vpop.f32.mrb[0].mxu0
    %v465 = vpop.f32.mrb[0].mxu0
    %v466 = vadd.f32 0.0, %v465
    %v467 = vpop.f32.mrb[0].mxu0
    %468 = vmatprep.mubr.bf16.mxu0 0
    %469 = vmatmul.mubr.bf16.gmra.mrb[0].mxu0 %v348
    %v470 = vpop.f32.mrb[0].mxu0
    %v471 = vadd.f32 0.0, %v470
    %v472 = vpop.f32.mrb[0].mxu0
    %v473 = vpop.f32.mrb[0].mxu0
    %v474 = vadd.f32 0.0, %v473
    %v475 = vpop.f32.mrb[0].mxu0
    %476 = vmatprep.mubr.bf16.mxu0 0
    %477 = vmatmul.mubr.bf16.gmra.mrb[0].mxu0 %v351
    %v478 = vpop.f32.mrb[0].mxu0
    %v479 = vadd.f32 0.0, %v478
    %v480 = vpop.f32.mrb[0].mxu0
    %v481 = vpop.f32.mrb[0].mxu0
    %v482 = vadd.f32 0.0, %v481
    %v483 = vpop.f32.mrb[0].mxu0
    %484 = vmatprep.mubr.bf16.mxu0 0
    %485 = vmatmul.mubr.bf16.gmra.mrb[0].mxu0 %v354
    %v486 = vpop.f32.mrb[0].mxu0
    %v487 = vadd.f32 0.0, %v486
    %v488 = vpop.f32.mrb[0].mxu0
    %v489 = vpop.f32.mrb[0].mxu0
    %v490 = vadd.f32 0.0, %v489
    %v491 = vpop.f32.mrb[0].mxu0
    %492 = vmatprep.mubr.bf16.mxu0 0
    %493 = vmatmul.mubr.bf16.gmra.mrb[0].mxu0 %v357
    %v494 = vpop.f32.mrb[0].mxu0
    %v495 = vadd.f32 0.0, %v494
    %v496 = vpop.f32.mrb[0].mxu0
    %v497 = vpop.f32.mrb[0].mxu0
    %v498 = vadd.f32 0.0, %v497
    %v499 = vpop.f32.mrb[0].mxu0
    %500 = vmatprep.mubr.bf16.mxu0 0
    %501 = vmatmul.mubr.bf16.gmra.mrb[0].mxu0 %v360
    %v502 = vpop.f32.mrb[0].mxu0
    %v503 = vadd.f32 0.0, %v502
    %v504 = vpop.f32.mrb[0].mxu0
    %v505 = vpop.f32.mrb[0].mxu0
    %v506 = vadd.f32 0.0, %v505
    %v507 = vpop.f32.mrb[0].mxu0
    %508 = vmatprep.mubr.bf16.mxu0 0
    %509 = vmatmul.mubr.bf16.gmra.mrb[0].mxu0 %v363
    %v510 = vpop.f32.mrb[0].mxu0
    %v511 = vadd.f32 0.0, %v510
    %v512 = vpop.f32.mrb[0].mxu0
    %v513 = vpop.f32.mrb[0].mxu0
    %v514 = vadd.f32 0.0, %v513
    %v515 = vpop.f32.mrb[0].mxu0
    %516 = vmatprep.mubr.bf16.mxu0 0
    %517 = vmatmul.mubr.bf16.gmra.mrb[0].mxu0 %v366
    %v518 = vpop.f32.mrb[0].mxu0
    %v519 = vadd.f32 0.0, %v518
    %v520 = vpop.f32.mrb[0].mxu0
    %v521 = vpop.f32.mrb[0].mxu0
    %v522 = vadd.f32 0.0, %v521
    %v523 = vpop.f32.mrb[0].mxu0
    %524 = vmatprep.mubr.bf16.mxu0 0
    %525 = vmatmul.mubr.bf16.gmra.mrb[0].mxu0 %v369
    %v526 = vpop.f32.mrb[0].mxu0
    %v527 = vadd.f32 0.0, %v526
    %v528 = vpop.f32.mrb[0].mxu0
    %v529 = vpop.f32.mrb[0].mxu0
    %v530 = vadd.f32 0.0, %v529
    %v531 = vpop.f32.mrb[0].mxu0
    %532 = vmatprep.mubr.bf16.mxu0 0
    %533 = vmatmul.mubr.bf16.gmra.mrb[0].mxu0 %v372
    %v534 = vpop.f32.mrb[0].mxu0
    %v535 = vadd.f32 0.0, %v534
    %v536 = vpop.f32.mrb[0].mxu0
    %v537 = vpop.f32.mrb[0].mxu0
    %v538 = vadd.f32 0.0, %v537
    %v539 = vpop.f32.mrb[0].mxu0
    %540 = vmatprep.mubr.bf16.mxu0 0
    %541 = vmatmul.mubr.bf16.gmra.mrb[0].mxu0 %v375
    %v542 = vpop.f32.mrb[0].mxu0
    %v543 = vadd.f32 0.0, %v542
    %v544 = vpop.f32.mrb[0].mxu0
    %v545 = vpop.f32.mrb[0].mxu0
    %v546 = vadd.f32 0.0, %v545
    %v547 = vpop.f32.mrb[0].mxu0
    %548 = vmatprep.mubr.bf16.mxu0 0
    %549 = vmatmul.mubr.bf16.gmra.mrb[0].mxu0 %v378
    %v550 = vpop.f32.mrb[0].mxu0
    %v551 = vadd.f32 0.0, %v550
    %v552 = vpop.f32.mrb[0].mxu0
    %v553 = vpop.f32.mrb[0].mxu0
    %v554 = vadd.f32 0.0, %v553
    %v555 = vpop.f32.mrb[0].mxu0
    %556 = vmatprep.mubr.bf16.mxu0 0
    %557 = vmatmul.mubr.bf16.gmra.mrb[0].mxu0 %v381
    %v558 = vpop.f32.mrb[0].mxu0
    %v559 = vadd.f32 0.0, %v558
    %v560 = vpop.f32.mrb[0].mxu0
    %v561 = vpop.f32.mrb[0].mxu0
    %v562 = vadd.f32 0.0, %v561
    %v563 = vpop.f32.mrb[0].mxu0
    %564 = vmatprep.mubr.bf16.mxu0 0
    %565 = vmatmul.mubr.bf16.gmra.mrb[0].mxu0 %v384
    %v566 = vpop.f32.mrb[0].mxu0
    %v567 = vadd.f32 0.0, %v566
    %v568 = vpop.f32.mrb[0].mxu0
    %v569 = vpop.f32.mrb[0].mxu0
    %v570 = vadd.f32 0.0, %v569
    %v571 = vpop.f32.mrb[0].mxu0
    %572 = vmatprep.mubr.bf16.mxu0 0
    %573 = vmatmul.mubr.bf16.gmra.mrb[0].mxu0 %v387
    %v574 = vpop.f32.mrb[0].mxu0
    %v575 = vadd.f32 0.0, %v574
    %v576 = vpop.f32.mrb[0].mxu0
    %v577 = vpop.f32.mrb[0].mxu0
    %v578 = vadd.f32 0.0, %v577
    %v579 = vpop.f32.mrb[0].mxu0
    %580 = vmatprep.mubr.bf16.mxu0 0
    %581 = vmatmul.mubr.bf16.gmra.mrb[0].mxu0 %v390
    %v582 = vpop.f32.mrb[0].mxu0
    %v583 = vadd.f32 0.0, %v582
    %v584 = vpop.f32.mrb[0].mxu0
    %v585 = vpop.f32.mrb[0].mxu0
    %v586 = vadd.f32 0.0, %v585
    %v587 = vpop.f32.mrb[0].mxu0
    %588 = vmatprep.mubr.bf16.mxu0 0
    %589 = vmatmul.mubr.bf16.gmra.mrb[0].mxu0 %v393
    %v590 = vpop.f32.mrb[0].mxu0
    %v591 = vadd.f32 0.0, %v590
    %v592 = vpop.f32.mrb[0].mxu0
    %v593 = vpop.f32.mrb[0].mxu0
    %v594 = vadd.f32 0.0, %v593
    %v595 = vpop.f32.mrb[0].mxu0
    %596 = vmatprep.mubr.bf16.mxu0 0
    %597 = vmatmul.mubr.bf16.gmra.mrb[0].mxu0 %v396
    %v598 = vpop.f32.mrb[0].mxu0
    %v599 = vadd.f32 0.0, %v598
    %v600 = vpop.f32.mrb[0].mxu0
    %v601 = vpop.f32.mrb[0].mxu0
    %v602 = vadd.f32 0.0, %v601
    %v603 = vpop.f32.mrb[0].mxu0
    %604 = vmatprep.mubr.bf16.mxu0 0
    %605 = vmatmul.mubr.bf16.gmra.mrb[0].mxu0 %v399
    %v606 = vpop.f32.mrb[0].mxu0
    %v607 = vadd.f32 0.0, %v606
    %v608 = vpop.f32.mrb[0].mxu0
    %v609 = vpop.f32.mrb[0].mxu0
    %v610 = vadd.f32 0.0, %v609
    %v611 = vpop.f32.mrb[0].mxu0
    %612 = vmatprep.mubr.bf16.mxu0 0
    %613 = vmatmul.mubr.bf16.gmra.mrb[0].mxu0 %v402
    %v614 = vpop.f32.mrb[0].mxu0
    %v615 = vadd.f32 0.0, %v614
    %v616 = vpop.f32.mrb[0].mxu0
    %v617 = vpop.f32.mrb[0].mxu0
    %v618 = vadd.f32 0.0, %v617
    %v619 = vpop.f32.mrb[0].mxu0
    %620 = vmatprep.mubr.bf16.mxu0 0
    %621 = vmatmul.mubr.bf16.gmra.mrb[0].mxu0 %v405
    %v622 = vpop.f32.mrb[0].mxu0
    %v623 = vadd.f32 0.0, %v622
    %v624 = vpop.f32.mrb[0].mxu0
    %v625 = vpop.f32.mrb[0].mxu0
    %v626 = vadd.f32 0.0, %v625
    %v627 = vpop.f32.mrb[0].mxu0
    %628 = vmatprep.mubr.bf16.mxu0 0
    %629 = vmatmul.mubr.bf16.gmra.mrb[0].mxu0 %v408
    %v630 = vpop.f32.mrb[0].mxu0
    %v631 = vadd.f32 0.0, %v630
    %v632 = vpop.f32.mrb[0].mxu0
    %v633 = vpop.f32.mrb[0].mxu0
    %v634 = vadd.f32 0.0, %v633
    %v635 = vpop.f32.mrb[0].mxu0
    %636 = vmatprep.mubr.bf16.mxu0 0
    %637 = vmatmul.mubr.bf16.gmra.mrb[0].mxu0 %v411
    %v638 = vpop.f32.mrb[0].mxu0
    %v639 = vadd.f32 0.0, %v638
    %v640 = vpop.f32.mrb[0].mxu0
    %v641 = vpop.f32.mrb[0].mxu0
    %v642 = vadd.f32 0.0, %v641
    %v643 = vpop.f32.mrb[0].mxu0
    %644 = vmatprep.mubr.bf16.mxu0 0
    %645 = vmatmul.mubr.bf16.gmra.mrb[0].mxu0 %v414
    %v646 = vpop.f32.mrb[0].mxu0
    %v647 = vadd.f32 0.0, %v646
    %v648 = vpop.f32.mrb[0].mxu0
    %v649 = vpop.f32.mrb[0].mxu0
    %v650 = vpop.f32.mrb[0].mxu0
    %651 = vdwg.mxu0
    %v701 = vcombine.high %v455, %v455
    %v703 = vunpack.c.l.s4 1966171168
    %v704 = vunpack.c.0.s8 %v703
    %v705 = vlaneseq
    %v706 = vshrl.u32 %v705, 7
    %v707 = vsub.s32 %v704, %v706
    %v708 = vrot.slane %v455, %v707
    %v710 = vunpack.c.l.s4 1966171168
    %v711 = vunpack.c.0.s8 %v710
    %v712 = vlaneseq
    %v713 = vshrl.u32 %v712, 7
    %v714 = vsub.s32 %v711, %v713
    %v715 = vrot.slane %v701, %v714
    %v716 = vcombine.high %v708, %v708
    %v717 = vcombine.high %v715, %v715
    %v719 = vunpack.c.l.s4 1966171168
    %v720 = vunpack.c.0.s8 %v719
    %v721 = vlaneseq
    %v722 = vshrl.u32 %v721, 7
    %v723 = vsub.s32 %v720, %v722
    %v724 = vrot.slane %v708, %v723
    %v726 = vunpack.c.l.s4 1966171168
    %v727 = vunpack.c.0.s8 %v726
    %v728 = vlaneseq
    %v729 = vshrl.u32 %v728, 7
    %v730 = vsub.s32 %v727, %v729
    %v731 = vrot.slane %v715, %v730
    %v733 = vunpack.c.l.s4 1966171168
    %v734 = vunpack.c.0.s8 %v733
    %v735 = vlaneseq
    %v736 = vshrl.u32 %v735, 7
    %v737 = vsub.s32 %v734, %v736
    %v738 = vrot.slane %v716, %v737
    %v740 = vunpack.c.l.s4 1966171168
    %v741 = vunpack.c.0.s8 %v740
    %v742 = vlaneseq
    %v743 = vshrl.u32 %v742, 7
    %v744 = vsub.s32 %v741, %v743
    %v745 = vrot.slane %v717, %v744
    %v746 = vcombine.high %v724, %v724
    %v747 = vcombine.high %v731, %v731
    %v748 = vcombine.high %v738, %v738
    %v749 = vcombine.high %v745, %v745
    %v750 = vcombine.high %v458, %v458
    %v752 = vunpack.c.l.s4 1966171168
    %v753 = vunpack.c.0.s8 %v752
    %v754 = vlaneseq
    %v755 = vshrl.u32 %v754, 7
    %v756 = vsub.s32 %v753, %v755
    %v757 = vrot.slane %v458, %v756
    %v759 = vunpack.c.l.s4 1966171168
    %v760 = vunpack.c.0.s8 %v759
    %v761 = vlaneseq
    %v762 = vshrl.u32 %v761, 7
    %v763 = vsub.s32 %v760, %v762
    %v764 = vrot.slane %v750, %v763
    %v765 = vcombine.high %v757, %v757
    %v766 = vcombine.high %v764, %v764
    %v768 = vunpack.c.l.s4 1966171168
    %v769 = vunpack.c.0.s8 %v768
    %v770 = vlaneseq
    %v771 = vshrl.u32 %v770, 7
    %v772 = vsub.s32 %v769, %v771
    %v773 = vrot.slane %v757, %v772
    %v775 = vunpack.c.l.s4 1966171168
    %v776 = vunpack.c.0.s8 %v775
    %v777 = vlaneseq
    %v778 = vshrl.u32 %v777, 7
    %v779 = vsub.s32 %v776, %v778
    %v780 = vrot.slane %v764, %v779
    %v782 = vunpack.c.l.s4 1966171168
    %v783 = vunpack.c.0.s8 %v782
    %v784 = vlaneseq
    %v785 = vshrl.u32 %v784, 7
    %v786 = vsub.s32 %v783, %v785
    %v787 = vrot.slane %v765, %v786
    %v789 = vunpack.c.l.s4 1966171168
    %v790 = vunpack.c.0.s8 %v789
    %v791 = vlaneseq
    %v792 = vshrl.u32 %v791, 7
    %v793 = vsub.s32 %v790, %v792
    %v794 = vrot.slane %v766, %v793
    %v795 = vcombine.high %v773, %v773
    %v796 = vcombine.high %v780, %v780
    %v797 = vcombine.high %v787, %v787
    %v798 = vcombine.high %v794, %v794
    %v799 = vcombine.high %v463, %v463
    %v801 = vunpack.c.l.s4 1966171168
    %v802 = vunpack.c.0.s8 %v801
    %v803 = vlaneseq
    %v804 = vshrl.u32 %v803, 7
    %v805 = vsub.s32 %v802, %v804
    %v806 = vrot.slane %v463, %v805
    %v808 = vunpack.c.l.s4 1966171168
    %v809 = vunpack.c.0.s8 %v808
    %v810 = vlaneseq
    %v811 = vshrl.u32 %v810, 7
    %v812 = vsub.s32 %v809, %v811
    %v813 = vrot.slane %v799, %v812
    %v814 = vcombine.high %v806, %v806
    %v815 = vcombine.high %v813, %v813
    %v817 = vunpack.c.l.s4 1966171168
    %v818 = vunpack.c.0.s8 %v817
    %v819 = vlaneseq
    %v820 = vshrl.u32 %v819, 7
    %v821 = vsub.s32 %v818, %v820
    %v822 = vrot.slane %v806, %v821
    %v824 = vunpack.c.l.s4 1966171168
    %v825 = vunpack.c.0.s8 %v824
    %v826 = vlaneseq
    %v827 = vshrl.u32 %v826, 7
    %v828 = vsub.s32 %v825, %v827
    %v829 = vrot.slane %v813, %v828
    %v831 = vunpack.c.l.s4 1966171168
    %v832 = vunpack.c.0.s8 %v831
    %v833 = vlaneseq
    %v834 = vshrl.u32 %v833, 7
    %v835 = vsub.s32 %v832, %v834
    %v836 = vrot.slane %v814, %v835
    %v838 = vunpack.c.l.s4 1966171168
    %v839 = vunpack.c.0.s8 %v838
    %v840 = vlaneseq
    %v841 = vshrl.u32 %v840, 7
    %v842 = vsub.s32 %v839, %v841
    %v843 = vrot.slane %v815, %v842
    %v844 = vcombine.high %v822, %v822
    %v845 = vcombine.high %v829, %v829
    %v846 = vcombine.high %v836, %v836
    %v847 = vcombine.high %v843, %v843
    %v848 = vcombine.high %v466, %v466
    %v850 = vunpack.c.l.s4 1966171168
    %v851 = vunpack.c.0.s8 %v850
    %v852 = vlaneseq
    %v853 = vshrl.u32 %v852, 7
    %v854 = vsub.s32 %v851, %v853
    %v855 = vrot.slane %v466, %v854
    %v857 = vunpack.c.l.s4 1966171168
    %v858 = vunpack.c.0.s8 %v857
    %v859 = vlaneseq
    %v860 = vshrl.u32 %v859, 7
    %v861 = vsub.s32 %v858, %v860
    %v862 = vrot.slane %v848, %v861
    %v863 = vcombine.high %v855, %v855
    %v864 = vcombine.high %v862, %v862
    %v866 = vunpack.c.l.s4 1966171168
    %v867 = vunpack.c.0.s8 %v866
    %v868 = vlaneseq
    %v869 = vshrl.u32 %v868, 7
    %v870 = vsub.s32 %v867, %v869
    %v871 = vrot.slane %v855, %v870
    %v873 = vunpack.c.l.s4 1966171168
    %v874 = vunpack.c.0.s8 %v873
    %v875 = vlaneseq
    %v876 = vshrl.u32 %v875, 7
    %v877 = vsub.s32 %v874, %v876
    %v878 = vrot.slane %v862, %v877
    %v880 = vunpack.c.l.s4 1966171168
    %v881 = vunpack.c.0.s8 %v880
    %v882 = vlaneseq
    %v883 = vshrl.u32 %v882, 7
    %v884 = vsub.s32 %v881, %v883
    %v885 = vrot.slane %v863, %v884
    %v887 = vunpack.c.l.s4 1966171168
    %v888 = vunpack.c.0.s8 %v887
    %v889 = vlaneseq
    %v890 = vshrl.u32 %v889, 7
    %v891 = vsub.s32 %v888, %v890
    %v892 = vrot.slane %v864, %v891
    %v893 = vcombine.high %v871, %v871
    %v894 = vcombine.high %v878, %v878
    %v895 = vcombine.high %v885, %v885
    %v896 = vcombine.high %v892, %v892
    %v897 = vcombine.high %v471, %v471
    %v899 = vunpack.c.l.s4 1966171168
    %v900 = vunpack.c.0.s8 %v899
    %v901 = vlaneseq
    %v902 = vshrl.u32 %v901, 7
    %v903 = vsub.s32 %v900, %v902
    %v904 = vrot.slane %v471, %v903
    %v906 = vunpack.c.l.s4 1966171168
    %v907 = vunpack.c.0.s8 %v906
    %v908 = vlaneseq
    %v909 = vshrl.u32 %v908, 7
    %v910 = vsub.s32 %v907, %v909
    %v911 = vrot.slane %v897, %v910
    %v912 = vcombine.high %v904, %v904
    %v913 = vcombine.high %v911, %v911
    %v915 = vunpack.c.l.s4 1966171168
    %v916 = vunpack.c.0.s8 %v915
    %v917 = vlaneseq
    %v918 = vshrl.u32 %v917, 7
    %v919 = vsub.s32 %v916, %v918
    %v920 = vrot.slane %v904, %v919
    %v922 = vunpack.c.l.s4 1966171168
    %v923 = vunpack.c.0.s8 %v922
    %v924 = vlaneseq
    %v925 = vshrl.u32 %v924, 7
    %v926 = vsub.s32 %v923, %v925
    %v927 = vrot.slane %v911, %v926
    %v929 = vunpack.c.l.s4 1966171168
    %v930 = vunpack.c.0.s8 %v929
    %v931 = vlaneseq
    %v932 = vshrl.u32 %v931, 7
    %v933 = vsub.s32 %v930, %v932
    %v934 = vrot.slane %v912, %v933
    %v936 = vunpack.c.l.s4 1966171168
    %v937 = vunpack.c.0.s8 %v936
    %v938 = vlaneseq
    %v939 = vshrl.u32 %v938, 7
    %v940 = vsub.s32 %v937, %v939
    %v941 = vrot.slane %v913, %v940
    %v942 = vcombine.high %v920, %v920
    %v943 = vcombine.high %v927, %v927
    %v944 = vcombine.high %v934, %v934
    %v945 = vcombine.high %v941, %v941
    %v946 = vcombine.high %v474, %v474
    %v948 = vunpack.c.l.s4 1966171168
    %v949 = vunpack.c.0.s8 %v948
    %v950 = vlaneseq
    %v951 = vshrl.u32 %v950, 7
    %v952 = vsub.s32 %v949, %v951
    %v953 = vrot.slane %v474, %v952
    %v955 = vunpack.c.l.s4 1966171168
    %v956 = vunpack.c.0.s8 %v955
    %v957 = vlaneseq
    %v958 = vshrl.u32 %v957, 7
    %v959 = vsub.s32 %v956, %v958
    %v960 = vrot.slane %v946, %v959
    %v961 = vcombine.high %v953, %v953
    %v962 = vcombine.high %v960, %v960
    %v964 = vunpack.c.l.s4 1966171168
    %v965 = vunpack.c.0.s8 %v964
    %v966 = vlaneseq
    %v967 = vshrl.u32 %v966, 7
    %v968 = vsub.s32 %v965, %v967
    %v969 = vrot.slane %v953, %v968
    %v971 = vunpack.c.l.s4 1966171168
    %v972 = vunpack.c.0.s8 %v971
    %v973 = vlaneseq
    %v974 = vshrl.u32 %v973, 7
    %v975 = vsub.s32 %v972, %v974
    %v976 = vrot.slane %v960, %v975
    %v978 = vunpack.c.l.s4 1966171168
    %v979 = vunpack.c.0.s8 %v978
    %v980 = vlaneseq
    %v981 = vshrl.u32 %v980, 7
    %v982 = vsub.s32 %v979, %v981
    %v983 = vrot.slane %v961, %v982
    %v985 = vunpack.c.l.s4 1966171168
    %v986 = vunpack.c.0.s8 %v985
    %v987 = vlaneseq
    %v988 = vshrl.u32 %v987, 7
    %v989 = vsub.s32 %v986, %v988
    %v990 = vrot.slane %v962, %v989
    %v991 = vcombine.high %v969, %v969
    %v992 = vcombine.high %v976, %v976
    %v993 = vcombine.high %v983, %v983
    %v994 = vcombine.high %v990, %v990
    %v995 = vcombine.high %v479, %v479
    %v997 = vunpack.c.l.s4 1966171168
    %v998 = vunpack.c.0.s8 %v997
    %v999 = vlaneseq
    %v1000 = vshrl.u32 %v999, 7
    %v1001 = vsub.s32 %v998, %v1000
    %v1002 = vrot.slane %v479, %v1001
    %v1004 = vunpack.c.l.s4 1966171168
    %v1005 = vunpack.c.0.s8 %v1004
    %v1006 = vlaneseq
    %v1007 = vshrl.u32 %v1006, 7
    %v1008 = vsub.s32 %v1005, %v1007
    %v1009 = vrot.slane %v995, %v1008
    %v1010 = vcombine.high %v1002, %v1002
    %v1011 = vcombine.high %v1009, %v1009
    %v1013 = vunpack.c.l.s4 1966171168
    %v1014 = vunpack.c.0.s8 %v1013
    %v1015 = vlaneseq
    %v1016 = vshrl.u32 %v1015, 7
    %v1017 = vsub.s32 %v1014, %v1016
    %v1018 = vrot.slane %v1002, %v1017
    %v1020 = vunpack.c.l.s4 1966171168
    %v1021 = vunpack.c.0.s8 %v1020
    %v1022 = vlaneseq
    %v1023 = vshrl.u32 %v1022, 7
    %v1024 = vsub.s32 %v1021, %v1023
    %v1025 = vrot.slane %v1009, %v1024
    %v1027 = vunpack.c.l.s4 1966171168
    %v1028 = vunpack.c.0.s8 %v1027
    %v1029 = vlaneseq
    %v1030 = vshrl.u32 %v1029, 7
    %v1031 = vsub.s32 %v1028, %v1030
    %v1032 = vrot.slane %v1010, %v1031
    %v1034 = vunpack.c.l.s4 1966171168
    %v1035 = vunpack.c.0.s8 %v1034
    %v1036 = vlaneseq
    %v1037 = vshrl.u32 %v1036, 7
    %v1038 = vsub.s32 %v1035, %v1037
    %v1039 = vrot.slane %v1011, %v1038
    %v1040 = vcombine.high %v1018, %v1018
    %v1041 = vcombine.high %v1025, %v1025
    %v1042 = vcombine.high %v1032, %v1032
    %v1043 = vcombine.high %v1039, %v1039
    %v1044 = vcombine.high %v482, %v482
    %v1046 = vunpack.c.l.s4 1966171168
    %v1047 = vunpack.c.0.s8 %v1046
    %v1048 = vlaneseq
    %v1049 = vshrl.u32 %v1048, 7
    %v1050 = vsub.s32 %v1047, %v1049
    %v1051 = vrot.slane %v482, %v1050
    %v1053 = vunpack.c.l.s4 1966171168
    %v1054 = vunpack.c.0.s8 %v1053
    %v1055 = vlaneseq
    %v1056 = vshrl.u32 %v1055, 7
    %v1057 = vsub.s32 %v1054, %v1056
    %v1058 = vrot.slane %v1044, %v1057
    %v1059 = vcombine.high %v1051, %v1051
    %v1060 = vcombine.high %v1058, %v1058
    %v1062 = vunpack.c.l.s4 1966171168
    %v1063 = vunpack.c.0.s8 %v1062
    %v1064 = vlaneseq
    %v1065 = vshrl.u32 %v1064, 7
    %v1066 = vsub.s32 %v1063, %v1065
    %v1067 = vrot.slane %v1051, %v1066
    %v1069 = vunpack.c.l.s4 1966171168
    %v1070 = vunpack.c.0.s8 %v1069
    %v1071 = vlaneseq
    %v1072 = vshrl.u32 %v1071, 7
    %v1073 = vsub.s32 %v1070, %v1072
    %v1074 = vrot.slane %v1058, %v1073
    %v1076 = vunpack.c.l.s4 1966171168
    %v1077 = vunpack.c.0.s8 %v1076
    %v1078 = vlaneseq
    %v1079 = vshrl.u32 %v1078, 7
    %v1080 = vsub.s32 %v1077, %v1079
    %v1081 = vrot.slane %v1059, %v1080
    %v1083 = vunpack.c.l.s4 1966171168
    %v1084 = vunpack.c.0.s8 %v1083
    %v1085 = vlaneseq
    %v1086 = vshrl.u32 %v1085, 7
    %v1087 = vsub.s32 %v1084, %v1086
    %v1088 = vrot.slane %v1060, %v1087
    %v1089 = vcombine.high %v1067, %v1067
    %v1090 = vcombine.high %v1074, %v1074
    %v1091 = vcombine.high %v1081, %v1081
    %v1092 = vcombine.high %v1088, %v1088
    %v1093 = vcombine.high %v487, %v487
    %v1095 = vunpack.c.l.s4 1966171168
    %v1096 = vunpack.c.0.s8 %v1095
    %v1097 = vlaneseq
    %v1098 = vshrl.u32 %v1097, 7
    %v1099 = vsub.s32 %v1096, %v1098
    %v1100 = vrot.slane %v487, %v1099
    %v1102 = vunpack.c.l.s4 1966171168
    %v1103 = vunpack.c.0.s8 %v1102
    %v1104 = vlaneseq
    %v1105 = vshrl.u32 %v1104, 7
    %v1106 = vsub.s32 %v1103, %v1105
    %v1107 = vrot.slane %v1093, %v1106
    %v1108 = vcombine.high %v1100, %v1100
    %v1109 = vcombine.high %v1107, %v1107
    %v1111 = vunpack.c.l.s4 1966171168
    %v1112 = vunpack.c.0.s8 %v1111
    %v1113 = vlaneseq
    %v1114 = vshrl.u32 %v1113, 7
    %v1115 = vsub.s32 %v1112, %v1114
    %v1116 = vrot.slane %v1100, %v1115
    %v1118 = vunpack.c.l.s4 1966171168
    %v1119 = vunpack.c.0.s8 %v1118
    %v1120 = vlaneseq
    %v1121 = vshrl.u32 %v1120, 7
    %v1122 = vsub.s32 %v1119, %v1121
    %v1123 = vrot.slane %v1107, %v1122
    %v1125 = vunpack.c.l.s4 1966171168
    %v1126 = vunpack.c.0.s8 %v1125
    %v1127 = vlaneseq
    %v1128 = vshrl.u32 %v1127, 7
    %v1129 = vsub.s32 %v1126, %v1128
    %v1130 = vrot.slane %v1108, %v1129
    %v1132 = vunpack.c.l.s4 1966171168
    %v1133 = vunpack.c.0.s8 %v1132
    %v1134 = vlaneseq
    %v1135 = vshrl.u32 %v1134, 7
    %v1136 = vsub.s32 %v1133, %v1135
    %v1137 = vrot.slane %v1109, %v1136
    %v1138 = vcombine.high %v1116, %v1116
    %v1139 = vcombine.high %v1123, %v1123
    %v1140 = vcombine.high %v1130, %v1130
    %v1141 = vcombine.high %v1137, %v1137
    %v1142 = vcombine.high %v490, %v490
    %v1144 = vunpack.c.l.s4 1966171168
    %v1145 = vunpack.c.0.s8 %v1144
    %v1146 = vlaneseq
    %v1147 = vshrl.u32 %v1146, 7
    %v1148 = vsub.s32 %v1145, %v1147
    %v1149 = vrot.slane %v490, %v1148
    %v1151 = vunpack.c.l.s4 1966171168
    %v1152 = vunpack.c.0.s8 %v1151
    %v1153 = vlaneseq
    %v1154 = vshrl.u32 %v1153, 7
    %v1155 = vsub.s32 %v1152, %v1154
    %v1156 = vrot.slane %v1142, %v1155
    %v1157 = vcombine.high %v1149, %v1149
    %v1158 = vcombine.high %v1156, %v1156
    %v1160 = vunpack.c.l.s4 1966171168
    %v1161 = vunpack.c.0.s8 %v1160
    %v1162 = vlaneseq
    %v1163 = vshrl.u32 %v1162, 7
    %v1164 = vsub.s32 %v1161, %v1163
    %v1165 = vrot.slane %v1149, %v1164
    %v1167 = vunpack.c.l.s4 1966171168
    %v1168 = vunpack.c.0.s8 %v1167
    %v1169 = vlaneseq
    %v1170 = vshrl.u32 %v1169, 7
    %v1171 = vsub.s32 %v1168, %v1170
    %v1172 = vrot.slane %v1156, %v1171
    %v1174 = vunpack.c.l.s4 1966171168
    %v1175 = vunpack.c.0.s8 %v1174
    %v1176 = vlaneseq
    %v1177 = vshrl.u32 %v1176, 7
    %v1178 = vsub.s32 %v1175, %v1177
    %v1179 = vrot.slane %v1157, %v1178
    %v1181 = vunpack.c.l.s4 1966171168
    %v1182 = vunpack.c.0.s8 %v1181
    %v1183 = vlaneseq
    %v1184 = vshrl.u32 %v1183, 7
    %v1185 = vsub.s32 %v1182, %v1184
    %v1186 = vrot.slane %v1158, %v1185
    %v1187 = vcombine.high %v1165, %v1165
    %v1188 = vcombine.high %v1172, %v1172
    %v1189 = vcombine.high %v1179, %v1179
    %v1190 = vcombine.high %v1186, %v1186
    %v1191 = vcombine.high %v495, %v495
    %v1193 = vunpack.c.l.s4 1966171168
    %v1194 = vunpack.c.0.s8 %v1193
    %v1195 = vlaneseq
    %v1196 = vshrl.u32 %v1195, 7
    %v1197 = vsub.s32 %v1194, %v1196
    %v1198 = vrot.slane %v495, %v1197
    %v1200 = vunpack.c.l.s4 1966171168
    %v1201 = vunpack.c.0.s8 %v1200
    %v1202 = vlaneseq
    %v1203 = vshrl.u32 %v1202, 7
    %v1204 = vsub.s32 %v1201, %v1203
    %v1205 = vrot.slane %v1191, %v1204
    %v1206 = vcombine.high %v1198, %v1198
    %v1207 = vcombine.high %v1205, %v1205
    %v1209 = vunpack.c.l.s4 1966171168
    %v1210 = vunpack.c.0.s8 %v1209
    %v1211 = vlaneseq
    %v1212 = vshrl.u32 %v1211, 7
    %v1213 = vsub.s32 %v1210, %v1212
    %v1214 = vrot.slane %v1198, %v1213
    %v1216 = vunpack.c.l.s4 1966171168
    %v1217 = vunpack.c.0.s8 %v1216
    %v1218 = vlaneseq
    %v1219 = vshrl.u32 %v1218, 7
    %v1220 = vsub.s32 %v1217, %v1219
    %v1221 = vrot.slane %v1205, %v1220
    %v1223 = vunpack.c.l.s4 1966171168
    %v1224 = vunpack.c.0.s8 %v1223
    %v1225 = vlaneseq
    %v1226 = vshrl.u32 %v1225, 7
    %v1227 = vsub.s32 %v1224, %v1226
    %v1228 = vrot.slane %v1206, %v1227
    %v1230 = vunpack.c.l.s4 1966171168
    %v1231 = vunpack.c.0.s8 %v1230
    %v1232 = vlaneseq
    %v1233 = vshrl.u32 %v1232, 7
    %v1234 = vsub.s32 %v1231, %v1233
    %v1235 = vrot.slane %v1207, %v1234
    %v1236 = vcombine.high %v1214, %v1214
    %v1237 = vcombine.high %v1221, %v1221
    %v1238 = vcombine.high %v1228, %v1228
    %v1239 = vcombine.high %v1235, %v1235
    %v1240 = vcombine.high %v498, %v498
    %v1242 = vunpack.c.l.s4 1966171168
    %v1243 = vunpack.c.0.s8 %v1242
    %v1244 = vlaneseq
    %v1245 = vshrl.u32 %v1244, 7
    %v1246 = vsub.s32 %v1243, %v1245
    %v1247 = vrot.slane %v498, %v1246
    %v1249 = vunpack.c.l.s4 1966171168
    %v1250 = vunpack.c.0.s8 %v1249
    %v1251 = vlaneseq
    %v1252 = vshrl.u32 %v1251, 7
    %v1253 = vsub.s32 %v1250, %v1252
    %v1254 = vrot.slane %v1240, %v1253
    %v1255 = vcombine.high %v1247, %v1247
    %v1256 = vcombine.high %v1254, %v1254
    %v1258 = vunpack.c.l.s4 1966171168
    %v1259 = vunpack.c.0.s8 %v1258
    %v1260 = vlaneseq
    %v1261 = vshrl.u32 %v1260, 7
    %v1262 = vsub.s32 %v1259, %v1261
    %v1263 = vrot.slane %v1247, %v1262
    %v1265 = vunpack.c.l.s4 1966171168
    %v1266 = vunpack.c.0.s8 %v1265
    %v1267 = vlaneseq
    %v1268 = vshrl.u32 %v1267, 7
    %v1269 = vsub.s32 %v1266, %v1268
    %v1270 = vrot.slane %v1254, %v1269
    %v1272 = vunpack.c.l.s4 1966171168
    %v1273 = vunpack.c.0.s8 %v1272
    %v1274 = vlaneseq
    %v1275 = vshrl.u32 %v1274, 7
    %v1276 = vsub.s32 %v1273, %v1275
    %v1277 = vrot.slane %v1255, %v1276
    %v1279 = vunpack.c.l.s4 1966171168
    %v1280 = vunpack.c.0.s8 %v1279
    %v1281 = vlaneseq
    %v1282 = vshrl.u32 %v1281, 7
    %v1283 = vsub.s32 %v1280, %v1282
    %v1284 = vrot.slane %v1256, %v1283
    %v1285 = vcombine.high %v1263, %v1263
    %v1286 = vcombine.high %v1270, %v1270
    %v1287 = vcombine.high %v1277, %v1277
    %v1288 = vcombine.high %v1284, %v1284
    %v1289 = vcombine.high %v503, %v503
    %v1291 = vunpack.c.l.s4 1966171168
    %v1292 = vunpack.c.0.s8 %v1291
    %v1293 = vlaneseq
    %v1294 = vshrl.u32 %v1293, 7
    %v1295 = vsub.s32 %v1292, %v1294
    %v1296 = vrot.slane %v503, %v1295
    %v1298 = vunpack.c.l.s4 1966171168
    %v1299 = vunpack.c.0.s8 %v1298
    %v1300 = vlaneseq
    %v1301 = vshrl.u32 %v1300, 7
    %v1302 = vsub.s32 %v1299, %v1301
    %v1303 = vrot.slane %v1289, %v1302
    %v1304 = vcombine.high %v1296, %v1296
    %v1305 = vcombine.high %v1303, %v1303
    %v1307 = vunpack.c.l.s4 1966171168
    %v1308 = vunpack.c.0.s8 %v1307
    %v1309 = vlaneseq
    %v1310 = vshrl.u32 %v1309, 7
    %v1311 = vsub.s32 %v1308, %v1310
    %v1312 = vrot.slane %v1296, %v1311
    %v1314 = vunpack.c.l.s4 1966171168
    %v1315 = vunpack.c.0.s8 %v1314
    %v1316 = vlaneseq
    %v1317 = vshrl.u32 %v1316, 7
    %v1318 = vsub.s32 %v1315, %v1317
    %v1319 = vrot.slane %v1303, %v1318
    %v1321 = vunpack.c.l.s4 1966171168
    %v1322 = vunpack.c.0.s8 %v1321
    %v1323 = vlaneseq
    %v1324 = vshrl.u32 %v1323, 7
    %v1325 = vsub.s32 %v1322, %v1324
    %v1326 = vrot.slane %v1304, %v1325
    %v1328 = vunpack.c.l.s4 1966171168
    %v1329 = vunpack.c.0.s8 %v1328
    %v1330 = vlaneseq
    %v1331 = vshrl.u32 %v1330, 7
    %v1332 = vsub.s32 %v1329, %v1331
    %v1333 = vrot.slane %v1305, %v1332
    %v1334 = vcombine.high %v1312, %v1312
    %v1335 = vcombine.high %v1319, %v1319
    %v1336 = vcombine.high %v1326, %v1326
    %v1337 = vcombine.high %v1333, %v1333
    %v1338 = vcombine.high %v506, %v506
    %v1340 = vunpack.c.l.s4 1966171168
    %v1341 = vunpack.c.0.s8 %v1340
    %v1342 = vlaneseq
    %v1343 = vshrl.u32 %v1342, 7
    %v1344 = vsub.s32 %v1341, %v1343
    %v1345 = vrot.slane %v506, %v1344
    %v1347 = vunpack.c.l.s4 1966171168
    %v1348 = vunpack.c.0.s8 %v1347
    %v1349 = vlaneseq
    %v1350 = vshrl.u32 %v1349, 7
    %v1351 = vsub.s32 %v1348, %v1350
    %v1352 = vrot.slane %v1338, %v1351
    %v1353 = vcombine.high %v1345, %v1345
    %v1354 = vcombine.high %v1352, %v1352
    %v1356 = vunpack.c.l.s4 1966171168
    %v1357 = vunpack.c.0.s8 %v1356
    %v1358 = vlaneseq
    %v1359 = vshrl.u32 %v1358, 7
    %v1360 = vsub.s32 %v1357, %v1359
    %v1361 = vrot.slane %v1345, %v1360
    %v1363 = vunpack.c.l.s4 1966171168
    %v1364 = vunpack.c.0.s8 %v1363
    %v1365 = vlaneseq
    %v1366 = vshrl.u32 %v1365, 7
    %v1367 = vsub.s32 %v1364, %v1366
    %v1368 = vrot.slane %v1352, %v1367
    %v1370 = vunpack.c.l.s4 1966171168
    %v1371 = vunpack.c.0.s8 %v1370
    %v1372 = vlaneseq
    %v1373 = vshrl.u32 %v1372, 7
    %v1374 = vsub.s32 %v1371, %v1373
    %v1375 = vrot.slane %v1353, %v1374
    %v1377 = vunpack.c.l.s4 1966171168
    %v1378 = vunpack.c.0.s8 %v1377
    %v1379 = vlaneseq
    %v1380 = vshrl.u32 %v1379, 7
    %v1381 = vsub.s32 %v1378, %v1380
    %v1382 = vrot.slane %v1354, %v1381
    %v1383 = vcombine.high %v1361, %v1361
    %v1384 = vcombine.high %v1368, %v1368
    %v1385 = vcombine.high %v1375, %v1375
    %v1386 = vcombine.high %v1382, %v1382
    %v1387 = vcombine.high %v511, %v511
    %v1389 = vunpack.c.l.s4 1966171168
    %v1390 = vunpack.c.0.s8 %v1389
    %v1391 = vlaneseq
    %v1392 = vshrl.u32 %v1391, 7
    %v1393 = vsub.s32 %v1390, %v1392
    %v1394 = vrot.slane %v511, %v1393
    %v1396 = vunpack.c.l.s4 1966171168
    %v1397 = vunpack.c.0.s8 %v1396
    %v1398 = vlaneseq
    %v1399 = vshrl.u32 %v1398, 7
    %v1400 = vsub.s32 %v1397, %v1399
    %v1401 = vrot.slane %v1387, %v1400
    %v1402 = vcombine.high %v1394, %v1394
    %v1403 = vcombine.high %v1401, %v1401
    %v1405 = vunpack.c.l.s4 1966171168
    %v1406 = vunpack.c.0.s8 %v1405
    %v1407 = vlaneseq
    %v1408 = vshrl.u32 %v1407, 7
    %v1409 = vsub.s32 %v1406, %v1408
    %v1410 = vrot.slane %v1394, %v1409
    %v1412 = vunpack.c.l.s4 1966171168
    %v1413 = vunpack.c.0.s8 %v1412
    %v1414 = vlaneseq
    %v1415 = vshrl.u32 %v1414, 7
    %v1416 = vsub.s32 %v1413, %v1415
    %v1417 = vrot.slane %v1401, %v1416
    %v1419 = vunpack.c.l.s4 1966171168
    %v1420 = vunpack.c.0.s8 %v1419
    %v1421 = vlaneseq
    %v1422 = vshrl.u32 %v1421, 7
    %v1423 = vsub.s32 %v1420, %v1422
    %v1424 = vrot.slane %v1402, %v1423
    %v1426 = vunpack.c.l.s4 1966171168
    %v1427 = vunpack.c.0.s8 %v1426
    %v1428 = vlaneseq
    %v1429 = vshrl.u32 %v1428, 7
    %v1430 = vsub.s32 %v1427, %v1429
    %v1431 = vrot.slane %v1403, %v1430
    %v1432 = vcombine.high %v1410, %v1410
    %v1433 = vcombine.high %v1417, %v1417
    %v1434 = vcombine.high %v1424, %v1424
    %v1435 = vcombine.high %v1431, %v1431
    %v1436 = vcombine.high %v514, %v514
    %v1438 = vunpack.c.l.s4 1966171168
    %v1439 = vunpack.c.0.s8 %v1438
    %v1440 = vlaneseq
    %v1441 = vshrl.u32 %v1440, 7
    %v1442 = vsub.s32 %v1439, %v1441
    %v1443 = vrot.slane %v514, %v1442
    %v1445 = vunpack.c.l.s4 1966171168
    %v1446 = vunpack.c.0.s8 %v1445
    %v1447 = vlaneseq
    %v1448 = vshrl.u32 %v1447, 7
    %v1449 = vsub.s32 %v1446, %v1448
    %v1450 = vrot.slane %v1436, %v1449
    %v1451 = vcombine.high %v1443, %v1443
    %v1452 = vcombine.high %v1450, %v1450
    %v1454 = vunpack.c.l.s4 1966171168
    %v1455 = vunpack.c.0.s8 %v1454
    %v1456 = vlaneseq
    %v1457 = vshrl.u32 %v1456, 7
    %v1458 = vsub.s32 %v1455, %v1457
    %v1459 = vrot.slane %v1443, %v1458
    %v1461 = vunpack.c.l.s4 1966171168
    %v1462 = vunpack.c.0.s8 %v1461
    %v1463 = vlaneseq
    %v1464 = vshrl.u32 %v1463, 7
    %v1465 = vsub.s32 %v1462, %v1464
    %v1466 = vrot.slane %v1450, %v1465
    %v1468 = vunpack.c.l.s4 1966171168
    %v1469 = vunpack.c.0.s8 %v1468
    %v1470 = vlaneseq
    %v1471 = vshrl.u32 %v1470, 7
    %v1472 = vsub.s32 %v1469, %v1471
    %v1473 = vrot.slane %v1451, %v1472
    %v1475 = vunpack.c.l.s4 1966171168
    %v1476 = vunpack.c.0.s8 %v1475
    %v1477 = vlaneseq
    %v1478 = vshrl.u32 %v1477, 7
    %v1479 = vsub.s32 %v1476, %v1478
    %v1480 = vrot.slane %v1452, %v1479
    %v1481 = vcombine.high %v1459, %v1459
    %v1482 = vcombine.high %v1466, %v1466
    %v1483 = vcombine.high %v1473, %v1473
    %v1484 = vcombine.high %v1480, %v1480
    %v1485 = vcombine.high %v519, %v519
    %v1487 = vunpack.c.l.s4 1966171168
    %v1488 = vunpack.c.0.s8 %v1487
    %v1489 = vlaneseq
    %v1490 = vshrl.u32 %v1489, 7
    %v1491 = vsub.s32 %v1488, %v1490
    %v1492 = vrot.slane %v519, %v1491
    %v1494 = vunpack.c.l.s4 1966171168
    %v1495 = vunpack.c.0.s8 %v1494
    %v1496 = vlaneseq
    %v1497 = vshrl.u32 %v1496, 7
    %v1498 = vsub.s32 %v1495, %v1497
    %v1499 = vrot.slane %v1485, %v1498
    %v1500 = vcombine.high %v1492, %v1492
    %v1501 = vcombine.high %v1499, %v1499
    %v1503 = vunpack.c.l.s4 1966171168
    %v1504 = vunpack.c.0.s8 %v1503
    %v1505 = vlaneseq
    %v1506 = vshrl.u32 %v1505, 7
    %v1507 = vsub.s32 %v1504, %v1506
    %v1508 = vrot.slane %v1492, %v1507
    %v1510 = vunpack.c.l.s4 1966171168
    %v1511 = vunpack.c.0.s8 %v1510
    %v1512 = vlaneseq
    %v1513 = vshrl.u32 %v1512, 7
    %v1514 = vsub.s32 %v1511, %v1513
    %v1515 = vrot.slane %v1499, %v1514
    %v1517 = vunpack.c.l.s4 1966171168
    %v1518 = vunpack.c.0.s8 %v1517
    %v1519 = vlaneseq
    %v1520 = vshrl.u32 %v1519, 7
    %v1521 = vsub.s32 %v1518, %v1520
    %v1522 = vrot.slane %v1500, %v1521
    %v1524 = vunpack.c.l.s4 1966171168
    %v1525 = vunpack.c.0.s8 %v1524
    %v1526 = vlaneseq
    %v1527 = vshrl.u32 %v1526, 7
    %v1528 = vsub.s32 %v1525, %v1527
    %v1529 = vrot.slane %v1501, %v1528
    %v1530 = vcombine.high %v1508, %v1508
    %v1531 = vcombine.high %v1515, %v1515
    %v1532 = vcombine.high %v1522, %v1522
    %v1533 = vcombine.high %v1529, %v1529
    %v1534 = vcombine.high %v522, %v522
    %v1536 = vunpack.c.l.s4 1966171168
    %v1537 = vunpack.c.0.s8 %v1536
    %v1538 = vlaneseq
    %v1539 = vshrl.u32 %v1538, 7
    %v1540 = vsub.s32 %v1537, %v1539
    %v1541 = vrot.slane %v522, %v1540
    %v1543 = vunpack.c.l.s4 1966171168
    %v1544 = vunpack.c.0.s8 %v1543
    %v1545 = vlaneseq
    %v1546 = vshrl.u32 %v1545, 7
    %v1547 = vsub.s32 %v1544, %v1546
    %v1548 = vrot.slane %v1534, %v1547
    %v1549 = vcombine.high %v1541, %v1541
    %v1550 = vcombine.high %v1548, %v1548
    %v1552 = vunpack.c.l.s4 1966171168
    %v1553 = vunpack.c.0.s8 %v1552
    %v1554 = vlaneseq
    %v1555 = vshrl.u32 %v1554, 7
    %v1556 = vsub.s32 %v1553, %v1555
    %v1557 = vrot.slane %v1541, %v1556
    %v1559 = vunpack.c.l.s4 1966171168
    %v1560 = vunpack.c.0.s8 %v1559
    %v1561 = vlaneseq
    %v1562 = vshrl.u32 %v1561, 7
    %v1563 = vsub.s32 %v1560, %v1562
    %v1564 = vrot.slane %v1548, %v1563
    %v1566 = vunpack.c.l.s4 1966171168
    %v1567 = vunpack.c.0.s8 %v1566
    %v1568 = vlaneseq
    %v1569 = vshrl.u32 %v1568, 7
    %v1570 = vsub.s32 %v1567, %v1569
    %v1571 = vrot.slane %v1549, %v1570
    %v1573 = vunpack.c.l.s4 1966171168
    %v1574 = vunpack.c.0.s8 %v1573
    %v1575 = vlaneseq
    %v1576 = vshrl.u32 %v1575, 7
    %v1577 = vsub.s32 %v1574, %v1576
    %v1578 = vrot.slane %v1550, %v1577
    %v1579 = vcombine.high %v1557, %v1557
    %v1580 = vcombine.high %v1564, %v1564
    %v1581 = vcombine.high %v1571, %v1571
    %v1582 = vcombine.high %v1578, %v1578
    %v1583 = vcombine.high %v527, %v527
    %v1585 = vunpack.c.l.s4 1966171168
    %v1586 = vunpack.c.0.s8 %v1585
    %v1587 = vlaneseq
    %v1588 = vshrl.u32 %v1587, 7
    %v1589 = vsub.s32 %v1586, %v1588
    %v1590 = vrot.slane %v527, %v1589
    %v1592 = vunpack.c.l.s4 1966171168
    %v1593 = vunpack.c.0.s8 %v1592
    %v1594 = vlaneseq
    %v1595 = vshrl.u32 %v1594, 7
    %v1596 = vsub.s32 %v1593, %v1595
    %v1597 = vrot.slane %v1583, %v1596
    %v1598 = vcombine.high %v1590, %v1590
    %v1599 = vcombine.high %v1597, %v1597
    %v1601 = vunpack.c.l.s4 1966171168
    %v1602 = vunpack.c.0.s8 %v1601
    %v1603 = vlaneseq
    %v1604 = vshrl.u32 %v1603, 7
    %v1605 = vsub.s32 %v1602, %v1604
    %v1606 = vrot.slane %v1590, %v1605
    %v1608 = vunpack.c.l.s4 1966171168
    %v1609 = vunpack.c.0.s8 %v1608
    %v1610 = vlaneseq
    %v1611 = vshrl.u32 %v1610, 7
    %v1612 = vsub.s32 %v1609, %v1611
    %v1613 = vrot.slane %v1597, %v1612
    %v1615 = vunpack.c.l.s4 1966171168
    %v1616 = vunpack.c.0.s8 %v1615
    %v1617 = vlaneseq
    %v1618 = vshrl.u32 %v1617, 7
    %v1619 = vsub.s32 %v1616, %v1618
    %v1620 = vrot.slane %v1598, %v1619
    %v1622 = vunpack.c.l.s4 1966171168
    %v1623 = vunpack.c.0.s8 %v1622
    %v1624 = vlaneseq
    %v1625 = vshrl.u32 %v1624, 7
    %v1626 = vsub.s32 %v1623, %v1625
    %v1627 = vrot.slane %v1599, %v1626
    %v1628 = vcombine.high %v1606, %v1606
    %v1629 = vcombine.high %v1613, %v1613
    %v1630 = vcombine.high %v1620, %v1620
    %v1631 = vcombine.high %v1627, %v1627
    %v1632 = vcombine.high %v530, %v530
    %v1634 = vunpack.c.l.s4 1966171168
    %v1635 = vunpack.c.0.s8 %v1634
    %v1636 = vlaneseq
    %v1637 = vshrl.u32 %v1636, 7
    %v1638 = vsub.s32 %v1635, %v1637
    %v1639 = vrot.slane %v530, %v1638
    %v1641 = vunpack.c.l.s4 1966171168
    %v1642 = vunpack.c.0.s8 %v1641
    %v1643 = vlaneseq
    %v1644 = vshrl.u32 %v1643, 7
    %v1645 = vsub.s32 %v1642, %v1644
    %v1646 = vrot.slane %v1632, %v1645
    %v1647 = vcombine.high %v1639, %v1639
    %v1648 = vcombine.high %v1646, %v1646
    %v1650 = vunpack.c.l.s4 1966171168
    %v1651 = vunpack.c.0.s8 %v1650
    %v1652 = vlaneseq
    %v1653 = vshrl.u32 %v1652, 7
    %v1654 = vsub.s32 %v1651, %v1653
    %v1655 = vrot.slane %v1639, %v1654
    %v1657 = vunpack.c.l.s4 1966171168
    %v1658 = vunpack.c.0.s8 %v1657
    %v1659 = vlaneseq
    %v1660 = vshrl.u32 %v1659, 7
    %v1661 = vsub.s32 %v1658, %v1660
    %v1662 = vrot.slane %v1646, %v1661
    %v1664 = vunpack.c.l.s4 1966171168
    %v1665 = vunpack.c.0.s8 %v1664
    %v1666 = vlaneseq
    %v1667 = vshrl.u32 %v1666, 7
    %v1668 = vsub.s32 %v1665, %v1667
    %v1669 = vrot.slane %v1647, %v1668
    %v1671 = vunpack.c.l.s4 1966171168
    %v1672 = vunpack.c.0.s8 %v1671
    %v1673 = vlaneseq
    %v1674 = vshrl.u32 %v1673, 7
    %v1675 = vsub.s32 %v1672, %v1674
    %v1676 = vrot.slane %v1648, %v1675
    %v1677 = vcombine.high %v1655, %v1655
    %v1678 = vcombine.high %v1662, %v1662
    %v1679 = vcombine.high %v1669, %v1669
    %v1680 = vcombine.high %v1676, %v1676
    %v1681 = vcombine.high %v535, %v535
    %v1683 = vunpack.c.l.s4 1966171168
    %v1684 = vunpack.c.0.s8 %v1683
    %v1685 = vlaneseq
    %v1686 = vshrl.u32 %v1685, 7
    %v1687 = vsub.s32 %v1684, %v1686
    %v1688 = vrot.slane %v535, %v1687
    %v1690 = vunpack.c.l.s4 1966171168
    %v1691 = vunpack.c.0.s8 %v1690
    %v1692 = vlaneseq
    %v1693 = vshrl.u32 %v1692, 7
    %v1694 = vsub.s32 %v1691, %v1693
    %v1695 = vrot.slane %v1681, %v1694
    %v1696 = vcombine.high %v1688, %v1688
    %v1697 = vcombine.high %v1695, %v1695
    %v1699 = vunpack.c.l.s4 1966171168
    %v1700 = vunpack.c.0.s8 %v1699
    %v1701 = vlaneseq
    %v1702 = vshrl.u32 %v1701, 7
    %v1703 = vsub.s32 %v1700, %v1702
    %v1704 = vrot.slane %v1688, %v1703
    %v1706 = vunpack.c.l.s4 1966171168
    %v1707 = vunpack.c.0.s8 %v1706
    %v1708 = vlaneseq
    %v1709 = vshrl.u32 %v1708, 7
    %v1710 = vsub.s32 %v1707, %v1709
    %v1711 = vrot.slane %v1695, %v1710
    %v1713 = vunpack.c.l.s4 1966171168
    %v1714 = vunpack.c.0.s8 %v1713
    %v1715 = vlaneseq
    %v1716 = vshrl.u32 %v1715, 7
    %v1717 = vsub.s32 %v1714, %v1716
    %v1718 = vrot.slane %v1696, %v1717
    %v1720 = vunpack.c.l.s4 1966171168
    %v1721 = vunpack.c.0.s8 %v1720
    %v1722 = vlaneseq
    %v1723 = vshrl.u32 %v1722, 7
    %v1724 = vsub.s32 %v1721, %v1723
    %v1725 = vrot.slane %v1697, %v1724
    %v1726 = vcombine.high %v1704, %v1704
    %v1727 = vcombine.high %v1711, %v1711
    %v1728 = vcombine.high %v1718, %v1718
    %v1729 = vcombine.high %v1725, %v1725
    %v1730 = vcombine.high %v538, %v538
    %v1732 = vunpack.c.l.s4 1966171168
    %v1733 = vunpack.c.0.s8 %v1732
    %v1734 = vlaneseq
    %v1735 = vshrl.u32 %v1734, 7
    %v1736 = vsub.s32 %v1733, %v1735
    %v1737 = vrot.slane %v538, %v1736
    %v1739 = vunpack.c.l.s4 1966171168
    %v1740 = vunpack.c.0.s8 %v1739
    %v1741 = vlaneseq
    %v1742 = vshrl.u32 %v1741, 7
    %v1743 = vsub.s32 %v1740, %v1742
    %v1744 = vrot.slane %v1730, %v1743
    %v1745 = vcombine.high %v1737, %v1737
    %v1746 = vcombine.high %v1744, %v1744
    %v1748 = vunpack.c.l.s4 1966171168
    %v1749 = vunpack.c.0.s8 %v1748
    %v1750 = vlaneseq
    %v1751 = vshrl.u32 %v1750, 7
    %v1752 = vsub.s32 %v1749, %v1751
    %v1753 = vrot.slane %v1737, %v1752
    %v1755 = vunpack.c.l.s4 1966171168
    %v1756 = vunpack.c.0.s8 %v1755
    %v1757 = vlaneseq
    %v1758 = vshrl.u32 %v1757, 7
    %v1759 = vsub.s32 %v1756, %v1758
    %v1760 = vrot.slane %v1744, %v1759
    %v1762 = vunpack.c.l.s4 1966171168
    %v1763 = vunpack.c.0.s8 %v1762
    %v1764 = vlaneseq
    %v1765 = vshrl.u32 %v1764, 7
    %v1766 = vsub.s32 %v1763, %v1765
    %v1767 = vrot.slane %v1745, %v1766
    %v1769 = vunpack.c.l.s4 1966171168
    %v1770 = vunpack.c.0.s8 %v1769
    %v1771 = vlaneseq
    %v1772 = vshrl.u32 %v1771, 7
    %v1773 = vsub.s32 %v1770, %v1772
    %v1774 = vrot.slane %v1746, %v1773
    %v1775 = vcombine.high %v1753, %v1753
    %v1776 = vcombine.high %v1760, %v1760
    %v1777 = vcombine.high %v1767, %v1767
    %v1778 = vcombine.high %v1774, %v1774
    %v1779 = vcombine.high %v543, %v543
    %v1781 = vunpack.c.l.s4 1966171168
    %v1782 = vunpack.c.0.s8 %v1781
    %v1783 = vlaneseq
    %v1784 = vshrl.u32 %v1783, 7
    %v1785 = vsub.s32 %v1782, %v1784
    %v1786 = vrot.slane %v543, %v1785
    %v1788 = vunpack.c.l.s4 1966171168
    %v1789 = vunpack.c.0.s8 %v1788
    %v1790 = vlaneseq
    %v1791 = vshrl.u32 %v1790, 7
    %v1792 = vsub.s32 %v1789, %v1791
    %v1793 = vrot.slane %v1779, %v1792
    %v1794 = vcombine.high %v1786, %v1786
    %v1795 = vcombine.high %v1793, %v1793
    %v1797 = vunpack.c.l.s4 1966171168
    %v1798 = vunpack.c.0.s8 %v1797
    %v1799 = vlaneseq
    %v1800 = vshrl.u32 %v1799, 7
    %v1801 = vsub.s32 %v1798, %v1800
    %v1802 = vrot.slane %v1786, %v1801
    %v1804 = vunpack.c.l.s4 1966171168
    %v1805 = vunpack.c.0.s8 %v1804
    %v1806 = vlaneseq
    %v1807 = vshrl.u32 %v1806, 7
    %v1808 = vsub.s32 %v1805, %v1807
    %v1809 = vrot.slane %v1793, %v1808
    %v1811 = vunpack.c.l.s4 1966171168
    %v1812 = vunpack.c.0.s8 %v1811
    %v1813 = vlaneseq
    %v1814 = vshrl.u32 %v1813, 7
    %v1815 = vsub.s32 %v1812, %v1814
    %v1816 = vrot.slane %v1794, %v1815
    %v1818 = vunpack.c.l.s4 1966171168
    %v1819 = vunpack.c.0.s8 %v1818
    %v1820 = vlaneseq
    %v1821 = vshrl.u32 %v1820, 7
    %v1822 = vsub.s32 %v1819, %v1821
    %v1823 = vrot.slane %v1795, %v1822
    %v1824 = vcombine.high %v1802, %v1802
    %v1825 = vcombine.high %v1809, %v1809
    %v1826 = vcombine.high %v1816, %v1816
    %v1827 = vcombine.high %v1823, %v1823
    %v1828 = vcombine.high %v546, %v546
    %v1830 = vunpack.c.l.s4 1966171168
    %v1831 = vunpack.c.0.s8 %v1830
    %v1832 = vlaneseq
    %v1833 = vshrl.u32 %v1832, 7
    %v1834 = vsub.s32 %v1831, %v1833
    %v1835 = vrot.slane %v546, %v1834
    %v1837 = vunpack.c.l.s4 1966171168
    %v1838 = vunpack.c.0.s8 %v1837
    %v1839 = vlaneseq
    %v1840 = vshrl.u32 %v1839, 7
    %v1841 = vsub.s32 %v1838, %v1840
    %v1842 = vrot.slane %v1828, %v1841
    %v1843 = vcombine.high %v1835, %v1835
    %v1844 = vcombine.high %v1842, %v1842
    %v1846 = vunpack.c.l.s4 1966171168
    %v1847 = vunpack.c.0.s8 %v1846
    %v1848 = vlaneseq
    %v1849 = vshrl.u32 %v1848, 7
    %v1850 = vsub.s32 %v1847, %v1849
    %v1851 = vrot.slane %v1835, %v1850
    %v1853 = vunpack.c.l.s4 1966171168
    %v1854 = vunpack.c.0.s8 %v1853
    %v1855 = vlaneseq
    %v1856 = vshrl.u32 %v1855, 7
    %v1857 = vsub.s32 %v1854, %v1856
    %v1858 = vrot.slane %v1842, %v1857
    %v1860 = vunpack.c.l.s4 1966171168
    %v1861 = vunpack.c.0.s8 %v1860
    %v1862 = vlaneseq
    %v1863 = vshrl.u32 %v1862, 7
    %v1864 = vsub.s32 %v1861, %v1863
    %v1865 = vrot.slane %v1843, %v1864
    %v1867 = vunpack.c.l.s4 1966171168
    %v1868 = vunpack.c.0.s8 %v1867
    %v1869 = vlaneseq
    %v1870 = vshrl.u32 %v1869, 7
    %v1871 = vsub.s32 %v1868, %v1870
    %v1872 = vrot.slane %v1844, %v1871
    %v1873 = vcombine.high %v1851, %v1851
    %v1874 = vcombine.high %v1858, %v1858
    %v1875 = vcombine.high %v1865, %v1865
    %v1876 = vcombine.high %v1872, %v1872
    %v1877 = vcombine.high %v551, %v551
    %v1879 = vunpack.c.l.s4 1966171168
    %v1880 = vunpack.c.0.s8 %v1879
    %v1881 = vlaneseq
    %v1882 = vshrl.u32 %v1881, 7
    %v1883 = vsub.s32 %v1880, %v1882
    %v1884 = vrot.slane %v551, %v1883
    %v1886 = vunpack.c.l.s4 1966171168
    %v1887 = vunpack.c.0.s8 %v1886
    %v1888 = vlaneseq
    %v1889 = vshrl.u32 %v1888, 7
    %v1890 = vsub.s32 %v1887, %v1889
    %v1891 = vrot.slane %v1877, %v1890
    %v1892 = vcombine.high %v1884, %v1884
    %v1893 = vcombine.high %v1891, %v1891
    %v1895 = vunpack.c.l.s4 1966171168
    %v1896 = vunpack.c.0.s8 %v1895
    %v1897 = vlaneseq
    %v1898 = vshrl.u32 %v1897, 7
    %v1899 = vsub.s32 %v1896, %v1898
    %v1900 = vrot.slane %v1884, %v1899
    %v1902 = vunpack.c.l.s4 1966171168
    %v1903 = vunpack.c.0.s8 %v1902
    %v1904 = vlaneseq
    %v1905 = vshrl.u32 %v1904, 7
    %v1906 = vsub.s32 %v1903, %v1905
    %v1907 = vrot.slane %v1891, %v1906
    %v1909 = vunpack.c.l.s4 1966171168
    %v1910 = vunpack.c.0.s8 %v1909
    %v1911 = vlaneseq
    %v1912 = vshrl.u32 %v1911, 7
    %v1913 = vsub.s32 %v1910, %v1912
    %v1914 = vrot.slane %v1892, %v1913
    %v1916 = vunpack.c.l.s4 1966171168
    %v1917 = vunpack.c.0.s8 %v1916
    %v1918 = vlaneseq
    %v1919 = vshrl.u32 %v1918, 7
    %v1920 = vsub.s32 %v1917, %v1919
    %v1921 = vrot.slane %v1893, %v1920
    %v1922 = vcombine.high %v1900, %v1900
    %v1923 = vcombine.high %v1907, %v1907
    %v1924 = vcombine.high %v1914, %v1914
    %v1925 = vcombine.high %v1921, %v1921
    %v1926 = vcombine.high %v554, %v554
    %v1928 = vunpack.c.l.s4 1966171168
    %v1929 = vunpack.c.0.s8 %v1928
    %v1930 = vlaneseq
    %v1931 = vshrl.u32 %v1930, 7
    %v1932 = vsub.s32 %v1929, %v1931
    %v1933 = vrot.slane %v554, %v1932
    %v1935 = vunpack.c.l.s4 1966171168
    %v1936 = vunpack.c.0.s8 %v1935
    %v1937 = vlaneseq
    %v1938 = vshrl.u32 %v1937, 7
    %v1939 = vsub.s32 %v1936, %v1938
    %v1940 = vrot.slane %v1926, %v1939
    %v1941 = vcombine.high %v1933, %v1933
    %v1942 = vcombine.high %v1940, %v1940
    %v1944 = vunpack.c.l.s4 1966171168
    %v1945 = vunpack.c.0.s8 %v1944
    %v1946 = vlaneseq
    %v1947 = vshrl.u32 %v1946, 7
    %v1948 = vsub.s32 %v1945, %v1947
    %v1949 = vrot.slane %v1933, %v1948
    %v1951 = vunpack.c.l.s4 1966171168
    %v1952 = vunpack.c.0.s8 %v1951
    %v1953 = vlaneseq
    %v1954 = vshrl.u32 %v1953, 7
    %v1955 = vsub.s32 %v1952, %v1954
    %v1956 = vrot.slane %v1940, %v1955
    %v1958 = vunpack.c.l.s4 1966171168
    %v1959 = vunpack.c.0.s8 %v1958
    %v1960 = vlaneseq
    %v1961 = vshrl.u32 %v1960, 7
    %v1962 = vsub.s32 %v1959, %v1961
    %v1963 = vrot.slane %v1941, %v1962
    %v1965 = vunpack.c.l.s4 1966171168
    %v1966 = vunpack.c.0.s8 %v1965
    %v1967 = vlaneseq
    %v1968 = vshrl.u32 %v1967, 7
    %v1969 = vsub.s32 %v1966, %v1968
    %v1970 = vrot.slane %v1942, %v1969
    %v1971 = vcombine.high %v1949, %v1949
    %v1972 = vcombine.high %v1956, %v1956
    %v1973 = vcombine.high %v1963, %v1963
    %v1974 = vcombine.high %v1970, %v1970
    %v1975 = vcombine.high %v559, %v559
    %v1977 = vunpack.c.l.s4 1966171168
    %v1978 = vunpack.c.0.s8 %v1977
    %v1979 = vlaneseq
    %v1980 = vshrl.u32 %v1979, 7
    %v1981 = vsub.s32 %v1978, %v1980
    %v1982 = vrot.slane %v559, %v1981
    %v1984 = vunpack.c.l.s4 1966171168
    %v1985 = vunpack.c.0.s8 %v1984
    %v1986 = vlaneseq
    %v1987 = vshrl.u32 %v1986, 7
    %v1988 = vsub.s32 %v1985, %v1987
    %v1989 = vrot.slane %v1975, %v1988
    %v1990 = vcombine.high %v1982, %v1982
    %v1991 = vcombine.high %v1989, %v1989
    %v1993 = vunpack.c.l.s4 1966171168
    %v1994 = vunpack.c.0.s8 %v1993
    %v1995 = vlaneseq
    %v1996 = vshrl.u32 %v1995, 7
    %v1997 = vsub.s32 %v1994, %v1996
    %v1998 = vrot.slane %v1982, %v1997
    %v2000 = vunpack.c.l.s4 1966171168
    %v2001 = vunpack.c.0.s8 %v2000
    %v2002 = vlaneseq
    %v2003 = vshrl.u32 %v2002, 7
    %v2004 = vsub.s32 %v2001, %v2003
    %v2005 = vrot.slane %v1989, %v2004
    %v2007 = vunpack.c.l.s4 1966171168
    %v2008 = vunpack.c.0.s8 %v2007
    %v2009 = vlaneseq
    %v2010 = vshrl.u32 %v2009, 7
    %v2011 = vsub.s32 %v2008, %v2010
    %v2012 = vrot.slane %v1990, %v2011
    %v2014 = vunpack.c.l.s4 1966171168
    %v2015 = vunpack.c.0.s8 %v2014
    %v2016 = vlaneseq
    %v2017 = vshrl.u32 %v2016, 7
    %v2018 = vsub.s32 %v2015, %v2017
    %v2019 = vrot.slane %v1991, %v2018
    %v2020 = vcombine.high %v1998, %v1998
    %v2021 = vcombine.high %v2005, %v2005
    %v2022 = vcombine.high %v2012, %v2012
    %v2023 = vcombine.high %v2019, %v2019
    %v2024 = vcombine.high %v562, %v562
    %v2026 = vunpack.c.l.s4 1966171168
    %v2027 = vunpack.c.0.s8 %v2026
    %v2028 = vlaneseq
    %v2029 = vshrl.u32 %v2028, 7
    %v2030 = vsub.s32 %v2027, %v2029
    %v2031 = vrot.slane %v562, %v2030
    %v2033 = vunpack.c.l.s4 1966171168
    %v2034 = vunpack.c.0.s8 %v2033
    %v2035 = vlaneseq
    %v2036 = vshrl.u32 %v2035, 7
    %v2037 = vsub.s32 %v2034, %v2036
    %v2038 = vrot.slane %v2024, %v2037
    %v2039 = vcombine.high %v2031, %v2031
    %v2040 = vcombine.high %v2038, %v2038
    %v2042 = vunpack.c.l.s4 1966171168
    %v2043 = vunpack.c.0.s8 %v2042
    %v2044 = vlaneseq
    %v2045 = vshrl.u32 %v2044, 7
    %v2046 = vsub.s32 %v2043, %v2045
    %v2047 = vrot.slane %v2031, %v2046
    %v2049 = vunpack.c.l.s4 1966171168
    %v2050 = vunpack.c.0.s8 %v2049
    %v2051 = vlaneseq
    %v2052 = vshrl.u32 %v2051, 7
    %v2053 = vsub.s32 %v2050, %v2052
    %v2054 = vrot.slane %v2038, %v2053
    %v2056 = vunpack.c.l.s4 1966171168
    %v2057 = vunpack.c.0.s8 %v2056
    %v2058 = vlaneseq
    %v2059 = vshrl.u32 %v2058, 7
    %v2060 = vsub.s32 %v2057, %v2059
    %v2061 = vrot.slane %v2039, %v2060
    %v2063 = vunpack.c.l.s4 1966171168
    %v2064 = vunpack.c.0.s8 %v2063
    %v2065 = vlaneseq
    %v2066 = vshrl.u32 %v2065, 7
    %v2067 = vsub.s32 %v2064, %v2066
    %v2068 = vrot.slane %v2040, %v2067
    %v2069 = vcombine.high %v2047, %v2047
    %v2070 = vcombine.high %v2054, %v2054
    %v2071 = vcombine.high %v2061, %v2061
    %v2072 = vcombine.high %v2068, %v2068
    %v2073 = vcombine.high %v567, %v567
    %v2075 = vunpack.c.l.s4 1966171168
    %v2076 = vunpack.c.0.s8 %v2075
    %v2077 = vlaneseq
    %v2078 = vshrl.u32 %v2077, 7
    %v2079 = vsub.s32 %v2076, %v2078
    %v2080 = vrot.slane %v567, %v2079
    %v2082 = vunpack.c.l.s4 1966171168
    %v2083 = vunpack.c.0.s8 %v2082
    %v2084 = vlaneseq
    %v2085 = vshrl.u32 %v2084, 7
    %v2086 = vsub.s32 %v2083, %v2085
    %v2087 = vrot.slane %v2073, %v2086
    %v2088 = vcombine.high %v2080, %v2080
    %v2089 = vcombine.high %v2087, %v2087
    %v2091 = vunpack.c.l.s4 1966171168
    %v2092 = vunpack.c.0.s8 %v2091
    %v2093 = vlaneseq
    %v2094 = vshrl.u32 %v2093, 7
    %v2095 = vsub.s32 %v2092, %v2094
    %v2096 = vrot.slane %v2080, %v2095
    %v2098 = vunpack.c.l.s4 1966171168
    %v2099 = vunpack.c.0.s8 %v2098
    %v2100 = vlaneseq
    %v2101 = vshrl.u32 %v2100, 7
    %v2102 = vsub.s32 %v2099, %v2101
    %v2103 = vrot.slane %v2087, %v2102
    %v2105 = vunpack.c.l.s4 1966171168
    %v2106 = vunpack.c.0.s8 %v2105
    %v2107 = vlaneseq
    %v2108 = vshrl.u32 %v2107, 7
    %v2109 = vsub.s32 %v2106, %v2108
    %v2110 = vrot.slane %v2088, %v2109
    %v2112 = vunpack.c.l.s4 1966171168
    %v2113 = vunpack.c.0.s8 %v2112
    %v2114 = vlaneseq
    %v2115 = vshrl.u32 %v2114, 7
    %v2116 = vsub.s32 %v2113, %v2115
    %v2117 = vrot.slane %v2089, %v2116
    %v2118 = vcombine.high %v2096, %v2096
    %v2119 = vcombine.high %v2103, %v2103
    %v2120 = vcombine.high %v2110, %v2110
    %v2121 = vcombine.high %v2117, %v2117
    %v2122 = vcombine.high %v570, %v570
    %v2124 = vunpack.c.l.s4 1966171168
    %v2125 = vunpack.c.0.s8 %v2124
    %v2126 = vlaneseq
    %v2127 = vshrl.u32 %v2126, 7
    %v2128 = vsub.s32 %v2125, %v2127
    %v2129 = vrot.slane %v570, %v2128
    %v2131 = vunpack.c.l.s4 1966171168
    %v2132 = vunpack.c.0.s8 %v2131
    %v2133 = vlaneseq
    %v2134 = vshrl.u32 %v2133, 7
    %v2135 = vsub.s32 %v2132, %v2134
    %v2136 = vrot.slane %v2122, %v2135
    %v2137 = vcombine.high %v2129, %v2129
    %v2138 = vcombine.high %v2136, %v2136
    %v2140 = vunpack.c.l.s4 1966171168
    %v2141 = vunpack.c.0.s8 %v2140
    %v2142 = vlaneseq
    %v2143 = vshrl.u32 %v2142, 7
    %v2144 = vsub.s32 %v2141, %v2143
    %v2145 = vrot.slane %v2129, %v2144
    %v2147 = vunpack.c.l.s4 1966171168
    %v2148 = vunpack.c.0.s8 %v2147
    %v2149 = vlaneseq
    %v2150 = vshrl.u32 %v2149, 7
    %v2151 = vsub.s32 %v2148, %v2150
    %v2152 = vrot.slane %v2136, %v2151
    %v2154 = vunpack.c.l.s4 1966171168
    %v2155 = vunpack.c.0.s8 %v2154
    %v2156 = vlaneseq
    %v2157 = vshrl.u32 %v2156, 7
    %v2158 = vsub.s32 %v2155, %v2157
    %v2159 = vrot.slane %v2137, %v2158
    %v2161 = vunpack.c.l.s4 1966171168
    %v2162 = vunpack.c.0.s8 %v2161
    %v2163 = vlaneseq
    %v2164 = vshrl.u32 %v2163, 7
    %v2165 = vsub.s32 %v2162, %v2164
    %v2166 = vrot.slane %v2138, %v2165
    %v2167 = vcombine.high %v2145, %v2145
    %v2168 = vcombine.high %v2152, %v2152
    %v2169 = vcombine.high %v2159, %v2159
    %v2170 = vcombine.high %v2166, %v2166
    %v2171 = vcombine.high %v575, %v575
    %v2173 = vunpack.c.l.s4 1966171168
    %v2174 = vunpack.c.0.s8 %v2173
    %v2175 = vlaneseq
    %v2176 = vshrl.u32 %v2175, 7
    %v2177 = vsub.s32 %v2174, %v2176
    %v2178 = vrot.slane %v575, %v2177
    %v2180 = vunpack.c.l.s4 1966171168
    %v2181 = vunpack.c.0.s8 %v2180
    %v2182 = vlaneseq
    %v2183 = vshrl.u32 %v2182, 7
    %v2184 = vsub.s32 %v2181, %v2183
    %v2185 = vrot.slane %v2171, %v2184
    %v2186 = vcombine.high %v2178, %v2178
    %v2187 = vcombine.high %v2185, %v2185
    %v2189 = vunpack.c.l.s4 1966171168
    %v2190 = vunpack.c.0.s8 %v2189
    %v2191 = vlaneseq
    %v2192 = vshrl.u32 %v2191, 7
    %v2193 = vsub.s32 %v2190, %v2192
    %v2194 = vrot.slane %v2178, %v2193
    %v2196 = vunpack.c.l.s4 1966171168
    %v2197 = vunpack.c.0.s8 %v2196
    %v2198 = vlaneseq
    %v2199 = vshrl.u32 %v2198, 7
    %v2200 = vsub.s32 %v2197, %v2199
    %v2201 = vrot.slane %v2185, %v2200
    %v2203 = vunpack.c.l.s4 1966171168
    %v2204 = vunpack.c.0.s8 %v2203
    %v2205 = vlaneseq
    %v2206 = vshrl.u32 %v2205, 7
    %v2207 = vsub.s32 %v2204, %v2206
    %v2208 = vrot.slane %v2186, %v2207
    %v2210 = vunpack.c.l.s4 1966171168
    %v2211 = vunpack.c.0.s8 %v2210
    %v2212 = vlaneseq
    %v2213 = vshrl.u32 %v2212, 7
    %v2214 = vsub.s32 %v2211, %v2213
    %v2215 = vrot.slane %v2187, %v2214
    %v2216 = vcombine.high %v2194, %v2194
    %v2217 = vcombine.high %v2201, %v2201
    %v2218 = vcombine.high %v2208, %v2208
    %v2219 = vcombine.high %v2215, %v2215
    %v2220 = vcombine.high %v578, %v578
    %v2222 = vunpack.c.l.s4 1966171168
    %v2223 = vunpack.c.0.s8 %v2222
    %v2224 = vlaneseq
    %v2225 = vshrl.u32 %v2224, 7
    %v2226 = vsub.s32 %v2223, %v2225
    %v2227 = vrot.slane %v578, %v2226
    %v2229 = vunpack.c.l.s4 1966171168
    %v2230 = vunpack.c.0.s8 %v2229
    %v2231 = vlaneseq
    %v2232 = vshrl.u32 %v2231, 7
    %v2233 = vsub.s32 %v2230, %v2232
    %v2234 = vrot.slane %v2220, %v2233
    %v2235 = vcombine.high %v2227, %v2227
    %v2236 = vcombine.high %v2234, %v2234
    %v2238 = vunpack.c.l.s4 1966171168
    %v2239 = vunpack.c.0.s8 %v2238
    %v2240 = vlaneseq
    %v2241 = vshrl.u32 %v2240, 7
    %v2242 = vsub.s32 %v2239, %v2241
    %v2243 = vrot.slane %v2227, %v2242
    %v2245 = vunpack.c.l.s4 1966171168
    %v2246 = vunpack.c.0.s8 %v2245
    %v2247 = vlaneseq
    %v2248 = vshrl.u32 %v2247, 7
    %v2249 = vsub.s32 %v2246, %v2248
    %v2250 = vrot.slane %v2234, %v2249
    %v2252 = vunpack.c.l.s4 1966171168
    %v2253 = vunpack.c.0.s8 %v2252
    %v2254 = vlaneseq
    %v2255 = vshrl.u32 %v2254, 7
    %v2256 = vsub.s32 %v2253, %v2255
    %v2257 = vrot.slane %v2235, %v2256
    %v2259 = vunpack.c.l.s4 1966171168
    %v2260 = vunpack.c.0.s8 %v2259
    %v2261 = vlaneseq
    %v2262 = vshrl.u32 %v2261, 7
    %v2263 = vsub.s32 %v2260, %v2262
    %v2264 = vrot.slane %v2236, %v2263
    %v2265 = vcombine.high %v2243, %v2243
    %v2266 = vcombine.high %v2250, %v2250
    %v2267 = vcombine.high %v2257, %v2257
    %v2268 = vcombine.high %v2264, %v2264
    %v2269 = vcombine.high %v583, %v583
    %v2271 = vunpack.c.l.s4 1966171168
    %v2272 = vunpack.c.0.s8 %v2271
    %v2273 = vlaneseq
    %v2274 = vshrl.u32 %v2273, 7
    %v2275 = vsub.s32 %v2272, %v2274
    %v2276 = vrot.slane %v583, %v2275
    %v2278 = vunpack.c.l.s4 1966171168
    %v2279 = vunpack.c.0.s8 %v2278
    %v2280 = vlaneseq
    %v2281 = vshrl.u32 %v2280, 7
    %v2282 = vsub.s32 %v2279, %v2281
    %v2283 = vrot.slane %v2269, %v2282
    %v2284 = vcombine.high %v2276, %v2276
    %v2285 = vcombine.high %v2283, %v2283
    %v2287 = vunpack.c.l.s4 1966171168
    %v2288 = vunpack.c.0.s8 %v2287
    %v2289 = vlaneseq
    %v2290 = vshrl.u32 %v2289, 7
    %v2291 = vsub.s32 %v2288, %v2290
    %v2292 = vrot.slane %v2276, %v2291
    %v2294 = vunpack.c.l.s4 1966171168
    %v2295 = vunpack.c.0.s8 %v2294
    %v2296 = vlaneseq
    %v2297 = vshrl.u32 %v2296, 7
    %v2298 = vsub.s32 %v2295, %v2297
    %v2299 = vrot.slane %v2283, %v2298
    %v2301 = vunpack.c.l.s4 1966171168
    %v2302 = vunpack.c.0.s8 %v2301
    %v2303 = vlaneseq
    %v2304 = vshrl.u32 %v2303, 7
    %v2305 = vsub.s32 %v2302, %v2304
    %v2306 = vrot.slane %v2284, %v2305
    %v2308 = vunpack.c.l.s4 1966171168
    %v2309 = vunpack.c.0.s8 %v2308
    %v2310 = vlaneseq
    %v2311 = vshrl.u32 %v2310, 7
    %v2312 = vsub.s32 %v2309, %v2311
    %v2313 = vrot.slane %v2285, %v2312
    %v2314 = vcombine.high %v2292, %v2292
    %v2315 = vcombine.high %v2299, %v2299
    %v2316 = vcombine.high %v2306, %v2306
    %v2317 = vcombine.high %v2313, %v2313
    %v2318 = vcombine.high %v586, %v586
    %v2320 = vunpack.c.l.s4 1966171168
    %v2321 = vunpack.c.0.s8 %v2320
    %v2322 = vlaneseq
    %v2323 = vshrl.u32 %v2322, 7
    %v2324 = vsub.s32 %v2321, %v2323
    %v2325 = vrot.slane %v586, %v2324
    %v2327 = vunpack.c.l.s4 1966171168
    %v2328 = vunpack.c.0.s8 %v2327
    %v2329 = vlaneseq
    %v2330 = vshrl.u32 %v2329, 7
    %v2331 = vsub.s32 %v2328, %v2330
    %v2332 = vrot.slane %v2318, %v2331
    %v2333 = vcombine.high %v2325, %v2325
    %v2334 = vcombine.high %v2332, %v2332
    %v2336 = vunpack.c.l.s4 1966171168
    %v2337 = vunpack.c.0.s8 %v2336
    %v2338 = vlaneseq
    %v2339 = vshrl.u32 %v2338, 7
    %v2340 = vsub.s32 %v2337, %v2339
    %v2341 = vrot.slane %v2325, %v2340
    %v2343 = vunpack.c.l.s4 1966171168
    %v2344 = vunpack.c.0.s8 %v2343
    %v2345 = vlaneseq
    %v2346 = vshrl.u32 %v2345, 7
    %v2347 = vsub.s32 %v2344, %v2346
    %v2348 = vrot.slane %v2332, %v2347
    %v2350 = vunpack.c.l.s4 1966171168
    %v2351 = vunpack.c.0.s8 %v2350
    %v2352 = vlaneseq
    %v2353 = vshrl.u32 %v2352, 7
    %v2354 = vsub.s32 %v2351, %v2353
    %v2355 = vrot.slane %v2333, %v2354
    %v2357 = vunpack.c.l.s4 1966171168
    %v2358 = vunpack.c.0.s8 %v2357
    %v2359 = vlaneseq
    %v2360 = vshrl.u32 %v2359, 7
    %v2361 = vsub.s32 %v2358, %v2360
    %v2362 = vrot.slane %v2334, %v2361
    %v2363 = vcombine.high %v2341, %v2341
    %v2364 = vcombine.high %v2348, %v2348
    %v2365 = vcombine.high %v2355, %v2355
    %v2366 = vcombine.high %v2362, %v2362
    %v2367 = vcombine.high %v591, %v591
    %v2369 = vunpack.c.l.s4 1966171168
    %v2370 = vunpack.c.0.s8 %v2369
    %v2371 = vlaneseq
    %v2372 = vshrl.u32 %v2371, 7
    %v2373 = vsub.s32 %v2370, %v2372
    %v2374 = vrot.slane %v591, %v2373
    %v2376 = vunpack.c.l.s4 1966171168
    %v2377 = vunpack.c.0.s8 %v2376
    %v2378 = vlaneseq
    %v2379 = vshrl.u32 %v2378, 7
    %v2380 = vsub.s32 %v2377, %v2379
    %v2381 = vrot.slane %v2367, %v2380
    %v2382 = vcombine.high %v2374, %v2374
    %v2383 = vcombine.high %v2381, %v2381
    %v2385 = vunpack.c.l.s4 1966171168
    %v2386 = vunpack.c.0.s8 %v2385
    %v2387 = vlaneseq
    %v2388 = vshrl.u32 %v2387, 7
    %v2389 = vsub.s32 %v2386, %v2388
    %v2390 = vrot.slane %v2374, %v2389
    %v2392 = vunpack.c.l.s4 1966171168
    %v2393 = vunpack.c.0.s8 %v2392
    %v2394 = vlaneseq
    %v2395 = vshrl.u32 %v2394, 7
    %v2396 = vsub.s32 %v2393, %v2395
    %v2397 = vrot.slane %v2381, %v2396
    %v2399 = vunpack.c.l.s4 1966171168
    %v2400 = vunpack.c.0.s8 %v2399
    %v2401 = vlaneseq
    %v2402 = vshrl.u32 %v2401, 7
    %v2403 = vsub.s32 %v2400, %v2402
    %v2404 = vrot.slane %v2382, %v2403
    %v2406 = vunpack.c.l.s4 1966171168
    %v2407 = vunpack.c.0.s8 %v2406
    %v2408 = vlaneseq
    %v2409 = vshrl.u32 %v2408, 7
    %v2410 = vsub.s32 %v2407, %v2409
    %v2411 = vrot.slane %v2383, %v2410
    %v2412 = vcombine.high %v2390, %v2390
    %v2413 = vcombine.high %v2397, %v2397
    %v2414 = vcombine.high %v2404, %v2404
    %v2415 = vcombine.high %v2411, %v2411
    %v2416 = vcombine.high %v594, %v594
    %v2418 = vunpack.c.l.s4 1966171168
    %v2419 = vunpack.c.0.s8 %v2418
    %v2420 = vlaneseq
    %v2421 = vshrl.u32 %v2420, 7
    %v2422 = vsub.s32 %v2419, %v2421
    %v2423 = vrot.slane %v594, %v2422
    %v2425 = vunpack.c.l.s4 1966171168
    %v2426 = vunpack.c.0.s8 %v2425
    %v2427 = vlaneseq
    %v2428 = vshrl.u32 %v2427, 7
    %v2429 = vsub.s32 %v2426, %v2428
    %v2430 = vrot.slane %v2416, %v2429
    %v2431 = vcombine.high %v2423, %v2423
    %v2432 = vcombine.high %v2430, %v2430
    %v2434 = vunpack.c.l.s4 1966171168
    %v2435 = vunpack.c.0.s8 %v2434
    %v2436 = vlaneseq
    %v2437 = vshrl.u32 %v2436, 7
    %v2438 = vsub.s32 %v2435, %v2437
    %v2439 = vrot.slane %v2423, %v2438
    %v2441 = vunpack.c.l.s4 1966171168
    %v2442 = vunpack.c.0.s8 %v2441
    %v2443 = vlaneseq
    %v2444 = vshrl.u32 %v2443, 7
    %v2445 = vsub.s32 %v2442, %v2444
    %v2446 = vrot.slane %v2430, %v2445
    %v2448 = vunpack.c.l.s4 1966171168
    %v2449 = vunpack.c.0.s8 %v2448
    %v2450 = vlaneseq
    %v2451 = vshrl.u32 %v2450, 7
    %v2452 = vsub.s32 %v2449, %v2451
    %v2453 = vrot.slane %v2431, %v2452
    %v2455 = vunpack.c.l.s4 1966171168
    %v2456 = vunpack.c.0.s8 %v2455
    %v2457 = vlaneseq
    %v2458 = vshrl.u32 %v2457, 7
    %v2459 = vsub.s32 %v2456, %v2458
    %v2460 = vrot.slane %v2432, %v2459
    %v2461 = vcombine.high %v2439, %v2439
    %v2462 = vcombine.high %v2446, %v2446
    %v2463 = vcombine.high %v2453, %v2453
    %v2464 = vcombine.high %v2460, %v2460
    %v2465 = vcombine.high %v599, %v599
    %v2467 = vunpack.c.l.s4 1966171168
    %v2468 = vunpack.c.0.s8 %v2467
    %v2469 = vlaneseq
    %v2470 = vshrl.u32 %v2469, 7
    %v2471 = vsub.s32 %v2468, %v2470
    %v2472 = vrot.slane %v599, %v2471
    %v2474 = vunpack.c.l.s4 1966171168
    %v2475 = vunpack.c.0.s8 %v2474
    %v2476 = vlaneseq
    %v2477 = vshrl.u32 %v2476, 7
    %v2478 = vsub.s32 %v2475, %v2477
    %v2479 = vrot.slane %v2465, %v2478
    %v2480 = vcombine.high %v2472, %v2472
    %v2481 = vcombine.high %v2479, %v2479
    %v2483 = vunpack.c.l.s4 1966171168
    %v2484 = vunpack.c.0.s8 %v2483
    %v2485 = vlaneseq
    %v2486 = vshrl.u32 %v2485, 7
    %v2487 = vsub.s32 %v2484, %v2486
    %v2488 = vrot.slane %v2472, %v2487
    %v2490 = vunpack.c.l.s4 1966171168
    %v2491 = vunpack.c.0.s8 %v2490
    %v2492 = vlaneseq
    %v2493 = vshrl.u32 %v2492, 7
    %v2494 = vsub.s32 %v2491, %v2493
    %v2495 = vrot.slane %v2479, %v2494
    %v2497 = vunpack.c.l.s4 1966171168
    %v2498 = vunpack.c.0.s8 %v2497
    %v2499 = vlaneseq
    %v2500 = vshrl.u32 %v2499, 7
    %v2501 = vsub.s32 %v2498, %v2500
    %v2502 = vrot.slane %v2480, %v2501
    %v2504 = vunpack.c.l.s4 1966171168
    %v2505 = vunpack.c.0.s8 %v2504
    %v2506 = vlaneseq
    %v2507 = vshrl.u32 %v2506, 7
    %v2508 = vsub.s32 %v2505, %v2507
    %v2509 = vrot.slane %v2481, %v2508
    %v2510 = vcombine.high %v2488, %v2488
    %v2511 = vcombine.high %v2495, %v2495
    %v2512 = vcombine.high %v2502, %v2502
    %v2513 = vcombine.high %v2509, %v2509
    %v2514 = vcombine.high %v602, %v602
    %v2516 = vunpack.c.l.s4 1966171168
    %v2517 = vunpack.c.0.s8 %v2516
    %v2518 = vlaneseq
    %v2519 = vshrl.u32 %v2518, 7
    %v2520 = vsub.s32 %v2517, %v2519
    %v2521 = vrot.slane %v602, %v2520
    %v2523 = vunpack.c.l.s4 1966171168
    %v2524 = vunpack.c.0.s8 %v2523
    %v2525 = vlaneseq
    %v2526 = vshrl.u32 %v2525, 7
    %v2527 = vsub.s32 %v2524, %v2526
    %v2528 = vrot.slane %v2514, %v2527
    %v2529 = vcombine.high %v2521, %v2521
    %v2530 = vcombine.high %v2528, %v2528
    %v2532 = vunpack.c.l.s4 1966171168
    %v2533 = vunpack.c.0.s8 %v2532
    %v2534 = vlaneseq
    %v2535 = vshrl.u32 %v2534, 7
    %v2536 = vsub.s32 %v2533, %v2535
    %v2537 = vrot.slane %v2521, %v2536
    %v2539 = vunpack.c.l.s4 1966171168
    %v2540 = vunpack.c.0.s8 %v2539
    %v2541 = vlaneseq
    %v2542 = vshrl.u32 %v2541, 7
    %v2543 = vsub.s32 %v2540, %v2542
    %v2544 = vrot.slane %v2528, %v2543
    %v2546 = vunpack.c.l.s4 1966171168
    %v2547 = vunpack.c.0.s8 %v2546
    %v2548 = vlaneseq
    %v2549 = vshrl.u32 %v2548, 7
    %v2550 = vsub.s32 %v2547, %v2549
    %v2551 = vrot.slane %v2529, %v2550
    %v2553 = vunpack.c.l.s4 1966171168
    %v2554 = vunpack.c.0.s8 %v2553
    %v2555 = vlaneseq
    %v2556 = vshrl.u32 %v2555, 7
    %v2557 = vsub.s32 %v2554, %v2556
    %v2558 = vrot.slane %v2530, %v2557
    %v2559 = vcombine.high %v2537, %v2537
    %v2560 = vcombine.high %v2544, %v2544
    %v2561 = vcombine.high %v2551, %v2551
    %v2562 = vcombine.high %v2558, %v2558
    %v2563 = vcombine.high %v607, %v607
    %v2565 = vunpack.c.l.s4 1966171168
    %v2566 = vunpack.c.0.s8 %v2565
    %v2567 = vlaneseq
    %v2568 = vshrl.u32 %v2567, 7
    %v2569 = vsub.s32 %v2566, %v2568
    %v2570 = vrot.slane %v607, %v2569
    %v2572 = vunpack.c.l.s4 1966171168
    %v2573 = vunpack.c.0.s8 %v2572
    %v2574 = vlaneseq
    %v2575 = vshrl.u32 %v2574, 7
    %v2576 = vsub.s32 %v2573, %v2575
    %v2577 = vrot.slane %v2563, %v2576
    %v2578 = vcombine.high %v2570, %v2570
    %v2579 = vcombine.high %v2577, %v2577
    %v2581 = vunpack.c.l.s4 1966171168
    %v2582 = vunpack.c.0.s8 %v2581
    %v2583 = vlaneseq
    %v2584 = vshrl.u32 %v2583, 7
    %v2585 = vsub.s32 %v2582, %v2584
    %v2586 = vrot.slane %v2570, %v2585
    %v2588 = vunpack.c.l.s4 1966171168
    %v2589 = vunpack.c.0.s8 %v2588
    %v2590 = vlaneseq
    %v2591 = vshrl.u32 %v2590, 7
    %v2592 = vsub.s32 %v2589, %v2591
    %v2593 = vrot.slane %v2577, %v2592
    %v2595 = vunpack.c.l.s4 1966171168
    %v2596 = vunpack.c.0.s8 %v2595
    %v2597 = vlaneseq
    %v2598 = vshrl.u32 %v2597, 7
    %v2599 = vsub.s32 %v2596, %v2598
    %v2600 = vrot.slane %v2578, %v2599
    %v2602 = vunpack.c.l.s4 1966171168
    %v2603 = vunpack.c.0.s8 %v2602
    %v2604 = vlaneseq
    %v2605 = vshrl.u32 %v2604, 7
    %v2606 = vsub.s32 %v2603, %v2605
    %v2607 = vrot.slane %v2579, %v2606
    %v2608 = vcombine.high %v2586, %v2586
    %v2609 = vcombine.high %v2593, %v2593
    %v2610 = vcombine.high %v2600, %v2600
    %v2611 = vcombine.high %v2607, %v2607
    %v2612 = vcombine.high %v610, %v610
    %v2614 = vunpack.c.l.s4 1966171168
    %v2615 = vunpack.c.0.s8 %v2614
    %v2616 = vlaneseq
    %v2617 = vshrl.u32 %v2616, 7
    %v2618 = vsub.s32 %v2615, %v2617
    %v2619 = vrot.slane %v610, %v2618
    %v2621 = vunpack.c.l.s4 1966171168
    %v2622 = vunpack.c.0.s8 %v2621
    %v2623 = vlaneseq
    %v2624 = vshrl.u32 %v2623, 7
    %v2625 = vsub.s32 %v2622, %v2624
    %v2626 = vrot.slane %v2612, %v2625
    %v2627 = vcombine.high %v2619, %v2619
    %v2628 = vcombine.high %v2626, %v2626
    %v2630 = vunpack.c.l.s4 1966171168
    %v2631 = vunpack.c.0.s8 %v2630
    %v2632 = vlaneseq
    %v2633 = vshrl.u32 %v2632, 7
    %v2634 = vsub.s32 %v2631, %v2633
    %v2635 = vrot.slane %v2619, %v2634
    %v2637 = vunpack.c.l.s4 1966171168
    %v2638 = vunpack.c.0.s8 %v2637
    %v2639 = vlaneseq
    %v2640 = vshrl.u32 %v2639, 7
    %v2641 = vsub.s32 %v2638, %v2640
    %v2642 = vrot.slane %v2626, %v2641
    %v2644 = vunpack.c.l.s4 1966171168
    %v2645 = vunpack.c.0.s8 %v2644
    %v2646 = vlaneseq
    %v2647 = vshrl.u32 %v2646, 7
    %v2648 = vsub.s32 %v2645, %v2647
    %v2649 = vrot.slane %v2627, %v2648
    %v2651 = vunpack.c.l.s4 1966171168
    %v2652 = vunpack.c.0.s8 %v2651
    %v2653 = vlaneseq
    %v2654 = vshrl.u32 %v2653, 7
    %v2655 = vsub.s32 %v2652, %v2654
    %v2656 = vrot.slane %v2628, %v2655
    %v2657 = vcombine.high %v2635, %v2635
    %v2658 = vcombine.high %v2642, %v2642
    %v2659 = vcombine.high %v2649, %v2649
    %v2660 = vcombine.high %v2656, %v2656
    %v2661 = vcombine.high %v615, %v615
    %v2663 = vunpack.c.l.s4 1966171168
    %v2664 = vunpack.c.0.s8 %v2663
    %v2665 = vlaneseq
    %v2666 = vshrl.u32 %v2665, 7
    %v2667 = vsub.s32 %v2664, %v2666
    %v2668 = vrot.slane %v615, %v2667
    %v2670 = vunpack.c.l.s4 1966171168
    %v2671 = vunpack.c.0.s8 %v2670
    %v2672 = vlaneseq
    %v2673 = vshrl.u32 %v2672, 7
    %v2674 = vsub.s32 %v2671, %v2673
    %v2675 = vrot.slane %v2661, %v2674
    %v2676 = vcombine.high %v2668, %v2668
    %v2677 = vcombine.high %v2675, %v2675
    %v2679 = vunpack.c.l.s4 1966171168
    %v2680 = vunpack.c.0.s8 %v2679
    %v2681 = vlaneseq
    %v2682 = vshrl.u32 %v2681, 7
    %v2683 = vsub.s32 %v2680, %v2682
    %v2684 = vrot.slane %v2668, %v2683
    %v2686 = vunpack.c.l.s4 1966171168
    %v2687 = vunpack.c.0.s8 %v2686
    %v2688 = vlaneseq
    %v2689 = vshrl.u32 %v2688, 7
    %v2690 = vsub.s32 %v2687, %v2689
    %v2691 = vrot.slane %v2675, %v2690
    %v2693 = vunpack.c.l.s4 1966171168
    %v2694 = vunpack.c.0.s8 %v2693
    %v2695 = vlaneseq
    %v2696 = vshrl.u32 %v2695, 7
    %v2697 = vsub.s32 %v2694, %v2696
    %v2698 = vrot.slane %v2676, %v2697
    %v2700 = vunpack.c.l.s4 1966171168
    %v2701 = vunpack.c.0.s8 %v2700
    %v2702 = vlaneseq
    %v2703 = vshrl.u32 %v2702, 7
    %v2704 = vsub.s32 %v2701, %v2703
    %v2705 = vrot.slane %v2677, %v2704
    %v2706 = vcombine.high %v2684, %v2684
    %v2707 = vcombine.high %v2691, %v2691
    %v2708 = vcombine.high %v2698, %v2698
    %v2709 = vcombine.high %v2705, %v2705
    %v2710 = vcombine.high %v618, %v618
    %v2712 = vunpack.c.l.s4 1966171168
    %v2713 = vunpack.c.0.s8 %v2712
    %v2714 = vlaneseq
    %v2715 = vshrl.u32 %v2714, 7
    %v2716 = vsub.s32 %v2713, %v2715
    %v2717 = vrot.slane %v618, %v2716
    %v2719 = vunpack.c.l.s4 1966171168
    %v2720 = vunpack.c.0.s8 %v2719
    %v2721 = vlaneseq
    %v2722 = vshrl.u32 %v2721, 7
    %v2723 = vsub.s32 %v2720, %v2722
    %v2724 = vrot.slane %v2710, %v2723
    %v2725 = vcombine.high %v2717, %v2717
    %v2726 = vcombine.high %v2724, %v2724
    %v2728 = vunpack.c.l.s4 1966171168
    %v2729 = vunpack.c.0.s8 %v2728
    %v2730 = vlaneseq
    %v2731 = vshrl.u32 %v2730, 7
    %v2732 = vsub.s32 %v2729, %v2731
    %v2733 = vrot.slane %v2717, %v2732
    %v2735 = vunpack.c.l.s4 1966171168
    %v2736 = vunpack.c.0.s8 %v2735
    %v2737 = vlaneseq
    %v2738 = vshrl.u32 %v2737, 7
    %v2739 = vsub.s32 %v2736, %v2738
    %v2740 = vrot.slane %v2724, %v2739
    %v2742 = vunpack.c.l.s4 1966171168
    %v2743 = vunpack.c.0.s8 %v2742
    %v2744 = vlaneseq
    %v2745 = vshrl.u32 %v2744, 7
    %v2746 = vsub.s32 %v2743, %v2745
    %v2747 = vrot.slane %v2725, %v2746
    %v2749 = vunpack.c.l.s4 1966171168
    %v2750 = vunpack.c.0.s8 %v2749
    %v2751 = vlaneseq
    %v2752 = vshrl.u32 %v2751, 7
    %v2753 = vsub.s32 %v2750, %v2752
    %v2754 = vrot.slane %v2726, %v2753
    %v2755 = vcombine.high %v2733, %v2733
    %v2756 = vcombine.high %v2740, %v2740
    %v2757 = vcombine.high %v2747, %v2747
    %v2758 = vcombine.high %v2754, %v2754
    %v2759 = vcombine.high %v623, %v623
    %v2761 = vunpack.c.l.s4 1966171168
    %v2762 = vunpack.c.0.s8 %v2761
    %v2763 = vlaneseq
    %v2764 = vshrl.u32 %v2763, 7
    %v2765 = vsub.s32 %v2762, %v2764
    %v2766 = vrot.slane %v623, %v2765
    %v2768 = vunpack.c.l.s4 1966171168
    %v2769 = vunpack.c.0.s8 %v2768
    %v2770 = vlaneseq
    %v2771 = vshrl.u32 %v2770, 7
    %v2772 = vsub.s32 %v2769, %v2771
    %v2773 = vrot.slane %v2759, %v2772
    %v2774 = vcombine.high %v2766, %v2766
    %v2775 = vcombine.high %v2773, %v2773
    %v2777 = vunpack.c.l.s4 1966171168
    %v2778 = vunpack.c.0.s8 %v2777
    %v2779 = vlaneseq
    %v2780 = vshrl.u32 %v2779, 7
    %v2781 = vsub.s32 %v2778, %v2780
    %v2782 = vrot.slane %v2766, %v2781
    %v2784 = vunpack.c.l.s4 1966171168
    %v2785 = vunpack.c.0.s8 %v2784
    %v2786 = vlaneseq
    %v2787 = vshrl.u32 %v2786, 7
    %v2788 = vsub.s32 %v2785, %v2787
    %v2789 = vrot.slane %v2773, %v2788
    %v2791 = vunpack.c.l.s4 1966171168
    %v2792 = vunpack.c.0.s8 %v2791
    %v2793 = vlaneseq
    %v2794 = vshrl.u32 %v2793, 7
    %v2795 = vsub.s32 %v2792, %v2794
    %v2796 = vrot.slane %v2774, %v2795
    %v2798 = vunpack.c.l.s4 1966171168
    %v2799 = vunpack.c.0.s8 %v2798
    %v2800 = vlaneseq
    %v2801 = vshrl.u32 %v2800, 7
    %v2802 = vsub.s32 %v2799, %v2801
    %v2803 = vrot.slane %v2775, %v2802
    %v2804 = vcombine.high %v2782, %v2782
    %v2805 = vcombine.high %v2789, %v2789
    %v2806 = vcombine.high %v2796, %v2796
    %v2807 = vcombine.high %v2803, %v2803
    %v2808 = vcombine.high %v626, %v626
    %v2810 = vunpack.c.l.s4 1966171168
    %v2811 = vunpack.c.0.s8 %v2810
    %v2812 = vlaneseq
    %v2813 = vshrl.u32 %v2812, 7
    %v2814 = vsub.s32 %v2811, %v2813
    %v2815 = vrot.slane %v626, %v2814
    %v2817 = vunpack.c.l.s4 1966171168
    %v2818 = vunpack.c.0.s8 %v2817
    %v2819 = vlaneseq
    %v2820 = vshrl.u32 %v2819, 7
    %v2821 = vsub.s32 %v2818, %v2820
    %v2822 = vrot.slane %v2808, %v2821
    %v2823 = vcombine.high %v2815, %v2815
    %v2824 = vcombine.high %v2822, %v2822
    %v2826 = vunpack.c.l.s4 1966171168
    %v2827 = vunpack.c.0.s8 %v2826
    %v2828 = vlaneseq
    %v2829 = vshrl.u32 %v2828, 7
    %v2830 = vsub.s32 %v2827, %v2829
    %v2831 = vrot.slane %v2815, %v2830
    %v2833 = vunpack.c.l.s4 1966171168
    %v2834 = vunpack.c.0.s8 %v2833
    %v2835 = vlaneseq
    %v2836 = vshrl.u32 %v2835, 7
    %v2837 = vsub.s32 %v2834, %v2836
    %v2838 = vrot.slane %v2822, %v2837
    %v2840 = vunpack.c.l.s4 1966171168
    %v2841 = vunpack.c.0.s8 %v2840
    %v2842 = vlaneseq
    %v2843 = vshrl.u32 %v2842, 7
    %v2844 = vsub.s32 %v2841, %v2843
    %v2845 = vrot.slane %v2823, %v2844
    %v2847 = vunpack.c.l.s4 1966171168
    %v2848 = vunpack.c.0.s8 %v2847
    %v2849 = vlaneseq
    %v2850 = vshrl.u32 %v2849, 7
    %v2851 = vsub.s32 %v2848, %v2850
    %v2852 = vrot.slane %v2824, %v2851
    %v2853 = vcombine.high %v2831, %v2831
    %v2854 = vcombine.high %v2838, %v2838
    %v2855 = vcombine.high %v2845, %v2845
    %v2856 = vcombine.high %v2852, %v2852
    %v2857 = vcombine.high %v631, %v631
    %v2859 = vunpack.c.l.s4 1966171168
    %v2860 = vunpack.c.0.s8 %v2859
    %v2861 = vlaneseq
    %v2862 = vshrl.u32 %v2861, 7
    %v2863 = vsub.s32 %v2860, %v2862
    %v2864 = vrot.slane %v631, %v2863
    %v2866 = vunpack.c.l.s4 1966171168
    %v2867 = vunpack.c.0.s8 %v2866
    %v2868 = vlaneseq
    %v2869 = vshrl.u32 %v2868, 7
    %v2870 = vsub.s32 %v2867, %v2869
    %v2871 = vrot.slane %v2857, %v2870
    %v2872 = vcombine.high %v2864, %v2864
    %v2873 = vcombine.high %v2871, %v2871
    %v2875 = vunpack.c.l.s4 1966171168
    %v2876 = vunpack.c.0.s8 %v2875
    %v2877 = vlaneseq
    %v2878 = vshrl.u32 %v2877, 7
    %v2879 = vsub.s32 %v2876, %v2878
    %v2880 = vrot.slane %v2864, %v2879
    %v2882 = vunpack.c.l.s4 1966171168
    %v2883 = vunpack.c.0.s8 %v2882
    %v2884 = vlaneseq
    %v2885 = vshrl.u32 %v2884, 7
    %v2886 = vsub.s32 %v2883, %v2885
    %v2887 = vrot.slane %v2871, %v2886
    %v2889 = vunpack.c.l.s4 1966171168
    %v2890 = vunpack.c.0.s8 %v2889
    %v2891 = vlaneseq
    %v2892 = vshrl.u32 %v2891, 7
    %v2893 = vsub.s32 %v2890, %v2892
    %v2894 = vrot.slane %v2872, %v2893
    %v2896 = vunpack.c.l.s4 1966171168
    %v2897 = vunpack.c.0.s8 %v2896
    %v2898 = vlaneseq
    %v2899 = vshrl.u32 %v2898, 7
    %v2900 = vsub.s32 %v2897, %v2899
    %v2901 = vrot.slane %v2873, %v2900
    %v2902 = vcombine.high %v2880, %v2880
    %v2903 = vcombine.high %v2887, %v2887
    %v2904 = vcombine.high %v2894, %v2894
    %v2905 = vcombine.high %v2901, %v2901
    %v2906 = vcombine.high %v634, %v634
    %v2908 = vunpack.c.l.s4 1966171168
    %v2909 = vunpack.c.0.s8 %v2908
    %v2910 = vlaneseq
    %v2911 = vshrl.u32 %v2910, 7
    %v2912 = vsub.s32 %v2909, %v2911
    %v2913 = vrot.slane %v634, %v2912
    %v2915 = vunpack.c.l.s4 1966171168
    %v2916 = vunpack.c.0.s8 %v2915
    %v2917 = vlaneseq
    %v2918 = vshrl.u32 %v2917, 7
    %v2919 = vsub.s32 %v2916, %v2918
    %v2920 = vrot.slane %v2906, %v2919
    %v2921 = vcombine.high %v2913, %v2913
    %v2922 = vcombine.high %v2920, %v2920
    %v2924 = vunpack.c.l.s4 1966171168
    %v2925 = vunpack.c.0.s8 %v2924
    %v2926 = vlaneseq
    %v2927 = vshrl.u32 %v2926, 7
    %v2928 = vsub.s32 %v2925, %v2927
    %v2929 = vrot.slane %v2913, %v2928
    %v2931 = vunpack.c.l.s4 1966171168
    %v2932 = vunpack.c.0.s8 %v2931
    %v2933 = vlaneseq
    %v2934 = vshrl.u32 %v2933, 7
    %v2935 = vsub.s32 %v2932, %v2934
    %v2936 = vrot.slane %v2920, %v2935
    %v2938 = vunpack.c.l.s4 1966171168
    %v2939 = vunpack.c.0.s8 %v2938
    %v2940 = vlaneseq
    %v2941 = vshrl.u32 %v2940, 7
    %v2942 = vsub.s32 %v2939, %v2941
    %v2943 = vrot.slane %v2921, %v2942
    %v2945 = vunpack.c.l.s4 1966171168
    %v2946 = vunpack.c.0.s8 %v2945
    %v2947 = vlaneseq
    %v2948 = vshrl.u32 %v2947, 7
    %v2949 = vsub.s32 %v2946, %v2948
    %v2950 = vrot.slane %v2922, %v2949
    %v2951 = vcombine.high %v2929, %v2929
    %v2952 = vcombine.high %v2936, %v2936
    %v2953 = vcombine.high %v2943, %v2943
    %v2954 = vcombine.high %v2950, %v2950
    %v2955 = vcombine.high %v639, %v639
    %v2957 = vunpack.c.l.s4 1966171168
    %v2958 = vunpack.c.0.s8 %v2957
    %v2959 = vlaneseq
    %v2960 = vshrl.u32 %v2959, 7
    %v2961 = vsub.s32 %v2958, %v2960
    %v2962 = vrot.slane %v639, %v2961
    %v2964 = vunpack.c.l.s4 1966171168
    %v2965 = vunpack.c.0.s8 %v2964
    %v2966 = vlaneseq
    %v2967 = vshrl.u32 %v2966, 7
    %v2968 = vsub.s32 %v2965, %v2967
    %v2969 = vrot.slane %v2955, %v2968
    %v2970 = vcombine.high %v2962, %v2962
    %v2971 = vcombine.high %v2969, %v2969
    %v2973 = vunpack.c.l.s4 1966171168
    %v2974 = vunpack.c.0.s8 %v2973
    %v2975 = vlaneseq
    %v2976 = vshrl.u32 %v2975, 7
    %v2977 = vsub.s32 %v2974, %v2976
    %v2978 = vrot.slane %v2962, %v2977
    %v2980 = vunpack.c.l.s4 1966171168
    %v2981 = vunpack.c.0.s8 %v2980
    %v2982 = vlaneseq
    %v2983 = vshrl.u32 %v2982, 7
    %v2984 = vsub.s32 %v2981, %v2983
    %v2985 = vrot.slane %v2969, %v2984
    %v2987 = vunpack.c.l.s4 1966171168
    %v2988 = vunpack.c.0.s8 %v2987
    %v2989 = vlaneseq
    %v2990 = vshrl.u32 %v2989, 7
    %v2991 = vsub.s32 %v2988, %v2990
    %v2992 = vrot.slane %v2970, %v2991
    %v2994 = vunpack.c.l.s4 1966171168
    %v2995 = vunpack.c.0.s8 %v2994
    %v2996 = vlaneseq
    %v2997 = vshrl.u32 %v2996, 7
    %v2998 = vsub.s32 %v2995, %v2997
    %v2999 = vrot.slane %v2971, %v2998
    %v3000 = vcombine.high %v2978, %v2978
    %v3001 = vcombine.high %v2985, %v2985
    %v3002 = vcombine.high %v2992, %v2992
    %v3003 = vcombine.high %v2999, %v2999
    %v3004 = vcombine.high %v642, %v642
    %v3006 = vunpack.c.l.s4 1966171168
    %v3007 = vunpack.c.0.s8 %v3006
    %v3008 = vlaneseq
    %v3009 = vshrl.u32 %v3008, 7
    %v3010 = vsub.s32 %v3007, %v3009
    %v3011 = vrot.slane %v642, %v3010
    %v3013 = vunpack.c.l.s4 1966171168
    %v3014 = vunpack.c.0.s8 %v3013
    %v3015 = vlaneseq
    %v3016 = vshrl.u32 %v3015, 7
    %v3017 = vsub.s32 %v3014, %v3016
    %v3018 = vrot.slane %v3004, %v3017
    %v3019 = vcombine.high %v3011, %v3011
    %v3020 = vcombine.high %v3018, %v3018
    %v3022 = vunpack.c.l.s4 1966171168
    %v3023 = vunpack.c.0.s8 %v3022
    %v3024 = vlaneseq
    %v3025 = vshrl.u32 %v3024, 7
    %v3026 = vsub.s32 %v3023, %v3025
    %v3027 = vrot.slane %v3011, %v3026
    %v3029 = vunpack.c.l.s4 1966171168
    %v3030 = vunpack.c.0.s8 %v3029
    %v3031 = vlaneseq
    %v3032 = vshrl.u32 %v3031, 7
    %v3033 = vsub.s32 %v3030, %v3032
    %v3034 = vrot.slane %v3018, %v3033
    %v3036 = vunpack.c.l.s4 1966171168
    %v3037 = vunpack.c.0.s8 %v3036
    %v3038 = vlaneseq
    %v3039 = vshrl.u32 %v3038, 7
    %v3040 = vsub.s32 %v3037, %v3039
    %v3041 = vrot.slane %v3019, %v3040
    %v3043 = vunpack.c.l.s4 1966171168
    %v3044 = vunpack.c.0.s8 %v3043
    %v3045 = vlaneseq
    %v3046 = vshrl.u32 %v3045, 7
    %v3047 = vsub.s32 %v3044, %v3046
    %v3048 = vrot.slane %v3020, %v3047
    %v3049 = vcombine.high %v3027, %v3027
    %v3050 = vcombine.high %v3034, %v3034
    %v3051 = vcombine.high %v3041, %v3041
    %v3052 = vcombine.high %v3048, %v3048
    %v3053 = vcombine.high %v647, %v647
    %v3055 = vunpack.c.l.s4 1966171168
    %v3056 = vunpack.c.0.s8 %v3055
    %v3057 = vlaneseq
    %v3058 = vshrl.u32 %v3057, 7
    %v3059 = vsub.s32 %v3056, %v3058
    %v3060 = vrot.slane %v647, %v3059
    %v3062 = vunpack.c.l.s4 1966171168
    %v3063 = vunpack.c.0.s8 %v3062
    %v3064 = vlaneseq
    %v3065 = vshrl.u32 %v3064, 7
    %v3066 = vsub.s32 %v3063, %v3065
    %v3067 = vrot.slane %v3053, %v3066
    %v3068 = vcombine.high %v3060, %v3060
    %v3069 = vcombine.high %v3067, %v3067
    %v3071 = vunpack.c.l.s4 1966171168
    %v3072 = vunpack.c.0.s8 %v3071
    %v3073 = vlaneseq
    %v3074 = vshrl.u32 %v3073, 7
    %v3075 = vsub.s32 %v3072, %v3074
    %v3076 = vrot.slane %v3060, %v3075
    %v3078 = vunpack.c.l.s4 1966171168
    %v3079 = vunpack.c.0.s8 %v3078
    %v3080 = vlaneseq
    %v3081 = vshrl.u32 %v3080, 7
    %v3082 = vsub.s32 %v3079, %v3081
    %v3083 = vrot.slane %v3067, %v3082
    %v3085 = vunpack.c.l.s4 1966171168
    %v3086 = vunpack.c.0.s8 %v3085
    %v3087 = vlaneseq
    %v3088 = vshrl.u32 %v3087, 7
    %v3089 = vsub.s32 %v3086, %v3088
    %v3090 = vrot.slane %v3068, %v3089
    %v3092 = vunpack.c.l.s4 1966171168
    %v3093 = vunpack.c.0.s8 %v3092
    %v3094 = vlaneseq
    %v3095 = vshrl.u32 %v3094, 7
    %v3096 = vsub.s32 %v3093, %v3095
    %v3097 = vrot.slane %v3069, %v3096
    %v3098 = vcombine.high %v3076, %v3076
    %v3099 = vcombine.high %v3083, %v3083
    %v3100 = vcombine.high %v3090, %v3090
    %v3101 = vcombine.high %v3097, %v3097
    %v3494 = vmax.f32 %v724, %v1032
    %v3495 = vmax.f32 %v738, %v1040
    %v3496 = vmax.f32 %v746, %v1042
    %v3497 = vmax.f32 %v748, %v1025
    %v3498 = vmax.f32 %v731, %v1039
    %v3499 = vmax.f32 %v745, %v1041
    %v3500 = vmax.f32 %v747, %v1043
    %v3501 = vmax.f32 %v749, %v1067
    %v3502 = vmax.f32 %v773, %v1081
    %v3503 = vmax.f32 %v787, %v1089
    %v3504 = vmax.f32 %v795, %v1091
    %v3505 = vmax.f32 %v797, %v1074
    %v3506 = vmax.f32 %v780, %v1088
    %v3507 = vmax.f32 %v794, %v1090
    %v3508 = vmax.f32 %v796, %v1092
    %v3509 = vmax.f32 %v798, %v1116
    %v3510 = vmax.f32 %v822, %v1130
    %v3511 = vmax.f32 %v836, %v1138
    %v3512 = vmax.f32 %v844, %v1140
    %v3513 = vmax.f32 %v846, %v1123
    %v3514 = vmax.f32 %v829, %v1137
    %v3515 = vmax.f32 %v843, %v1139
    %v3516 = vmax.f32 %v845, %v1141
    %v3517 = vmax.f32 %v847, %v1165
    %v3518 = vmax.f32 %v871, %v1179
    %v3519 = vmax.f32 %v885, %v1187
    %v3520 = vmax.f32 %v893, %v1189
    %v3521 = vmax.f32 %v895, %v1172
    %v3522 = vmax.f32 %v878, %v1186
    %v3523 = vmax.f32 %v892, %v1188
    %v3524 = vmax.f32 %v894, %v1190
    %v3525 = vmax.f32 %v896, %v1214
    %v3526 = vmax.f32 %v920, %v1228
    %v3527 = vmax.f32 %v934, %v1236
    %v3528 = vmax.f32 %v942, %v1238
    %v3529 = vmax.f32 %v944, %v1221
    %v3530 = vmax.f32 %v927, %v1235
    %v3531 = vmax.f32 %v941, %v1237
    %v3532 = vmax.f32 %v943, %v1239
    %v3533 = vmax.f32 %v945, %v1263
    %v3534 = vmax.f32 %v969, %v1277
    %v3535 = vmax.f32 %v983, %v1285
    %v3536 = vmax.f32 %v991, %v1287
    %v3537 = vmax.f32 %v993, %v1270
    %v3538 = vmax.f32 %v976, %v1284
    %v3539 = vmax.f32 %v990, %v1286
    %v3540 = vmax.f32 %v992, %v1288
    %v3541 = vmax.f32 %v994, %v1312
    %v3542 = vmax.f32 %v1018, %v1326
    %v3543 = vmax.f32 %v1907, %v2215
    %v3544 = vmax.f32 %v1921, %v2217
    %v3545 = vmax.f32 %v1923, %v2219
    %v3546 = vmax.f32 %v1925, %v2243
    %v3547 = vmax.f32 %v1949, %v2257
    %v3548 = vmax.f32 %v1963, %v2265
    %v3549 = vmax.f32 %v1971, %v2267
    %v3550 = vmax.f32 %v1973, %v2250
    %v3551 = vmax.f32 %v1956, %v2264
    %v3552 = vmax.f32 %v1970, %v2266
    %v3553 = vmax.f32 %v1972, %v2268
    %v3554 = vmax.f32 %v1974, %v2292
    %v3555 = vmax.f32 %v1998, %v2306
    %v3556 = vmax.f32 %v2012, %v2314
    %v3557 = vmax.f32 %v2020, %v2316
    %v3558 = vmax.f32 %v2022, %v2299
    %v3559 = vmax.f32 %v2005, %v2313
    %v3560 = vmax.f32 %v2019, %v2315
    %v3561 = vmax.f32 %v2021, %v2317
    %v3562 = vmax.f32 %v2023, %v2341
    %v3563 = vmax.f32 %v2047, %v2355
    %v3564 = vmax.f32 %v2061, %v2363
    %v3565 = vmax.f32 %v2069, %v2365
    %v3566 = vmax.f32 %v2071, %v2348
    %v3567 = vmax.f32 %v2054, %v2362
    %v3568 = vmax.f32 %v2068, %v2364
    %v3569 = vmax.f32 %v2070, %v2366
    %v3570 = vmax.f32 %v2072, %v2390
    %v3571 = vmax.f32 %v2096, %v2404
    %v3572 = vmax.f32 %v2110, %v2412
    %v3573 = vmax.f32 %v2118, %v2414
    %v3574 = vmax.f32 %v2120, %v2397
    %v3575 = vmax.f32 %v2103, %v2411
    %v3576 = vmax.f32 %v2117, %v2413
    %v3577 = vmax.f32 %v2119, %v2415
    %v3578 = vmax.f32 %v2121, %v2439
    %v3579 = vmax.f32 %v2145, %v2453
    %v3580 = vmax.f32 %v2159, %v2461
    %v3581 = vmax.f32 %v2167, %v2463
    %v3582 = vmax.f32 %v2169, %v2446
    %v3583 = vmax.f32 %v2152, %v2460
    %v3584 = vmax.f32 %v2166, %v2462
    %v3585 = vmax.f32 %v2168, %v2464
    %v3586 = vmax.f32 %v2170, %v2488
    %v3587 = vmax.f32 %v2194, %v2502
    %v3588 = vmax.f32 %v2208, %v2510
    %v3589 = vmax.f32 %v2216, %v2512
    %v3590 = vmax.f32 %v2218, %v2495
    %v3591 = vmax.f32 %v2201, %v2509
    %v3592 = vmax.f32 %v1334, %v1630
    %v3593 = vmax.f32 %v1336, %v1613
    %v3594 = vmax.f32 %v1319, %v1627
    %v3595 = vmax.f32 %v1333, %v1629
    %v3596 = vmax.f32 %v1335, %v1631
    %v3597 = vmax.f32 %v1337, %v1655
    %v3598 = vmax.f32 %v1361, %v1669
    %v3599 = vmax.f32 %v1375, %v1677
    %v3600 = vmax.f32 %v1383, %v1679
    %v3601 = vmax.f32 %v1385, %v1662
    %v3602 = vmax.f32 %v1368, %v1676
    %v3603 = vmax.f32 %v1382, %v1678
    %v3604 = vmax.f32 %v1384, %v1680
    %v3605 = vmax.f32 %v1386, %v1704
    %v3606 = vmax.f32 %v1410, %v1718
    %v3607 = vmax.f32 %v1424, %v1726
    %v3608 = vmax.f32 %v1432, %v1728
    %v3609 = vmax.f32 %v1434, %v1711
    %v3610 = vmax.f32 %v1417, %v1725
    %v3611 = vmax.f32 %v1431, %v1727
    %v3612 = vmax.f32 %v1433, %v1729
    %v3613 = vmax.f32 %v1435, %v1753
    %v3614 = vmax.f32 %v1459, %v1767
    %v3615 = vmax.f32 %v1473, %v1775
    %v3616 = vmax.f32 %v1481, %v1777
    %v3617 = vmax.f32 %v1483, %v1760
    %v3618 = vmax.f32 %v1466, %v1774
    %v3619 = vmax.f32 %v1480, %v1776
    %v3620 = vmax.f32 %v1482, %v1778
    %v3621 = vmax.f32 %v1484, %v1802
    %v3622 = vmax.f32 %v1508, %v1816
    %v3623 = vmax.f32 %v1522, %v1824
    %v3624 = vmax.f32 %v1530, %v1826
    %v3625 = vmax.f32 %v1532, %v1809
    %v3626 = vmax.f32 %v1515, %v1823
    %v3627 = vmax.f32 %v1529, %v1825
    %v3628 = vmax.f32 %v1531, %v1827
    %v3629 = vmax.f32 %v1533, %v1851
    %v3630 = vmax.f32 %v1557, %v1865
    %v3631 = vmax.f32 %v1571, %v1873
    %v3632 = vmax.f32 %v1579, %v1875
    %v3633 = vmax.f32 %v1581, %v1858
    %v3634 = vmax.f32 %v1564, %v1872
    %v3635 = vmax.f32 %v1578, %v1874
    %v3636 = vmax.f32 %v1580, %v1876
    %v3637 = vmax.f32 %v1582, %v1900
    %v3638 = vmax.f32 %v1606, %v1914
    %v3639 = vmax.f32 %v1620, %v1922
    %v3640 = vmax.f32 %v1628, %v1924
    %v3641 = vmax.f32 %v2511, %v2807
    %v3642 = vmax.f32 %v2513, %v2831
    %v3643 = vmax.f32 %v2537, %v2845
    %v3644 = vmax.f32 %v2551, %v2853
    %v3645 = vmax.f32 %v2559, %v2855
    %v3646 = vmax.f32 %v2561, %v2838
    %v3647 = vmax.f32 %v2544, %v2852
    %v3648 = vmax.f32 %v2558, %v2854
    %v3649 = vmax.f32 %v2560, %v2856
    %v3650 = vmax.f32 %v2562, %v2880
    %v3651 = vmax.f32 %v2586, %v2894
    %v3652 = vmax.f32 %v2600, %v2902
    %v3653 = vmax.f32 %v2608, %v2904
    %v3654 = vmax.f32 %v2610, %v2887
    %v3655 = vmax.f32 %v2593, %v2901
    %v3656 = vmax.f32 %v2607, %v2903
    %v3657 = vmax.f32 %v2609, %v2905
    %v3658 = vmax.f32 %v2611, %v2929
    %v3659 = vmax.f32 %v2635, %v2943
    %v3660 = vmax.f32 %v2649, %v2951
    %v3661 = vmax.f32 %v2657, %v2953
    %v3662 = vmax.f32 %v2659, %v2936
    %v3663 = vmax.f32 %v2642, %v2950
    %v3664 = vmax.f32 %v2656, %v2952
    %v3665 = vmax.f32 %v2658, %v2954
    %v3666 = vmax.f32 %v2660, %v2978
    %v3667 = vmax.f32 %v2684, %v2992
    %v3668 = vmax.f32 %v2698, %v3000
    %v3669 = vmax.f32 %v2706, %v3002
    %v3670 = vmax.f32 %v2708, %v2985
    %v3671 = vmax.f32 %v2691, %v2999
    %v3672 = vmax.f32 %v2705, %v3001
    %v3673 = vmax.f32 %v2707, %v3003
    %v3674 = vmax.f32 %v2709, %v3027
    %v3675 = vmax.f32 %v2733, %v3041
    %v3676 = vmax.f32 %v2747, %v3049
    %v3677 = vmax.f32 %v2755, %v3051
    %v3678 = vmax.f32 %v2757, %v3034
    %v3679 = vmax.f32 %v2740, %v3048
    %v3680 = vmax.f32 %v2754, %v3050
    %v3681 = vmax.f32 %v2756, %v3052
    %v3682 = vmax.f32 %v2758, %v3076
    %v3683 = vmax.f32 %v2782, %v3090
    %v3684 = vmax.f32 %v2796, %v3098
    %v3685 = vmax.f32 %v2804, %v3100
    %v3686 = vmax.f32 %v2806, %v3083
    %v3687 = vmax.f32 %v2789, %v3097
    %v3688 = vmax.f32 %v2803, %v3099
    %v3689 = vmax.f32 %v2805, %v3101
    %v3690 = vmax.f32 %v3494, %v3592
    %v3691 = vmax.f32 %v3495, %v3593
    %v3692 = vmax.f32 %v3496, %v3594
    %v3693 = vmax.f32 %v3497, %v3595
    %v3694 = vmax.f32 %v3498, %v3596
    %v3695 = vmax.f32 %v3499, %v3597
    %v3696 = vmax.f32 %v3500, %v3598
    %v3697 = vmax.f32 %v3501, %v3599
    %v3698 = vmax.f32 %v3502, %v3600
    %v3699 = vmax.f32 %v3503, %v3601
    %v3700 = vmax.f32 %v3504, %v3602
    %v3701 = vmax.f32 %v3505, %v3603
    %v3702 = vmax.f32 %v3506, %v3604
    %v3703 = vmax.f32 %v3507, %v3605
    %v3704 = vmax.f32 %v3508, %v3606
    %v3705 = vmax.f32 %v3509, %v3607
    %v3706 = vmax.f32 %v3510, %v3608
    %v3707 = vmax.f32 %v3511, %v3609
    %v3708 = vmax.f32 %v3512, %v3610
    %v3709 = vmax.f32 %v3513, %v3611
    %v3710 = vmax.f32 %v3514, %v3612
    %v3711 = vmax.f32 %v3515, %v3613
    %v3712 = vmax.f32 %v3516, %v3614
    %v3713 = vmax.f32 %v3517, %v3615
    %v3714 = vmax.f32 %v3518, %v3616
    %v3715 = vmax.f32 %v3519, %v3617
    %v3716 = vmax.f32 %v3520, %v3618
    %v3717 = vmax.f32 %v3521, %v3619
    %v3718 = vmax.f32 %v3522, %v3620
    %v3719 = vmax.f32 %v3523, %v3621
    %v3720 = vmax.f32 %v3524, %v3622
    %v3721 = vmax.f32 %v3525, %v3623
    %v3722 = vmax.f32 %v3526, %v3624
    %v3723 = vmax.f32 %v3527, %v3625
    %v3724 = vmax.f32 %v3528, %v3626
    %v3725 = vmax.f32 %v3529, %v3627
    %v3726 = vmax.f32 %v3530, %v3628
    %v3727 = vmax.f32 %v3531, %v3629
    %v3728 = vmax.f32 %v3532, %v3630
    %v3729 = vmax.f32 %v3533, %v3631
    %v3730 = vmax.f32 %v3534, %v3632
    %v3731 = vmax.f32 %v3535, %v3633
    %v3732 = vmax.f32 %v3536, %v3634
    %v3733 = vmax.f32 %v3537, %v3635
    %v3734 = vmax.f32 %v3538, %v3636
    %v3735 = vmax.f32 %v3539, %v3637
    %v3736 = vmax.f32 %v3540, %v3638
    %v3737 = vmax.f32 %v3541, %v3639
    %v3738 = vmax.f32 %v3542, %v3640
    %v3739 = vmax.f32 %v3543, %v3641
    %v3740 = vmax.f32 %v3544, %v3642
    %v3741 = vmax.f32 %v3545, %v3643
    %v3742 = vmax.f32 %v3546, %v3644
    %v3743 = vmax.f32 %v3547, %v3645
    %v3744 = vmax.f32 %v3548, %v3646
    %v3745 = vmax.f32 %v3549, %v3647
    %v3746 = vmax.f32 %v3550, %v3648
    %v3747 = vmax.f32 %v3551, %v3649
    %v3748 = vmax.f32 %v3552, %v3650
    %v3749 = vmax.f32 %v3553, %v3651
    %v3750 = vmax.f32 %v3554, %v3652
    %v3751 = vmax.f32 %v3555, %v3653
    %v3752 = vmax.f32 %v3556, %v3654
    %v3753 = vmax.f32 %v3557, %v3655
    %v3754 = vmax.f32 %v3558, %v3656
    %v3755 = vmax.f32 %v3559, %v3657
    %v3756 = vmax.f32 %v3560, %v3658
    %v3757 = vmax.f32 %v3561, %v3659
    %v3758 = vmax.f32 %v3562, %v3660
    %v3759 = vmax.f32 %v3563, %v3661
    %v3760 = vmax.f32 %v3564, %v3662
    %v3761 = vmax.f32 %v3565, %v3663
    %v3762 = vmax.f32 %v3566, %v3664
    %v3763 = vmax.f32 %v3567, %v3665
    %v3764 = vmax.f32 %v3568, %v3666
    %v3765 = vmax.f32 %v3569, %v3667
    %v3766 = vmax.f32 %v3570, %v3668
    %v3767 = vmax.f32 %v3571, %v3669
    %v3768 = vmax.f32 %v3572, %v3670
    %v3769 = vmax.f32 %v3573, %v3671
    %v3770 = vmax.f32 %v3574, %v3672
    %v3771 = vmax.f32 %v3575, %v3673
    %v3772 = vmax.f32 %v3576, %v3674
    %v3773 = vmax.f32 %v3577, %v3675
    %v3774 = vmax.f32 %v3578, %v3676
    %v3775 = vmax.f32 %v3579, %v3677
    %v3776 = vmax.f32 %v3580, %v3678
    %v3777 = vmax.f32 %v3581, %v3679
    %v3778 = vmax.f32 %v3582, %v3680
    %v3779 = vmax.f32 %v3583, %v3681
    %v3780 = vmax.f32 %v3584, %v3682
    %v3781 = vmax.f32 %v3585, %v3683
    %v3782 = vmax.f32 %v3586, %v3684
    %v3783 = vmax.f32 %v3587, %v3685
    %v3784 = vmax.f32 %v3588, %v3686
    %v3785 = vmax.f32 %v3589, %v3687
    %v3786 = vmax.f32 %v3590, %v3688
    %v3787 = vmax.f32 %v3591, %v3689
    %v3788 = vlaneseq
    %v3789 = vshrl.u32 %v3788, 7
    %v3790 = vsub.s32 0, %v3789
    %v3791 = vrot.slane %v124, %v3790
    %v3793 = vcombine.high %v3791, %v3791
    %v3795 = vunpack.c.l.s4 1966171168
    %v3796 = vunpack.c.0.s8 %v3795
    %v3797 = vlaneseq
    %v3798 = vshrl.u32 %v3797, 7
    %v3799 = vsub.s32 %v3796, %v3798
    %v3800 = vrot.slane %v3791, %v3799
    %v3802 = vunpack.c.l.s4 1966171168
    %v3803 = vunpack.c.0.s8 %v3802
    %v3804 = vlaneseq
    %v3805 = vshrl.u32 %v3804, 7
    %v3806 = vsub.s32 %v3803, %v3805
    %v3807 = vrot.slane %v3793, %v3806
    %v3808 = vcombine.high %v3800, %v3800
    %v3809 = vcombine.high %v3807, %v3807
    %v3811 = vunpack.c.l.s4 1966171168
    %v3812 = vunpack.c.0.s8 %v3811
    %v3813 = vlaneseq
    %v3814 = vshrl.u32 %v3813, 7
    %v3815 = vsub.s32 %v3812, %v3814
    %v3816 = vrot.slane %v3800, %v3815
    %v3818 = vunpack.c.l.s4 1966171168
    %v3819 = vunpack.c.0.s8 %v3818
    %v3820 = vlaneseq
    %v3821 = vshrl.u32 %v3820, 7
    %v3822 = vsub.s32 %v3819, %v3821
    %v3823 = vrot.slane %v3807, %v3822
    %v3825 = vunpack.c.l.s4 1966171168
    %v3826 = vunpack.c.0.s8 %v3825
    %v3827 = vlaneseq
    %v3828 = vshrl.u32 %v3827, 7
    %v3829 = vsub.s32 %v3826, %v3828
    %v3830 = vrot.slane %v3808, %v3829
    %v3832 = vunpack.c.l.s4 1966171168
    %v3833 = vunpack.c.0.s8 %v3832
    %v3834 = vlaneseq
    %v3835 = vshrl.u32 %v3834, 7
    %v3836 = vsub.s32 %v3833, %v3835
    %v3837 = vrot.slane %v3809, %v3836
    %v3838 = vcombine.high %v3816, %v3816
    %v3839 = vcombine.high %v3823, %v3823
    %v3840 = vcombine.high %v3830, %v3830
    %v3848 = vadd.f32 %v3690, %v3816
    %v3849 = vadd.f32 %v3691, %v3830
    %v3850 = vadd.f32 %v3692, %v3838
    %v3851 = vadd.f32 %v3693, %v3840
    %v3852 = vadd.f32 %v3694, %v3823
    %v3853 = vadd.f32 %v3695, %v3837
    %v3854 = vadd.f32 %v3696, %v3839
    %v3855 = vadd.f32 %v3697, %v3816
    %v3856 = vadd.f32 %v3698, %v3830
    %v3857 = vadd.f32 %v3699, %v3838
    %v3858 = vadd.f32 %v3700, %v3840
    %v3859 = vadd.f32 %v3701, %v3823
    %v3860 = vadd.f32 %v3702, %v3837
    %v3861 = vadd.f32 %v3703, %v3839
    %v3862 = vadd.f32 %v3704, %v3816
    %v3863 = vadd.f32 %v3705, %v3830
    %v3864 = vadd.f32 %v3706, %v3838
    %v3865 = vadd.f32 %v3707, %v3840
    %v3866 = vadd.f32 %v3708, %v3823
    %v3867 = vadd.f32 %v3709, %v3837
    %v3868 = vadd.f32 %v3710, %v3839
    %v3869 = vadd.f32 %v3711, %v3816
    %v3870 = vadd.f32 %v3712, %v3830
    %v3871 = vadd.f32 %v3713, %v3838
    %v3872 = vadd.f32 %v3714, %v3840
    %v3873 = vadd.f32 %v3715, %v3823
    %v3874 = vadd.f32 %v3716, %v3837
    %v3875 = vadd.f32 %v3717, %v3839
    %v3876 = vadd.f32 %v3718, %v3816
    %v3877 = vadd.f32 %v3719, %v3830
    %v3878 = vadd.f32 %v3720, %v3838
    %v3879 = vadd.f32 %v3721, %v3840
    %v3880 = vadd.f32 %v3722, %v3823
    %v3881 = vadd.f32 %v3723, %v3837
    %v3882 = vadd.f32 %v3724, %v3839
    %v3883 = vadd.f32 %v3725, %v3816
    %v3884 = vadd.f32 %v3726, %v3830
    %v3885 = vadd.f32 %v3727, %v3838
    %v3886 = vadd.f32 %v3728, %v3840
    %v3887 = vadd.f32 %v3729, %v3823
    %v3888 = vadd.f32 %v3730, %v3837
    %v3889 = vadd.f32 %v3731, %v3839
    %v3890 = vadd.f32 %v3732, %v3816
    %v3891 = vadd.f32 %v3733, %v3830
    %v3892 = vadd.f32 %v3734, %v3838
    %v3893 = vadd.f32 %v3735, %v3840
    %v3894 = vadd.f32 %v3736, %v3823
    %v3895 = vadd.f32 %v3737, %v3837
    %v3896 = vadd.f32 %v3738, %v3839
    %v3897 = vadd.f32 %v3739, %v3816
    %v3898 = vadd.f32 %v3740, %v3830
    %v3899 = vadd.f32 %v3741, %v3838
    %v3900 = vadd.f32 %v3742, %v3840
    %v3901 = vadd.f32 %v3743, %v3823
    %v3902 = vadd.f32 %v3744, %v3837
    %v3903 = vadd.f32 %v3745, %v3839
    %v3904 = vadd.f32 %v3746, %v3816
    %v3905 = vadd.f32 %v3747, %v3830
    %v3906 = vadd.f32 %v3748, %v3838
    %v3907 = vadd.f32 %v3749, %v3840
    %v3908 = vadd.f32 %v3750, %v3823
    %v3909 = vadd.f32 %v3751, %v3837
    %v3910 = vadd.f32 %v3752, %v3839
    %v3911 = vadd.f32 %v3753, %v3816
    %v3912 = vadd.f32 %v3754, %v3830
    %v3913 = vadd.f32 %v3755, %v3838
    %v3914 = vadd.f32 %v3756, %v3840
    %v3915 = vadd.f32 %v3757, %v3823
    %v3916 = vadd.f32 %v3758, %v3837
    %v3917 = vadd.f32 %v3759, %v3839
    %v3918 = vadd.f32 %v3760, %v3816
    %v3919 = vadd.f32 %v3761, %v3830
    %v3920 = vadd.f32 %v3762, %v3838
    %v3921 = vadd.f32 %v3763, %v3840
    %v3922 = vadd.f32 %v3764, %v3823
    %v3923 = vadd.f32 %v3765, %v3837
    %v3924 = vadd.f32 %v3766, %v3839
    %v3925 = vadd.f32 %v3767, %v3816
    %v3926 = vadd.f32 %v3768, %v3830
    %v3927 = vadd.f32 %v3769, %v3838
    %v3928 = vadd.f32 %v3770, %v3840
    %v3929 = vadd.f32 %v3771, %v3823
    %v3930 = vadd.f32 %v3772, %v3837
    %v3931 = vadd.f32 %v3773, %v3839
    %v3932 = vadd.f32 %v3774, %v3816
    %v3933 = vadd.f32 %v3775, %v3830
    %v3934 = vadd.f32 %v3776, %v3838
    %v3935 = vadd.f32 %v3777, %v3840
    %v3936 = vadd.f32 %v3778, %v3823
    %v3937 = vadd.f32 %v3779, %v3837
    %v3938 = vadd.f32 %v3780, %v3839
    %v3939 = vadd.f32 %v3781, %v3816
    %v3940 = vadd.f32 %v3782, %v3830
    %v3941 = vadd.f32 %v3783, %v3838
    %v3942 = vadd.f32 %v3784, %v3840
    %v3943 = vadd.f32 %v3785, %v3823
    %v3944 = vadd.f32 %v3786, %v3837
    %v3945 = vadd.f32 %v3787, %v3839
    %v3946 = vmax.f32 %v3848, 0.0
    %v3947 = vmax.f32 %v3849, 0.0
    %v3948 = vmax.f32 %v3850, 0.0
    %v3949 = vmax.f32 %v3851, 0.0
    %v3950 = vmax.f32 %v3852, 0.0
    %v3951 = vmax.f32 %v3853, 0.0
    %v3952 = vmax.f32 %v3854, 0.0
    %v3953 = vmax.f32 %v3855, 0.0
    %v3954 = vmax.f32 %v3856, 0.0
    %v3955 = vmax.f32 %v3857, 0.0
    %v3956 = vmax.f32 %v3858, 0.0
    %v3957 = vmax.f32 %v3859, 0.0
    %v3958 = vmax.f32 %v3860, 0.0
    %v3959 = vmax.f32 %v3861, 0.0
    %v3960 = vmax.f32 %v3862, 0.0
    %v3961 = vmax.f32 %v3863, 0.0
    %v3962 = vmax.f32 %v3864, 0.0
    %v3963 = vmax.f32 %v3865, 0.0
    %v3964 = vmax.f32 %v3866, 0.0
    %v3965 = vmax.f32 %v3867, 0.0
    %v3966 = vmax.f32 %v3868, 0.0
    %v3967 = vmax.f32 %v3869, 0.0
    %v3968 = vmax.f32 %v3870, 0.0
    %v3969 = vmax.f32 %v3871, 0.0
    %v3970 = vmax.f32 %v3872, 0.0
    %v3971 = vmax.f32 %v3873, 0.0
    %v3972 = vmax.f32 %v3874, 0.0
    %v3973 = vmax.f32 %v3875, 0.0
    %v3974 = vmax.f32 %v3876, 0.0
    %v3975 = vmax.f32 %v3877, 0.0
    %v3976 = vmax.f32 %v3878, 0.0
    %v3977 = vmax.f32 %v3879, 0.0
    %v3978 = vmax.f32 %v3880, 0.0
    %v3979 = vmax.f32 %v3881, 0.0
    %v3980 = vmax.f32 %v3882, 0.0
    %v3981 = vmax.f32 %v3883, 0.0
    %v3982 = vmax.f32 %v3884, 0.0
    %v3983 = vmax.f32 %v3885, 0.0
    %v3984 = vmax.f32 %v3886, 0.0
    %v3985 = vmax.f32 %v3887, 0.0
    %v3986 = vmax.f32 %v3888, 0.0
    %v3987 = vmax.f32 %v3889, 0.0
    %v3988 = vmax.f32 %v3890, 0.0
    %v3989 = vmax.f32 %v3891, 0.0
    %v3990 = vmax.f32 %v3892, 0.0
    %v3991 = vmax.f32 %v3893, 0.0
    %v3992 = vmax.f32 %v3894, 0.0
    %v3993 = vmax.f32 %v3895, 0.0
    %v3994 = vmax.f32 %v3896, 0.0
    %v3995 = vmax.f32 %v3897, 0.0
    %v3996 = vmax.f32 %v3898, 0.0
    %v3997 = vmax.f32 %v3899, 0.0
    %v3998 = vmax.f32 %v3900, 0.0
    %v3999 = vmax.f32 %v3901, 0.0
    %v4000 = vmax.f32 %v3902, 0.0
    %v4001 = vmax.f32 %v3903, 0.0
    %v4002 = vmax.f32 %v3904, 0.0
    %v4003 = vmax.f32 %v3905, 0.0
    %v4004 = vmax.f32 %v3906, 0.0
    %v4005 = vmax.f32 %v3907, 0.0
    %v4006 = vmax.f32 %v3908, 0.0
    %v4007 = vmax.f32 %v3909, 0.0
    %v4008 = vmax.f32 %v3910, 0.0
    %v4009 = vmax.f32 %v3911, 0.0
    %v4010 = vmax.f32 %v3912, 0.0
    %v4011 = vmax.f32 %v3913, 0.0
    %v4012 = vmax.f32 %v3914, 0.0
    %v4013 = vmax.f32 %v3915, 0.0
    %v4014 = vmax.f32 %v3916, 0.0
    %v4015 = vmax.f32 %v3917, 0.0
    %v4016 = vmax.f32 %v3918, 0.0
    %v4017 = vmax.f32 %v3919, 0.0
    %v4018 = vmax.f32 %v3920, 0.0
    %v4019 = vmax.f32 %v3921, 0.0
    %v4020 = vmax.f32 %v3922, 0.0
    %v4021 = vmax.f32 %v3923, 0.0
    %v4022 = vmax.f32 %v3924, 0.0
    %v4023 = vmax.f32 %v3925, 0.0
    %v4024 = vmax.f32 %v3926, 0.0
    %v4025 = vmax.f32 %v3927, 0.0
    %v4026 = vmax.f32 %v3928, 0.0
    %v4027 = vmax.f32 %v3929, 0.0
    %v4028 = vmax.f32 %v3930, 0.0
    %v4029 = vmax.f32 %v3931, 0.0
    %v4030 = vmax.f32 %v3932, 0.0
    %v4031 = vmax.f32 %v3933, 0.0
    %v4032 = vmax.f32 %v3934, 0.0
    %v4033 = vmax.f32 %v3935, 0.0
    %v4034 = vmax.f32 %v3936, 0.0
    %v4035 = vmax.f32 %v3937, 0.0
    %v4036 = vmax.f32 %v3938, 0.0
    %v4037 = vmax.f32 %v3939, 0.0
    %v4038 = vmax.f32 %v3940, 0.0
    %v4039 = vmax.f32 %v3941, 0.0
    %v4040 = vmax.f32 %v3942, 0.0
    %v4041 = vmax.f32 %v3943, 0.0
    %v4042 = vmax.f32 %v3944, 0.0
    %v4043 = vmax.f32 %v3945, 0.0
    %v4094 = vcombine.low %v3946, %v3947
    %v4095 = vcombine.low %v3948, %v3949
    %v4097 = vunpack.c.l.s4 1966171168
    %v4098 = vunpack.c.0.s8 %v4097
    %v4099 = vlaneseq
    %v4100 = vshrl.u32 %v4099, 7
    %v4101 = vsub.s32 %v4098, %v4100
    %v4102 = vrot.slane %v4094, %v4101
    %v4104 = vunpack.c.l.s4 1966171168
    %v4105 = vunpack.c.0.s8 %v4104
    %v4106 = vlaneseq
    %v4107 = vshrl.u32 %v4106, 7
    %v4108 = vsub.s32 %v4105, %v4107
    %v4109 = vrot.slane %v4095, %v4108
    %v4111 = vunpack.c.l.s4 1966171168
    %v4112 = vunpack.c.0.s8 %v4111
    %v4113 = vlaneseq
    %v4114 = vshrl.u32 %v4113, 7
    %v4115 = vsub.s32 %v4112, %v4114
    %v4116 = vrot.slane %v3950, %v4115
    %v4117 = vcombine.low %v4102, %v4109
    %v4119 = vunpack.c.l.s4 1966171168
    %v4120 = vunpack.c.0.s8 %v4119
    %v4121 = vlaneseq
    %v4122 = vshrl.u32 %v4121, 7
    %v4123 = vsub.s32 %v4120, %v4122
    %v4124 = vrot.slane %v4117, %v4123
    %v4126 = vunpack.c.l.s4 1966171168
    %v4127 = vunpack.c.0.s8 %v4126
    %v4128 = vlaneseq
    %v4129 = vshrl.u32 %v4128, 7
    %v4130 = vsub.s32 %v4127, %v4129
    %v4131 = vrot.slane %v4116, %v4130
    %v4132 = vcombine.low %v4124, %v4131
    %v4133 = vcombine.low %v3953, %v3954
    %v4134 = vcombine.low %v3955, %v3956
    %v4136 = vunpack.c.l.s4 1966171168
    %v4137 = vunpack.c.0.s8 %v4136
    %v4138 = vlaneseq
    %v4139 = vshrl.u32 %v4138, 7
    %v4140 = vsub.s32 %v4137, %v4139
    %v4141 = vrot.slane %v4133, %v4140
    %v4143 = vunpack.c.l.s4 1966171168
    %v4144 = vunpack.c.0.s8 %v4143
    %v4145 = vlaneseq
    %v4146 = vshrl.u32 %v4145, 7
    %v4147 = vsub.s32 %v4144, %v4146
    %v4148 = vrot.slane %v4134, %v4147
    %v4150 = vunpack.c.l.s4 1966171168
    %v4151 = vunpack.c.0.s8 %v4150
    %v4152 = vlaneseq
    %v4153 = vshrl.u32 %v4152, 7
    %v4154 = vsub.s32 %v4151, %v4153
    %v4155 = vrot.slane %v3957, %v4154
    %v4156 = vcombine.low %v4141, %v4148
    %v4158 = vunpack.c.l.s4 1966171168
    %v4159 = vunpack.c.0.s8 %v4158
    %v4160 = vlaneseq
    %v4161 = vshrl.u32 %v4160, 7
    %v4162 = vsub.s32 %v4159, %v4161
    %v4163 = vrot.slane %v4156, %v4162
    %v4165 = vunpack.c.l.s4 1966171168
    %v4166 = vunpack.c.0.s8 %v4165
    %v4167 = vlaneseq
    %v4168 = vshrl.u32 %v4167, 7
    %v4169 = vsub.s32 %v4166, %v4168
    %v4170 = vrot.slane %v4155, %v4169
    %v4171 = vcombine.low %v4163, %v4170
    %v4172 = vcombine.low %v3960, %v3961
    %v4173 = vcombine.low %v3962, %v3963
    %v4175 = vunpack.c.l.s4 1966171168
    %v4176 = vunpack.c.0.s8 %v4175
    %v4177 = vlaneseq
    %v4178 = vshrl.u32 %v4177, 7
    %v4179 = vsub.s32 %v4176, %v4178
    %v4180 = vrot.slane %v4172, %v4179
    %v4182 = vunpack.c.l.s4 1966171168
    %v4183 = vunpack.c.0.s8 %v4182
    %v4184 = vlaneseq
    %v4185 = vshrl.u32 %v4184, 7
    %v4186 = vsub.s32 %v4183, %v4185
    %v4187 = vrot.slane %v4173, %v4186
    %v4189 = vunpack.c.l.s4 1966171168
    %v4190 = vunpack.c.0.s8 %v4189
    %v4191 = vlaneseq
    %v4192 = vshrl.u32 %v4191, 7
    %v4193 = vsub.s32 %v4190, %v4192
    %v4194 = vrot.slane %v3964, %v4193
    %v4195 = vcombine.low %v4180, %v4187
    %v4197 = vunpack.c.l.s4 1966171168
    %v4198 = vunpack.c.0.s8 %v4197
    %v4199 = vlaneseq
    %v4200 = vshrl.u32 %v4199, 7
    %v4201 = vsub.s32 %v4198, %v4200
    %v4202 = vrot.slane %v4195, %v4201
    %v4204 = vunpack.c.l.s4 1966171168
    %v4205 = vunpack.c.0.s8 %v4204
    %v4206 = vlaneseq
    %v4207 = vshrl.u32 %v4206, 7
    %v4208 = vsub.s32 %v4205, %v4207
    %v4209 = vrot.slane %v4194, %v4208
    %v4210 = vcombine.low %v4202, %v4209
    %v4211 = vcombine.low %v3967, %v3968
    %v4212 = vcombine.low %v3969, %v3970
    %v4214 = vunpack.c.l.s4 1966171168
    %v4215 = vunpack.c.0.s8 %v4214
    %v4216 = vlaneseq
    %v4217 = vshrl.u32 %v4216, 7
    %v4218 = vsub.s32 %v4215, %v4217
    %v4219 = vrot.slane %v4211, %v4218
    %v4221 = vunpack.c.l.s4 1966171168
    %v4222 = vunpack.c.0.s8 %v4221
    %v4223 = vlaneseq
    %v4224 = vshrl.u32 %v4223, 7
    %v4225 = vsub.s32 %v4222, %v4224
    %v4226 = vrot.slane %v4212, %v4225
    %v4228 = vunpack.c.l.s4 1966171168
    %v4229 = vunpack.c.0.s8 %v4228
    %v4230 = vlaneseq
    %v4231 = vshrl.u32 %v4230, 7
    %v4232 = vsub.s32 %v4229, %v4231
    %v4233 = vrot.slane %v3971, %v4232
    %v4234 = vcombine.low %v4219, %v4226
    %v4236 = vunpack.c.l.s4 1966171168
    %v4237 = vunpack.c.0.s8 %v4236
    %v4238 = vlaneseq
    %v4239 = vshrl.u32 %v4238, 7
    %v4240 = vsub.s32 %v4237, %v4239
    %v4241 = vrot.slane %v4234, %v4240
    %v4243 = vunpack.c.l.s4 1966171168
    %v4244 = vunpack.c.0.s8 %v4243
    %v4245 = vlaneseq
    %v4246 = vshrl.u32 %v4245, 7
    %v4247 = vsub.s32 %v4244, %v4246
    %v4248 = vrot.slane %v4233, %v4247
    %v4249 = vcombine.low %v4241, %v4248
    %v4250 = vcombine.low %v3974, %v3975
    %v4251 = vcombine.low %v3976, %v3977
    %v4253 = vunpack.c.l.s4 1966171168
    %v4254 = vunpack.c.0.s8 %v4253
    %v4255 = vlaneseq
    %v4256 = vshrl.u32 %v4255, 7
    %v4257 = vsub.s32 %v4254, %v4256
    %v4258 = vrot.slane %v4250, %v4257
    %v4260 = vunpack.c.l.s4 1966171168
    %v4261 = vunpack.c.0.s8 %v4260
    %v4262 = vlaneseq
    %v4263 = vshrl.u32 %v4262, 7
    %v4264 = vsub.s32 %v4261, %v4263
    %v4265 = vrot.slane %v4251, %v4264
    %v4267 = vunpack.c.l.s4 1966171168
    %v4268 = vunpack.c.0.s8 %v4267
    %v4269 = vlaneseq
    %v4270 = vshrl.u32 %v4269, 7
    %v4271 = vsub.s32 %v4268, %v4270
    %v4272 = vrot.slane %v3978, %v4271
    %v4273 = vcombine.low %v4258, %v4265
    %v4275 = vunpack.c.l.s4 1966171168
    %v4276 = vunpack.c.0.s8 %v4275
    %v4277 = vlaneseq
    %v4278 = vshrl.u32 %v4277, 7
    %v4279 = vsub.s32 %v4276, %v4278
    %v4280 = vrot.slane %v4273, %v4279
    %v4282 = vunpack.c.l.s4 1966171168
    %v4283 = vunpack.c.0.s8 %v4282
    %v4284 = vlaneseq
    %v4285 = vshrl.u32 %v4284, 7
    %v4286 = vsub.s32 %v4283, %v4285
    %v4287 = vrot.slane %v4272, %v4286
    %v4288 = vcombine.low %v4280, %v4287
    %v4289 = vcombine.low %v3995, %v3996
    %v4290 = vcombine.low %v3997, %v3998
    %v4292 = vunpack.c.l.s4 1966171168
    %v4293 = vunpack.c.0.s8 %v4292
    %v4294 = vlaneseq
    %v4295 = vshrl.u32 %v4294, 7
    %v4296 = vsub.s32 %v4293, %v4295
    %v4297 = vrot.slane %v4289, %v4296
    %v4299 = vunpack.c.l.s4 1966171168
    %v4300 = vunpack.c.0.s8 %v4299
    %v4301 = vlaneseq
    %v4302 = vshrl.u32 %v4301, 7
    %v4303 = vsub.s32 %v4300, %v4302
    %v4304 = vrot.slane %v4290, %v4303
    %v4306 = vunpack.c.l.s4 1966171168
    %v4307 = vunpack.c.0.s8 %v4306
    %v4308 = vlaneseq
    %v4309 = vshrl.u32 %v4308, 7
    %v4310 = vsub.s32 %v4307, %v4309
    %v4311 = vrot.slane %v3999, %v4310
    %v4312 = vcombine.low %v4297, %v4304
    %v4314 = vunpack.c.l.s4 1966171168
    %v4315 = vunpack.c.0.s8 %v4314
    %v4316 = vlaneseq
    %v4317 = vshrl.u32 %v4316, 7
    %v4318 = vsub.s32 %v4315, %v4317
    %v4319 = vrot.slane %v4312, %v4318
    %v4321 = vunpack.c.l.s4 1966171168
    %v4322 = vunpack.c.0.s8 %v4321
    %v4323 = vlaneseq
    %v4324 = vshrl.u32 %v4323, 7
    %v4325 = vsub.s32 %v4322, %v4324
    %v4326 = vrot.slane %v4311, %v4325
    %v4327 = vcombine.low %v4319, %v4326
    %v4328 = vcombine.low %v4002, %v4003
    %v4329 = vcombine.low %v4004, %v4005
    %v4331 = vunpack.c.l.s4 1966171168
    %v4332 = vunpack.c.0.s8 %v4331
    %v4333 = vlaneseq
    %v4334 = vshrl.u32 %v4333, 7
    %v4335 = vsub.s32 %v4332, %v4334
    %v4336 = vrot.slane %v4328, %v4335
    %v4338 = vunpack.c.l.s4 1966171168
    %v4339 = vunpack.c.0.s8 %v4338
    %v4340 = vlaneseq
    %v4341 = vshrl.u32 %v4340, 7
    %v4342 = vsub.s32 %v4339, %v4341
    %v4343 = vrot.slane %v4329, %v4342
    %v4345 = vunpack.c.l.s4 1966171168
    %v4346 = vunpack.c.0.s8 %v4345
    %v4347 = vlaneseq
    %v4348 = vshrl.u32 %v4347, 7
    %v4349 = vsub.s32 %v4346, %v4348
    %v4350 = vrot.slane %v4006, %v4349
    %v4351 = vcombine.low %v4336, %v4343
    %v4353 = vunpack.c.l.s4 1966171168
    %v4354 = vunpack.c.0.s8 %v4353
    %v4355 = vlaneseq
    %v4356 = vshrl.u32 %v4355, 7
    %v4357 = vsub.s32 %v4354, %v4356
    %v4358 = vrot.slane %v4351, %v4357
    %v4360 = vunpack.c.l.s4 1966171168
    %v4361 = vunpack.c.0.s8 %v4360
    %v4362 = vlaneseq
    %v4363 = vshrl.u32 %v4362, 7
    %v4364 = vsub.s32 %v4361, %v4363
    %v4365 = vrot.slane %v4350, %v4364
    %v4366 = vcombine.low %v4358, %v4365
    %v4367 = vcombine.low %v4009, %v4010
    %v4368 = vcombine.low %v4011, %v4012
    %v4370 = vunpack.c.l.s4 1966171168
    %v4371 = vunpack.c.0.s8 %v4370
    %v4372 = vlaneseq
    %v4373 = vshrl.u32 %v4372, 7
    %v4374 = vsub.s32 %v4371, %v4373
    %v4375 = vrot.slane %v4367, %v4374
    %v4377 = vunpack.c.l.s4 1966171168
    %v4378 = vunpack.c.0.s8 %v4377
    %v4379 = vlaneseq
    %v4380 = vshrl.u32 %v4379, 7
    %v4381 = vsub.s32 %v4378, %v4380
    %v4382 = vrot.slane %v4368, %v4381
    %v4384 = vunpack.c.l.s4 1966171168
    %v4385 = vunpack.c.0.s8 %v4384
    %v4386 = vlaneseq
    %v4387 = vshrl.u32 %v4386, 7
    %v4388 = vsub.s32 %v4385, %v4387
    %v4389 = vrot.slane %v4013, %v4388
    %v4390 = vcombine.low %v4375, %v4382
    %v4392 = vunpack.c.l.s4 1966171168
    %v4393 = vunpack.c.0.s8 %v4392
    %v4394 = vlaneseq
    %v4395 = vshrl.u32 %v4394, 7
    %v4396 = vsub.s32 %v4393, %v4395
    %v4397 = vrot.slane %v4390, %v4396
    %v4399 = vunpack.c.l.s4 1966171168
    %v4400 = vunpack.c.0.s8 %v4399
    %v4401 = vlaneseq
    %v4402 = vshrl.u32 %v4401, 7
    %v4403 = vsub.s32 %v4400, %v4402
    %v4404 = vrot.slane %v4389, %v4403
    %v4405 = vcombine.low %v4397, %v4404
    %v4406 = vcombine.low %v4016, %v4017
    %v4407 = vcombine.low %v4018, %v4019
    %v4409 = vunpack.c.l.s4 1966171168
    %v4410 = vunpack.c.0.s8 %v4409
    %v4411 = vlaneseq
    %v4412 = vshrl.u32 %v4411, 7
    %v4413 = vsub.s32 %v4410, %v4412
    %v4414 = vrot.slane %v4406, %v4413
    %v4416 = vunpack.c.l.s4 1966171168
    %v4417 = vunpack.c.0.s8 %v4416
    %v4418 = vlaneseq
    %v4419 = vshrl.u32 %v4418, 7
    %v4420 = vsub.s32 %v4417, %v4419
    %v4421 = vrot.slane %v4407, %v4420
    %v4423 = vunpack.c.l.s4 1966171168
    %v4424 = vunpack.c.0.s8 %v4423
    %v4425 = vlaneseq
    %v4426 = vshrl.u32 %v4425, 7
    %v4427 = vsub.s32 %v4424, %v4426
    %v4428 = vrot.slane %v4020, %v4427
    %v4429 = vcombine.low %v4414, %v4421
    %v4431 = vunpack.c.l.s4 1966171168
    %v4432 = vunpack.c.0.s8 %v4431
    %v4433 = vlaneseq
    %v4434 = vshrl.u32 %v4433, 7
    %v4435 = vsub.s32 %v4432, %v4434
    %v4436 = vrot.slane %v4429, %v4435
    %v4438 = vunpack.c.l.s4 1966171168
    %v4439 = vunpack.c.0.s8 %v4438
    %v4440 = vlaneseq
    %v4441 = vshrl.u32 %v4440, 7
    %v4442 = vsub.s32 %v4439, %v4441
    %v4443 = vrot.slane %v4428, %v4442
    %v4444 = vcombine.low %v4436, %v4443
    %v4445 = vcombine.low %v4023, %v4024
    %v4446 = vcombine.low %v4025, %v4026
    %v4448 = vunpack.c.l.s4 1966171168
    %v4449 = vunpack.c.0.s8 %v4448
    %v4450 = vlaneseq
    %v4451 = vshrl.u32 %v4450, 7
    %v4452 = vsub.s32 %v4449, %v4451
    %v4453 = vrot.slane %v4445, %v4452
    %v4455 = vunpack.c.l.s4 1966171168
    %v4456 = vunpack.c.0.s8 %v4455
    %v4457 = vlaneseq
    %v4458 = vshrl.u32 %v4457, 7
    %v4459 = vsub.s32 %v4456, %v4458
    %v4460 = vrot.slane %v4446, %v4459
    %v4462 = vunpack.c.l.s4 1966171168
    %v4463 = vunpack.c.0.s8 %v4462
    %v4464 = vlaneseq
    %v4465 = vshrl.u32 %v4464, 7
    %v4466 = vsub.s32 %v4463, %v4465
    %v4467 = vrot.slane %v4027, %v4466
    %v4468 = vcombine.low %v4453, %v4460
    %v4470 = vunpack.c.l.s4 1966171168
    %v4471 = vunpack.c.0.s8 %v4470
    %v4472 = vlaneseq
    %v4473 = vshrl.u32 %v4472, 7
    %v4474 = vsub.s32 %v4471, %v4473
    %v4475 = vrot.slane %v4468, %v4474
    %v4477 = vunpack.c.l.s4 1966171168
    %v4478 = vunpack.c.0.s8 %v4477
    %v4479 = vlaneseq
    %v4480 = vshrl.u32 %v4479, 7
    %v4481 = vsub.s32 %v4478, %v4480
    %v4482 = vrot.slane %v4467, %v4481
    %v4483 = vcombine.low %v4475, %v4482
    %v4504 = vcombine.low %v3947, %v3948
    %v4505 = vcombine.low %v3949, %v3950
    %v4507 = vunpack.c.l.s4 1966171168
    %v4508 = vunpack.c.0.s8 %v4507
    %v4509 = vlaneseq
    %v4510 = vshrl.u32 %v4509, 7
    %v4511 = vsub.s32 %v4508, %v4510
    %v4512 = vrot.slane %v4504, %v4511
    %v4514 = vunpack.c.l.s4 1966171168
    %v4515 = vunpack.c.0.s8 %v4514
    %v4516 = vlaneseq
    %v4517 = vshrl.u32 %v4516, 7
    %v4518 = vsub.s32 %v4515, %v4517
    %v4519 = vrot.slane %v4505, %v4518
    %v4521 = vunpack.c.l.s4 1966171168
    %v4522 = vunpack.c.0.s8 %v4521
    %v4523 = vlaneseq
    %v4524 = vshrl.u32 %v4523, 7
    %v4525 = vsub.s32 %v4522, %v4524
    %v4526 = vrot.slane %v3951, %v4525
    %v4527 = vcombine.low %v4512, %v4519
    %v4529 = vunpack.c.l.s4 1966171168
    %v4530 = vunpack.c.0.s8 %v4529
    %v4531 = vlaneseq
    %v4532 = vshrl.u32 %v4531, 7
    %v4533 = vsub.s32 %v4530, %v4532
    %v4534 = vrot.slane %v4527, %v4533
    %v4536 = vunpack.c.l.s4 1966171168
    %v4537 = vunpack.c.0.s8 %v4536
    %v4538 = vlaneseq
    %v4539 = vshrl.u32 %v4538, 7
    %v4540 = vsub.s32 %v4537, %v4539
    %v4541 = vrot.slane %v4526, %v4540
    %v4542 = vcombine.low %v4534, %v4541
    %v4543 = vcombine.low %v3954, %v3955
    %v4544 = vcombine.low %v3956, %v3957
    %v4546 = vunpack.c.l.s4 1966171168
    %v4547 = vunpack.c.0.s8 %v4546
    %v4548 = vlaneseq
    %v4549 = vshrl.u32 %v4548, 7
    %v4550 = vsub.s32 %v4547, %v4549
    %v4551 = vrot.slane %v4543, %v4550
    %v4553 = vunpack.c.l.s4 1966171168
    %v4554 = vunpack.c.0.s8 %v4553
    %v4555 = vlaneseq
    %v4556 = vshrl.u32 %v4555, 7
    %v4557 = vsub.s32 %v4554, %v4556
    %v4558 = vrot.slane %v4544, %v4557
    %v4560 = vunpack.c.l.s4 1966171168
    %v4561 = vunpack.c.0.s8 %v4560
    %v4562 = vlaneseq
    %v4563 = vshrl.u32 %v4562, 7
    %v4564 = vsub.s32 %v4561, %v4563
    %v4565 = vrot.slane %v3958, %v4564
    %v4566 = vcombine.low %v4551, %v4558
    %v4568 = vunpack.c.l.s4 1966171168
    %v4569 = vunpack.c.0.s8 %v4568
    %v4570 = vlaneseq
    %v4571 = vshrl.u32 %v4570, 7
    %v4572 = vsub.s32 %v4569, %v4571
    %v4573 = vrot.slane %v4566, %v4572
    %v4575 = vunpack.c.l.s4 1966171168
    %v4576 = vunpack.c.0.s8 %v4575
    %v4577 = vlaneseq
    %v4578 = vshrl.u32 %v4577, 7
    %v4579 = vsub.s32 %v4576, %v4578
    %v4580 = vrot.slane %v4565, %v4579
    %v4581 = vcombine.low %v4573, %v4580
    %v4582 = vcombine.low %v3961, %v3962
    %v4583 = vcombine.low %v3963, %v3964
    %v4585 = vunpack.c.l.s4 1966171168
    %v4586 = vunpack.c.0.s8 %v4585
    %v4587 = vlaneseq
    %v4588 = vshrl.u32 %v4587, 7
    %v4589 = vsub.s32 %v4586, %v4588
    %v4590 = vrot.slane %v4582, %v4589
    %v4592 = vunpack.c.l.s4 1966171168
    %v4593 = vunpack.c.0.s8 %v4592
    %v4594 = vlaneseq
    %v4595 = vshrl.u32 %v4594, 7
    %v4596 = vsub.s32 %v4593, %v4595
    %v4597 = vrot.slane %v4583, %v4596
    %v4599 = vunpack.c.l.s4 1966171168
    %v4600 = vunpack.c.0.s8 %v4599
    %v4601 = vlaneseq
    %v4602 = vshrl.u32 %v4601, 7
    %v4603 = vsub.s32 %v4600, %v4602
    %v4604 = vrot.slane %v3965, %v4603
    %v4605 = vcombine.low %v4590, %v4597
    %v4607 = vunpack.c.l.s4 1966171168
    %v4608 = vunpack.c.0.s8 %v4607
    %v4609 = vlaneseq
    %v4610 = vshrl.u32 %v4609, 7
    %v4611 = vsub.s32 %v4608, %v4610
    %v4612 = vrot.slane %v4605, %v4611
    %v4614 = vunpack.c.l.s4 1966171168
    %v4615 = vunpack.c.0.s8 %v4614
    %v4616 = vlaneseq
    %v4617 = vshrl.u32 %v4616, 7
    %v4618 = vsub.s32 %v4615, %v4617
    %v4619 = vrot.slane %v4604, %v4618
    %v4620 = vcombine.low %v4612, %v4619
    %v4621 = vcombine.low %v3968, %v3969
    %v4622 = vcombine.low %v3970, %v3971
    %v4624 = vunpack.c.l.s4 1966171168
    %v4625 = vunpack.c.0.s8 %v4624
    %v4626 = vlaneseq
    %v4627 = vshrl.u32 %v4626, 7
    %v4628 = vsub.s32 %v4625, %v4627
    %v4629 = vrot.slane %v4621, %v4628
    %v4631 = vunpack.c.l.s4 1966171168
    %v4632 = vunpack.c.0.s8 %v4631
    %v4633 = vlaneseq
    %v4634 = vshrl.u32 %v4633, 7
    %v4635 = vsub.s32 %v4632, %v4634
    %v4636 = vrot.slane %v4622, %v4635
    %v4638 = vunpack.c.l.s4 1966171168
    %v4639 = vunpack.c.0.s8 %v4638
    %v4640 = vlaneseq
    %v4641 = vshrl.u32 %v4640, 7
    %v4642 = vsub.s32 %v4639, %v4641
    %v4643 = vrot.slane %v3972, %v4642
    %v4644 = vcombine.low %v4629, %v4636
    %v4646 = vunpack.c.l.s4 1966171168
    %v4647 = vunpack.c.0.s8 %v4646
    %v4648 = vlaneseq
    %v4649 = vshrl.u32 %v4648, 7
    %v4650 = vsub.s32 %v4647, %v4649
    %v4651 = vrot.slane %v4644, %v4650
    %v4653 = vunpack.c.l.s4 1966171168
    %v4654 = vunpack.c.0.s8 %v4653
    %v4655 = vlaneseq
    %v4656 = vshrl.u32 %v4655, 7
    %v4657 = vsub.s32 %v4654, %v4656
    %v4658 = vrot.slane %v4643, %v4657
    %v4659 = vcombine.low %v4651, %v4658
    %v4660 = vcombine.low %v3975, %v3976
    %v4661 = vcombine.low %v3977, %v3978
    %v4663 = vunpack.c.l.s4 1966171168
    %v4664 = vunpack.c.0.s8 %v4663
    %v4665 = vlaneseq
    %v4666 = vshrl.u32 %v4665, 7
    %v4667 = vsub.s32 %v4664, %v4666
    %v4668 = vrot.slane %v4660, %v4667
    %v4670 = vunpack.c.l.s4 1966171168
    %v4671 = vunpack.c.0.s8 %v4670
    %v4672 = vlaneseq
    %v4673 = vshrl.u32 %v4672, 7
    %v4674 = vsub.s32 %v4671, %v4673
    %v4675 = vrot.slane %v4661, %v4674
    %v4677 = vunpack.c.l.s4 1966171168
    %v4678 = vunpack.c.0.s8 %v4677
    %v4679 = vlaneseq
    %v4680 = vshrl.u32 %v4679, 7
    %v4681 = vsub.s32 %v4678, %v4680
    %v4682 = vrot.slane %v3979, %v4681
    %v4683 = vcombine.low %v4668, %v4675
    %v4685 = vunpack.c.l.s4 1966171168
    %v4686 = vunpack.c.0.s8 %v4685
    %v4687 = vlaneseq
    %v4688 = vshrl.u32 %v4687, 7
    %v4689 = vsub.s32 %v4686, %v4688
    %v4690 = vrot.slane %v4683, %v4689
    %v4692 = vunpack.c.l.s4 1966171168
    %v4693 = vunpack.c.0.s8 %v4692
    %v4694 = vlaneseq
    %v4695 = vshrl.u32 %v4694, 7
    %v4696 = vsub.s32 %v4693, %v4695
    %v4697 = vrot.slane %v4682, %v4696
    %v4698 = vcombine.low %v4690, %v4697
    %v4699 = vcombine.low %v3996, %v3997
    %v4700 = vcombine.low %v3998, %v3999
    %v4702 = vunpack.c.l.s4 1966171168
    %v4703 = vunpack.c.0.s8 %v4702
    %v4704 = vlaneseq
    %v4705 = vshrl.u32 %v4704, 7
    %v4706 = vsub.s32 %v4703, %v4705
    %v4707 = vrot.slane %v4699, %v4706
    %v4709 = vunpack.c.l.s4 1966171168
    %v4710 = vunpack.c.0.s8 %v4709
    %v4711 = vlaneseq
    %v4712 = vshrl.u32 %v4711, 7
    %v4713 = vsub.s32 %v4710, %v4712
    %v4714 = vrot.slane %v4700, %v4713
    %v4716 = vunpack.c.l.s4 1966171168
    %v4717 = vunpack.c.0.s8 %v4716
    %v4718 = vlaneseq
    %v4719 = vshrl.u32 %v4718, 7
    %v4720 = vsub.s32 %v4717, %v4719
    %v4721 = vrot.slane %v4000, %v4720
    %v4722 = vcombine.low %v4707, %v4714
    %v4724 = vunpack.c.l.s4 1966171168
    %v4725 = vunpack.c.0.s8 %v4724
    %v4726 = vlaneseq
    %v4727 = vshrl.u32 %v4726, 7
    %v4728 = vsub.s32 %v4725, %v4727
    %v4729 = vrot.slane %v4722, %v4728
    %v4731 = vunpack.c.l.s4 1966171168
    %v4732 = vunpack.c.0.s8 %v4731
    %v4733 = vlaneseq
    %v4734 = vshrl.u32 %v4733, 7
    %v4735 = vsub.s32 %v4732, %v4734
    %v4736 = vrot.slane %v4721, %v4735
    %v4737 = vcombine.low %v4729, %v4736
    %v4738 = vcombine.low %v4003, %v4004
    %v4739 = vcombine.low %v4005, %v4006
    %v4741 = vunpack.c.l.s4 1966171168
    %v4742 = vunpack.c.0.s8 %v4741
    %v4743 = vlaneseq
    %v4744 = vshrl.u32 %v4743, 7
    %v4745 = vsub.s32 %v4742, %v4744
    %v4746 = vrot.slane %v4738, %v4745
    %v4748 = vunpack.c.l.s4 1966171168
    %v4749 = vunpack.c.0.s8 %v4748
    %v4750 = vlaneseq
    %v4751 = vshrl.u32 %v4750, 7
    %v4752 = vsub.s32 %v4749, %v4751
    %v4753 = vrot.slane %v4739, %v4752
    %v4755 = vunpack.c.l.s4 1966171168
    %v4756 = vunpack.c.0.s8 %v4755
    %v4757 = vlaneseq
    %v4758 = vshrl.u32 %v4757, 7
    %v4759 = vsub.s32 %v4756, %v4758
    %v4760 = vrot.slane %v4007, %v4759
    %v4761 = vcombine.low %v4746, %v4753
    %v4763 = vunpack.c.l.s4 1966171168
    %v4764 = vunpack.c.0.s8 %v4763
    %v4765 = vlaneseq
    %v4766 = vshrl.u32 %v4765, 7
    %v4767 = vsub.s32 %v4764, %v4766
    %v4768 = vrot.slane %v4761, %v4767
    %v4770 = vunpack.c.l.s4 1966171168
    %v4771 = vunpack.c.0.s8 %v4770
    %v4772 = vlaneseq
    %v4773 = vshrl.u32 %v4772, 7
    %v4774 = vsub.s32 %v4771, %v4773
    %v4775 = vrot.slane %v4760, %v4774
    %v4776 = vcombine.low %v4768, %v4775
    %v4777 = vcombine.low %v4010, %v4011
    %v4778 = vcombine.low %v4012, %v4013
    %v4780 = vunpack.c.l.s4 1966171168
    %v4781 = vunpack.c.0.s8 %v4780
    %v4782 = vlaneseq
    %v4783 = vshrl.u32 %v4782, 7
    %v4784 = vsub.s32 %v4781, %v4783
    %v4785 = vrot.slane %v4777, %v4784
    %v4787 = vunpack.c.l.s4 1966171168
    %v4788 = vunpack.c.0.s8 %v4787
    %v4789 = vlaneseq
    %v4790 = vshrl.u32 %v4789, 7
    %v4791 = vsub.s32 %v4788, %v4790
    %v4792 = vrot.slane %v4778, %v4791
    %v4794 = vunpack.c.l.s4 1966171168
    %v4795 = vunpack.c.0.s8 %v4794
    %v4796 = vlaneseq
    %v4797 = vshrl.u32 %v4796, 7
    %v4798 = vsub.s32 %v4795, %v4797
    %v4799 = vrot.slane %v4014, %v4798
    %v4800 = vcombine.low %v4785, %v4792
    %v4802 = vunpack.c.l.s4 1966171168
    %v4803 = vunpack.c.0.s8 %v4802
    %v4804 = vlaneseq
    %v4805 = vshrl.u32 %v4804, 7
    %v4806 = vsub.s32 %v4803, %v4805
    %v4807 = vrot.slane %v4800, %v4806
    %v4809 = vunpack.c.l.s4 1966171168
    %v4810 = vunpack.c.0.s8 %v4809
    %v4811 = vlaneseq
    %v4812 = vshrl.u32 %v4811, 7
    %v4813 = vsub.s32 %v4810, %v4812
    %v4814 = vrot.slane %v4799, %v4813
    %v4815 = vcombine.low %v4807, %v4814
    %v4816 = vcombine.low %v4017, %v4018
    %v4817 = vcombine.low %v4019, %v4020
    %v4819 = vunpack.c.l.s4 1966171168
    %v4820 = vunpack.c.0.s8 %v4819
    %v4821 = vlaneseq
    %v4822 = vshrl.u32 %v4821, 7
    %v4823 = vsub.s32 %v4820, %v4822
    %v4824 = vrot.slane %v4816, %v4823
    %v4826 = vunpack.c.l.s4 1966171168
    %v4827 = vunpack.c.0.s8 %v4826
    %v4828 = vlaneseq
    %v4829 = vshrl.u32 %v4828, 7
    %v4830 = vsub.s32 %v4827, %v4829
    %v4831 = vrot.slane %v4817, %v4830
    %v4833 = vunpack.c.l.s4 1966171168
    %v4834 = vunpack.c.0.s8 %v4833
    %v4835 = vlaneseq
    %v4836 = vshrl.u32 %v4835, 7
    %v4837 = vsub.s32 %v4834, %v4836
    %v4838 = vrot.slane %v4021, %v4837
    %v4839 = vcombine.low %v4824, %v4831
    %v4841 = vunpack.c.l.s4 1966171168
    %v4842 = vunpack.c.0.s8 %v4841
    %v4843 = vlaneseq
    %v4844 = vshrl.u32 %v4843, 7
    %v4845 = vsub.s32 %v4842, %v4844
    %v4846 = vrot.slane %v4839, %v4845
    %v4848 = vunpack.c.l.s4 1966171168
    %v4849 = vunpack.c.0.s8 %v4848
    %v4850 = vlaneseq
    %v4851 = vshrl.u32 %v4850, 7
    %v4852 = vsub.s32 %v4849, %v4851
    %v4853 = vrot.slane %v4838, %v4852
    %v4854 = vcombine.low %v4846, %v4853
    %v4855 = vcombine.low %v4024, %v4025
    %v4856 = vcombine.low %v4026, %v4027
    %v4858 = vunpack.c.l.s4 1966171168
    %v4859 = vunpack.c.0.s8 %v4858
    %v4860 = vlaneseq
    %v4861 = vshrl.u32 %v4860, 7
    %v4862 = vsub.s32 %v4859, %v4861
    %v4863 = vrot.slane %v4855, %v4862
    %v4865 = vunpack.c.l.s4 1966171168
    %v4866 = vunpack.c.0.s8 %v4865
    %v4867 = vlaneseq
    %v4868 = vshrl.u32 %v4867, 7
    %v4869 = vsub.s32 %v4866, %v4868
    %v4870 = vrot.slane %v4856, %v4869
    %v4872 = vunpack.c.l.s4 1966171168
    %v4873 = vunpack.c.0.s8 %v4872
    %v4874 = vlaneseq
    %v4875 = vshrl.u32 %v4874, 7
    %v4876 = vsub.s32 %v4873, %v4875
    %v4877 = vrot.slane %v4028, %v4876
    %v4878 = vcombine.low %v4863, %v4870
    %v4880 = vunpack.c.l.s4 1966171168
    %v4881 = vunpack.c.0.s8 %v4880
    %v4882 = vlaneseq
    %v4883 = vshrl.u32 %v4882, 7
    %v4884 = vsub.s32 %v4881, %v4883
    %v4885 = vrot.slane %v4878, %v4884
    %v4887 = vunpack.c.l.s4 1966171168
    %v4888 = vunpack.c.0.s8 %v4887
    %v4889 = vlaneseq
    %v4890 = vshrl.u32 %v4889, 7
    %v4891 = vsub.s32 %v4888, %v4890
    %v4892 = vrot.slane %v4877, %v4891
    %v4893 = vcombine.low %v4885, %v4892
    %4894 = vrot.lane.b32.xlu0 %v4542, 12
    %v4895 = vpop.permute.xlu0 %4894
    %4896 = vrot.lane.b32.xlu0 %v4581, 12
    %v4897 = vpop.permute.xlu0 %4896
    %4898 = vrot.lane.b32.xlu0 %v4620, 12
    %v4899 = vpop.permute.xlu0 %4898
    %4900 = vrot.lane.b32.xlu0 %v4659, 12
    %v4901 = vpop.permute.xlu0 %4900
    %4902 = vrot.lane.b32.xlu0 %v4698, 12
    %v4903 = vpop.permute.xlu0 %4902
    %4904 = vrot.lane.b32.xlu0 %v4737, 12
    %v4905 = vpop.permute.xlu0 %4904
    %4906 = vrot.lane.b32.xlu0 %v4776, 12
    %v4907 = vpop.permute.xlu0 %4906
    %4908 = vrot.lane.b32.xlu0 %v4815, 12
    %v4909 = vpop.permute.xlu0 %4908
    %4910 = vrot.lane.b32.xlu0 %v4854, 12
    %v4911 = vpop.permute.xlu0 %4910
    %4912 = vrot.lane.b32.xlu0 %v4893, 12
    %v4913 = vpop.permute.xlu0 %4912
    %v4934 = vcombine.low %v3950, %v3951
    %v4936 = vunpack.c.l.s4 1966171168
    %v4937 = vunpack.c.0.s8 %v4936
    %v4938 = vlaneseq
    %v4939 = vshrl.u32 %v4938, 7
    %v4940 = vsub.s32 %v4937, %v4939
    %v4941 = vrot.slane %v4934, %v4940
    %v4943 = vunpack.c.l.s4 1966171168
    %v4944 = vunpack.c.0.s8 %v4943
    %v4945 = vlaneseq
    %v4946 = vshrl.u32 %v4945, 7
    %v4947 = vsub.s32 %v4944, %v4946
    %v4948 = vrot.slane %v3952, %v4947
    %v4949 = vcombine.low %v4109, %v4941
    %v4951 = vunpack.c.l.s4 1966171168
    %v4952 = vunpack.c.0.s8 %v4951
    %v4953 = vlaneseq
    %v4954 = vshrl.u32 %v4953, 7
    %v4955 = vsub.s32 %v4952, %v4954
    %v4956 = vrot.slane %v4949, %v4955
    %v4958 = vunpack.c.l.s4 1966171168
    %v4959 = vunpack.c.0.s8 %v4958
    %v4960 = vlaneseq
    %v4961 = vshrl.u32 %v4960, 7
    %v4962 = vsub.s32 %v4959, %v4961
    %v4963 = vrot.slane %v4948, %v4962
    %v4964 = vcombine.low %v4956, %v4963
    %v4965 = vcombine.low %v3957, %v3958
    %v4967 = vunpack.c.l.s4 1966171168
    %v4968 = vunpack.c.0.s8 %v4967
    %v4969 = vlaneseq
    %v4970 = vshrl.u32 %v4969, 7
    %v4971 = vsub.s32 %v4968, %v4970
    %v4972 = vrot.slane %v4965, %v4971
    %v4974 = vunpack.c.l.s4 1966171168
    %v4975 = vunpack.c.0.s8 %v4974
    %v4976 = vlaneseq
    %v4977 = vshrl.u32 %v4976, 7
    %v4978 = vsub.s32 %v4975, %v4977
    %v4979 = vrot.slane %v3959, %v4978
    %v4980 = vcombine.low %v4148, %v4972
    %v4982 = vunpack.c.l.s4 1966171168
    %v4983 = vunpack.c.0.s8 %v4982
    %v4984 = vlaneseq
    %v4985 = vshrl.u32 %v4984, 7
    %v4986 = vsub.s32 %v4983, %v4985
    %v4987 = vrot.slane %v4980, %v4986
    %v4989 = vunpack.c.l.s4 1966171168
    %v4990 = vunpack.c.0.s8 %v4989
    %v4991 = vlaneseq
    %v4992 = vshrl.u32 %v4991, 7
    %v4993 = vsub.s32 %v4990, %v4992
    %v4994 = vrot.slane %v4979, %v4993
    %v4995 = vcombine.low %v4987, %v4994
    %v4996 = vcombine.low %v3964, %v3965
    %v4998 = vunpack.c.l.s4 1966171168
    %v4999 = vunpack.c.0.s8 %v4998
    %v5000 = vlaneseq
    %v5001 = vshrl.u32 %v5000, 7
    %v5002 = vsub.s32 %v4999, %v5001
    %v5003 = vrot.slane %v4996, %v5002
    %v5005 = vunpack.c.l.s4 1966171168
    %v5006 = vunpack.c.0.s8 %v5005
    %v5007 = vlaneseq
    %v5008 = vshrl.u32 %v5007, 7
    %v5009 = vsub.s32 %v5006, %v5008
    %v5010 = vrot.slane %v3966, %v5009
    %v5011 = vcombine.low %v4187, %v5003
    %v5013 = vunpack.c.l.s4 1966171168
    %v5014 = vunpack.c.0.s8 %v5013
    %v5015 = vlaneseq
    %v5016 = vshrl.u32 %v5015, 7
    %v5017 = vsub.s32 %v5014, %v5016
    %v5018 = vrot.slane %v5011, %v5017
    %v5020 = vunpack.c.l.s4 1966171168
    %v5021 = vunpack.c.0.s8 %v5020
    %v5022 = vlaneseq
    %v5023 = vshrl.u32 %v5022, 7
    %v5024 = vsub.s32 %v5021, %v5023
    %v5025 = vrot.slane %v5010, %v5024
    %v5026 = vcombine.low %v5018, %v5025
    %v5027 = vcombine.low %v3971, %v3972
    %v5029 = vunpack.c.l.s4 1966171168
    %v5030 = vunpack.c.0.s8 %v5029
    %v5031 = vlaneseq
    %v5032 = vshrl.u32 %v5031, 7
    %v5033 = vsub.s32 %v5030, %v5032
    %v5034 = vrot.slane %v5027, %v5033
    %v5036 = vunpack.c.l.s4 1966171168
    %v5037 = vunpack.c.0.s8 %v5036
    %v5038 = vlaneseq
    %v5039 = vshrl.u32 %v5038, 7
    %v5040 = vsub.s32 %v5037, %v5039
    %v5041 = vrot.slane %v3973, %v5040
    %v5042 = vcombine.low %v4226, %v5034
    %v5044 = vunpack.c.l.s4 1966171168
    %v5045 = vunpack.c.0.s8 %v5044
    %v5046 = vlaneseq
    %v5047 = vshrl.u32 %v5046, 7
    %v5048 = vsub.s32 %v5045, %v5047
    %v5049 = vrot.slane %v5042, %v5048
    %v5051 = vunpack.c.l.s4 1966171168
    %v5052 = vunpack.c.0.s8 %v5051
    %v5053 = vlaneseq
    %v5054 = vshrl.u32 %v5053, 7
    %v5055 = vsub.s32 %v5052, %v5054
    %v5056 = vrot.slane %v5041, %v5055
    %v5057 = vcombine.low %v5049, %v5056
    %v5058 = vcombine.low %v3978, %v3979
    %v5060 = vunpack.c.l.s4 1966171168
    %v5061 = vunpack.c.0.s8 %v5060
    %v5062 = vlaneseq
    %v5063 = vshrl.u32 %v5062, 7
    %v5064 = vsub.s32 %v5061, %v5063
    %v5065 = vrot.slane %v5058, %v5064
    %v5067 = vunpack.c.l.s4 1966171168
    %v5068 = vunpack.c.0.s8 %v5067
    %v5069 = vlaneseq
    %v5070 = vshrl.u32 %v5069, 7
    %v5071 = vsub.s32 %v5068, %v5070
    %v5072 = vrot.slane %v3980, %v5071
    %v5073 = vcombine.low %v4265, %v5065
    %v5075 = vunpack.c.l.s4 1966171168
    %v5076 = vunpack.c.0.s8 %v5075
    %v5077 = vlaneseq
    %v5078 = vshrl.u32 %v5077, 7
    %v5079 = vsub.s32 %v5076, %v5078
    %v5080 = vrot.slane %v5073, %v5079
    %v5082 = vunpack.c.l.s4 1966171168
    %v5083 = vunpack.c.0.s8 %v5082
    %v5084 = vlaneseq
    %v5085 = vshrl.u32 %v5084, 7
    %v5086 = vsub.s32 %v5083, %v5085
    %v5087 = vrot.slane %v5072, %v5086
    %v5088 = vcombine.low %v5080, %v5087
    %v5089 = vcombine.low %v3999, %v4000
    %v5091 = vunpack.c.l.s4 1966171168
    %v5092 = vunpack.c.0.s8 %v5091
    %v5093 = vlaneseq
    %v5094 = vshrl.u32 %v5093, 7
    %v5095 = vsub.s32 %v5092, %v5094
    %v5096 = vrot.slane %v5089, %v5095
    %v5098 = vunpack.c.l.s4 1966171168
    %v5099 = vunpack.c.0.s8 %v5098
    %v5100 = vlaneseq
    %v5101 = vshrl.u32 %v5100, 7
    %v5102 = vsub.s32 %v5099, %v5101
    %v5103 = vrot.slane %v4001, %v5102
    %v5104 = vcombine.low %v4304, %v5096
    %v5106 = vunpack.c.l.s4 1966171168
    %v5107 = vunpack.c.0.s8 %v5106
    %v5108 = vlaneseq
    %v5109 = vshrl.u32 %v5108, 7
    %v5110 = vsub.s32 %v5107, %v5109
    %v5111 = vrot.slane %v5104, %v5110
    %v5113 = vunpack.c.l.s4 1966171168
    %v5114 = vunpack.c.0.s8 %v5113
    %v5115 = vlaneseq
    %v5116 = vshrl.u32 %v5115, 7
    %v5117 = vsub.s32 %v5114, %v5116
    %v5118 = vrot.slane %v5103, %v5117
    %v5119 = vcombine.low %v5111, %v5118
    %v5120 = vcombine.low %v4006, %v4007
    %v5122 = vunpack.c.l.s4 1966171168
    %v5123 = vunpack.c.0.s8 %v5122
    %v5124 = vlaneseq
    %v5125 = vshrl.u32 %v5124, 7
    %v5126 = vsub.s32 %v5123, %v5125
    %v5127 = vrot.slane %v5120, %v5126
    %v5129 = vunpack.c.l.s4 1966171168
    %v5130 = vunpack.c.0.s8 %v5129
    %v5131 = vlaneseq
    %v5132 = vshrl.u32 %v5131, 7
    %v5133 = vsub.s32 %v5130, %v5132
    %v5134 = vrot.slane %v4008, %v5133
    %v5135 = vcombine.low %v4343, %v5127
    %v5137 = vunpack.c.l.s4 1966171168
    %v5138 = vunpack.c.0.s8 %v5137
    %v5139 = vlaneseq
    %v5140 = vshrl.u32 %v5139, 7
    %v5141 = vsub.s32 %v5138, %v5140
    %v5142 = vrot.slane %v5135, %v5141
    %v5144 = vunpack.c.l.s4 1966171168
    %v5145 = vunpack.c.0.s8 %v5144
    %v5146 = vlaneseq
    %v5147 = vshrl.u32 %v5146, 7
    %v5148 = vsub.s32 %v5145, %v5147
    %v5149 = vrot.slane %v5134, %v5148
    %v5150 = vcombine.low %v5142, %v5149
    %v5151 = vcombine.low %v4013, %v4014
    %v5153 = vunpack.c.l.s4 1966171168
    %v5154 = vunpack.c.0.s8 %v5153
    %v5155 = vlaneseq
    %v5156 = vshrl.u32 %v5155, 7
    %v5157 = vsub.s32 %v5154, %v5156
    %v5158 = vrot.slane %v5151, %v5157
    %v5160 = vunpack.c.l.s4 1966171168
    %v5161 = vunpack.c.0.s8 %v5160
    %v5162 = vlaneseq
    %v5163 = vshrl.u32 %v5162, 7
    %v5164 = vsub.s32 %v5161, %v5163
    %v5165 = vrot.slane %v4015, %v5164
    %v5166 = vcombine.low %v4382, %v5158
    %v5168 = vunpack.c.l.s4 1966171168
    %v5169 = vunpack.c.0.s8 %v5168
    %v5170 = vlaneseq
    %v5171 = vshrl.u32 %v5170, 7
    %v5172 = vsub.s32 %v5169, %v5171
    %v5173 = vrot.slane %v5166, %v5172
    %v5175 = vunpack.c.l.s4 1966171168
    %v5176 = vunpack.c.0.s8 %v5175
    %v5177 = vlaneseq
    %v5178 = vshrl.u32 %v5177, 7
    %v5179 = vsub.s32 %v5176, %v5178
    %v5180 = vrot.slane %v5165, %v5179
    %v5181 = vcombine.low %v5173, %v5180
    %v5182 = vcombine.low %v4020, %v4021
    %v5184 = vunpack.c.l.s4 1966171168
    %v5185 = vunpack.c.0.s8 %v5184
    %v5186 = vlaneseq
    %v5187 = vshrl.u32 %v5186, 7
    %v5188 = vsub.s32 %v5185, %v5187
    %v5189 = vrot.slane %v5182, %v5188
    %v5191 = vunpack.c.l.s4 1966171168
    %v5192 = vunpack.c.0.s8 %v5191
    %v5193 = vlaneseq
    %v5194 = vshrl.u32 %v5193, 7
    %v5195 = vsub.s32 %v5192, %v5194
    %v5196 = vrot.slane %v4022, %v5195
    %v5197 = vcombine.low %v4421, %v5189
    %v5199 = vunpack.c.l.s4 1966171168
    %v5200 = vunpack.c.0.s8 %v5199
    %v5201 = vlaneseq
    %v5202 = vshrl.u32 %v5201, 7
    %v5203 = vsub.s32 %v5200, %v5202
    %v5204 = vrot.slane %v5197, %v5203
    %v5206 = vunpack.c.l.s4 1966171168
    %v5207 = vunpack.c.0.s8 %v5206
    %v5208 = vlaneseq
    %v5209 = vshrl.u32 %v5208, 7
    %v5210 = vsub.s32 %v5207, %v5209
    %v5211 = vrot.slane %v5196, %v5210
    %v5212 = vcombine.low %v5204, %v5211
    %v5213 = vcombine.low %v4027, %v4028
    %v5215 = vunpack.c.l.s4 1966171168
    %v5216 = vunpack.c.0.s8 %v5215
    %v5217 = vlaneseq
    %v5218 = vshrl.u32 %v5217, 7
    %v5219 = vsub.s32 %v5216, %v5218
    %v5220 = vrot.slane %v5213, %v5219
    %v5222 = vunpack.c.l.s4 1966171168
    %v5223 = vunpack.c.0.s8 %v5222
    %v5224 = vlaneseq
    %v5225 = vshrl.u32 %v5224, 7
    %v5226 = vsub.s32 %v5223, %v5225
    %v5227 = vrot.slane %v4029, %v5226
    %v5228 = vcombine.low %v4460, %v5220
    %v5230 = vunpack.c.l.s4 1966171168
    %v5231 = vunpack.c.0.s8 %v5230
    %v5232 = vlaneseq
    %v5233 = vshrl.u32 %v5232, 7
    %v5234 = vsub.s32 %v5231, %v5233
    %v5235 = vrot.slane %v5228, %v5234
    %v5237 = vunpack.c.l.s4 1966171168
    %v5238 = vunpack.c.0.s8 %v5237
    %v5239 = vlaneseq
    %v5240 = vshrl.u32 %v5239, 7
    %v5241 = vsub.s32 %v5238, %v5240
    %v5242 = vrot.slane %v5227, %v5241
    %v5243 = vcombine.low %v5235, %v5242
    %5244 = vrot.lane.b32.xlu0 %v4964, 24
    %v5245 = vpop.permute.xlu0 %5244
    %5246 = vrot.lane.b32.xlu0 %v4995, 24
    %v5247 = vpop.permute.xlu0 %5246
    %5248 = vrot.lane.b32.xlu0 %v5026, 24
    %v5249 = vpop.permute.xlu0 %5248
    %5250 = vrot.lane.b32.xlu0 %v5057, 24
    %v5251 = vpop.permute.xlu0 %5250
    %5252 = vrot.lane.b32.xlu0 %v5088, 24
    %v5253 = vpop.permute.xlu0 %5252
    %5254 = vrot.lane.b32.xlu0 %v5119, 24
    %v5255 = vpop.permute.xlu0 %5254
    %5256 = vrot.lane.b32.xlu0 %v5150, 24
    %v5257 = vpop.permute.xlu0 %5256
    %5258 = vrot.lane.b32.xlu0 %v5181, 24
    %v5259 = vpop.permute.xlu0 %5258
    %5260 = vrot.lane.b32.xlu0 %v5212, 24
    %v5261 = vpop.permute.xlu0 %5260
    %5262 = vrot.lane.b32.xlu0 %v5243, 24
    %v5263 = vpop.permute.xlu0 %5262
    %5274 = vrot.lane.b32.xlu0 %v4132, 18
    %v5275 = vpop.permute.xlu0 %5274
    %5276 = vrot.lane.b32.xlu0 %v4171, 18
    %v5277 = vpop.permute.xlu0 %5276
    %5278 = vrot.lane.b32.xlu0 %v4210, 18
    %v5279 = vpop.permute.xlu0 %5278
    %5280 = vrot.lane.b32.xlu0 %v4249, 18
    %v5281 = vpop.permute.xlu0 %5280
    %5282 = vrot.lane.b32.xlu0 %v4288, 18
    %v5283 = vpop.permute.xlu0 %5282
    %5284 = vrot.lane.b32.xlu0 %v4327, 18
    %v5285 = vpop.permute.xlu0 %5284
    %5286 = vrot.lane.b32.xlu0 %v4366, 18
    %v5287 = vpop.permute.xlu0 %5286
    %5288 = vrot.lane.b32.xlu0 %v4405, 18
    %v5289 = vpop.permute.xlu0 %5288
    %5290 = vrot.lane.b32.xlu0 %v4444, 18
    %v5291 = vpop.permute.xlu0 %5290
    %5292 = vrot.lane.b32.xlu0 %v4483, 18
    %v5293 = vpop.permute.xlu0 %5292
    %5304 = vrot.lane.b32.xlu0 %v4542, 30
    %v5305 = vpop.permute.xlu0 %5304
    %5306 = vrot.lane.b32.xlu0 %v4581, 30
    %v5307 = vpop.permute.xlu0 %5306
    %5308 = vrot.lane.b32.xlu0 %v4620, 30
    %v5309 = vpop.permute.xlu0 %5308
    %5310 = vrot.lane.b32.xlu0 %v4659, 30
    %v5311 = vpop.permute.xlu0 %5310
    %5312 = vrot.lane.b32.xlu0 %v4698, 30
    %v5313 = vpop.permute.xlu0 %5312
    %5314 = vrot.lane.b32.xlu0 %v4737, 30
    %v5315 = vpop.permute.xlu0 %5314
    %5316 = vrot.lane.b32.xlu0 %v4776, 30
    %v5317 = vpop.permute.xlu0 %5316
    %5318 = vrot.lane.b32.xlu0 %v4815, 30
    %v5319 = vpop.permute.xlu0 %5318
    %5320 = vrot.lane.b32.xlu0 %v4854, 30
    %v5321 = vpop.permute.xlu0 %5320
    %5322 = vrot.lane.b32.xlu0 %v4893, 30
    %v5323 = vpop.permute.xlu0 %5322
    %5334 = vrot.lane.b32.xlu0 %v4964, 42
    %v5335 = vpop.permute.xlu0 %5334
    %5336 = vrot.lane.b32.xlu0 %v4995, 42
    %v5337 = vpop.permute.xlu0 %5336
    %5338 = vrot.lane.b32.xlu0 %v5026, 42
    %v5339 = vpop.permute.xlu0 %5338
    %5340 = vrot.lane.b32.xlu0 %v5057, 42
    %v5341 = vpop.permute.xlu0 %5340
    %5342 = vrot.lane.b32.xlu0 %v5088, 42
    %v5343 = vpop.permute.xlu0 %5342
    %5344 = vrot.lane.b32.xlu0 %v5119, 42
    %v5345 = vpop.permute.xlu0 %5344
    %5346 = vrot.lane.b32.xlu0 %v5150, 42
    %v5347 = vpop.permute.xlu0 %5346
    %5348 = vrot.lane.b32.xlu0 %v5181, 42
    %v5349 = vpop.permute.xlu0 %5348
    %5350 = vrot.lane.b32.xlu0 %v5212, 42
    %v5351 = vpop.permute.xlu0 %5350
    %5352 = vrot.lane.b32.xlu0 %v5243, 42
    %v5353 = vpop.permute.xlu0 %5352
    %v5374 = vcombine.low %v3981, %v3982
    %v5375 = vcombine.low %v3983, %v3984
    %v5377 = vunpack.c.l.s4 1966171168
    %v5378 = vunpack.c.0.s8 %v5377
    %v5379 = vlaneseq
    %v5380 = vshrl.u32 %v5379, 7
    %v5381 = vsub.s32 %v5378, %v5380
    %v5382 = vrot.slane %v5374, %v5381
    %v5384 = vunpack.c.l.s4 1966171168
    %v5385 = vunpack.c.0.s8 %v5384
    %v5386 = vlaneseq
    %v5387 = vshrl.u32 %v5386, 7
    %v5388 = vsub.s32 %v5385, %v5387
    %v5389 = vrot.slane %v5375, %v5388
    %v5391 = vunpack.c.l.s4 1966171168
    %v5392 = vunpack.c.0.s8 %v5391
    %v5393 = vlaneseq
    %v5394 = vshrl.u32 %v5393, 7
    %v5395 = vsub.s32 %v5392, %v5394
    %v5396 = vrot.slane %v3985, %v5395
    %v5397 = vcombine.low %v5382, %v5389
    %v5399 = vunpack.c.l.s4 1966171168
    %v5400 = vunpack.c.0.s8 %v5399
    %v5401 = vlaneseq
    %v5402 = vshrl.u32 %v5401, 7
    %v5403 = vsub.s32 %v5400, %v5402
    %v5404 = vrot.slane %v5397, %v5403
    %v5406 = vunpack.c.l.s4 1966171168
    %v5407 = vunpack.c.0.s8 %v5406
    %v5408 = vlaneseq
    %v5409 = vshrl.u32 %v5408, 7
    %v5410 = vsub.s32 %v5407, %v5409
    %v5411 = vrot.slane %v5396, %v5410
    %v5412 = vcombine.low %v5404, %v5411
    %v5413 = vcombine.low %v4030, %v4031
    %v5414 = vcombine.low %v4032, %v4033
    %v5416 = vunpack.c.l.s4 1966171168
    %v5417 = vunpack.c.0.s8 %v5416
    %v5418 = vlaneseq
    %v5419 = vshrl.u32 %v5418, 7
    %v5420 = vsub.s32 %v5417, %v5419
    %v5421 = vrot.slane %v5413, %v5420
    %v5423 = vunpack.c.l.s4 1966171168
    %v5424 = vunpack.c.0.s8 %v5423
    %v5425 = vlaneseq
    %v5426 = vshrl.u32 %v5425, 7
    %v5427 = vsub.s32 %v5424, %v5426
    %v5428 = vrot.slane %v5414, %v5427
    %v5430 = vunpack.c.l.s4 1966171168
    %v5431 = vunpack.c.0.s8 %v5430
    %v5432 = vlaneseq
    %v5433 = vshrl.u32 %v5432, 7
    %v5434 = vsub.s32 %v5431, %v5433
    %v5435 = vrot.slane %v4034, %v5434
    %v5436 = vcombine.low %v5421, %v5428
    %v5438 = vunpack.c.l.s4 1966171168
    %v5439 = vunpack.c.0.s8 %v5438
    %v5440 = vlaneseq
    %v5441 = vshrl.u32 %v5440, 7
    %v5442 = vsub.s32 %v5439, %v5441
    %v5443 = vrot.slane %v5436, %v5442
    %v5445 = vunpack.c.l.s4 1966171168
    %v5446 = vunpack.c.0.s8 %v5445
    %v5447 = vlaneseq
    %v5448 = vshrl.u32 %v5447, 7
    %v5449 = vsub.s32 %v5446, %v5448
    %v5450 = vrot.slane %v5435, %v5449
    %v5451 = vcombine.low %v5443, %v5450
    %5452 = vrot.lane.b32.xlu0 %v4171, 60
    %v5453 = vpop.permute.xlu0 %5452
    %5454 = vrot.lane.b32.xlu0 %v4210, 60
    %v5455 = vpop.permute.xlu0 %5454
    %5456 = vrot.lane.b32.xlu0 %v4249, 60
    %v5457 = vpop.permute.xlu0 %5456
    %5458 = vrot.lane.b32.xlu0 %v4288, 60
    %v5459 = vpop.permute.xlu0 %5458
    %5460 = vrot.lane.b32.xlu0 %v5412, 60
    %v5461 = vpop.permute.xlu0 %5460
    %5462 = vrot.lane.b32.xlu0 %v4366, 60
    %v5463 = vpop.permute.xlu0 %5462
    %5464 = vrot.lane.b32.xlu0 %v4405, 60
    %v5465 = vpop.permute.xlu0 %5464
    %5466 = vrot.lane.b32.xlu0 %v4444, 60
    %v5467 = vpop.permute.xlu0 %5466
    %5468 = vrot.lane.b32.xlu0 %v4483, 60
    %v5469 = vpop.permute.xlu0 %5468
    %5470 = vrot.lane.b32.xlu0 %v5451, 60
    %v5471 = vpop.permute.xlu0 %5470
    %v5484 = vcombine.low %v3982, %v3983
    %v5485 = vcombine.low %v3984, %v3985
    %v5487 = vunpack.c.l.s4 1966171168
    %v5488 = vunpack.c.0.s8 %v5487
    %v5489 = vlaneseq
    %v5490 = vshrl.u32 %v5489, 7
    %v5491 = vsub.s32 %v5488, %v5490
    %v5492 = vrot.slane %v5484, %v5491
    %v5494 = vunpack.c.l.s4 1966171168
    %v5495 = vunpack.c.0.s8 %v5494
    %v5496 = vlaneseq
    %v5497 = vshrl.u32 %v5496, 7
    %v5498 = vsub.s32 %v5495, %v5497
    %v5499 = vrot.slane %v5485, %v5498
    %v5501 = vunpack.c.l.s4 1966171168
    %v5502 = vunpack.c.0.s8 %v5501
    %v5503 = vlaneseq
    %v5504 = vshrl.u32 %v5503, 7
    %v5505 = vsub.s32 %v5502, %v5504
    %v5506 = vrot.slane %v3986, %v5505
    %v5507 = vcombine.low %v5492, %v5499
    %v5509 = vunpack.c.l.s4 1966171168
    %v5510 = vunpack.c.0.s8 %v5509
    %v5511 = vlaneseq
    %v5512 = vshrl.u32 %v5511, 7
    %v5513 = vsub.s32 %v5510, %v5512
    %v5514 = vrot.slane %v5507, %v5513
    %v5516 = vunpack.c.l.s4 1966171168
    %v5517 = vunpack.c.0.s8 %v5516
    %v5518 = vlaneseq
    %v5519 = vshrl.u32 %v5518, 7
    %v5520 = vsub.s32 %v5517, %v5519
    %v5521 = vrot.slane %v5506, %v5520
    %v5522 = vcombine.low %v5514, %v5521
    %v5523 = vcombine.low %v4031, %v4032
    %v5524 = vcombine.low %v4033, %v4034
    %v5526 = vunpack.c.l.s4 1966171168
    %v5527 = vunpack.c.0.s8 %v5526
    %v5528 = vlaneseq
    %v5529 = vshrl.u32 %v5528, 7
    %v5530 = vsub.s32 %v5527, %v5529
    %v5531 = vrot.slane %v5523, %v5530
    %v5533 = vunpack.c.l.s4 1966171168
    %v5534 = vunpack.c.0.s8 %v5533
    %v5535 = vlaneseq
    %v5536 = vshrl.u32 %v5535, 7
    %v5537 = vsub.s32 %v5534, %v5536
    %v5538 = vrot.slane %v5524, %v5537
    %v5540 = vunpack.c.l.s4 1966171168
    %v5541 = vunpack.c.0.s8 %v5540
    %v5542 = vlaneseq
    %v5543 = vshrl.u32 %v5542, 7
    %v5544 = vsub.s32 %v5541, %v5543
    %v5545 = vrot.slane %v4035, %v5544
    %v5546 = vcombine.low %v5531, %v5538
    %v5548 = vunpack.c.l.s4 1966171168
    %v5549 = vunpack.c.0.s8 %v5548
    %v5550 = vlaneseq
    %v5551 = vshrl.u32 %v5550, 7
    %v5552 = vsub.s32 %v5549, %v5551
    %v5553 = vrot.slane %v5546, %v5552
    %v5555 = vunpack.c.l.s4 1966171168
    %v5556 = vunpack.c.0.s8 %v5555
    %v5557 = vlaneseq
    %v5558 = vshrl.u32 %v5557, 7
    %v5559 = vsub.s32 %v5556, %v5558
    %v5560 = vrot.slane %v5545, %v5559
    %v5561 = vcombine.low %v5553, %v5560
    %5562 = vrot.lane.b32.xlu0 %v4581, 72
    %v5563 = vpop.permute.xlu0 %5562
    %5564 = vrot.lane.b32.xlu0 %v4620, 72
    %v5565 = vpop.permute.xlu0 %5564
    %5566 = vrot.lane.b32.xlu0 %v4659, 72
    %v5567 = vpop.permute.xlu0 %5566
    %5568 = vrot.lane.b32.xlu0 %v4698, 72
    %v5569 = vpop.permute.xlu0 %5568
    %5570 = vrot.lane.b32.xlu0 %v5522, 72
    %v5571 = vpop.permute.xlu0 %5570
    %5572 = vrot.lane.b32.xlu0 %v4776, 72
    %v5573 = vpop.permute.xlu0 %5572
    %5574 = vrot.lane.b32.xlu0 %v4815, 72
    %v5575 = vpop.permute.xlu0 %5574
    %5576 = vrot.lane.b32.xlu0 %v4854, 72
    %v5577 = vpop.permute.xlu0 %5576
    %5578 = vrot.lane.b32.xlu0 %v4893, 72
    %v5579 = vpop.permute.xlu0 %5578
    %5580 = vrot.lane.b32.xlu0 %v5561, 72
    %v5581 = vpop.permute.xlu0 %5580
    %v5594 = vcombine.low %v3985, %v3986
    %v5596 = vunpack.c.l.s4 1966171168
    %v5597 = vunpack.c.0.s8 %v5596
    %v5598 = vlaneseq
    %v5599 = vshrl.u32 %v5598, 7
    %v5600 = vsub.s32 %v5597, %v5599
    %v5601 = vrot.slane %v5594, %v5600
    %v5603 = vunpack.c.l.s4 1966171168
    %v5604 = vunpack.c.0.s8 %v5603
    %v5605 = vlaneseq
    %v5606 = vshrl.u32 %v5605, 7
    %v5607 = vsub.s32 %v5604, %v5606
    %v5608 = vrot.slane %v3987, %v5607
    %v5609 = vcombine.low %v5389, %v5601
    %v5611 = vunpack.c.l.s4 1966171168
    %v5612 = vunpack.c.0.s8 %v5611
    %v5613 = vlaneseq
    %v5614 = vshrl.u32 %v5613, 7
    %v5615 = vsub.s32 %v5612, %v5614
    %v5616 = vrot.slane %v5609, %v5615
    %v5618 = vunpack.c.l.s4 1966171168
    %v5619 = vunpack.c.0.s8 %v5618
    %v5620 = vlaneseq
    %v5621 = vshrl.u32 %v5620, 7
    %v5622 = vsub.s32 %v5619, %v5621
    %v5623 = vrot.slane %v5608, %v5622
    %v5624 = vcombine.low %v5616, %v5623
    %v5625 = vcombine.low %v4034, %v4035
    %v5627 = vunpack.c.l.s4 1966171168
    %v5628 = vunpack.c.0.s8 %v5627
    %v5629 = vlaneseq
    %v5630 = vshrl.u32 %v5629, 7
    %v5631 = vsub.s32 %v5628, %v5630
    %v5632 = vrot.slane %v5625, %v5631
    %v5634 = vunpack.c.l.s4 1966171168
    %v5635 = vunpack.c.0.s8 %v5634
    %v5636 = vlaneseq
    %v5637 = vshrl.u32 %v5636, 7
    %v5638 = vsub.s32 %v5635, %v5637
    %v5639 = vrot.slane %v4036, %v5638
    %v5640 = vcombine.low %v5428, %v5632
    %v5642 = vunpack.c.l.s4 1966171168
    %v5643 = vunpack.c.0.s8 %v5642
    %v5644 = vlaneseq
    %v5645 = vshrl.u32 %v5644, 7
    %v5646 = vsub.s32 %v5643, %v5645
    %v5647 = vrot.slane %v5640, %v5646
    %v5649 = vunpack.c.l.s4 1966171168
    %v5650 = vunpack.c.0.s8 %v5649
    %v5651 = vlaneseq
    %v5652 = vshrl.u32 %v5651, 7
    %v5653 = vsub.s32 %v5650, %v5652
    %v5654 = vrot.slane %v5639, %v5653
    %v5655 = vcombine.low %v5647, %v5654
    %5656 = vrot.lane.b32.xlu0 %v4995, 84
    %v5657 = vpop.permute.xlu0 %5656
    %5658 = vrot.lane.b32.xlu0 %v5026, 84
    %v5659 = vpop.permute.xlu0 %5658
    %5660 = vrot.lane.b32.xlu0 %v5057, 84
    %v5661 = vpop.permute.xlu0 %5660
    %5662 = vrot.lane.b32.xlu0 %v5088, 84
    %v5663 = vpop.permute.xlu0 %5662
    %5664 = vrot.lane.b32.xlu0 %v5624, 84
    %v5665 = vpop.permute.xlu0 %5664
    %5666 = vrot.lane.b32.xlu0 %v5150, 84
    %v5667 = vpop.permute.xlu0 %5666
    %5668 = vrot.lane.b32.xlu0 %v5181, 84
    %v5669 = vpop.permute.xlu0 %5668
    %5670 = vrot.lane.b32.xlu0 %v5212, 84
    %v5671 = vpop.permute.xlu0 %5670
    %5672 = vrot.lane.b32.xlu0 %v5243, 84
    %v5673 = vpop.permute.xlu0 %5672
    %5674 = vrot.lane.b32.xlu0 %v5655, 84
    %v5675 = vpop.permute.xlu0 %5674
    %5686 = vrot.lane.b32.xlu0 %v4171, 78
    %v5687 = vpop.permute.xlu0 %5686
    %5688 = vrot.lane.b32.xlu0 %v4210, 78
    %v5689 = vpop.permute.xlu0 %5688
    %5690 = vrot.lane.b32.xlu0 %v4249, 78
    %v5691 = vpop.permute.xlu0 %5690
    %5692 = vrot.lane.b32.xlu0 %v4288, 78
    %v5693 = vpop.permute.xlu0 %5692
    %5694 = vrot.lane.b32.xlu0 %v5412, 78
    %v5695 = vpop.permute.xlu0 %5694
    %5696 = vrot.lane.b32.xlu0 %v4366, 78
    %v5697 = vpop.permute.xlu0 %5696
    %5698 = vrot.lane.b32.xlu0 %v4405, 78
    %v5699 = vpop.permute.xlu0 %5698
    %5700 = vrot.lane.b32.xlu0 %v4444, 78
    %v5701 = vpop.permute.xlu0 %5700
    %5702 = vrot.lane.b32.xlu0 %v4483, 78
    %v5703 = vpop.permute.xlu0 %5702
    %5704 = vrot.lane.b32.xlu0 %v5451, 78
    %v5705 = vpop.permute.xlu0 %5704
    %vm5716 = vcmask 48128
    %v5717 = vsel %vm5716, %v4132, %v4132
    %v5718 = vsel %vm5716, %v4171, %v4171
    %v5719 = vsel %vm5716, %v4210, %v4210
    %v5720 = vsel %vm5716, %v4249, %v4249
    %v5721 = vsel %vm5716, %v4288, %v4288
    %v5722 = vsel %vm5716, %v4327, %v4327
    %v5723 = vsel %vm5716, %v4366, %v4366
    %v5724 = vsel %vm5716, %v4405, %v4405
    %v5725 = vsel %vm5716, %v4444, %v4444
    %v5726 = vsel %vm5716, %v4483, %v4483
    %vm5727 = vcmask 97280
    %v5728 = vsel %vm5727, %v5717, %v4895
    %v5729 = vsel %vm5727, %v5718, %v4897
    %v5730 = vsel %vm5727, %v5719, %v4899
    %v5731 = vsel %vm5727, %v5720, %v4901
    %v5732 = vsel %vm5727, %v5721, %v4903
    %v5733 = vsel %vm5727, %v5722, %v4905
    %v5734 = vsel %vm5727, %v5723, %v4907
    %v5735 = vsel %vm5727, %v5724, %v4909
    %v5736 = vsel %vm5727, %v5725, %v4911
    %v5737 = vsel %vm5727, %v5726, %v4913
    %vm5738 = vcmask 146432
    %v5739 = vsel %vm5738, %v5728, %v4895
    %v5740 = vsel %vm5738, %v5729, %v4897
    %v5741 = vsel %vm5738, %v5730, %v4899
    %v5742 = vsel %vm5738, %v5731, %v4901
    %v5743 = vsel %vm5738, %v5732, %v4903
    %v5744 = vsel %vm5738, %v5733, %v4905
    %v5745 = vsel %vm5738, %v5734, %v4907
    %v5746 = vsel %vm5738, %v5735, %v4909
    %v5747 = vsel %vm5738, %v5736, %v4911
    %v5748 = vsel %vm5738, %v5737, %v4913
    %vm5749 = vcmask 195584
    %v5750 = vsel %vm5749, %v5739, %v5245
    %v5751 = vsel %vm5749, %v5740, %v5247
    %v5752 = vsel %vm5749, %v5741, %v5249
    %v5753 = vsel %vm5749, %v5742, %v5251
    %v5754 = vsel %vm5749, %v5743, %v5253
    %v5755 = vsel %vm5749, %v5744, %v5255
    %v5756 = vsel %vm5749, %v5745, %v5257
    %v5757 = vsel %vm5749, %v5746, %v5259
    %v5758 = vsel %vm5749, %v5747, %v5261
    %v5759 = vsel %vm5749, %v5748, %v5263
    %vm5760 = vcmask 244736
    %v5761 = vsel %vm5760, %v5750, %v5275
    %v5762 = vsel %vm5760, %v5751, %v5277
    %v5763 = vsel %vm5760, %v5752, %v5279
    %v5764 = vsel %vm5760, %v5753, %v5281
    %v5765 = vsel %vm5760, %v5754, %v5283
    %v5766 = vsel %vm5760, %v5755, %v5285
    %v5767 = vsel %vm5760, %v5756, %v5287
    %v5768 = vsel %vm5760, %v5757, %v5289
    %v5769 = vsel %vm5760, %v5758, %v5291
    %v5770 = vsel %vm5760, %v5759, %v5293
    %vm5771 = vcmask 293888
    %v5772 = vsel %vm5771, %v5761, %v5275
    %v5773 = vsel %vm5771, %v5762, %v5277
    %v5774 = vsel %vm5771, %v5763, %v5279
    %v5775 = vsel %vm5771, %v5764, %v5281
    %v5776 = vsel %vm5771, %v5765, %v5283
    %v5777 = vsel %vm5771, %v5766, %v5285
    %v5778 = vsel %vm5771, %v5767, %v5287
    %v5779 = vsel %vm5771, %v5768, %v5289
    %v5780 = vsel %vm5771, %v5769, %v5291
    %v5781 = vsel %vm5771, %v5770, %v5293
    %vm5782 = vcmask 343040
    %v5783 = vsel %vm5782, %v5772, %v5305
    %v5784 = vsel %vm5782, %v5773, %v5307
    %v5785 = vsel %vm5782, %v5774, %v5309
    %v5786 = vsel %vm5782, %v5775, %v5311
    %v5787 = vsel %vm5782, %v5776, %v5313
    %v5788 = vsel %vm5782, %v5777, %v5315
    %v5789 = vsel %vm5782, %v5778, %v5317
    %v5790 = vsel %vm5782, %v5779, %v5319
    %v5791 = vsel %vm5782, %v5780, %v5321
    %v5792 = vsel %vm5782, %v5781, %v5323
    %vm5793 = vcmask 392192
    %v5794 = vsel %vm5793, %v5783, %v5305
    %v5795 = vsel %vm5793, %v5784, %v5307
    %v5796 = vsel %vm5793, %v5785, %v5309
    %v5797 = vsel %vm5793, %v5786, %v5311
    %v5798 = vsel %vm5793, %v5787, %v5313
    %v5799 = vsel %vm5793, %v5788, %v5315
    %v5800 = vsel %vm5793, %v5789, %v5317
    %v5801 = vsel %vm5793, %v5790, %v5319
    %v5802 = vsel %vm5793, %v5791, %v5321
    %v5803 = vsel %vm5793, %v5792, %v5323
    %vm5804 = vcmask 441344
    %v5805 = vsel %vm5804, %v5794, %v5335
    %v5806 = vsel %vm5804, %v5795, %v5337
    %v5807 = vsel %vm5804, %v5796, %v5339
    %v5808 = vsel %vm5804, %v5797, %v5341
    %v5809 = vsel %vm5804, %v5798, %v5343
    %v5810 = vsel %vm5804, %v5799, %v5345
    %v5811 = vsel %vm5804, %v5800, %v5347
    %v5812 = vsel %vm5804, %v5801, %v5349
    %v5813 = vsel %vm5804, %v5802, %v5351
    %v5814 = vsel %vm5804, %v5803, %v5353
    %vm5815 = vcmask 490496
    %v5816 = vsel %vm5815, %v5805, %v5453
    %v5817 = vsel %vm5815, %v5806, %v5455
    %v5818 = vsel %vm5815, %v5807, %v5457
    %v5819 = vsel %vm5815, %v5808, %v5459
    %v5820 = vsel %vm5815, %v5809, %v5461
    %v5821 = vsel %vm5815, %v5810, %v5463
    %v5822 = vsel %vm5815, %v5811, %v5465
    %v5823 = vsel %vm5815, %v5812, %v5467
    %v5824 = vsel %vm5815, %v5813, %v5469
    %v5825 = vsel %vm5815, %v5814, %v5471
    %vm5826 = vcmask 539648
    %v5827 = vsel %vm5826, %v5816, %v5453
    %v5828 = vsel %vm5826, %v5817, %v5455
    %v5829 = vsel %vm5826, %v5818, %v5457
    %v5830 = vsel %vm5826, %v5819, %v5459
    %v5831 = vsel %vm5826, %v5820, %v5461
    %v5832 = vsel %vm5826, %v5821, %v5463
    %v5833 = vsel %vm5826, %v5822, %v5465
    %v5834 = vsel %vm5826, %v5823, %v5467
    %v5835 = vsel %vm5826, %v5824, %v5469
    %v5836 = vsel %vm5826, %v5825, %v5471
    %vm5837 = vcmask 588800
    %v5838 = vsel %vm5837, %v5827, %v5563
    %v5839 = vsel %vm5837, %v5828, %v5565
    %v5840 = vsel %vm5837, %v5829, %v5567
    %v5841 = vsel %vm5837, %v5830, %v5569
    %v5842 = vsel %vm5837, %v5831, %v5571
    %v5843 = vsel %vm5837, %v5832, %v5573
    %v5844 = vsel %vm5837, %v5833, %v5575
    %v5845 = vsel %vm5837, %v5834, %v5577
    %v5846 = vsel %vm5837, %v5835, %v5579
    %v5847 = vsel %vm5837, %v5836, %v5581
    %vm5848 = vcmask 637952
    %v5849 = vsel %vm5848, %v5838, %v5563
    %v5850 = vsel %vm5848, %v5839, %v5565
    %v5851 = vsel %vm5848, %v5840, %v5567
    %v5852 = vsel %vm5848, %v5841, %v5569
    %v5853 = vsel %vm5848, %v5842, %v5571
    %v5854 = vsel %vm5848, %v5843, %v5573
    %v5855 = vsel %vm5848, %v5844, %v5575
    %v5856 = vsel %vm5848, %v5845, %v5577
    %v5857 = vsel %vm5848, %v5846, %v5579
    %v5858 = vsel %vm5848, %v5847, %v5581
    %vm5859 = vcmask 687104
    %v5860 = vsel %vm5859, %v5849, %v5657
    %v5861 = vsel %vm5859, %v5850, %v5659
    %v5862 = vsel %vm5859, %v5851, %v5661
    %v5863 = vsel %vm5859, %v5852, %v5663
    %v5864 = vsel %vm5859, %v5853, %v5665
    %v5865 = vsel %vm5859, %v5854, %v5667
    %v5866 = vsel %vm5859, %v5855, %v5669
    %v5867 = vsel %vm5859, %v5856, %v5671
    %v5868 = vsel %vm5859, %v5857, %v5673
    %v5869 = vsel %vm5859, %v5858, %v5675
    %vm5870 = vcmask 736256
    %v5871 = vsel %vm5870, %v5860, %v5687
    %v5872 = vsel %vm5870, %v5861, %v5689
    %v5873 = vsel %vm5870, %v5862, %v5691
    %v5874 = vsel %vm5870, %v5863, %v5693
    %v5875 = vsel %vm5870, %v5864, %v5695
    %v5876 = vsel %vm5870, %v5865, %v5697
    %v5877 = vsel %vm5870, %v5866, %v5699
    %v5878 = vsel %vm5870, %v5867, %v5701
    %v5879 = vsel %vm5870, %v5868, %v5703
    %v5880 = vsel %vm5870, %v5869, %v5705
    %5881 = vrot.lane.b32.xlu0 %v4171, 110
    %v5882 = vpop.permute.xlu0 %5881
    %5883 = vrot.lane.b32.xlu0 %v4210, 110
    %v5884 = vpop.permute.xlu0 %5883
    %5885 = vrot.lane.b32.xlu0 %v4249, 110
    %v5886 = vpop.permute.xlu0 %5885
    %5887 = vrot.lane.b32.xlu0 %v4288, 110
    %v5888 = vpop.permute.xlu0 %5887
    %5889 = vrot.lane.b32.xlu0 %v5412, 110
    %v5890 = vpop.permute.xlu0 %5889
    %5891 = vrot.lane.b32.xlu0 %v4366, 110
    %v5892 = vpop.permute.xlu0 %5891
    %5893 = vrot.lane.b32.xlu0 %v4405, 110
    %v5894 = vpop.permute.xlu0 %5893
    %5895 = vrot.lane.b32.xlu0 %v4444, 110
    %v5896 = vpop.permute.xlu0 %5895
    %5897 = vrot.lane.b32.xlu0 %v4483, 110
    %v5898 = vpop.permute.xlu0 %5897
    %5899 = vrot.lane.b32.xlu0 %v5451, 110
    %v5900 = vpop.permute.xlu0 %5899
    %5911 = vrot.lane.b32.xlu0 %v4581, 122
    %v5912 = vpop.permute.xlu0 %5911
    %5913 = vrot.lane.b32.xlu0 %v4620, 122
    %v5914 = vpop.permute.xlu0 %5913
    %5915 = vrot.lane.b32.xlu0 %v4659, 122
    %v5916 = vpop.permute.xlu0 %5915
    %5917 = vrot.lane.b32.xlu0 %v4698, 122
    %v5918 = vpop.permute.xlu0 %5917
    %5919 = vrot.lane.b32.xlu0 %v5522, 122
    %v5920 = vpop.permute.xlu0 %5919
    %5921 = vrot.lane.b32.xlu0 %v4776, 122
    %v5922 = vpop.permute.xlu0 %5921
    %5923 = vrot.lane.b32.xlu0 %v4815, 122
    %v5924 = vpop.permute.xlu0 %5923
    %5925 = vrot.lane.b32.xlu0 %v4854, 122
    %v5926 = vpop.permute.xlu0 %5925
    %5927 = vrot.lane.b32.xlu0 %v4893, 122
    %v5928 = vpop.permute.xlu0 %5927
    %5929 = vrot.lane.b32.xlu0 %v5561, 122
    %v5930 = vpop.permute.xlu0 %5929
    %5941 = vrot.lane.b32.xlu0 %v4995, 6
    %v5942 = vpop.permute.xlu0 %5941
    %5943 = vrot.lane.b32.xlu0 %v5026, 6
    %v5944 = vpop.permute.xlu0 %5943
    %5945 = vrot.lane.b32.xlu0 %v5057, 6
    %v5946 = vpop.permute.xlu0 %5945
    %5947 = vrot.lane.b32.xlu0 %v5088, 6
    %v5948 = vpop.permute.xlu0 %5947
    %5949 = vrot.lane.b32.xlu0 %v5624, 6
    %v5950 = vpop.permute.xlu0 %5949
    %5951 = vrot.lane.b32.xlu0 %v5150, 6
    %v5952 = vpop.permute.xlu0 %5951
    %5953 = vrot.lane.b32.xlu0 %v5181, 6
    %v5954 = vpop.permute.xlu0 %5953
    %5955 = vrot.lane.b32.xlu0 %v5212, 6
    %v5956 = vpop.permute.xlu0 %5955
    %5957 = vrot.lane.b32.xlu0 %v5243, 6
    %v5958 = vpop.permute.xlu0 %5957
    %5959 = vrot.lane.b32.xlu0 %v5655, 6
    %v5960 = vpop.permute.xlu0 %5959
    %v5981 = vcombine.low %v3988, %v3989
    %v5982 = vcombine.low %v3990, %v3991
    %v5984 = vunpack.c.l.s4 1966171168
    %v5985 = vunpack.c.0.s8 %v5984
    %v5986 = vlaneseq
    %v5987 = vshrl.u32 %v5986, 7
    %v5988 = vsub.s32 %v5985, %v5987
    %v5989 = vrot.slane %v5981, %v5988
    %v5991 = vunpack.c.l.s4 1966171168
    %v5992 = vunpack.c.0.s8 %v5991
    %v5993 = vlaneseq
    %v5994 = vshrl.u32 %v5993, 7
    %v5995 = vsub.s32 %v5992, %v5994
    %v5996 = vrot.slane %v5982, %v5995
    %v5998 = vunpack.c.l.s4 1966171168
    %v5999 = vunpack.c.0.s8 %v5998
    %v6000 = vlaneseq
    %v6001 = vshrl.u32 %v6000, 7
    %v6002 = vsub.s32 %v5999, %v6001
    %v6003 = vrot.slane %v3992, %v6002
    %v6004 = vcombine.low %v5989, %v5996
    %v6006 = vunpack.c.l.s4 1966171168
    %v6007 = vunpack.c.0.s8 %v6006
    %v6008 = vlaneseq
    %v6009 = vshrl.u32 %v6008, 7
    %v6010 = vsub.s32 %v6007, %v6009
    %v6011 = vrot.slane %v6004, %v6010
    %v6013 = vunpack.c.l.s4 1966171168
    %v6014 = vunpack.c.0.s8 %v6013
    %v6015 = vlaneseq
    %v6016 = vshrl.u32 %v6015, 7
    %v6017 = vsub.s32 %v6014, %v6016
    %v6018 = vrot.slane %v6003, %v6017
    %v6019 = vcombine.low %v6011, %v6018
    %v6020 = vcombine.low %v4037, %v4038
    %v6021 = vcombine.low %v4039, %v4040
    %v6023 = vunpack.c.l.s4 1966171168
    %v6024 = vunpack.c.0.s8 %v6023
    %v6025 = vlaneseq
    %v6026 = vshrl.u32 %v6025, 7
    %v6027 = vsub.s32 %v6024, %v6026
    %v6028 = vrot.slane %v6020, %v6027
    %v6030 = vunpack.c.l.s4 1966171168
    %v6031 = vunpack.c.0.s8 %v6030
    %v6032 = vlaneseq
    %v6033 = vshrl.u32 %v6032, 7
    %v6034 = vsub.s32 %v6031, %v6033
    %v6035 = vrot.slane %v6021, %v6034
    %v6037 = vunpack.c.l.s4 1966171168
    %v6038 = vunpack.c.0.s8 %v6037
    %v6039 = vlaneseq
    %v6040 = vshrl.u32 %v6039, 7
    %v6041 = vsub.s32 %v6038, %v6040
    %v6042 = vrot.slane %v4041, %v6041
    %v6043 = vcombine.low %v6028, %v6035
    %v6045 = vunpack.c.l.s4 1966171168
    %v6046 = vunpack.c.0.s8 %v6045
    %v6047 = vlaneseq
    %v6048 = vshrl.u32 %v6047, 7
    %v6049 = vsub.s32 %v6046, %v6048
    %v6050 = vrot.slane %v6043, %v6049
    %v6052 = vunpack.c.l.s4 1966171168
    %v6053 = vunpack.c.0.s8 %v6052
    %v6054 = vlaneseq
    %v6055 = vshrl.u32 %v6054, 7
    %v6056 = vsub.s32 %v6053, %v6055
    %v6057 = vrot.slane %v6042, %v6056
    %v6058 = vcombine.low %v6050, %v6057
    %6059 = vrot.lane.b32.xlu0 %v4210, 24
    %v6060 = vpop.permute.xlu0 %6059
    %6061 = vrot.lane.b32.xlu0 %v4249, 24
    %v6062 = vpop.permute.xlu0 %6061
    %6063 = vrot.lane.b32.xlu0 %v4288, 24
    %v6064 = vpop.permute.xlu0 %6063
    %6065 = vrot.lane.b32.xlu0 %v5412, 24
    %v6066 = vpop.permute.xlu0 %6065
    %6067 = vrot.lane.b32.xlu0 %v6019, 24
    %v6068 = vpop.permute.xlu0 %6067
    %6069 = vrot.lane.b32.xlu0 %v4405, 24
    %v6070 = vpop.permute.xlu0 %6069
    %6071 = vrot.lane.b32.xlu0 %v4444, 24
    %v6072 = vpop.permute.xlu0 %6071
    %6073 = vrot.lane.b32.xlu0 %v4483, 24
    %v6074 = vpop.permute.xlu0 %6073
    %6075 = vrot.lane.b32.xlu0 %v5451, 24
    %v6076 = vpop.permute.xlu0 %6075
    %6077 = vrot.lane.b32.xlu0 %v6058, 24
    %v6078 = vpop.permute.xlu0 %6077
    %v6091 = vcombine.low %v3989, %v3990
    %v6092 = vcombine.low %v3991, %v3992
    %v6094 = vunpack.c.l.s4 1966171168
    %v6095 = vunpack.c.0.s8 %v6094
    %v6096 = vlaneseq
    %v6097 = vshrl.u32 %v6096, 7
    %v6098 = vsub.s32 %v6095, %v6097
    %v6099 = vrot.slane %v6091, %v6098
    %v6101 = vunpack.c.l.s4 1966171168
    %v6102 = vunpack.c.0.s8 %v6101
    %v6103 = vlaneseq
    %v6104 = vshrl.u32 %v6103, 7
    %v6105 = vsub.s32 %v6102, %v6104
    %v6106 = vrot.slane %v6092, %v6105
    %v6108 = vunpack.c.l.s4 1966171168
    %v6109 = vunpack.c.0.s8 %v6108
    %v6110 = vlaneseq
    %v6111 = vshrl.u32 %v6110, 7
    %v6112 = vsub.s32 %v6109, %v6111
    %v6113 = vrot.slane %v3993, %v6112
    %v6114 = vcombine.low %v6099, %v6106
    %v6116 = vunpack.c.l.s4 1966171168
    %v6117 = vunpack.c.0.s8 %v6116
    %v6118 = vlaneseq
    %v6119 = vshrl.u32 %v6118, 7
    %v6120 = vsub.s32 %v6117, %v6119
    %v6121 = vrot.slane %v6114, %v6120
    %v6123 = vunpack.c.l.s4 1966171168
    %v6124 = vunpack.c.0.s8 %v6123
    %v6125 = vlaneseq
    %v6126 = vshrl.u32 %v6125, 7
    %v6127 = vsub.s32 %v6124, %v6126
    %v6128 = vrot.slane %v6113, %v6127
    %v6129 = vcombine.low %v6121, %v6128
    %v6130 = vcombine.low %v4038, %v4039
    %v6131 = vcombine.low %v4040, %v4041
    %v6133 = vunpack.c.l.s4 1966171168
    %v6134 = vunpack.c.0.s8 %v6133
    %v6135 = vlaneseq
    %v6136 = vshrl.u32 %v6135, 7
    %v6137 = vsub.s32 %v6134, %v6136
    %v6138 = vrot.slane %v6130, %v6137
    %v6140 = vunpack.c.l.s4 1966171168
    %v6141 = vunpack.c.0.s8 %v6140
    %v6142 = vlaneseq
    %v6143 = vshrl.u32 %v6142, 7
    %v6144 = vsub.s32 %v6141, %v6143
    %v6145 = vrot.slane %v6131, %v6144
    %v6147 = vunpack.c.l.s4 1966171168
    %v6148 = vunpack.c.0.s8 %v6147
    %v6149 = vlaneseq
    %v6150 = vshrl.u32 %v6149, 7
    %v6151 = vsub.s32 %v6148, %v6150
    %v6152 = vrot.slane %v4042, %v6151
    %v6153 = vcombine.low %v6138, %v6145
    %v6155 = vunpack.c.l.s4 1966171168
    %v6156 = vunpack.c.0.s8 %v6155
    %v6157 = vlaneseq
    %v6158 = vshrl.u32 %v6157, 7
    %v6159 = vsub.s32 %v6156, %v6158
    %v6160 = vrot.slane %v6153, %v6159
    %v6162 = vunpack.c.l.s4 1966171168
    %v6163 = vunpack.c.0.s8 %v6162
    %v6164 = vlaneseq
    %v6165 = vshrl.u32 %v6164, 7
    %v6166 = vsub.s32 %v6163, %v6165
    %v6167 = vrot.slane %v6152, %v6166
    %v6168 = vcombine.low %v6160, %v6167
    %6169 = vrot.lane.b32.xlu0 %v4620, 36
    %v6170 = vpop.permute.xlu0 %6169
    %6171 = vrot.lane.b32.xlu0 %v4659, 36
    %v6172 = vpop.permute.xlu0 %6171
    %6173 = vrot.lane.b32.xlu0 %v4698, 36
    %v6174 = vpop.permute.xlu0 %6173
    %6175 = vrot.lane.b32.xlu0 %v5522, 36
    %v6176 = vpop.permute.xlu0 %6175
    %6177 = vrot.lane.b32.xlu0 %v6129, 36
    %v6178 = vpop.permute.xlu0 %6177
    %6179 = vrot.lane.b32.xlu0 %v4815, 36
    %v6180 = vpop.permute.xlu0 %6179
    %6181 = vrot.lane.b32.xlu0 %v4854, 36
    %v6182 = vpop.permute.xlu0 %6181
    %6183 = vrot.lane.b32.xlu0 %v4893, 36
    %v6184 = vpop.permute.xlu0 %6183
    %6185 = vrot.lane.b32.xlu0 %v5561, 36
    %v6186 = vpop.permute.xlu0 %6185
    %6187 = vrot.lane.b32.xlu0 %v6168, 36
    %v6188 = vpop.permute.xlu0 %6187
    %v6201 = vcombine.low %v3992, %v3993
    %v6203 = vunpack.c.l.s4 1966171168
    %v6204 = vunpack.c.0.s8 %v6203
    %v6205 = vlaneseq
    %v6206 = vshrl.u32 %v6205, 7
    %v6207 = vsub.s32 %v6204, %v6206
    %v6208 = vrot.slane %v6201, %v6207
    %v6210 = vunpack.c.l.s4 1966171168
    %v6211 = vunpack.c.0.s8 %v6210
    %v6212 = vlaneseq
    %v6213 = vshrl.u32 %v6212, 7
    %v6214 = vsub.s32 %v6211, %v6213
    %v6215 = vrot.slane %v3994, %v6214
    %v6216 = vcombine.low %v5996, %v6208
    %v6218 = vunpack.c.l.s4 1966171168
    %v6219 = vunpack.c.0.s8 %v6218
    %v6220 = vlaneseq
    %v6221 = vshrl.u32 %v6220, 7
    %v6222 = vsub.s32 %v6219, %v6221
    %v6223 = vrot.slane %v6216, %v6222
    %v6225 = vunpack.c.l.s4 1966171168
    %v6226 = vunpack.c.0.s8 %v6225
    %v6227 = vlaneseq
    %v6228 = vshrl.u32 %v6227, 7
    %v6229 = vsub.s32 %v6226, %v6228
    %v6230 = vrot.slane %v6215, %v6229
    %v6231 = vcombine.low %v6223, %v6230
    %v6232 = vcombine.low %v4041, %v4042
    %v6234 = vunpack.c.l.s4 1966171168
    %v6235 = vunpack.c.0.s8 %v6234
    %v6236 = vlaneseq
    %v6237 = vshrl.u32 %v6236, 7
    %v6238 = vsub.s32 %v6235, %v6237
    %v6239 = vrot.slane %v6232, %v6238
    %v6241 = vunpack.c.l.s4 1966171168
    %v6242 = vunpack.c.0.s8 %v6241
    %v6243 = vlaneseq
    %v6244 = vshrl.u32 %v6243, 7
    %v6245 = vsub.s32 %v6242, %v6244
    %v6246 = vrot.slane %v4043, %v6245
    %v6247 = vcombine.low %v6035, %v6239
    %v6249 = vunpack.c.l.s4 1966171168
    %v6250 = vunpack.c.0.s8 %v6249
    %v6251 = vlaneseq
    %v6252 = vshrl.u32 %v6251, 7
    %v6253 = vsub.s32 %v6250, %v6252
    %v6254 = vrot.slane %v6247, %v6253
    %v6256 = vunpack.c.l.s4 1966171168
    %v6257 = vunpack.c.0.s8 %v6256
    %v6258 = vlaneseq
    %v6259 = vshrl.u32 %v6258, 7
    %v6260 = vsub.s32 %v6257, %v6259
    %v6261 = vrot.slane %v6246, %v6260
    %v6262 = vcombine.low %v6254, %v6261
    %6263 = vrot.lane.b32.xlu0 %v5026, 48
    %v6264 = vpop.permute.xlu0 %6263
    %6265 = vrot.lane.b32.xlu0 %v5057, 48
    %v6266 = vpop.permute.xlu0 %6265
    %6267 = vrot.lane.b32.xlu0 %v5088, 48
    %v6268 = vpop.permute.xlu0 %6267
    %6269 = vrot.lane.b32.xlu0 %v5624, 48
    %v6270 = vpop.permute.xlu0 %6269
    %6271 = vrot.lane.b32.xlu0 %v6231, 48
    %v6272 = vpop.permute.xlu0 %6271
    %6273 = vrot.lane.b32.xlu0 %v5181, 48
    %v6274 = vpop.permute.xlu0 %6273
    %6275 = vrot.lane.b32.xlu0 %v5212, 48
    %v6276 = vpop.permute.xlu0 %6275
    %6277 = vrot.lane.b32.xlu0 %v5243, 48
    %v6278 = vpop.permute.xlu0 %6277
    %6279 = vrot.lane.b32.xlu0 %v5655, 48
    %v6280 = vpop.permute.xlu0 %6279
    %6281 = vrot.lane.b32.xlu0 %v6262, 48
    %v6282 = vpop.permute.xlu0 %6281
    %v6293 = vsel %vm5716, %v5882, %v5912
    %v6294 = vsel %vm5716, %v5884, %v5914
    %v6295 = vsel %vm5716, %v5886, %v5916
    %v6296 = vsel %vm5716, %v5888, %v5918
    %v6297 = vsel %vm5716, %v5890, %v5920
    %v6298 = vsel %vm5716, %v5892, %v5922
    %v6299 = vsel %vm5716, %v5894, %v5924
    %v6300 = vsel %vm5716, %v5896, %v5926
    %v6301 = vsel %vm5716, %v5898, %v5928
    %v6302 = vsel %vm5716, %v5900, %v5930
    %v6303 = vsel %vm5727, %v6293, %v5912
    %v6304 = vsel %vm5727, %v6294, %v5914
    %v6305 = vsel %vm5727, %v6295, %v5916
    %v6306 = vsel %vm5727, %v6296, %v5918
    %v6307 = vsel %vm5727, %v6297, %v5920
    %v6308 = vsel %vm5727, %v6298, %v5922
    %v6309 = vsel %vm5727, %v6299, %v5924
    %v6310 = vsel %vm5727, %v6300, %v5926
    %v6311 = vsel %vm5727, %v6301, %v5928
    %v6312 = vsel %vm5727, %v6302, %v5930
    %v6313 = vsel %vm5738, %v6303, %v5942
    %v6314 = vsel %vm5738, %v6304, %v5944
    %v6315 = vsel %vm5738, %v6305, %v5946
    %v6316 = vsel %vm5738, %v6306, %v5948
    %v6317 = vsel %vm5738, %v6307, %v5950
    %v6318 = vsel %vm5738, %v6308, %v5952
    %v6319 = vsel %vm5738, %v6309, %v5954
    %v6320 = vsel %vm5738, %v6310, %v5956
    %v6321 = vsel %vm5738, %v6311, %v5958
    %v6322 = vsel %vm5738, %v6312, %v5960
    %v6323 = vsel %vm5749, %v6313, %v6060
    %v6324 = vsel %vm5749, %v6314, %v6062
    %v6325 = vsel %vm5749, %v6315, %v6064
    %v6326 = vsel %vm5749, %v6316, %v6066
    %v6327 = vsel %vm5749, %v6317, %v6068
    %v6328 = vsel %vm5749, %v6318, %v6070
    %v6329 = vsel %vm5749, %v6319, %v6072
    %v6330 = vsel %vm5749, %v6320, %v6074
    %v6331 = vsel %vm5749, %v6321, %v6076
    %v6332 = vsel %vm5749, %v6322, %v6078
    %v6333 = vsel %vm5760, %v6323, %v6060
    %v6334 = vsel %vm5760, %v6324, %v6062
    %v6335 = vsel %vm5760, %v6325, %v6064
    %v6336 = vsel %vm5760, %v6326, %v6066
    %v6337 = vsel %vm5760, %v6327, %v6068
    %v6338 = vsel %vm5760, %v6328, %v6070
    %v6339 = vsel %vm5760, %v6329, %v6072
    %v6340 = vsel %vm5760, %v6330, %v6074
    %v6341 = vsel %vm5760, %v6331, %v6076
    %v6342 = vsel %vm5760, %v6332, %v6078
    %v6343 = vsel %vm5771, %v6333, %v6170
    %v6344 = vsel %vm5771, %v6334, %v6172
    %v6345 = vsel %vm5771, %v6335, %v6174
    %v6346 = vsel %vm5771, %v6336, %v6176
    %v6347 = vsel %vm5771, %v6337, %v6178
    %v6348 = vsel %vm5771, %v6338, %v6180
    %v6349 = vsel %vm5771, %v6339, %v6182
    %v6350 = vsel %vm5771, %v6340, %v6184
    %v6351 = vsel %vm5771, %v6341, %v6186
    %v6352 = vsel %vm5771, %v6342, %v6188
    %v6353 = vsel %vm5782, %v6343, %v6170
    %v6354 = vsel %vm5782, %v6344, %v6172
    %v6355 = vsel %vm5782, %v6345, %v6174
    %v6356 = vsel %vm5782, %v6346, %v6176
    %v6357 = vsel %vm5782, %v6347, %v6178
    %v6358 = vsel %vm5782, %v6348, %v6180
    %v6359 = vsel %vm5782, %v6349, %v6182
    %v6360 = vsel %vm5782, %v6350, %v6184
    %v6361 = vsel %vm5782, %v6351, %v6186
    %v6362 = vsel %vm5782, %v6352, %v6188
    %v6363 = vsel %vm5793, %v6353, %v6264
    %v6364 = vsel %vm5793, %v6354, %v6266
    %v6365 = vsel %vm5793, %v6355, %v6268
    %v6366 = vsel %vm5793, %v6356, %v6270
    %v6367 = vsel %vm5793, %v6357, %v6272
    %v6368 = vsel %vm5793, %v6358, %v6274
    %v6369 = vsel %vm5793, %v6359, %v6276
    %v6370 = vsel %vm5793, %v6360, %v6278
    %v6371 = vsel %vm5793, %v6361, %v6280
    %v6372 = vsel %vm5793, %v6362, %v6282
    %6383 = vrot.lane.b32.xlu0 %v6363, 96
    %v6384 = vpop.permute.xlu0 %6383
    %6385 = vrot.lane.b32.xlu0 %v6364, 96
    %v6386 = vpop.permute.xlu0 %6385
    %6387 = vrot.lane.b32.xlu0 %v6365, 96
    %v6388 = vpop.permute.xlu0 %6387
    %6389 = vrot.lane.b32.xlu0 %v6366, 96
    %v6390 = vpop.permute.xlu0 %6389
    %6391 = vrot.lane.b32.xlu0 %v6367, 96
    %v6392 = vpop.permute.xlu0 %6391
    %6393 = vrot.lane.b32.xlu0 %v6368, 96
    %v6394 = vpop.permute.xlu0 %6393
    %6395 = vrot.lane.b32.xlu0 %v6369, 96
    %v6396 = vpop.permute.xlu0 %6395
    %6397 = vrot.lane.b32.xlu0 %v6370, 96
    %v6398 = vpop.permute.xlu0 %6397
    %6399 = vrot.lane.b32.xlu0 %v6371, 96
    %v6400 = vpop.permute.xlu0 %6399
    %6401 = vrot.lane.b32.xlu0 %v6372, 96
    %v6402 = vpop.permute.xlu0 %6401
    %vm6413 = vcmask 785408
    %v6414 = vsel %vm6413, %v5871, %v6384
    %v6415 = vsel %vm6413, %v5872, %v6386
    %v6416 = vsel %vm6413, %v5873, %v6388
    %v6417 = vsel %vm6413, %v5874, %v6390
    %v6418 = vsel %vm6413, %v5875, %v6392
    %v6419 = vsel %vm6413, %v5876, %v6394
    %v6420 = vsel %vm6413, %v5877, %v6396
    %v6421 = vsel %vm6413, %v5878, %v6398
    %v6422 = vsel %vm6413, %v5879, %v6400
    %v6423 = vsel %vm6413, %v5880, %v6402
    %v6434 = vcombine.low %v6414, %v6384
    %v6435 = vcombine.high %v6414, %v6384
    %v6437 = vunpack.c.l.s4 1966171168
    %v6438 = vunpack.c.0.s8 %v6437
    %v6439 = vlaneseq
    %v6440 = vshrl.u32 %v6439, 7
    %v6441 = vsub.s32 %v6438, %v6440
    %v6442 = vrot.slane %v6434, %v6441
    %v6444 = vunpack.c.l.s4 1966171168
    %v6445 = vunpack.c.0.s8 %v6444
    %v6446 = vlaneseq
    %v6447 = vshrl.u32 %v6446, 7
    %v6448 = vsub.s32 %v6445, %v6447
    %v6449 = vrot.slane %v6435, %v6448
    %v6450 = vcombine.high %v6442, %v6442
    %v6452 = vunpack.c.l.s4 1966171168
    %v6453 = vunpack.c.0.s8 %v6452
    %v6454 = vlaneseq
    %v6455 = vshrl.u32 %v6454, 7
    %v6456 = vsub.s32 %v6453, %v6455
    %v6457 = vrot.slane %v6442, %v6456
    %v6459 = vunpack.c.l.s4 1966171168
    %v6460 = vunpack.c.0.s8 %v6459
    %v6461 = vlaneseq
    %v6462 = vshrl.u32 %v6461, 7
    %v6463 = vsub.s32 %v6460, %v6462
    %v6464 = vrot.slane %v6449, %v6463
    %v6466 = vunpack.c.l.s4 1966171168
    %v6467 = vunpack.c.0.s8 %v6466
    %v6468 = vlaneseq
    %v6469 = vshrl.u32 %v6468, 7
    %v6470 = vsub.s32 %v6467, %v6469
    %v6471 = vrot.slane %v6450, %v6470
    %v6472 = vcombine.high %v6457, %v6457
    %v6473 = vcombine.high %v6471, %v6471
    %v6474 = vcombine.low %v6415, %v6386
    %v6475 = vcombine.high %v6415, %v6386
    %v6477 = vunpack.c.l.s4 1966171168
    %v6478 = vunpack.c.0.s8 %v6477
    %v6479 = vlaneseq
    %v6480 = vshrl.u32 %v6479, 7
    %v6481 = vsub.s32 %v6478, %v6480
    %v6482 = vrot.slane %v6474, %v6481
    %v6484 = vunpack.c.l.s4 1966171168
    %v6485 = vunpack.c.0.s8 %v6484
    %v6486 = vlaneseq
    %v6487 = vshrl.u32 %v6486, 7
    %v6488 = vsub.s32 %v6485, %v6487
    %v6489 = vrot.slane %v6475, %v6488
    %v6490 = vcombine.high %v6482, %v6482
    %v6492 = vunpack.c.l.s4 1966171168
    %v6493 = vunpack.c.0.s8 %v6492
    %v6494 = vlaneseq
    %v6495 = vshrl.u32 %v6494, 7
    %v6496 = vsub.s32 %v6493, %v6495
    %v6497 = vrot.slane %v6482, %v6496
    %v6499 = vunpack.c.l.s4 1966171168
    %v6500 = vunpack.c.0.s8 %v6499
    %v6501 = vlaneseq
    %v6502 = vshrl.u32 %v6501, 7
    %v6503 = vsub.s32 %v6500, %v6502
    %v6504 = vrot.slane %v6489, %v6503
    %v6506 = vunpack.c.l.s4 1966171168
    %v6507 = vunpack.c.0.s8 %v6506
    %v6508 = vlaneseq
    %v6509 = vshrl.u32 %v6508, 7
    %v6510 = vsub.s32 %v6507, %v6509
    %v6511 = vrot.slane %v6490, %v6510
    %v6512 = vcombine.high %v6497, %v6497
    %v6513 = vcombine.high %v6511, %v6511
    %v6514 = vcombine.low %v6416, %v6388
    %v6515 = vcombine.high %v6416, %v6388
    %v6517 = vunpack.c.l.s4 1966171168
    %v6518 = vunpack.c.0.s8 %v6517
    %v6519 = vlaneseq
    %v6520 = vshrl.u32 %v6519, 7
    %v6521 = vsub.s32 %v6518, %v6520
    %v6522 = vrot.slane %v6514, %v6521
    %v6524 = vunpack.c.l.s4 1966171168
    %v6525 = vunpack.c.0.s8 %v6524
    %v6526 = vlaneseq
    %v6527 = vshrl.u32 %v6526, 7
    %v6528 = vsub.s32 %v6525, %v6527
    %v6529 = vrot.slane %v6515, %v6528
    %v6530 = vcombine.high %v6522, %v6522
    %v6532 = vunpack.c.l.s4 1966171168
    %v6533 = vunpack.c.0.s8 %v6532
    %v6534 = vlaneseq
    %v6535 = vshrl.u32 %v6534, 7
    %v6536 = vsub.s32 %v6533, %v6535
    %v6537 = vrot.slane %v6522, %v6536
    %v6539 = vunpack.c.l.s4 1966171168
    %v6540 = vunpack.c.0.s8 %v6539
    %v6541 = vlaneseq
    %v6542 = vshrl.u32 %v6541, 7
    %v6543 = vsub.s32 %v6540, %v6542
    %v6544 = vrot.slane %v6529, %v6543
    %v6546 = vunpack.c.l.s4 1966171168
    %v6547 = vunpack.c.0.s8 %v6546
    %v6548 = vlaneseq
    %v6549 = vshrl.u32 %v6548, 7
    %v6550 = vsub.s32 %v6547, %v6549
    %v6551 = vrot.slane %v6530, %v6550
    %v6552 = vcombine.high %v6537, %v6537
    %v6553 = vcombine.high %v6551, %v6551
    %v6554 = vcombine.low %v6417, %v6390
    %v6555 = vcombine.high %v6417, %v6390
    %v6557 = vunpack.c.l.s4 1966171168
    %v6558 = vunpack.c.0.s8 %v6557
    %v6559 = vlaneseq
    %v6560 = vshrl.u32 %v6559, 7
    %v6561 = vsub.s32 %v6558, %v6560
    %v6562 = vrot.slane %v6554, %v6561
    %v6564 = vunpack.c.l.s4 1966171168
    %v6565 = vunpack.c.0.s8 %v6564
    %v6566 = vlaneseq
    %v6567 = vshrl.u32 %v6566, 7
    %v6568 = vsub.s32 %v6565, %v6567
    %v6569 = vrot.slane %v6555, %v6568
    %v6570 = vcombine.high %v6562, %v6562
    %v6572 = vunpack.c.l.s4 1966171168
    %v6573 = vunpack.c.0.s8 %v6572
    %v6574 = vlaneseq
    %v6575 = vshrl.u32 %v6574, 7
    %v6576 = vsub.s32 %v6573, %v6575
    %v6577 = vrot.slane %v6562, %v6576
    %v6579 = vunpack.c.l.s4 1966171168
    %v6580 = vunpack.c.0.s8 %v6579
    %v6581 = vlaneseq
    %v6582 = vshrl.u32 %v6581, 7
    %v6583 = vsub.s32 %v6580, %v6582
    %v6584 = vrot.slane %v6569, %v6583
    %v6586 = vunpack.c.l.s4 1966171168
    %v6587 = vunpack.c.0.s8 %v6586
    %v6588 = vlaneseq
    %v6589 = vshrl.u32 %v6588, 7
    %v6590 = vsub.s32 %v6587, %v6589
    %v6591 = vrot.slane %v6570, %v6590
    %v6592 = vcombine.high %v6577, %v6577
    %v6593 = vcombine.high %v6591, %v6591
    %v6594 = vcombine.low %v6418, %v6392
    %v6595 = vcombine.high %v6418, %v6392
    %v6597 = vunpack.c.l.s4 1966171168
    %v6598 = vunpack.c.0.s8 %v6597
    %v6599 = vlaneseq
    %v6600 = vshrl.u32 %v6599, 7
    %v6601 = vsub.s32 %v6598, %v6600
    %v6602 = vrot.slane %v6594, %v6601
    %v6604 = vunpack.c.l.s4 1966171168
    %v6605 = vunpack.c.0.s8 %v6604
    %v6606 = vlaneseq
    %v6607 = vshrl.u32 %v6606, 7
    %v6608 = vsub.s32 %v6605, %v6607
    %v6609 = vrot.slane %v6595, %v6608
    %v6610 = vcombine.high %v6602, %v6602
    %v6612 = vunpack.c.l.s4 1966171168
    %v6613 = vunpack.c.0.s8 %v6612
    %v6614 = vlaneseq
    %v6615 = vshrl.u32 %v6614, 7
    %v6616 = vsub.s32 %v6613, %v6615
    %v6617 = vrot.slane %v6602, %v6616
    %v6619 = vunpack.c.l.s4 1966171168
    %v6620 = vunpack.c.0.s8 %v6619
    %v6621 = vlaneseq
    %v6622 = vshrl.u32 %v6621, 7
    %v6623 = vsub.s32 %v6620, %v6622
    %v6624 = vrot.slane %v6609, %v6623
    %v6626 = vunpack.c.l.s4 1966171168
    %v6627 = vunpack.c.0.s8 %v6626
    %v6628 = vlaneseq
    %v6629 = vshrl.u32 %v6628, 7
    %v6630 = vsub.s32 %v6627, %v6629
    %v6631 = vrot.slane %v6610, %v6630
    %v6632 = vcombine.high %v6617, %v6617
    %v6633 = vcombine.high %v6631, %v6631
    %v6634 = vcombine.low %v6419, %v6394
    %v6635 = vcombine.high %v6419, %v6394
    %v6637 = vunpack.c.l.s4 1966171168
    %v6638 = vunpack.c.0.s8 %v6637
    %v6639 = vlaneseq
    %v6640 = vshrl.u32 %v6639, 7
    %v6641 = vsub.s32 %v6638, %v6640
    %v6642 = vrot.slane %v6634, %v6641
    %v6644 = vunpack.c.l.s4 1966171168
    %v6645 = vunpack.c.0.s8 %v6644
    %v6646 = vlaneseq
    %v6647 = vshrl.u32 %v6646, 7
    %v6648 = vsub.s32 %v6645, %v6647
    %v6649 = vrot.slane %v6635, %v6648
    %v6650 = vcombine.high %v6642, %v6642
    %v6652 = vunpack.c.l.s4 1966171168
    %v6653 = vunpack.c.0.s8 %v6652
    %v6654 = vlaneseq
    %v6655 = vshrl.u32 %v6654, 7
    %v6656 = vsub.s32 %v6653, %v6655
    %v6657 = vrot.slane %v6642, %v6656
    %v6659 = vunpack.c.l.s4 1966171168
    %v6660 = vunpack.c.0.s8 %v6659
    %v6661 = vlaneseq
    %v6662 = vshrl.u32 %v6661, 7
    %v6663 = vsub.s32 %v6660, %v6662
    %v6664 = vrot.slane %v6649, %v6663
    %v6666 = vunpack.c.l.s4 1966171168
    %v6667 = vunpack.c.0.s8 %v6666
    %v6668 = vlaneseq
    %v6669 = vshrl.u32 %v6668, 7
    %v6670 = vsub.s32 %v6667, %v6669
    %v6671 = vrot.slane %v6650, %v6670
    %v6672 = vcombine.high %v6657, %v6657
    %v6673 = vcombine.high %v6671, %v6671
    %v6674 = vcombine.low %v6420, %v6396
    %v6675 = vcombine.high %v6420, %v6396
    %v6677 = vunpack.c.l.s4 1966171168
    %v6678 = vunpack.c.0.s8 %v6677
    %v6679 = vlaneseq
    %v6680 = vshrl.u32 %v6679, 7
    %v6681 = vsub.s32 %v6678, %v6680
    %v6682 = vrot.slane %v6674, %v6681
    %v6684 = vunpack.c.l.s4 1966171168
    %v6685 = vunpack.c.0.s8 %v6684
    %v6686 = vlaneseq
    %v6687 = vshrl.u32 %v6686, 7
    %v6688 = vsub.s32 %v6685, %v6687
    %v6689 = vrot.slane %v6675, %v6688
    %v6690 = vcombine.high %v6682, %v6682
    %v6692 = vunpack.c.l.s4 1966171168
    %v6693 = vunpack.c.0.s8 %v6692
    %v6694 = vlaneseq
    %v6695 = vshrl.u32 %v6694, 7
    %v6696 = vsub.s32 %v6693, %v6695
    %v6697 = vrot.slane %v6682, %v6696
    %v6699 = vunpack.c.l.s4 1966171168
    %v6700 = vunpack.c.0.s8 %v6699
    %v6701 = vlaneseq
    %v6702 = vshrl.u32 %v6701, 7
    %v6703 = vsub.s32 %v6700, %v6702
    %v6704 = vrot.slane %v6689, %v6703
    %v6706 = vunpack.c.l.s4 1966171168
    %v6707 = vunpack.c.0.s8 %v6706
    %v6708 = vlaneseq
    %v6709 = vshrl.u32 %v6708, 7
    %v6710 = vsub.s32 %v6707, %v6709
    %v6711 = vrot.slane %v6690, %v6710
    %v6712 = vcombine.high %v6697, %v6697
    %v6713 = vcombine.high %v6711, %v6711
    %v6714 = vcombine.low %v6421, %v6398
    %v6715 = vcombine.high %v6421, %v6398
    %v6717 = vunpack.c.l.s4 1966171168
    %v6718 = vunpack.c.0.s8 %v6717
    %v6719 = vlaneseq
    %v6720 = vshrl.u32 %v6719, 7
    %v6721 = vsub.s32 %v6718, %v6720
    %v6722 = vrot.slane %v6714, %v6721
    %v6724 = vunpack.c.l.s4 1966171168
    %v6725 = vunpack.c.0.s8 %v6724
    %v6726 = vlaneseq
    %v6727 = vshrl.u32 %v6726, 7
    %v6728 = vsub.s32 %v6725, %v6727
    %v6729 = vrot.slane %v6715, %v6728
    %v6730 = vcombine.high %v6722, %v6722
    %v6732 = vunpack.c.l.s4 1966171168
    %v6733 = vunpack.c.0.s8 %v6732
    %v6734 = vlaneseq
    %v6735 = vshrl.u32 %v6734, 7
    %v6736 = vsub.s32 %v6733, %v6735
    %v6737 = vrot.slane %v6722, %v6736
    %v6739 = vunpack.c.l.s4 1966171168
    %v6740 = vunpack.c.0.s8 %v6739
    %v6741 = vlaneseq
    %v6742 = vshrl.u32 %v6741, 7
    %v6743 = vsub.s32 %v6740, %v6742
    %v6744 = vrot.slane %v6729, %v6743
    %v6746 = vunpack.c.l.s4 1966171168
    %v6747 = vunpack.c.0.s8 %v6746
    %v6748 = vlaneseq
    %v6749 = vshrl.u32 %v6748, 7
    %v6750 = vsub.s32 %v6747, %v6749
    %v6751 = vrot.slane %v6730, %v6750
    %v6752 = vcombine.high %v6737, %v6737
    %v6753 = vcombine.high %v6751, %v6751
    %v6754 = vcombine.low %v6422, %v6400
    %v6755 = vcombine.high %v6422, %v6400
    %v6757 = vunpack.c.l.s4 1966171168
    %v6758 = vunpack.c.0.s8 %v6757
    %v6759 = vlaneseq
    %v6760 = vshrl.u32 %v6759, 7
    %v6761 = vsub.s32 %v6758, %v6760
    %v6762 = vrot.slane %v6754, %v6761
    %v6764 = vunpack.c.l.s4 1966171168
    %v6765 = vunpack.c.0.s8 %v6764
    %v6766 = vlaneseq
    %v6767 = vshrl.u32 %v6766, 7
    %v6768 = vsub.s32 %v6765, %v6767
    %v6769 = vrot.slane %v6755, %v6768
    %v6770 = vcombine.high %v6762, %v6762
    %v6772 = vunpack.c.l.s4 1966171168
    %v6773 = vunpack.c.0.s8 %v6772
    %v6774 = vlaneseq
    %v6775 = vshrl.u32 %v6774, 7
    %v6776 = vsub.s32 %v6773, %v6775
    %v6777 = vrot.slane %v6762, %v6776
    %v6779 = vunpack.c.l.s4 1966171168
    %v6780 = vunpack.c.0.s8 %v6779
    %v6781 = vlaneseq
    %v6782 = vshrl.u32 %v6781, 7
    %v6783 = vsub.s32 %v6780, %v6782
    %v6784 = vrot.slane %v6769, %v6783
    %v6786 = vunpack.c.l.s4 1966171168
    %v6787 = vunpack.c.0.s8 %v6786
    %v6788 = vlaneseq
    %v6789 = vshrl.u32 %v6788, 7
    %v6790 = vsub.s32 %v6787, %v6789
    %v6791 = vrot.slane %v6770, %v6790
    %v6792 = vcombine.high %v6777, %v6777
    %v6793 = vcombine.high %v6791, %v6791
    %v6794 = vcombine.low %v6423, %v6402
    %v6795 = vcombine.high %v6423, %v6402
    %v6797 = vunpack.c.l.s4 1966171168
    %v6798 = vunpack.c.0.s8 %v6797
    %v6799 = vlaneseq
    %v6800 = vshrl.u32 %v6799, 7
    %v6801 = vsub.s32 %v6798, %v6800
    %v6802 = vrot.slane %v6794, %v6801
    %v6804 = vunpack.c.l.s4 1966171168
    %v6805 = vunpack.c.0.s8 %v6804
    %v6806 = vlaneseq
    %v6807 = vshrl.u32 %v6806, 7
    %v6808 = vsub.s32 %v6805, %v6807
    %v6809 = vrot.slane %v6795, %v6808
    %v6810 = vcombine.high %v6802, %v6802
    %v6812 = vunpack.c.l.s4 1966171168
    %v6813 = vunpack.c.0.s8 %v6812
    %v6814 = vlaneseq
    %v6815 = vshrl.u32 %v6814, 7
    %v6816 = vsub.s32 %v6813, %v6815
    %v6817 = vrot.slane %v6802, %v6816
    %v6819 = vunpack.c.l.s4 1966171168
    %v6820 = vunpack.c.0.s8 %v6819
    %v6821 = vlaneseq
    %v6822 = vshrl.u32 %v6821, 7
    %v6823 = vsub.s32 %v6820, %v6822
    %v6824 = vrot.slane %v6809, %v6823
    %v6826 = vunpack.c.l.s4 1966171168
    %v6827 = vunpack.c.0.s8 %v6826
    %v6828 = vlaneseq
    %v6829 = vshrl.u32 %v6828, 7
    %v6830 = vsub.s32 %v6827, %v6829
    %v6831 = vrot.slane %v6810, %v6830
    %v6832 = vcombine.high %v6817, %v6817
    %v6833 = vcombine.high %v6831, %v6831
    %v6834 = vcombine.low %v6457, %v6471
    %v6835 = vcombine.low %v6472, %v6473
    %v6836 = vcombine.low %v6464, %v6497
    %v6837 = vcombine.low %v6511, %v6512
    %v6839 = vunpack.c.l.s4 1966171168
    %v6840 = vunpack.c.0.s8 %v6839
    %v6841 = vlaneseq
    %v6842 = vshrl.u32 %v6841, 7
    %v6843 = vsub.s32 %v6840, %v6842
    %v6844 = vrot.slane %v6834, %v6843
    %v6846 = vunpack.c.l.s4 1966171168
    %v6847 = vunpack.c.0.s8 %v6846
    %v6848 = vlaneseq
    %v6849 = vshrl.u32 %v6848, 7
    %v6850 = vsub.s32 %v6847, %v6849
    %v6851 = vrot.slane %v6835, %v6850
    %v6853 = vunpack.c.l.s4 1966171168
    %v6854 = vunpack.c.0.s8 %v6853
    %v6855 = vlaneseq
    %v6856 = vshrl.u32 %v6855, 7
    %v6857 = vsub.s32 %v6854, %v6856
    %v6858 = vrot.slane %v6836, %v6857
    %v6860 = vunpack.c.l.s4 1966171168
    %v6861 = vunpack.c.0.s8 %v6860
    %v6862 = vlaneseq
    %v6863 = vshrl.u32 %v6862, 7
    %v6864 = vsub.s32 %v6861, %v6863
    %v6865 = vrot.slane %v6837, %v6864
    %v6866 = vcombine.low %v6844, %v6851
    %v6867 = vcombine.high %v6844, %v6851
    %v6868 = vcombine.low %v6858, %v6865
    %v6869 = vcombine.high %v6858, %v6865
    %v6871 = vunpack.c.l.s4 1966171168
    %v6872 = vunpack.c.0.s8 %v6871
    %v6873 = vlaneseq
    %v6874 = vshrl.u32 %v6873, 7
    %v6875 = vsub.s32 %v6872, %v6874
    %v6876 = vrot.slane %v6866, %v6875
    %v6878 = vunpack.c.l.s4 1966171168
    %v6879 = vunpack.c.0.s8 %v6878
    %v6880 = vlaneseq
    %v6881 = vshrl.u32 %v6880, 7
    %v6882 = vsub.s32 %v6879, %v6881
    %v6883 = vrot.slane %v6867, %v6882
    %v6885 = vunpack.c.l.s4 1966171168
    %v6886 = vunpack.c.0.s8 %v6885
    %v6887 = vlaneseq
    %v6888 = vshrl.u32 %v6887, 7
    %v6889 = vsub.s32 %v6886, %v6888
    %v6890 = vrot.slane %v6868, %v6889
    %v6892 = vunpack.c.l.s4 1966171168
    %v6893 = vunpack.c.0.s8 %v6892
    %v6894 = vlaneseq
    %v6895 = vshrl.u32 %v6894, 7
    %v6896 = vsub.s32 %v6893, %v6895
    %v6897 = vrot.slane %v6869, %v6896
    %v6898 = vcombine.low %v6876, %v6890
    %v6899 = vcombine.low %v6883, %v6897
    %v6900 = vcombine.low %v6513, %v6504
    %v6901 = vcombine.low %v6537, %v6551
    %v6902 = vcombine.low %v6552, %v6553
    %v6903 = vcombine.low %v6544, %v6577
    %v6905 = vunpack.c.l.s4 1966171168
    %v6906 = vunpack.c.0.s8 %v6905
    %v6907 = vlaneseq
    %v6908 = vshrl.u32 %v6907, 7
    %v6909 = vsub.s32 %v6906, %v6908
    %v6910 = vrot.slane %v6900, %v6909
    %v6912 = vunpack.c.l.s4 1966171168
    %v6913 = vunpack.c.0.s8 %v6912
    %v6914 = vlaneseq
    %v6915 = vshrl.u32 %v6914, 7
    %v6916 = vsub.s32 %v6913, %v6915
    %v6917 = vrot.slane %v6901, %v6916
    %v6919 = vunpack.c.l.s4 1966171168
    %v6920 = vunpack.c.0.s8 %v6919
    %v6921 = vlaneseq
    %v6922 = vshrl.u32 %v6921, 7
    %v6923 = vsub.s32 %v6920, %v6922
    %v6924 = vrot.slane %v6902, %v6923
    %v6926 = vunpack.c.l.s4 1966171168
    %v6927 = vunpack.c.0.s8 %v6926
    %v6928 = vlaneseq
    %v6929 = vshrl.u32 %v6928, 7
    %v6930 = vsub.s32 %v6927, %v6929
    %v6931 = vrot.slane %v6903, %v6930
    %v6932 = vcombine.low %v6910, %v6917
    %v6933 = vcombine.high %v6910, %v6917
    %v6934 = vcombine.low %v6924, %v6931
    %v6935 = vcombine.high %v6924, %v6931
    %v6937 = vunpack.c.l.s4 1966171168
    %v6938 = vunpack.c.0.s8 %v6937
    %v6939 = vlaneseq
    %v6940 = vshrl.u32 %v6939, 7
    %v6941 = vsub.s32 %v6938, %v6940
    %v6942 = vrot.slane %v6932, %v6941
    %v6944 = vunpack.c.l.s4 1966171168
    %v6945 = vunpack.c.0.s8 %v6944
    %v6946 = vlaneseq
    %v6947 = vshrl.u32 %v6946, 7
    %v6948 = vsub.s32 %v6945, %v6947
    %v6949 = vrot.slane %v6933, %v6948
    %v6951 = vunpack.c.l.s4 1966171168
    %v6952 = vunpack.c.0.s8 %v6951
    %v6953 = vlaneseq
    %v6954 = vshrl.u32 %v6953, 7
    %v6955 = vsub.s32 %v6952, %v6954
    %v6956 = vrot.slane %v6934, %v6955
    %v6958 = vunpack.c.l.s4 1966171168
    %v6959 = vunpack.c.0.s8 %v6958
    %v6960 = vlaneseq
    %v6961 = vshrl.u32 %v6960, 7
    %v6962 = vsub.s32 %v6959, %v6961
    %v6963 = vrot.slane %v6935, %v6962
    %v6964 = vcombine.low %v6942, %v6956
    %v6965 = vcombine.low %v6949, %v6963
    %v6966 = vcombine.low %v6591, %v6592
    %v6967 = vcombine.low %v6593, %v6584
    %v6968 = vcombine.low %v6617, %v6631
    %v6969 = vcombine.low %v6632, %v6633
    %v6971 = vunpack.c.l.s4 1966171168
    %v6972 = vunpack.c.0.s8 %v6971
    %v6973 = vlaneseq
    %v6974 = vshrl.u32 %v6973, 7
    %v6975 = vsub.s32 %v6972, %v6974
    %v6976 = vrot.slane %v6966, %v6975
    %v6978 = vunpack.c.l.s4 1966171168
    %v6979 = vunpack.c.0.s8 %v6978
    %v6980 = vlaneseq
    %v6981 = vshrl.u32 %v6980, 7
    %v6982 = vsub.s32 %v6979, %v6981
    %v6983 = vrot.slane %v6967, %v6982
    %v6985 = vunpack.c.l.s4 1966171168
    %v6986 = vunpack.c.0.s8 %v6985
    %v6987 = vlaneseq
    %v6988 = vshrl.u32 %v6987, 7
    %v6989 = vsub.s32 %v6986, %v6988
    %v6990 = vrot.slane %v6968, %v6989
    %v6992 = vunpack.c.l.s4 1966171168
    %v6993 = vunpack.c.0.s8 %v6992
    %v6994 = vlaneseq
    %v6995 = vshrl.u32 %v6994, 7
    %v6996 = vsub.s32 %v6993, %v6995
    %v6997 = vrot.slane %v6969, %v6996
    %v6998 = vcombine.low %v6976, %v6983
    %v6999 = vcombine.high %v6976, %v6983
    %v7000 = vcombine.low %v6990, %v6997
    %v7001 = vcombine.high %v6990, %v6997
    %v7003 = vunpack.c.l.s4 1966171168
    %v7004 = vunpack.c.0.s8 %v7003
    %v7005 = vlaneseq
    %v7006 = vshrl.u32 %v7005, 7
    %v7007 = vsub.s32 %v7004, %v7006
    %v7008 = vrot.slane %v6998, %v7007
    %v7010 = vunpack.c.l.s4 1966171168
    %v7011 = vunpack.c.0.s8 %v7010
    %v7012 = vlaneseq
    %v7013 = vshrl.u32 %v7012, 7
    %v7014 = vsub.s32 %v7011, %v7013
    %v7015 = vrot.slane %v6999, %v7014
    %v7017 = vunpack.c.l.s4 1966171168
    %v7018 = vunpack.c.0.s8 %v7017
    %v7019 = vlaneseq
    %v7020 = vshrl.u32 %v7019, 7
    %v7021 = vsub.s32 %v7018, %v7020
    %v7022 = vrot.slane %v7000, %v7021
    %v7024 = vunpack.c.l.s4 1966171168
    %v7025 = vunpack.c.0.s8 %v7024
    %v7026 = vlaneseq
    %v7027 = vshrl.u32 %v7026, 7
    %v7028 = vsub.s32 %v7025, %v7027
    %v7029 = vrot.slane %v7001, %v7028
    %v7030 = vcombine.low %v7008, %v7022
    %v7031 = vcombine.low %v7015, %v7029
    %v7032 = vcombine.low %v6624, %v6657
    %v7033 = vcombine.low %v6671, %v6672
    %v7034 = vcombine.low %v6673, %v6664
    %v7035 = vcombine.low %v6697, %v6711
    %v7037 = vunpack.c.l.s4 1966171168
    %v7038 = vunpack.c.0.s8 %v7037
    %v7039 = vlaneseq
    %v7040 = vshrl.u32 %v7039, 7
    %v7041 = vsub.s32 %v7038, %v7040
    %v7042 = vrot.slane %v7032, %v7041
    %v7044 = vunpack.c.l.s4 1966171168
    %v7045 = vunpack.c.0.s8 %v7044
    %v7046 = vlaneseq
    %v7047 = vshrl.u32 %v7046, 7
    %v7048 = vsub.s32 %v7045, %v7047
    %v7049 = vrot.slane %v7033, %v7048
    %v7051 = vunpack.c.l.s4 1966171168
    %v7052 = vunpack.c.0.s8 %v7051
    %v7053 = vlaneseq
    %v7054 = vshrl.u32 %v7053, 7
    %v7055 = vsub.s32 %v7052, %v7054
    %v7056 = vrot.slane %v7034, %v7055
    %v7058 = vunpack.c.l.s4 1966171168
    %v7059 = vunpack.c.0.s8 %v7058
    %v7060 = vlaneseq
    %v7061 = vshrl.u32 %v7060, 7
    %v7062 = vsub.s32 %v7059, %v7061
    %v7063 = vrot.slane %v7035, %v7062
    %v7064 = vcombine.low %v7042, %v7049
    %v7065 = vcombine.high %v7042, %v7049
    %v7066 = vcombine.low %v7056, %v7063
    %v7067 = vcombine.high %v7056, %v7063
    %v7069 = vunpack.c.l.s4 1966171168
    %v7070 = vunpack.c.0.s8 %v7069
    %v7071 = vlaneseq
    %v7072 = vshrl.u32 %v7071, 7
    %v7073 = vsub.s32 %v7070, %v7072
    %v7074 = vrot.slane %v7064, %v7073
    %v7076 = vunpack.c.l.s4 1966171168
    %v7077 = vunpack.c.0.s8 %v7076
    %v7078 = vlaneseq
    %v7079 = vshrl.u32 %v7078, 7
    %v7080 = vsub.s32 %v7077, %v7079
    %v7081 = vrot.slane %v7065, %v7080
    %v7083 = vunpack.c.l.s4 1966171168
    %v7084 = vunpack.c.0.s8 %v7083
    %v7085 = vlaneseq
    %v7086 = vshrl.u32 %v7085, 7
    %v7087 = vsub.s32 %v7084, %v7086
    %v7088 = vrot.slane %v7066, %v7087
    %v7090 = vunpack.c.l.s4 1966171168
    %v7091 = vunpack.c.0.s8 %v7090
    %v7092 = vlaneseq
    %v7093 = vshrl.u32 %v7092, 7
    %v7094 = vsub.s32 %v7091, %v7093
    %v7095 = vrot.slane %v7067, %v7094
    %v7096 = vcombine.low %v7074, %v7088
    %v7097 = vcombine.low %v7081, %v7095
    %v7098 = vcombine.low %v6712, %v6713
    %v7099 = vcombine.low %v6704, %v6737
    %v7100 = vcombine.low %v6751, %v6752
    %v7101 = vcombine.low %v6753, %v6744
    %v7103 = vunpack.c.l.s4 1966171168
    %v7104 = vunpack.c.0.s8 %v7103
    %v7105 = vlaneseq
    %v7106 = vshrl.u32 %v7105, 7
    %v7107 = vsub.s32 %v7104, %v7106
    %v7108 = vrot.slane %v7098, %v7107
    %v7110 = vunpack.c.l.s4 1966171168
    %v7111 = vunpack.c.0.s8 %v7110
    %v7112 = vlaneseq
    %v7113 = vshrl.u32 %v7112, 7
    %v7114 = vsub.s32 %v7111, %v7113
    %v7115 = vrot.slane %v7099, %v7114
    %v7117 = vunpack.c.l.s4 1966171168
    %v7118 = vunpack.c.0.s8 %v7117
    %v7119 = vlaneseq
    %v7120 = vshrl.u32 %v7119, 7
    %v7121 = vsub.s32 %v7118, %v7120
    %v7122 = vrot.slane %v7100, %v7121
    %v7124 = vunpack.c.l.s4 1966171168
    %v7125 = vunpack.c.0.s8 %v7124
    %v7126 = vlaneseq
    %v7127 = vshrl.u32 %v7126, 7
    %v7128 = vsub.s32 %v7125, %v7127
    %v7129 = vrot.slane %v7101, %v7128
    %v7130 = vcombine.low %v7108, %v7115
    %v7131 = vcombine.high %v7108, %v7115
    %v7132 = vcombine.low %v7122, %v7129
    %v7133 = vcombine.high %v7122, %v7129
    %v7135 = vunpack.c.l.s4 1966171168
    %v7136 = vunpack.c.0.s8 %v7135
    %v7137 = vlaneseq
    %v7138 = vshrl.u32 %v7137, 7
    %v7139 = vsub.s32 %v7136, %v7138
    %v7140 = vrot.slane %v7130, %v7139
    %v7142 = vunpack.c.l.s4 1966171168
    %v7143 = vunpack.c.0.s8 %v7142
    %v7144 = vlaneseq
    %v7145 = vshrl.u32 %v7144, 7
    %v7146 = vsub.s32 %v7143, %v7145
    %v7147 = vrot.slane %v7131, %v7146
    %v7149 = vunpack.c.l.s4 1966171168
    %v7150 = vunpack.c.0.s8 %v7149
    %v7151 = vlaneseq
    %v7152 = vshrl.u32 %v7151, 7
    %v7153 = vsub.s32 %v7150, %v7152
    %v7154 = vrot.slane %v7132, %v7153
    %v7156 = vunpack.c.l.s4 1966171168
    %v7157 = vunpack.c.0.s8 %v7156
    %v7158 = vlaneseq
    %v7159 = vshrl.u32 %v7158, 7
    %v7160 = vsub.s32 %v7157, %v7159
    %v7161 = vrot.slane %v7133, %v7160
    %v7162 = vcombine.low %v7140, %v7154
    %v7163 = vcombine.low %v7147, %v7161
    %v7164 = vcombine.low %v6777, %v6791
    %v7165 = vcombine.low %v6792, %v6793
    %v7166 = vcombine.low %v6784, %v6817
    %v7167 = vcombine.low %v6831, %v6832
    %v7169 = vunpack.c.l.s4 1966171168
    %v7170 = vunpack.c.0.s8 %v7169
    %v7171 = vlaneseq
    %v7172 = vshrl.u32 %v7171, 7
    %v7173 = vsub.s32 %v7170, %v7172
    %v7174 = vrot.slane %v7164, %v7173
    %v7176 = vunpack.c.l.s4 1966171168
    %v7177 = vunpack.c.0.s8 %v7176
    %v7178 = vlaneseq
    %v7179 = vshrl.u32 %v7178, 7
    %v7180 = vsub.s32 %v7177, %v7179
    %v7181 = vrot.slane %v7165, %v7180
    %v7183 = vunpack.c.l.s4 1966171168
    %v7184 = vunpack.c.0.s8 %v7183
    %v7185 = vlaneseq
    %v7186 = vshrl.u32 %v7185, 7
    %v7187 = vsub.s32 %v7184, %v7186
    %v7188 = vrot.slane %v7166, %v7187
    %v7190 = vunpack.c.l.s4 1966171168
    %v7191 = vunpack.c.0.s8 %v7190
    %v7192 = vlaneseq
    %v7193 = vshrl.u32 %v7192, 7
    %v7194 = vsub.s32 %v7191, %v7193
    %v7195 = vrot.slane %v7167, %v7194
    %v7196 = vcombine.low %v7174, %v7181
    %v7197 = vcombine.high %v7174, %v7181
    %v7198 = vcombine.low %v7188, %v7195
    %v7199 = vcombine.high %v7188, %v7195
    %v7201 = vunpack.c.l.s4 1966171168
    %v7202 = vunpack.c.0.s8 %v7201
    %v7203 = vlaneseq
    %v7204 = vshrl.u32 %v7203, 7
    %v7205 = vsub.s32 %v7202, %v7204
    %v7206 = vrot.slane %v7196, %v7205
    %v7208 = vunpack.c.l.s4 1966171168
    %v7209 = vunpack.c.0.s8 %v7208
    %v7210 = vlaneseq
    %v7211 = vshrl.u32 %v7210, 7
    %v7212 = vsub.s32 %v7209, %v7211
    %v7213 = vrot.slane %v7197, %v7212
    %v7215 = vunpack.c.l.s4 1966171168
    %v7216 = vunpack.c.0.s8 %v7215
    %v7217 = vlaneseq
    %v7218 = vshrl.u32 %v7217, 7
    %v7219 = vsub.s32 %v7216, %v7218
    %v7220 = vrot.slane %v7198, %v7219
    %v7222 = vunpack.c.l.s4 1966171168
    %v7223 = vunpack.c.0.s8 %v7222
    %v7224 = vlaneseq
    %v7225 = vshrl.u32 %v7224, 7
    %v7226 = vsub.s32 %v7223, %v7225
    %v7227 = vrot.slane %v7199, %v7226
    %v7228 = vcombine.low %v7206, %v7220
    %v7229 = vcombine.low %v7213, %v7227
    %v7230 = vcombine.low %v6833, %v6824
    %v7232 = vunpack.c.l.s4 1966171168
    %v7233 = vunpack.c.0.s8 %v7232
    %v7234 = vlaneseq
    %v7235 = vshrl.u32 %v7234, 7
    %v7236 = vsub.s32 %v7233, %v7235
    %v7237 = vrot.slane %v7230, %v7236
    %v7238 = vcombine.high %v7237, %v7237
    %v7240 = vunpack.c.l.s4 1966171168
    %v7241 = vunpack.c.0.s8 %v7240
    %v7242 = vlaneseq
    %v7243 = vshrl.u32 %v7242, 7
    %v7244 = vsub.s32 %v7241, %v7243
    %v7245 = vrot.slane %v7237, %v7244
    %v7247 = vunpack.c.l.s4 1966171168
    %v7248 = vunpack.c.0.s8 %v7247
    %v7249 = vlaneseq
    %v7250 = vshrl.u32 %v7249, 7
    %v7251 = vsub.s32 %v7248, %v7250
    %v7252 = vrot.slane %v7238, %v7251
    %v7267 = vpack.c.bf16 %v6964, %v6898
    %v7268 = vpack.c.bf16 %v6965, %v6899
    %v7269 = vpack.c.bf16 %v7096, %v7030
    %v7270 = vpack.c.bf16 %v7097, %v7031
    %v7271 = vpack.c.bf16 %v7228, %v7162
    %v7272 = vpack.c.bf16 %v7229, %v7163
    %v7273 = vpack.c.bf16 %v7245, %v7245
    %v7274 = vpack.c.bf16 %v7252, %v7252
    %v7294 = vunpack.c.l.b16 %v29
    %v7295 = vunpack.c.l.b16 %v30
    %v7296 = vunpack.c.l.b16 %v31
    %v7297 = vunpack.c.l.b16 %v32
    %v7298 = vunpack.c.l.b16 %v33
    %v7299 = vunpack.c.l.b16 %v34
    %v7300 = vunpack.c.l.b16 %v35
    %v7301 = vunpack.c.l.b16 %v36
    %v7302 = vunpack.c.l.b16 %v37
    %v7303 = vunpack.c.l.b16 %v38
    %v7304 = vunpack.c.l.b16 %v39
    %v7305 = vunpack.c.l.b16 %v40
    %v7306 = vunpack.c.l.b16 %v41
    %v7307 = vunpack.c.l.b16 %v42
    %v7308 = vunpack.c.l.b16 %v43
    %v7309 = vunpack.c.l.b16 %v44
    %v7310 = vunpack.c.l.b16 %v45
    %v7311 = vunpack.c.l.b16 %v46
    %v7312 = vunpack.c.l.b16 %v47
    %v7313 = vpack.c.b16 %v7295, %v7294
    %v7314 = vpack.c.b16 %v7297, %v7296
    %v7315 = vpack.c.b16 %v7299, %v7298
    %v7316 = vpack.c.b16 %v7301, %v7300
    %v7317 = vpack.c.b16 %v7303, %v7302
    %v7318 = vpack.c.b16 %v7305, %v7304
    %v7319 = vpack.c.b16 %v7307, %v7306
    %v7320 = vpack.c.b16 %v7309, %v7308
    %v7321 = vpack.c.b16 %v7311, %v7310
    %v7322 = vpack.c.b16 %v7312, %v7312
    %vm7332 = vcmask 179200
    %v7334 = vsel %vm7332, %v7268, 0
    %v7337 = vsel %vm7332, %v7270, 0
    %v7340 = vsel %vm7332, %v7272, 0
    %v7343 = vsel %vm7332, %v7274, 0
    %vm7345 = vcmask 1042432
    %v7347 = vsel %vm7345, %v7322, 0
    %7349 = vmatprep.subr.bf16.mxu0 0
    %7350 = vmatpush1.bf16.msra.mxu0 %v7313
    %7351 = vmatprep.subr.bf16.mxu0 0
    %7352 = vmatpush1.bf16.msra.mxu0 %v7314
    %7353 = vmatprep.subr.bf16.mxu0 0
    %7354 = vmatpush1.bf16.msra.mxu0 %v7315
    %7355 = vmatprep.subr.bf16.mxu0 0
    %7356 = vmatpush1.bf16.msra.mxu0 %v7316
    %7357 = vmatprep.subr.bf16.mxu0 0
    %7358 = vmatpush1.bf16.msra.mxu0 %v7317
    %7359 = vmatprep.subr.bf16.mxu0 0
    %7360 = vmatpush1.bf16.msra.mxu0 %v7318
    %7361 = vmatprep.subr.bf16.mxu0 0
    %7362 = vmatpush1.bf16.msra.mxu0 %v7319
    %7363 = vmatprep.subr.bf16.mxu0 0
    %7364 = vmatpush1.bf16.msra.mxu0 %v7320
    %7365 = vmatprep.subr.bf16.mxu0 0
    %7366 = vmatpush1.bf16.msra.mxu0 %v7321
    %7367 = vmatprep.subr.bf16.mxu0 0
    %7368 = vmatpush1.bf16.msra.mxu0 %v7347
    %7369 = vmatprep.subr.bf16.mxu0 0
    %7370 = vmatpush1.bf16.msra.mxu0 0
    %7371 = vmatprep.subr.bf16.mxu0 0
    %7372 = vmatpush1.bf16.msra.mxu0 0
    %7373 = vmatprep.subr.bf16.mxu0 0
    %7374 = vmatpush1.bf16.msra.mxu0 0
    %7375 = vmatprep.subr.bf16.mxu0 0
    %7376 = vmatpush1.bf16.msra.mxu0 0
    %7377 = vmatprep.subr.bf16.mxu0 0
    %7378 = vmatpush1.bf16.msra.mxu0 0
    %7379 = vmatprep.subr.bf16.mxu0 0
    %7380 = vmatpush1.bf16.msra.mxu0 0
    %7381 = vmatprep.mubr.bf16.mxu0 %v7334
    %7382 = vmatmul.mubr.bf16.gmra.mrb[0].mxu0 %v7267
    %v7383 = vpop.f32.mrb[0].mxu0
    %v7384 = vadd.f32 0.0, %v7383
    %v7385 = vpop.f32.mrb[0].mxu0
    %v7386 = vpop.f32.mrb[0].mxu0
    %v7387 = vadd.f32 0.0, %v7386
    %v7388 = vpop.f32.mrb[0].mxu0
    %7389 = vmatprep.mubr.bf16.mxu0 %v7337
    %7390 = vmatmul.mubr.bf16.gmra.mrb[0].mxu0 %v7269
    %v7391 = vpop.f32.mrb[0].mxu0
    %v7392 = vadd.f32 0.0, %v7391
    %v7393 = vpop.f32.mrb[0].mxu0
    %v7394 = vpop.f32.mrb[0].mxu0
    %v7395 = vadd.f32 0.0, %v7394
    %v7396 = vpop.f32.mrb[0].mxu0
    %7397 = vmatprep.mubr.bf16.mxu0 %v7340
    %7398 = vmatmul.mubr.bf16.gmra.mrb[0].mxu0 %v7271
    %v7399 = vpop.f32.mrb[0].mxu0
    %v7400 = vadd.f32 0.0, %v7399
    %v7401 = vpop.f32.mrb[0].mxu0
    %v7402 = vpop.f32.mrb[0].mxu0
    %v7403 = vadd.f32 0.0, %v7402
    %v7404 = vpop.f32.mrb[0].mxu0
    %7405 = vmatprep.mubr.bf16.mxu0 %v7343
    %7406 = vmatmul.mubr.bf16.gmra.mrb[0].mxu0 %v7273
    %v7407 = vpop.f32.mrb[0].mxu0
    %v7408 = vadd.f32 0.0, %v7407
    %v7409 = vpop.f32.mrb[0].mxu0
    %v7410 = vpop.f32.mrb[0].mxu0
    %v7411 = vpop.f32.mrb[0].mxu0
    %7412 = vdwg.mxu0
    %7413 = vrot.lane.b32.xlu0 %v4132, 122
    %v7414 = vpop.permute.xlu0 %7413
    %7415 = vrot.lane.b32.xlu0 %v4171, 122
    %v7416 = vpop.permute.xlu0 %7415
    %7417 = vrot.lane.b32.xlu0 %v4210, 122
    %v7418 = vpop.permute.xlu0 %7417
    %7419 = vrot.lane.b32.xlu0 %v4249, 122
    %v7420 = vpop.permute.xlu0 %7419
    %7421 = vrot.lane.b32.xlu0 %v4288, 122
    %v7422 = vpop.permute.xlu0 %7421
    %7423 = vrot.lane.b32.xlu0 %v4327, 122
    %v7424 = vpop.permute.xlu0 %7423
    %7425 = vrot.lane.b32.xlu0 %v4366, 122
    %v7426 = vpop.permute.xlu0 %7425
    %7427 = vrot.lane.b32.xlu0 %v4405, 122
    %v7428 = vpop.permute.xlu0 %7427
    %7429 = vrot.lane.b32.xlu0 %v4444, 122
    %v7430 = vpop.permute.xlu0 %7429
    %7431 = vrot.lane.b32.xlu0 %v4483, 122
    %v7432 = vpop.permute.xlu0 %7431
    %7443 = vrot.lane.b32.xlu0 %v4542, 6
    %v7444 = vpop.permute.xlu0 %7443
    %7445 = vrot.lane.b32.xlu0 %v4581, 6
    %v7446 = vpop.permute.xlu0 %7445
    %7447 = vrot.lane.b32.xlu0 %v4620, 6
    %v7448 = vpop.permute.xlu0 %7447
    %7449 = vrot.lane.b32.xlu0 %v4659, 6
    %v7450 = vpop.permute.xlu0 %7449
    %7451 = vrot.lane.b32.xlu0 %v4698, 6
    %v7452 = vpop.permute.xlu0 %7451
    %7453 = vrot.lane.b32.xlu0 %v4737, 6
    %v7454 = vpop.permute.xlu0 %7453
    %7455 = vrot.lane.b32.xlu0 %v4776, 6
    %v7456 = vpop.permute.xlu0 %7455
    %7457 = vrot.lane.b32.xlu0 %v4815, 6
    %v7458 = vpop.permute.xlu0 %7457
    %7459 = vrot.lane.b32.xlu0 %v4854, 6
    %v7460 = vpop.permute.xlu0 %7459
    %7461 = vrot.lane.b32.xlu0 %v4893, 6
    %v7462 = vpop.permute.xlu0 %7461
    %7473 = vrot.lane.b32.xlu0 %v4964, 18
    %v7474 = vpop.permute.xlu0 %7473
    %7475 = vrot.lane.b32.xlu0 %v4995, 18
    %v7476 = vpop.permute.xlu0 %7475
    %7477 = vrot.lane.b32.xlu0 %v5026, 18
    %v7478 = vpop.permute.xlu0 %7477
    %7479 = vrot.lane.b32.xlu0 %v5057, 18
    %v7480 = vpop.permute.xlu0 %7479
    %7481 = vrot.lane.b32.xlu0 %v5088, 18
    %v7482 = vpop.permute.xlu0 %7481
    %7483 = vrot.lane.b32.xlu0 %v5119, 18
    %v7484 = vpop.permute.xlu0 %7483
    %7485 = vrot.lane.b32.xlu0 %v5150, 18
    %v7486 = vpop.permute.xlu0 %7485
    %7487 = vrot.lane.b32.xlu0 %v5181, 18
    %v7488 = vpop.permute.xlu0 %7487
    %7489 = vrot.lane.b32.xlu0 %v5212, 18
    %v7490 = vpop.permute.xlu0 %7489
    %7491 = vrot.lane.b32.xlu0 %v5243, 18
    %v7492 = vpop.permute.xlu0 %7491
    %7503 = vrot.lane.b32.xlu0 %v4132, 12
    %v7504 = vpop.permute.xlu0 %7503
    %7505 = vrot.lane.b32.xlu0 %v4171, 12
    %v7506 = vpop.permute.xlu0 %7505
    %7507 = vrot.lane.b32.xlu0 %v4210, 12
    %v7508 = vpop.permute.xlu0 %7507
    %7509 = vrot.lane.b32.xlu0 %v4249, 12
    %v7510 = vpop.permute.xlu0 %7509
    %7511 = vrot.lane.b32.xlu0 %v4288, 12
    %v7512 = vpop.permute.xlu0 %7511
    %7513 = vrot.lane.b32.xlu0 %v4327, 12
    %v7514 = vpop.permute.xlu0 %7513
    %7515 = vrot.lane.b32.xlu0 %v4366, 12
    %v7516 = vpop.permute.xlu0 %7515
    %7517 = vrot.lane.b32.xlu0 %v4405, 12
    %v7518 = vpop.permute.xlu0 %7517
    %7519 = vrot.lane.b32.xlu0 %v4444, 12
    %v7520 = vpop.permute.xlu0 %7519
    %7521 = vrot.lane.b32.xlu0 %v4483, 12
    %v7522 = vpop.permute.xlu0 %7521
    %7533 = vrot.lane.b32.xlu0 %v4542, 24
    %v7534 = vpop.permute.xlu0 %7533
    %7535 = vrot.lane.b32.xlu0 %v4581, 24
    %v7536 = vpop.permute.xlu0 %7535
    %7537 = vrot.lane.b32.xlu0 %v4620, 24
    %v7538 = vpop.permute.xlu0 %7537
    %7539 = vrot.lane.b32.xlu0 %v4659, 24
    %v7540 = vpop.permute.xlu0 %7539
    %7541 = vrot.lane.b32.xlu0 %v4698, 24
    %v7542 = vpop.permute.xlu0 %7541
    %7543 = vrot.lane.b32.xlu0 %v4737, 24
    %v7544 = vpop.permute.xlu0 %7543
    %7545 = vrot.lane.b32.xlu0 %v4776, 24
    %v7546 = vpop.permute.xlu0 %7545
    %7547 = vrot.lane.b32.xlu0 %v4815, 24
    %v7548 = vpop.permute.xlu0 %7547
    %7549 = vrot.lane.b32.xlu0 %v4854, 24
    %v7550 = vpop.permute.xlu0 %7549
    %7551 = vrot.lane.b32.xlu0 %v4893, 24
    %v7552 = vpop.permute.xlu0 %7551
    %7563 = vrot.lane.b32.xlu0 %v4964, 36
    %v7564 = vpop.permute.xlu0 %7563
    %7565 = vrot.lane.b32.xlu0 %v4995, 36
    %v7566 = vpop.permute.xlu0 %7565
    %7567 = vrot.lane.b32.xlu0 %v5026, 36
    %v7568 = vpop.permute.xlu0 %7567
    %7569 = vrot.lane.b32.xlu0 %v5057, 36
    %v7570 = vpop.permute.xlu0 %7569
    %7571 = vrot.lane.b32.xlu0 %v5088, 36
    %v7572 = vpop.permute.xlu0 %7571
    %7573 = vrot.lane.b32.xlu0 %v5119, 36
    %v7574 = vpop.permute.xlu0 %7573
    %7575 = vrot.lane.b32.xlu0 %v5150, 36
    %v7576 = vpop.permute.xlu0 %7575
    %7577 = vrot.lane.b32.xlu0 %v5181, 36
    %v7578 = vpop.permute.xlu0 %7577
    %7579 = vrot.lane.b32.xlu0 %v5212, 36
    %v7580 = vpop.permute.xlu0 %7579
    %7581 = vrot.lane.b32.xlu0 %v5243, 36
    %v7582 = vpop.permute.xlu0 %7581
    %7593 = vrot.lane.b32.xlu0 %v4171, 54
    %v7594 = vpop.permute.xlu0 %7593
    %7595 = vrot.lane.b32.xlu0 %v4210, 54
    %v7596 = vpop.permute.xlu0 %7595
    %7597 = vrot.lane.b32.xlu0 %v4249, 54
    %v7598 = vpop.permute.xlu0 %7597
    %7599 = vrot.lane.b32.xlu0 %v4288, 54
    %v7600 = vpop.permute.xlu0 %7599
    %7601 = vrot.lane.b32.xlu0 %v5412, 54
    %v7602 = vpop.permute.xlu0 %7601
    %7603 = vrot.lane.b32.xlu0 %v4366, 54
    %v7604 = vpop.permute.xlu0 %7603
    %7605 = vrot.lane.b32.xlu0 %v4405, 54
    %v7606 = vpop.permute.xlu0 %7605
    %7607 = vrot.lane.b32.xlu0 %v4444, 54
    %v7608 = vpop.permute.xlu0 %7607
    %7609 = vrot.lane.b32.xlu0 %v4483, 54
    %v7610 = vpop.permute.xlu0 %7609
    %7611 = vrot.lane.b32.xlu0 %v5451, 54
    %v7612 = vpop.permute.xlu0 %7611
    %7623 = vrot.lane.b32.xlu0 %v4581, 66
    %v7624 = vpop.permute.xlu0 %7623
    %7625 = vrot.lane.b32.xlu0 %v4620, 66
    %v7626 = vpop.permute.xlu0 %7625
    %7627 = vrot.lane.b32.xlu0 %v4659, 66
    %v7628 = vpop.permute.xlu0 %7627
    %7629 = vrot.lane.b32.xlu0 %v4698, 66
    %v7630 = vpop.permute.xlu0 %7629
    %7631 = vrot.lane.b32.xlu0 %v5522, 66
    %v7632 = vpop.permute.xlu0 %7631
    %7633 = vrot.lane.b32.xlu0 %v4776, 66
    %v7634 = vpop.permute.xlu0 %7633
    %7635 = vrot.lane.b32.xlu0 %v4815, 66
    %v7636 = vpop.permute.xlu0 %7635
    %7637 = vrot.lane.b32.xlu0 %v4854, 66
    %v7638 = vpop.permute.xlu0 %7637
    %7639 = vrot.lane.b32.xlu0 %v4893, 66
    %v7640 = vpop.permute.xlu0 %7639
    %7641 = vrot.lane.b32.xlu0 %v5561, 66
    %v7642 = vpop.permute.xlu0 %7641
    %7653 = vrot.lane.b32.xlu0 %v4995, 78
    %v7654 = vpop.permute.xlu0 %7653
    %7655 = vrot.lane.b32.xlu0 %v5026, 78
    %v7656 = vpop.permute.xlu0 %7655
    %7657 = vrot.lane.b32.xlu0 %v5057, 78
    %v7658 = vpop.permute.xlu0 %7657
    %7659 = vrot.lane.b32.xlu0 %v5088, 78
    %v7660 = vpop.permute.xlu0 %7659
    %7661 = vrot.lane.b32.xlu0 %v5624, 78
    %v7662 = vpop.permute.xlu0 %7661
    %7663 = vrot.lane.b32.xlu0 %v5150, 78
    %v7664 = vpop.permute.xlu0 %7663
    %7665 = vrot.lane.b32.xlu0 %v5181, 78
    %v7666 = vpop.permute.xlu0 %7665
    %7667 = vrot.lane.b32.xlu0 %v5212, 78
    %v7668 = vpop.permute.xlu0 %7667
    %7669 = vrot.lane.b32.xlu0 %v5243, 78
    %v7670 = vpop.permute.xlu0 %7669
    %7671 = vrot.lane.b32.xlu0 %v5655, 78
    %v7672 = vpop.permute.xlu0 %7671
    %7683 = vrot.lane.b32.xlu0 %v4171, 72
    %v7684 = vpop.permute.xlu0 %7683
    %7685 = vrot.lane.b32.xlu0 %v4210, 72
    %v7686 = vpop.permute.xlu0 %7685
    %7687 = vrot.lane.b32.xlu0 %v4249, 72
    %v7688 = vpop.permute.xlu0 %7687
    %7689 = vrot.lane.b32.xlu0 %v4288, 72
    %v7690 = vpop.permute.xlu0 %7689
    %7691 = vrot.lane.b32.xlu0 %v5412, 72
    %v7692 = vpop.permute.xlu0 %7691
    %7693 = vrot.lane.b32.xlu0 %v4366, 72
    %v7694 = vpop.permute.xlu0 %7693
    %7695 = vrot.lane.b32.xlu0 %v4405, 72
    %v7696 = vpop.permute.xlu0 %7695
    %7697 = vrot.lane.b32.xlu0 %v4444, 72
    %v7698 = vpop.permute.xlu0 %7697
    %7699 = vrot.lane.b32.xlu0 %v4483, 72
    %v7700 = vpop.permute.xlu0 %7699
    %7701 = vrot.lane.b32.xlu0 %v5451, 72
    %v7702 = vpop.permute.xlu0 %7701
    %v7713 = vsel %vm5716, %v7414, %v7444
    %v7714 = vsel %vm5716, %v7416, %v7446
    %v7715 = vsel %vm5716, %v7418, %v7448
    %v7716 = vsel %vm5716, %v7420, %v7450
    %v7717 = vsel %vm5716, %v7422, %v7452
    %v7718 = vsel %vm5716, %v7424, %v7454
    %v7719 = vsel %vm5716, %v7426, %v7456
    %v7720 = vsel %vm5716, %v7428, %v7458
    %v7721 = vsel %vm5716, %v7430, %v7460
    %v7722 = vsel %vm5716, %v7432, %v7462
    %v7723 = vsel %vm5727, %v7713, %v7444
    %v7724 = vsel %vm5727, %v7714, %v7446
    %v7725 = vsel %vm5727, %v7715, %v7448
    %v7726 = vsel %vm5727, %v7716, %v7450
    %v7727 = vsel %vm5727, %v7717, %v7452
    %v7728 = vsel %vm5727, %v7718, %v7454
    %v7729 = vsel %vm5727, %v7719, %v7456
    %v7730 = vsel %vm5727, %v7720, %v7458
    %v7731 = vsel %vm5727, %v7721, %v7460
    %v7732 = vsel %vm5727, %v7722, %v7462
    %v7733 = vsel %vm5738, %v7723, %v7474
    %v7734 = vsel %vm5738, %v7724, %v7476
    %v7735 = vsel %vm5738, %v7725, %v7478
    %v7736 = vsel %vm5738, %v7726, %v7480
    %v7737 = vsel %vm5738, %v7727, %v7482
    %v7738 = vsel %vm5738, %v7728, %v7484
    %v7739 = vsel %vm5738, %v7729, %v7486
    %v7740 = vsel %vm5738, %v7730, %v7488
    %v7741 = vsel %vm5738, %v7731, %v7490
    %v7742 = vsel %vm5738, %v7732, %v7492
    %v7743 = vsel %vm5749, %v7733, %v7474
    %v7744 = vsel %vm5749, %v7734, %v7476
    %v7745 = vsel %vm5749, %v7735, %v7478
    %v7746 = vsel %vm5749, %v7736, %v7480
    %v7747 = vsel %vm5749, %v7737, %v7482
    %v7748 = vsel %vm5749, %v7738, %v7484
    %v7749 = vsel %vm5749, %v7739, %v7486
    %v7750 = vsel %vm5749, %v7740, %v7488
    %v7751 = vsel %vm5749, %v7741, %v7490
    %v7752 = vsel %vm5749, %v7742, %v7492
    %v7753 = vsel %vm5760, %v7743, %v7504
    %v7754 = vsel %vm5760, %v7744, %v7506
    %v7755 = vsel %vm5760, %v7745, %v7508
    %v7756 = vsel %vm5760, %v7746, %v7510
    %v7757 = vsel %vm5760, %v7747, %v7512
    %v7758 = vsel %vm5760, %v7748, %v7514
    %v7759 = vsel %vm5760, %v7749, %v7516
    %v7760 = vsel %vm5760, %v7750, %v7518
    %v7761 = vsel %vm5760, %v7751, %v7520
    %v7762 = vsel %vm5760, %v7752, %v7522
    %v7763 = vsel %vm5771, %v7753, %v7534
    %v7764 = vsel %vm5771, %v7754, %v7536
    %v7765 = vsel %vm5771, %v7755, %v7538
    %v7766 = vsel %vm5771, %v7756, %v7540
    %v7767 = vsel %vm5771, %v7757, %v7542
    %v7768 = vsel %vm5771, %v7758, %v7544
    %v7769 = vsel %vm5771, %v7759, %v7546
    %v7770 = vsel %vm5771, %v7760, %v7548
    %v7771 = vsel %vm5771, %v7761, %v7550
    %v7772 = vsel %vm5771, %v7762, %v7552
    %v7773 = vsel %vm5782, %v7763, %v7534
    %v7774 = vsel %vm5782, %v7764, %v7536
    %v7775 = vsel %vm5782, %v7765, %v7538
    %v7776 = vsel %vm5782, %v7766, %v7540
    %v7777 = vsel %vm5782, %v7767, %v7542
    %v7778 = vsel %vm5782, %v7768, %v7544
    %v7779 = vsel %vm5782, %v7769, %v7546
    %v7780 = vsel %vm5782, %v7770, %v7548
    %v7781 = vsel %vm5782, %v7771, %v7550
    %v7782 = vsel %vm5782, %v7772, %v7552
    %v7783 = vsel %vm5793, %v7773, %v7564
    %v7784 = vsel %vm5793, %v7774, %v7566
    %v7785 = vsel %vm5793, %v7775, %v7568
    %v7786 = vsel %vm5793, %v7776, %v7570
    %v7787 = vsel %vm5793, %v7777, %v7572
    %v7788 = vsel %vm5793, %v7778, %v7574
    %v7789 = vsel %vm5793, %v7779, %v7576
    %v7790 = vsel %vm5793, %v7780, %v7578
    %v7791 = vsel %vm5793, %v7781, %v7580
    %v7792 = vsel %vm5793, %v7782, %v7582
    %v7793 = vsel %vm5804, %v7783, %v7564
    %v7794 = vsel %vm5804, %v7784, %v7566
    %v7795 = vsel %vm5804, %v7785, %v7568
    %v7796 = vsel %vm5804, %v7786, %v7570
    %v7797 = vsel %vm5804, %v7787, %v7572
    %v7798 = vsel %vm5804, %v7788, %v7574
    %v7799 = vsel %vm5804, %v7789, %v7576
    %v7800 = vsel %vm5804, %v7790, %v7578
    %v7801 = vsel %vm5804, %v7791, %v7580
    %v7802 = vsel %vm5804, %v7792, %v7582
    %v7803 = vsel %vm5815, %v7793, %v7594
    %v7804 = vsel %vm5815, %v7794, %v7596
    %v7805 = vsel %vm5815, %v7795, %v7598
    %v7806 = vsel %vm5815, %v7796, %v7600
    %v7807 = vsel %vm5815, %v7797, %v7602
    %v7808 = vsel %vm5815, %v7798, %v7604
    %v7809 = vsel %vm5815, %v7799, %v7606
    %v7810 = vsel %vm5815, %v7800, %v7608
    %v7811 = vsel %vm5815, %v7801, %v7610
    %v7812 = vsel %vm5815, %v7802, %v7612
    %v7813 = vsel %vm5826, %v7803, %v7624
    %v7814 = vsel %vm5826, %v7804, %v7626
    %v7815 = vsel %vm5826, %v7805, %v7628
    %v7816 = vsel %vm5826, %v7806, %v7630
    %v7817 = vsel %vm5826, %v7807, %v7632
    %v7818 = vsel %vm5826, %v7808, %v7634
    %v7819 = vsel %vm5826, %v7809, %v7636
    %v7820 = vsel %vm5826, %v7810, %v7638
    %v7821 = vsel %vm5826, %v7811, %v7640
    %v7822 = vsel %vm5826, %v7812, %v7642
    %v7823 = vsel %vm5837, %v7813, %v7624
    %v7824 = vsel %vm5837, %v7814, %v7626
    %v7825 = vsel %vm5837, %v7815, %v7628
    %v7826 = vsel %vm5837, %v7816, %v7630
    %v7827 = vsel %vm5837, %v7817, %v7632
    %v7828 = vsel %vm5837, %v7818, %v7634
    %v7829 = vsel %vm5837, %v7819, %v7636
    %v7830 = vsel %vm5837, %v7820, %v7638
    %v7831 = vsel %vm5837, %v7821, %v7640
    %v7832 = vsel %vm5837, %v7822, %v7642
    %v7833 = vsel %vm5848, %v7823, %v7654
    %v7834 = vsel %vm5848, %v7824, %v7656
    %v7835 = vsel %vm5848, %v7825, %v7658
    %v7836 = vsel %vm5848, %v7826, %v7660
    %v7837 = vsel %vm5848, %v7827, %v7662
    %v7838 = vsel %vm5848, %v7828, %v7664
    %v7839 = vsel %vm5848, %v7829, %v7666
    %v7840 = vsel %vm5848, %v7830, %v7668
    %v7841 = vsel %vm5848, %v7831, %v7670
    %v7842 = vsel %vm5848, %v7832, %v7672
    %v7843 = vsel %vm5859, %v7833, %v7654
    %v7844 = vsel %vm5859, %v7834, %v7656
    %v7845 = vsel %vm5859, %v7835, %v7658
    %v7846 = vsel %vm5859, %v7836, %v7660
    %v7847 = vsel %vm5859, %v7837, %v7662
    %v7848 = vsel %vm5859, %v7838, %v7664
    %v7849 = vsel %vm5859, %v7839, %v7666
    %v7850 = vsel %vm5859, %v7840, %v7668
    %v7851 = vsel %vm5859, %v7841, %v7670
    %v7852 = vsel %vm5859, %v7842, %v7672
    %v7853 = vsel %vm5870, %v7843, %v7684
    %v7854 = vsel %vm5870, %v7844, %v7686
    %v7855 = vsel %vm5870, %v7845, %v7688
    %v7856 = vsel %vm5870, %v7846, %v7690
    %v7857 = vsel %vm5870, %v7847, %v7692
    %v7858 = vsel %vm5870, %v7848, %v7694
    %v7859 = vsel %vm5870, %v7849, %v7696
    %v7860 = vsel %vm5870, %v7850, %v7698
    %v7861 = vsel %vm5870, %v7851, %v7700
    %v7862 = vsel %vm5870, %v7852, %v7702
    %7863 = vrot.lane.b32.xlu0 %v4581, 116
    %v7864 = vpop.permute.xlu0 %7863
    %7865 = vrot.lane.b32.xlu0 %v4620, 116
    %v7866 = vpop.permute.xlu0 %7865
    %7867 = vrot.lane.b32.xlu0 %v4659, 116
    %v7868 = vpop.permute.xlu0 %7867
    %7869 = vrot.lane.b32.xlu0 %v4698, 116
    %v7870 = vpop.permute.xlu0 %7869
    %7871 = vrot.lane.b32.xlu0 %v5522, 116
    %v7872 = vpop.permute.xlu0 %7871
    %7873 = vrot.lane.b32.xlu0 %v4776, 116
    %v7874 = vpop.permute.xlu0 %7873
    %7875 = vrot.lane.b32.xlu0 %v4815, 116
    %v7876 = vpop.permute.xlu0 %7875
    %7877 = vrot.lane.b32.xlu0 %v4854, 116
    %v7878 = vpop.permute.xlu0 %7877
    %7879 = vrot.lane.b32.xlu0 %v4893, 116
    %v7880 = vpop.permute.xlu0 %7879
    %7881 = vrot.lane.b32.xlu0 %v5561, 116
    %v7882 = vpop.permute.xlu0 %7881
    %7903 = vrot.lane.b32.xlu0 %v5412, 18
    %v7904 = vpop.permute.xlu0 %7903
    %7905 = vrot.lane.b32.xlu0 %v6019, 18
    %v7906 = vpop.permute.xlu0 %7905
    %7907 = vrot.lane.b32.xlu0 %v5451, 18
    %v7908 = vpop.permute.xlu0 %7907
    %7909 = vrot.lane.b32.xlu0 %v6058, 18
    %v7910 = vpop.permute.xlu0 %7909
    %7915 = vrot.lane.b32.xlu0 %v5522, 30
    %v7916 = vpop.permute.xlu0 %7915
    %7917 = vrot.lane.b32.xlu0 %v6129, 30
    %v7918 = vpop.permute.xlu0 %7917
    %7919 = vrot.lane.b32.xlu0 %v5561, 30
    %v7920 = vpop.permute.xlu0 %7919
    %7921 = vrot.lane.b32.xlu0 %v6168, 30
    %v7922 = vpop.permute.xlu0 %7921
    %7927 = vrot.lane.b32.xlu0 %v5624, 42
    %v7928 = vpop.permute.xlu0 %7927
    %7929 = vrot.lane.b32.xlu0 %v6231, 42
    %v7930 = vpop.permute.xlu0 %7929
    %7931 = vrot.lane.b32.xlu0 %v5655, 42
    %v7932 = vpop.permute.xlu0 %7931
    %7933 = vrot.lane.b32.xlu0 %v6262, 42
    %v7934 = vpop.permute.xlu0 %7933
    %v7939 = vsel %vm5716, %v7864, %v7864
    %v7940 = vsel %vm5716, %v7866, %v7866
    %v7941 = vsel %vm5716, %v7868, %v7868
    %v7942 = vsel %vm5716, %v7870, %v7870
    %v7943 = vsel %vm5716, %v7872, %v7872
    %v7944 = vsel %vm5716, %v7874, %v7874
    %v7945 = vsel %vm5716, %v7876, %v7876
    %v7946 = vsel %vm5716, %v7878, %v7878
    %v7947 = vsel %vm5716, %v7880, %v7880
    %v7948 = vsel %vm5716, %v7882, %v7882
    %v7949 = vsel %vm5727, %v7939, %v4995
    %v7950 = vsel %vm5727, %v7940, %v5026
    %v7951 = vsel %vm5727, %v7941, %v5057
    %v7952 = vsel %vm5727, %v7942, %v5088
    %v7953 = vsel %vm5727, %v7943, %v5624
    %v7954 = vsel %vm5727, %v7944, %v5150
    %v7955 = vsel %vm5727, %v7945, %v5181
    %v7956 = vsel %vm5727, %v7946, %v5212
    %v7957 = vsel %vm5727, %v7947, %v5243
    %v7958 = vsel %vm5727, %v7948, %v5655
    %v7959 = vsel %vm5738, %v7949, %v4995
    %v7960 = vsel %vm5738, %v7950, %v5026
    %v7961 = vsel %vm5738, %v7951, %v5057
    %v7962 = vsel %vm5738, %v7952, %v5088
    %v7963 = vsel %vm5738, %v7953, %v5624
    %v7964 = vsel %vm5738, %v7954, %v5150
    %v7965 = vsel %vm5738, %v7955, %v5181
    %v7966 = vsel %vm5738, %v7956, %v5212
    %v7967 = vsel %vm5738, %v7957, %v5243
    %v7968 = vsel %vm5738, %v7958, %v5655
    %v7969 = vsel %vm5749, %v7959, %v5279
    %v7970 = vsel %vm5749, %v7960, %v5281
    %v7971 = vsel %vm5749, %v7961, %v5283
    %v7972 = vsel %vm5749, %v7962, %v7904
    %v7973 = vsel %vm5749, %v7963, %v7906
    %v7974 = vsel %vm5749, %v7964, %v5289
    %v7975 = vsel %vm5749, %v7965, %v5291
    %v7976 = vsel %vm5749, %v7966, %v5293
    %v7977 = vsel %vm5749, %v7967, %v7908
    %v7978 = vsel %vm5749, %v7968, %v7910
    %v7979 = vsel %vm5760, %v7969, %v5309
    %v7980 = vsel %vm5760, %v7970, %v5311
    %v7981 = vsel %vm5760, %v7971, %v5313
    %v7982 = vsel %vm5760, %v7972, %v7916
    %v7983 = vsel %vm5760, %v7973, %v7918
    %v7984 = vsel %vm5760, %v7974, %v5319
    %v7985 = vsel %vm5760, %v7975, %v5321
    %v7986 = vsel %vm5760, %v7976, %v5323
    %v7987 = vsel %vm5760, %v7977, %v7920
    %v7988 = vsel %vm5760, %v7978, %v7922
    %v7989 = vsel %vm5771, %v7979, %v5309
    %v7990 = vsel %vm5771, %v7980, %v5311
    %v7991 = vsel %vm5771, %v7981, %v5313
    %v7992 = vsel %vm5771, %v7982, %v7916
    %v7993 = vsel %vm5771, %v7983, %v7918
    %v7994 = vsel %vm5771, %v7984, %v5319
    %v7995 = vsel %vm5771, %v7985, %v5321
    %v7996 = vsel %vm5771, %v7986, %v5323
    %v7997 = vsel %vm5771, %v7987, %v7920
    %v7998 = vsel %vm5771, %v7988, %v7922
    %v7999 = vsel %vm5782, %v7989, %v5339
    %v8000 = vsel %vm5782, %v7990, %v5341
    %v8001 = vsel %vm5782, %v7991, %v5343
    %v8002 = vsel %vm5782, %v7992, %v7928
    %v8003 = vsel %vm5782, %v7993, %v7930
    %v8004 = vsel %vm5782, %v7994, %v5349
    %v8005 = vsel %vm5782, %v7995, %v5351
    %v8006 = vsel %vm5782, %v7996, %v5353
    %v8007 = vsel %vm5782, %v7997, %v7932
    %v8008 = vsel %vm5782, %v7998, %v7934
    %v8009 = vsel %vm5793, %v7999, %v5339
    %v8010 = vsel %vm5793, %v8000, %v5341
    %v8011 = vsel %vm5793, %v8001, %v5343
    %v8012 = vsel %vm5793, %v8002, %v7928
    %v8013 = vsel %vm5793, %v8003, %v7930
    %v8014 = vsel %vm5793, %v8004, %v5349
    %v8015 = vsel %vm5793, %v8005, %v5351
    %v8016 = vsel %vm5793, %v8006, %v5353
    %v8017 = vsel %vm5793, %v8007, %v7932
    %v8018 = vsel %vm5793, %v8008, %v7934
    %8029 = vrot.lane.b32.xlu0 %v8009, 96
    %v8030 = vpop.permute.xlu0 %8029
    %8031 = vrot.lane.b32.xlu0 %v8010, 96
    %v8032 = vpop.permute.xlu0 %8031
    %8033 = vrot.lane.b32.xlu0 %v8011, 96
    %v8034 = vpop.permute.xlu0 %8033
    %8035 = vrot.lane.b32.xlu0 %v8012, 96
    %v8036 = vpop.permute.xlu0 %8035
    %8037 = vrot.lane.b32.xlu0 %v8013, 96
    %v8038 = vpop.permute.xlu0 %8037
    %8039 = vrot.lane.b32.xlu0 %v8014, 96
    %v8040 = vpop.permute.xlu0 %8039
    %8041 = vrot.lane.b32.xlu0 %v8015, 96
    %v8042 = vpop.permute.xlu0 %8041
    %8043 = vrot.lane.b32.xlu0 %v8016, 96
    %v8044 = vpop.permute.xlu0 %8043
    %8045 = vrot.lane.b32.xlu0 %v8017, 96
    %v8046 = vpop.permute.xlu0 %8045
    %8047 = vrot.lane.b32.xlu0 %v8018, 96
    %v8048 = vpop.permute.xlu0 %8047
    %v8059 = vsel %vm6413, %v7853, %v8030
    %v8060 = vsel %vm6413, %v7854, %v8032
    %v8061 = vsel %vm6413, %v7855, %v8034
    %v8062 = vsel %vm6413, %v7856, %v8036
    %v8063 = vsel %vm6413, %v7857, %v8038
    %v8064 = vsel %vm6413, %v7858, %v8040
    %v8065 = vsel %vm6413, %v7859, %v8042
    %v8066 = vsel %vm6413, %v7860, %v8044
    %v8067 = vsel %vm6413, %v7861, %v8046
    %v8068 = vsel %vm6413, %v7862, %v8048
    %v8079 = vcombine.low %v8059, %v8030
    %v8080 = vcombine.high %v8059, %v8030
    %v8082 = vunpack.c.l.s4 1966171168
    %v8083 = vunpack.c.0.s8 %v8082
    %v8084 = vlaneseq
    %v8085 = vshrl.u32 %v8084, 7
    %v8086 = vsub.s32 %v8083, %v8085
    %v8087 = vrot.slane %v8079, %v8086
    %v8089 = vunpack.c.l.s4 1966171168
    %v8090 = vunpack.c.0.s8 %v8089
    %v8091 = vlaneseq
    %v8092 = vshrl.u32 %v8091, 7
    %v8093 = vsub.s32 %v8090, %v8092
    %v8094 = vrot.slane %v8080, %v8093
    %v8095 = vcombine.high %v8087, %v8087
    %v8097 = vunpack.c.l.s4 1966171168
    %v8098 = vunpack.c.0.s8 %v8097
    %v8099 = vlaneseq
    %v8100 = vshrl.u32 %v8099, 7
    %v8101 = vsub.s32 %v8098, %v8100
    %v8102 = vrot.slane %v8087, %v8101
    %v8104 = vunpack.c.l.s4 1966171168
    %v8105 = vunpack.c.0.s8 %v8104
    %v8106 = vlaneseq
    %v8107 = vshrl.u32 %v8106, 7
    %v8108 = vsub.s32 %v8105, %v8107
    %v8109 = vrot.slane %v8094, %v8108
    %v8111 = vunpack.c.l.s4 1966171168
    %v8112 = vunpack.c.0.s8 %v8111
    %v8113 = vlaneseq
    %v8114 = vshrl.u32 %v8113, 7
    %v8115 = vsub.s32 %v8112, %v8114
    %v8116 = vrot.slane %v8095, %v8115
    %v8117 = vcombine.high %v8102, %v8102
    %v8118 = vcombine.high %v8116, %v8116
    %v8119 = vcombine.low %v8060, %v8032
    %v8120 = vcombine.high %v8060, %v8032
    %v8122 = vunpack.c.l.s4 1966171168
    %v8123 = vunpack.c.0.s8 %v8122
    %v8124 = vlaneseq
    %v8125 = vshrl.u32 %v8124, 7
    %v8126 = vsub.s32 %v8123, %v8125
    %v8127 = vrot.slane %v8119, %v8126
    %v8129 = vunpack.c.l.s4 1966171168
    %v8130 = vunpack.c.0.s8 %v8129
    %v8131 = vlaneseq
    %v8132 = vshrl.u32 %v8131, 7
    %v8133 = vsub.s32 %v8130, %v8132
    %v8134 = vrot.slane %v8120, %v8133
    %v8135 = vcombine.high %v8127, %v8127
    %v8137 = vunpack.c.l.s4 1966171168
    %v8138 = vunpack.c.0.s8 %v8137
    %v8139 = vlaneseq
    %v8140 = vshrl.u32 %v8139, 7
    %v8141 = vsub.s32 %v8138, %v8140
    %v8142 = vrot.slane %v8127, %v8141
    %v8144 = vunpack.c.l.s4 1966171168
    %v8145 = vunpack.c.0.s8 %v8144
    %v8146 = vlaneseq
    %v8147 = vshrl.u32 %v8146, 7
    %v8148 = vsub.s32 %v8145, %v8147
    %v8149 = vrot.slane %v8134, %v8148
    %v8151 = vunpack.c.l.s4 1966171168
    %v8152 = vunpack.c.0.s8 %v8151
    %v8153 = vlaneseq
    %v8154 = vshrl.u32 %v8153, 7
    %v8155 = vsub.s32 %v8152, %v8154
    %v8156 = vrot.slane %v8135, %v8155
    %v8157 = vcombine.high %v8142, %v8142
    %v8158 = vcombine.high %v8156, %v8156
    %v8159 = vcombine.low %v8061, %v8034
    %v8160 = vcombine.high %v8061, %v8034
    %v8162 = vunpack.c.l.s4 1966171168
    %v8163 = vunpack.c.0.s8 %v8162
    %v8164 = vlaneseq
    %v8165 = vshrl.u32 %v8164, 7
    %v8166 = vsub.s32 %v8163, %v8165
    %v8167 = vrot.slane %v8159, %v8166
    %v8169 = vunpack.c.l.s4 1966171168
    %v8170 = vunpack.c.0.s8 %v8169
    %v8171 = vlaneseq
    %v8172 = vshrl.u32 %v8171, 7
    %v8173 = vsub.s32 %v8170, %v8172
    %v8174 = vrot.slane %v8160, %v8173
    %v8175 = vcombine.high %v8167, %v8167
    %v8177 = vunpack.c.l.s4 1966171168
    %v8178 = vunpack.c.0.s8 %v8177
    %v8179 = vlaneseq
    %v8180 = vshrl.u32 %v8179, 7
    %v8181 = vsub.s32 %v8178, %v8180
    %v8182 = vrot.slane %v8167, %v8181
    %v8184 = vunpack.c.l.s4 1966171168
    %v8185 = vunpack.c.0.s8 %v8184
    %v8186 = vlaneseq
    %v8187 = vshrl.u32 %v8186, 7
    %v8188 = vsub.s32 %v8185, %v8187
    %v8189 = vrot.slane %v8174, %v8188
    %v8191 = vunpack.c.l.s4 1966171168
    %v8192 = vunpack.c.0.s8 %v8191
    %v8193 = vlaneseq
    %v8194 = vshrl.u32 %v8193, 7
    %v8195 = vsub.s32 %v8192, %v8194
    %v8196 = vrot.slane %v8175, %v8195
    %v8197 = vcombine.high %v8182, %v8182
    %v8198 = vcombine.high %v8196, %v8196
    %v8199 = vcombine.low %v8062, %v8036
    %v8200 = vcombine.high %v8062, %v8036
    %v8202 = vunpack.c.l.s4 1966171168
    %v8203 = vunpack.c.0.s8 %v8202
    %v8204 = vlaneseq
    %v8205 = vshrl.u32 %v8204, 7
    %v8206 = vsub.s32 %v8203, %v8205
    %v8207 = vrot.slane %v8199, %v8206
    %v8209 = vunpack.c.l.s4 1966171168
    %v8210 = vunpack.c.0.s8 %v8209
    %v8211 = vlaneseq
    %v8212 = vshrl.u32 %v8211, 7
    %v8213 = vsub.s32 %v8210, %v8212
    %v8214 = vrot.slane %v8200, %v8213
    %v8215 = vcombine.high %v8207, %v8207
    %v8217 = vunpack.c.l.s4 1966171168
    %v8218 = vunpack.c.0.s8 %v8217
    %v8219 = vlaneseq
    %v8220 = vshrl.u32 %v8219, 7
    %v8221 = vsub.s32 %v8218, %v8220
    %v8222 = vrot.slane %v8207, %v8221
    %v8224 = vunpack.c.l.s4 1966171168
    %v8225 = vunpack.c.0.s8 %v8224
    %v8226 = vlaneseq
    %v8227 = vshrl.u32 %v8226, 7
    %v8228 = vsub.s32 %v8225, %v8227
    %v8229 = vrot.slane %v8214, %v8228
    %v8231 = vunpack.c.l.s4 1966171168
    %v8232 = vunpack.c.0.s8 %v8231
    %v8233 = vlaneseq
    %v8234 = vshrl.u32 %v8233, 7
    %v8235 = vsub.s32 %v8232, %v8234
    %v8236 = vrot.slane %v8215, %v8235
    %v8237 = vcombine.high %v8222, %v8222
    %v8238 = vcombine.high %v8236, %v8236
    %v8239 = vcombine.low %v8063, %v8038
    %v8240 = vcombine.high %v8063, %v8038
    %v8242 = vunpack.c.l.s4 1966171168
    %v8243 = vunpack.c.0.s8 %v8242
    %v8244 = vlaneseq
    %v8245 = vshrl.u32 %v8244, 7
    %v8246 = vsub.s32 %v8243, %v8245
    %v8247 = vrot.slane %v8239, %v8246
    %v8249 = vunpack.c.l.s4 1966171168
    %v8250 = vunpack.c.0.s8 %v8249
    %v8251 = vlaneseq
    %v8252 = vshrl.u32 %v8251, 7
    %v8253 = vsub.s32 %v8250, %v8252
    %v8254 = vrot.slane %v8240, %v8253
    %v8255 = vcombine.high %v8247, %v8247
    %v8257 = vunpack.c.l.s4 1966171168
    %v8258 = vunpack.c.0.s8 %v8257
    %v8259 = vlaneseq
    %v8260 = vshrl.u32 %v8259, 7
    %v8261 = vsub.s32 %v8258, %v8260
    %v8262 = vrot.slane %v8247, %v8261
    %v8264 = vunpack.c.l.s4 1966171168
    %v8265 = vunpack.c.0.s8 %v8264
    %v8266 = vlaneseq
    %v8267 = vshrl.u32 %v8266, 7
    %v8268 = vsub.s32 %v8265, %v8267
    %v8269 = vrot.slane %v8254, %v8268
    %v8271 = vunpack.c.l.s4 1966171168
    %v8272 = vunpack.c.0.s8 %v8271
    %v8273 = vlaneseq
    %v8274 = vshrl.u32 %v8273, 7
    %v8275 = vsub.s32 %v8272, %v8274
    %v8276 = vrot.slane %v8255, %v8275
    %v8277 = vcombine.high %v8262, %v8262
    %v8278 = vcombine.high %v8276, %v8276
    %v8279 = vcombine.low %v8064, %v8040
    %v8280 = vcombine.high %v8064, %v8040
    %v8282 = vunpack.c.l.s4 1966171168
    %v8283 = vunpack.c.0.s8 %v8282
    %v8284 = vlaneseq
    %v8285 = vshrl.u32 %v8284, 7
    %v8286 = vsub.s32 %v8283, %v8285
    %v8287 = vrot.slane %v8279, %v8286
    %v8289 = vunpack.c.l.s4 1966171168
    %v8290 = vunpack.c.0.s8 %v8289
    %v8291 = vlaneseq
    %v8292 = vshrl.u32 %v8291, 7
    %v8293 = vsub.s32 %v8290, %v8292
    %v8294 = vrot.slane %v8280, %v8293
    %v8295 = vcombine.high %v8287, %v8287
    %v8297 = vunpack.c.l.s4 1966171168
    %v8298 = vunpack.c.0.s8 %v8297
    %v8299 = vlaneseq
    %v8300 = vshrl.u32 %v8299, 7
    %v8301 = vsub.s32 %v8298, %v8300
    %v8302 = vrot.slane %v8287, %v8301
    %v8304 = vunpack.c.l.s4 1966171168
    %v8305 = vunpack.c.0.s8 %v8304
    %v8306 = vlaneseq
    %v8307 = vshrl.u32 %v8306, 7
    %v8308 = vsub.s32 %v8305, %v8307
    %v8309 = vrot.slane %v8294, %v8308
    %v8311 = vunpack.c.l.s4 1966171168
    %v8312 = vunpack.c.0.s8 %v8311
    %v8313 = vlaneseq
    %v8314 = vshrl.u32 %v8313, 7
    %v8315 = vsub.s32 %v8312, %v8314
    %v8316 = vrot.slane %v8295, %v8315
    %v8317 = vcombine.high %v8302, %v8302
    %v8318 = vcombine.high %v8316, %v8316
    %v8319 = vcombine.low %v8065, %v8042
    %v8320 = vcombine.high %v8065, %v8042
    %v8322 = vunpack.c.l.s4 1966171168
    %v8323 = vunpack.c.0.s8 %v8322
    %v8324 = vlaneseq
    %v8325 = vshrl.u32 %v8324, 7
    %v8326 = vsub.s32 %v8323, %v8325
    %v8327 = vrot.slane %v8319, %v8326
    %v8329 = vunpack.c.l.s4 1966171168
    %v8330 = vunpack.c.0.s8 %v8329
    %v8331 = vlaneseq
    %v8332 = vshrl.u32 %v8331, 7
    %v8333 = vsub.s32 %v8330, %v8332
    %v8334 = vrot.slane %v8320, %v8333
    %v8335 = vcombine.high %v8327, %v8327
    %v8337 = vunpack.c.l.s4 1966171168
    %v8338 = vunpack.c.0.s8 %v8337
    %v8339 = vlaneseq
    %v8340 = vshrl.u32 %v8339, 7
    %v8341 = vsub.s32 %v8338, %v8340
    %v8342 = vrot.slane %v8327, %v8341
    %v8344 = vunpack.c.l.s4 1966171168
    %v8345 = vunpack.c.0.s8 %v8344
    %v8346 = vlaneseq
    %v8347 = vshrl.u32 %v8346, 7
    %v8348 = vsub.s32 %v8345, %v8347
    %v8349 = vrot.slane %v8334, %v8348
    %v8351 = vunpack.c.l.s4 1966171168
    %v8352 = vunpack.c.0.s8 %v8351
    %v8353 = vlaneseq
    %v8354 = vshrl.u32 %v8353, 7
    %v8355 = vsub.s32 %v8352, %v8354
    %v8356 = vrot.slane %v8335, %v8355
    %v8357 = vcombine.high %v8342, %v8342
    %v8358 = vcombine.high %v8356, %v8356
    %v8359 = vcombine.low %v8066, %v8044
    %v8360 = vcombine.high %v8066, %v8044
    %v8362 = vunpack.c.l.s4 1966171168
    %v8363 = vunpack.c.0.s8 %v8362
    %v8364 = vlaneseq
    %v8365 = vshrl.u32 %v8364, 7
    %v8366 = vsub.s32 %v8363, %v8365
    %v8367 = vrot.slane %v8359, %v8366
    %v8369 = vunpack.c.l.s4 1966171168
    %v8370 = vunpack.c.0.s8 %v8369
    %v8371 = vlaneseq
    %v8372 = vshrl.u32 %v8371, 7
    %v8373 = vsub.s32 %v8370, %v8372
    %v8374 = vrot.slane %v8360, %v8373
    %v8375 = vcombine.high %v8367, %v8367
    %v8377 = vunpack.c.l.s4 1966171168
    %v8378 = vunpack.c.0.s8 %v8377
    %v8379 = vlaneseq
    %v8380 = vshrl.u32 %v8379, 7
    %v8381 = vsub.s32 %v8378, %v8380
    %v8382 = vrot.slane %v8367, %v8381
    %v8384 = vunpack.c.l.s4 1966171168
    %v8385 = vunpack.c.0.s8 %v8384
    %v8386 = vlaneseq
    %v8387 = vshrl.u32 %v8386, 7
    %v8388 = vsub.s32 %v8385, %v8387
    %v8389 = vrot.slane %v8374, %v8388
    %v8391 = vunpack.c.l.s4 1966171168
    %v8392 = vunpack.c.0.s8 %v8391
    %v8393 = vlaneseq
    %v8394 = vshrl.u32 %v8393, 7
    %v8395 = vsub.s32 %v8392, %v8394
    %v8396 = vrot.slane %v8375, %v8395
    %v8397 = vcombine.high %v8382, %v8382
    %v8398 = vcombine.high %v8396, %v8396
    %v8399 = vcombine.low %v8067, %v8046
    %v8400 = vcombine.high %v8067, %v8046
    %v8402 = vunpack.c.l.s4 1966171168
    %v8403 = vunpack.c.0.s8 %v8402
    %v8404 = vlaneseq
    %v8405 = vshrl.u32 %v8404, 7
    %v8406 = vsub.s32 %v8403, %v8405
    %v8407 = vrot.slane %v8399, %v8406
    %v8409 = vunpack.c.l.s4 1966171168
    %v8410 = vunpack.c.0.s8 %v8409
    %v8411 = vlaneseq
    %v8412 = vshrl.u32 %v8411, 7
    %v8413 = vsub.s32 %v8410, %v8412
    %v8414 = vrot.slane %v8400, %v8413
    %v8415 = vcombine.high %v8407, %v8407
    %v8417 = vunpack.c.l.s4 1966171168
    %v8418 = vunpack.c.0.s8 %v8417
    %v8419 = vlaneseq
    %v8420 = vshrl.u32 %v8419, 7
    %v8421 = vsub.s32 %v8418, %v8420
    %v8422 = vrot.slane %v8407, %v8421
    %v8424 = vunpack.c.l.s4 1966171168
    %v8425 = vunpack.c.0.s8 %v8424
    %v8426 = vlaneseq
    %v8427 = vshrl.u32 %v8426, 7
    %v8428 = vsub.s32 %v8425, %v8427
    %v8429 = vrot.slane %v8414, %v8428
    %v8431 = vunpack.c.l.s4 1966171168
    %v8432 = vunpack.c.0.s8 %v8431
    %v8433 = vlaneseq
    %v8434 = vshrl.u32 %v8433, 7
    %v8435 = vsub.s32 %v8432, %v8434
    %v8436 = vrot.slane %v8415, %v8435
    %v8437 = vcombine.high %v8422, %v8422
    %v8438 = vcombine.high %v8436, %v8436
    %v8439 = vcombine.low %v8068, %v8048
    %v8440 = vcombine.high %v8068, %v8048
    %v8442 = vunpack.c.l.s4 1966171168
    %v8443 = vunpack.c.0.s8 %v8442
    %v8444 = vlaneseq
    %v8445 = vshrl.u32 %v8444, 7
    %v8446 = vsub.s32 %v8443, %v8445
    %v8447 = vrot.slane %v8439, %v8446
    %v8449 = vunpack.c.l.s4 1966171168
    %v8450 = vunpack.c.0.s8 %v8449
    %v8451 = vlaneseq
    %v8452 = vshrl.u32 %v8451, 7
    %v8453 = vsub.s32 %v8450, %v8452
    %v8454 = vrot.slane %v8440, %v8453
    %v8455 = vcombine.high %v8447, %v8447
    %v8457 = vunpack.c.l.s4 1966171168
    %v8458 = vunpack.c.0.s8 %v8457
    %v8459 = vlaneseq
    %v8460 = vshrl.u32 %v8459, 7
    %v8461 = vsub.s32 %v8458, %v8460
    %v8462 = vrot.slane %v8447, %v8461
    %v8464 = vunpack.c.l.s4 1966171168
    %v8465 = vunpack.c.0.s8 %v8464
    %v8466 = vlaneseq
    %v8467 = vshrl.u32 %v8466, 7
    %v8468 = vsub.s32 %v8465, %v8467
    %v8469 = vrot.slane %v8454, %v8468
    %v8471 = vunpack.c.l.s4 1966171168
    %v8472 = vunpack.c.0.s8 %v8471
    %v8473 = vlaneseq
    %v8474 = vshrl.u32 %v8473, 7
    %v8475 = vsub.s32 %v8472, %v8474
    %v8476 = vrot.slane %v8455, %v8475
    %v8477 = vcombine.high %v8462, %v8462
    %v8478 = vcombine.high %v8476, %v8476
    %v8479 = vcombine.low %v8102, %v8116
    %v8480 = vcombine.low %v8117, %v8118
    %v8481 = vcombine.low %v8109, %v8142
    %v8482 = vcombine.low %v8156, %v8157
    %v8484 = vunpack.c.l.s4 1966171168
    %v8485 = vunpack.c.0.s8 %v8484
    %v8486 = vlaneseq
    %v8487 = vshrl.u32 %v8486, 7
    %v8488 = vsub.s32 %v8485, %v8487
    %v8489 = vrot.slane %v8479, %v8488
    %v8491 = vunpack.c.l.s4 1966171168
    %v8492 = vunpack.c.0.s8 %v8491
    %v8493 = vlaneseq
    %v8494 = vshrl.u32 %v8493, 7
    %v8495 = vsub.s32 %v8492, %v8494
    %v8496 = vrot.slane %v8480, %v8495
    %v8498 = vunpack.c.l.s4 1966171168
    %v8499 = vunpack.c.0.s8 %v8498
    %v8500 = vlaneseq
    %v8501 = vshrl.u32 %v8500, 7
    %v8502 = vsub.s32 %v8499, %v8501
    %v8503 = vrot.slane %v8481, %v8502
    %v8505 = vunpack.c.l.s4 1966171168
    %v8506 = vunpack.c.0.s8 %v8505
    %v8507 = vlaneseq
    %v8508 = vshrl.u32 %v8507, 7
    %v8509 = vsub.s32 %v8506, %v8508
    %v8510 = vrot.slane %v8482, %v8509
    %v8511 = vcombine.low %v8489, %v8496
    %v8512 = vcombine.high %v8489, %v8496
    %v8513 = vcombine.low %v8503, %v8510
    %v8514 = vcombine.high %v8503, %v8510
    %v8516 = vunpack.c.l.s4 1966171168
    %v8517 = vunpack.c.0.s8 %v8516
    %v8518 = vlaneseq
    %v8519 = vshrl.u32 %v8518, 7
    %v8520 = vsub.s32 %v8517, %v8519
    %v8521 = vrot.slane %v8511, %v8520
    %v8523 = vunpack.c.l.s4 1966171168
    %v8524 = vunpack.c.0.s8 %v8523
    %v8525 = vlaneseq
    %v8526 = vshrl.u32 %v8525, 7
    %v8527 = vsub.s32 %v8524, %v8526
    %v8528 = vrot.slane %v8512, %v8527
    %v8530 = vunpack.c.l.s4 1966171168
    %v8531 = vunpack.c.0.s8 %v8530
    %v8532 = vlaneseq
    %v8533 = vshrl.u32 %v8532, 7
    %v8534 = vsub.s32 %v8531, %v8533
    %v8535 = vrot.slane %v8513, %v8534
    %v8537 = vunpack.c.l.s4 1966171168
    %v8538 = vunpack.c.0.s8 %v8537
    %v8539 = vlaneseq
    %v8540 = vshrl.u32 %v8539, 7
    %v8541 = vsub.s32 %v8538, %v8540
    %v8542 = vrot.slane %v8514, %v8541
    %v8543 = vcombine.low %v8521, %v8535
    %v8544 = vcombine.low %v8528, %v8542
    %v8545 = vcombine.low %v8158, %v8149
    %v8546 = vcombine.low %v8182, %v8196
    %v8547 = vcombine.low %v8197, %v8198
    %v8548 = vcombine.low %v8189, %v8222
    %v8550 = vunpack.c.l.s4 1966171168
    %v8551 = vunpack.c.0.s8 %v8550
    %v8552 = vlaneseq
    %v8553 = vshrl.u32 %v8552, 7
    %v8554 = vsub.s32 %v8551, %v8553
    %v8555 = vrot.slane %v8545, %v8554
    %v8557 = vunpack.c.l.s4 1966171168
    %v8558 = vunpack.c.0.s8 %v8557
    %v8559 = vlaneseq
    %v8560 = vshrl.u32 %v8559, 7
    %v8561 = vsub.s32 %v8558, %v8560
    %v8562 = vrot.slane %v8546, %v8561
    %v8564 = vunpack.c.l.s4 1966171168
    %v8565 = vunpack.c.0.s8 %v8564
    %v8566 = vlaneseq
    %v8567 = vshrl.u32 %v8566, 7
    %v8568 = vsub.s32 %v8565, %v8567
    %v8569 = vrot.slane %v8547, %v8568
    %v8571 = vunpack.c.l.s4 1966171168
    %v8572 = vunpack.c.0.s8 %v8571
    %v8573 = vlaneseq
    %v8574 = vshrl.u32 %v8573, 7
    %v8575 = vsub.s32 %v8572, %v8574
    %v8576 = vrot.slane %v8548, %v8575
    %v8577 = vcombine.low %v8555, %v8562
    %v8578 = vcombine.high %v8555, %v8562
    %v8579 = vcombine.low %v8569, %v8576
    %v8580 = vcombine.high %v8569, %v8576
    %v8582 = vunpack.c.l.s4 1966171168
    %v8583 = vunpack.c.0.s8 %v8582
    %v8584 = vlaneseq
    %v8585 = vshrl.u32 %v8584, 7
    %v8586 = vsub.s32 %v8583, %v8585
    %v8587 = vrot.slane %v8577, %v8586
    %v8589 = vunpack.c.l.s4 1966171168
    %v8590 = vunpack.c.0.s8 %v8589
    %v8591 = vlaneseq
    %v8592 = vshrl.u32 %v8591, 7
    %v8593 = vsub.s32 %v8590, %v8592
    %v8594 = vrot.slane %v8578, %v8593
    %v8596 = vunpack.c.l.s4 1966171168
    %v8597 = vunpack.c.0.s8 %v8596
    %v8598 = vlaneseq
    %v8599 = vshrl.u32 %v8598, 7
    %v8600 = vsub.s32 %v8597, %v8599
    %v8601 = vrot.slane %v8579, %v8600
    %v8603 = vunpack.c.l.s4 1966171168
    %v8604 = vunpack.c.0.s8 %v8603
    %v8605 = vlaneseq
    %v8606 = vshrl.u32 %v8605, 7
    %v8607 = vsub.s32 %v8604, %v8606
    %v8608 = vrot.slane %v8580, %v8607
    %v8609 = vcombine.low %v8587, %v8601
    %v8610 = vcombine.low %v8594, %v8608
    %v8611 = vcombine.low %v8236, %v8237
    %v8612 = vcombine.low %v8238, %v8229
    %v8613 = vcombine.low %v8262, %v8276
    %v8614 = vcombine.low %v8277, %v8278
    %v8616 = vunpack.c.l.s4 1966171168
    %v8617 = vunpack.c.0.s8 %v8616
    %v8618 = vlaneseq
    %v8619 = vshrl.u32 %v8618, 7
    %v8620 = vsub.s32 %v8617, %v8619
    %v8621 = vrot.slane %v8611, %v8620
    %v8623 = vunpack.c.l.s4 1966171168
    %v8624 = vunpack.c.0.s8 %v8623
    %v8625 = vlaneseq
    %v8626 = vshrl.u32 %v8625, 7
    %v8627 = vsub.s32 %v8624, %v8626
    %v8628 = vrot.slane %v8612, %v8627
    %v8630 = vunpack.c.l.s4 1966171168
    %v8631 = vunpack.c.0.s8 %v8630
    %v8632 = vlaneseq
    %v8633 = vshrl.u32 %v8632, 7
    %v8634 = vsub.s32 %v8631, %v8633
    %v8635 = vrot.slane %v8613, %v8634
    %v8637 = vunpack.c.l.s4 1966171168
    %v8638 = vunpack.c.0.s8 %v8637
    %v8639 = vlaneseq
    %v8640 = vshrl.u32 %v8639, 7
    %v8641 = vsub.s32 %v8638, %v8640
    %v8642 = vrot.slane %v8614, %v8641
    %v8643 = vcombine.low %v8621, %v8628
    %v8644 = vcombine.high %v8621, %v8628
    %v8645 = vcombine.low %v8635, %v8642
    %v8646 = vcombine.high %v8635, %v8642
    %v8648 = vunpack.c.l.s4 1966171168
    %v8649 = vunpack.c.0.s8 %v8648
    %v8650 = vlaneseq
    %v8651 = vshrl.u32 %v8650, 7
    %v8652 = vsub.s32 %v8649, %v8651
    %v8653 = vrot.slane %v8643, %v8652
    %v8655 = vunpack.c.l.s4 1966171168
    %v8656 = vunpack.c.0.s8 %v8655
    %v8657 = vlaneseq
    %v8658 = vshrl.u32 %v8657, 7
    %v8659 = vsub.s32 %v8656, %v8658
    %v8660 = vrot.slane %v8644, %v8659
    %v8662 = vunpack.c.l.s4 1966171168
    %v8663 = vunpack.c.0.s8 %v8662
    %v8664 = vlaneseq
    %v8665 = vshrl.u32 %v8664, 7
    %v8666 = vsub.s32 %v8663, %v8665
    %v8667 = vrot.slane %v8645, %v8666
    %v8669 = vunpack.c.l.s4 1966171168
    %v8670 = vunpack.c.0.s8 %v8669
    %v8671 = vlaneseq
    %v8672 = vshrl.u32 %v8671, 7
    %v8673 = vsub.s32 %v8670, %v8672
    %v8674 = vrot.slane %v8646, %v8673
    %v8675 = vcombine.low %v8653, %v8667
    %v8676 = vcombine.low %v8660, %v8674
    %v8677 = vcombine.low %v8269, %v8302
    %v8678 = vcombine.low %v8316, %v8317
    %v8679 = vcombine.low %v8318, %v8309
    %v8680 = vcombine.low %v8342, %v8356
    %v8682 = vunpack.c.l.s4 1966171168
    %v8683 = vunpack.c.0.s8 %v8682
    %v8684 = vlaneseq
    %v8685 = vshrl.u32 %v8684, 7
    %v8686 = vsub.s32 %v8683, %v8685
    %v8687 = vrot.slane %v8677, %v8686
    %v8689 = vunpack.c.l.s4 1966171168
    %v8690 = vunpack.c.0.s8 %v8689
    %v8691 = vlaneseq
    %v8692 = vshrl.u32 %v8691, 7
    %v8693 = vsub.s32 %v8690, %v8692
    %v8694 = vrot.slane %v8678, %v8693
    %v8696 = vunpack.c.l.s4 1966171168
    %v8697 = vunpack.c.0.s8 %v8696
    %v8698 = vlaneseq
    %v8699 = vshrl.u32 %v8698, 7
    %v8700 = vsub.s32 %v8697, %v8699
    %v8701 = vrot.slane %v8679, %v8700
    %v8703 = vunpack.c.l.s4 1966171168
    %v8704 = vunpack.c.0.s8 %v8703
    %v8705 = vlaneseq
    %v8706 = vshrl.u32 %v8705, 7
    %v8707 = vsub.s32 %v8704, %v8706
    %v8708 = vrot.slane %v8680, %v8707
    %v8709 = vcombine.low %v8687, %v8694
    %v8710 = vcombine.high %v8687, %v8694
    %v8711 = vcombine.low %v8701, %v8708
    %v8712 = vcombine.high %v8701, %v8708
    %v8714 = vunpack.c.l.s4 1966171168
    %v8715 = vunpack.c.0.s8 %v8714
    %v8716 = vlaneseq
    %v8717 = vshrl.u32 %v8716, 7
    %v8718 = vsub.s32 %v8715, %v8717
    %v8719 = vrot.slane %v8709, %v8718
    %v8721 = vunpack.c.l.s4 1966171168
    %v8722 = vunpack.c.0.s8 %v8721
    %v8723 = vlaneseq
    %v8724 = vshrl.u32 %v8723, 7
    %v8725 = vsub.s32 %v8722, %v8724
    %v8726 = vrot.slane %v8710, %v8725
    %v8728 = vunpack.c.l.s4 1966171168
    %v8729 = vunpack.c.0.s8 %v8728
    %v8730 = vlaneseq
    %v8731 = vshrl.u32 %v8730, 7
    %v8732 = vsub.s32 %v8729, %v8731
    %v8733 = vrot.slane %v8711, %v8732
    %v8735 = vunpack.c.l.s4 1966171168
    %v8736 = vunpack.c.0.s8 %v8735
    %v8737 = vlaneseq
    %v8738 = vshrl.u32 %v8737, 7
    %v8739 = vsub.s32 %v8736, %v8738
    %v8740 = vrot.slane %v8712, %v8739
    %v8741 = vcombine.low %v8719, %v8733
    %v8742 = vcombine.low %v8726, %v8740
    %v8743 = vcombine.low %v8357, %v8358
    %v8744 = vcombine.low %v8349, %v8382
    %v8745 = vcombine.low %v8396, %v8397
    %v8746 = vcombine.low %v8398, %v8389
    %v8748 = vunpack.c.l.s4 1966171168
    %v8749 = vunpack.c.0.s8 %v8748
    %v8750 = vlaneseq
    %v8751 = vshrl.u32 %v8750, 7
    %v8752 = vsub.s32 %v8749, %v8751
    %v8753 = vrot.slane %v8743, %v8752
    %v8755 = vunpack.c.l.s4 1966171168
    %v8756 = vunpack.c.0.s8 %v8755
    %v8757 = vlaneseq
    %v8758 = vshrl.u32 %v8757, 7
    %v8759 = vsub.s32 %v8756, %v8758
    %v8760 = vrot.slane %v8744, %v8759
    %v8762 = vunpack.c.l.s4 1966171168
    %v8763 = vunpack.c.0.s8 %v8762
    %v8764 = vlaneseq
    %v8765 = vshrl.u32 %v8764, 7
    %v8766 = vsub.s32 %v8763, %v8765
    %v8767 = vrot.slane %v8745, %v8766
    %v8769 = vunpack.c.l.s4 1966171168
    %v8770 = vunpack.c.0.s8 %v8769
    %v8771 = vlaneseq
    %v8772 = vshrl.u32 %v8771, 7
    %v8773 = vsub.s32 %v8770, %v8772
    %v8774 = vrot.slane %v8746, %v8773
    %v8775 = vcombine.low %v8753, %v8760
    %v8776 = vcombine.high %v8753, %v8760
    %v8777 = vcombine.low %v8767, %v8774
    %v8778 = vcombine.high %v8767, %v8774
    %v8780 = vunpack.c.l.s4 1966171168
    %v8781 = vunpack.c.0.s8 %v8780
    %v8782 = vlaneseq
    %v8783 = vshrl.u32 %v8782, 7
    %v8784 = vsub.s32 %v8781, %v8783
    %v8785 = vrot.slane %v8775, %v8784
    %v8787 = vunpack.c.l.s4 1966171168
    %v8788 = vunpack.c.0.s8 %v8787
    %v8789 = vlaneseq
    %v8790 = vshrl.u32 %v8789, 7
    %v8791 = vsub.s32 %v8788, %v8790
    %v8792 = vrot.slane %v8776, %v8791
    %v8794 = vunpack.c.l.s4 1966171168
    %v8795 = vunpack.c.0.s8 %v8794
    %v8796 = vlaneseq
    %v8797 = vshrl.u32 %v8796, 7
    %v8798 = vsub.s32 %v8795, %v8797
    %v8799 = vrot.slane %v8777, %v8798
    %v8801 = vunpack.c.l.s4 1966171168
    %v8802 = vunpack.c.0.s8 %v8801
    %v8803 = vlaneseq
    %v8804 = vshrl.u32 %v8803, 7
    %v8805 = vsub.s32 %v8802, %v8804
    %v8806 = vrot.slane %v8778, %v8805
    %v8807 = vcombine.low %v8785, %v8799
    %v8808 = vcombine.low %v8792, %v8806
    %v8809 = vcombine.low %v8422, %v8436
    %v8810 = vcombine.low %v8437, %v8438
    %v8811 = vcombine.low %v8429, %v8462
    %v8812 = vcombine.low %v8476, %v8477
    %v8814 = vunpack.c.l.s4 1966171168
    %v8815 = vunpack.c.0.s8 %v8814
    %v8816 = vlaneseq
    %v8817 = vshrl.u32 %v8816, 7
    %v8818 = vsub.s32 %v8815, %v8817
    %v8819 = vrot.slane %v8809, %v8818
    %v8821 = vunpack.c.l.s4 1966171168
    %v8822 = vunpack.c.0.s8 %v8821
    %v8823 = vlaneseq
    %v8824 = vshrl.u32 %v8823, 7
    %v8825 = vsub.s32 %v8822, %v8824
    %v8826 = vrot.slane %v8810, %v8825
    %v8828 = vunpack.c.l.s4 1966171168
    %v8829 = vunpack.c.0.s8 %v8828
    %v8830 = vlaneseq
    %v8831 = vshrl.u32 %v8830, 7
    %v8832 = vsub.s32 %v8829, %v8831
    %v8833 = vrot.slane %v8811, %v8832
    %v8835 = vunpack.c.l.s4 1966171168
    %v8836 = vunpack.c.0.s8 %v8835
    %v8837 = vlaneseq
    %v8838 = vshrl.u32 %v8837, 7
    %v8839 = vsub.s32 %v8836, %v8838
    %v8840 = vrot.slane %v8812, %v8839
    %v8841 = vcombine.low %v8819, %v8826
    %v8842 = vcombine.high %v8819, %v8826
    %v8843 = vcombine.low %v8833, %v8840
    %v8844 = vcombine.high %v8833, %v8840
    %v8846 = vunpack.c.l.s4 1966171168
    %v8847 = vunpack.c.0.s8 %v8846
    %v8848 = vlaneseq
    %v8849 = vshrl.u32 %v8848, 7
    %v8850 = vsub.s32 %v8847, %v8849
    %v8851 = vrot.slane %v8841, %v8850
    %v8853 = vunpack.c.l.s4 1966171168
    %v8854 = vunpack.c.0.s8 %v8853
    %v8855 = vlaneseq
    %v8856 = vshrl.u32 %v8855, 7
    %v8857 = vsub.s32 %v8854, %v8856
    %v8858 = vrot.slane %v8842, %v8857
    %v8860 = vunpack.c.l.s4 1966171168
    %v8861 = vunpack.c.0.s8 %v8860
    %v8862 = vlaneseq
    %v8863 = vshrl.u32 %v8862, 7
    %v8864 = vsub.s32 %v8861, %v8863
    %v8865 = vrot.slane %v8843, %v8864
    %v8867 = vunpack.c.l.s4 1966171168
    %v8868 = vunpack.c.0.s8 %v8867
    %v8869 = vlaneseq
    %v8870 = vshrl.u32 %v8869, 7
    %v8871 = vsub.s32 %v8868, %v8870
    %v8872 = vrot.slane %v8844, %v8871
    %v8873 = vcombine.low %v8851, %v8865
    %v8874 = vcombine.low %v8858, %v8872
    %v8875 = vcombine.low %v8478, %v8469
    %v8877 = vunpack.c.l.s4 1966171168
    %v8878 = vunpack.c.0.s8 %v8877
    %v8879 = vlaneseq
    %v8880 = vshrl.u32 %v8879, 7
    %v8881 = vsub.s32 %v8878, %v8880
    %v8882 = vrot.slane %v8875, %v8881
    %v8883 = vcombine.high %v8882, %v8882
    %v8885 = vunpack.c.l.s4 1966171168
    %v8886 = vunpack.c.0.s8 %v8885
    %v8887 = vlaneseq
    %v8888 = vshrl.u32 %v8887, 7
    %v8889 = vsub.s32 %v8886, %v8888
    %v8890 = vrot.slane %v8882, %v8889
    %v8892 = vunpack.c.l.s4 1966171168
    %v8893 = vunpack.c.0.s8 %v8892
    %v8894 = vlaneseq
    %v8895 = vshrl.u32 %v8894, 7
    %v8896 = vsub.s32 %v8893, %v8895
    %v8897 = vrot.slane %v8883, %v8896
    %v8912 = vpack.c.bf16 %v8609, %v8543
    %v8913 = vpack.c.bf16 %v8610, %v8544
    %v8914 = vpack.c.bf16 %v8741, %v8675
    %v8915 = vpack.c.bf16 %v8742, %v8676
    %v8916 = vpack.c.bf16 %v8873, %v8807
    %v8917 = vpack.c.bf16 %v8874, %v8808
    %v8918 = vpack.c.bf16 %v8890, %v8890
    %v8919 = vpack.c.bf16 %v8897, %v8897
    %v8921 = vsel %vm7332, %v8913, 0
    %v8924 = vsel %vm7332, %v8915, 0
    %v8927 = vsel %vm7332, %v8917, 0
    %v8930 = vsel %vm7332, %v8919, 0
    %8932 = vmatprep.subr.bf16.mxu0 0
    %8933 = vmatpush1.bf16.msra.mxu0 %v7313
    %8934 = vmatprep.subr.bf16.mxu0 0
    %8935 = vmatpush1.bf16.msra.mxu0 %v7314
    %8936 = vmatprep.subr.bf16.mxu0 0
    %8937 = vmatpush1.bf16.msra.mxu0 %v7315
    %8938 = vmatprep.subr.bf16.mxu0 0
    %8939 = vmatpush1.bf16.msra.mxu0 %v7316
    %8940 = vmatprep.subr.bf16.mxu0 0
    %8941 = vmatpush1.bf16.msra.mxu0 %v7317
    %8942 = vmatprep.subr.bf16.mxu0 0
    %8943 = vmatpush1.bf16.msra.mxu0 %v7318
    %8944 = vmatprep.subr.bf16.mxu0 0
    %8945 = vmatpush1.bf16.msra.mxu0 %v7319
    %8946 = vmatprep.subr.bf16.mxu0 0
    %8947 = vmatpush1.bf16.msra.mxu0 %v7320
    %8948 = vmatprep.subr.bf16.mxu0 0
    %8949 = vmatpush1.bf16.msra.mxu0 %v7321
    %8950 = vmatprep.subr.bf16.mxu0 0
    %8951 = vmatpush1.bf16.msra.mxu0 %v7347
    %8952 = vmatprep.subr.bf16.mxu0 0
    %8953 = vmatpush1.bf16.msra.mxu0 0
    %8954 = vmatprep.subr.bf16.mxu0 0
    %8955 = vmatpush1.bf16.msra.mxu0 0
    %8956 = vmatprep.subr.bf16.mxu0 0
    %8957 = vmatpush1.bf16.msra.mxu0 0
    %8958 = vmatprep.subr.bf16.mxu0 0
    %8959 = vmatpush1.bf16.msra.mxu0 0
    %8960 = vmatprep.subr.bf16.mxu0 0
    %8961 = vmatpush1.bf16.msra.mxu0 0
    %8962 = vmatprep.subr.bf16.mxu0 0
    %8963 = vmatpush1.bf16.msra.mxu0 0
    %8964 = vmatprep.mubr.bf16.mxu0 %v8921
    %8965 = vmatmul.mubr.bf16.gmra.mrb[0].mxu0 %v8912
    %v8966 = vpop.f32.mrb[0].mxu0
    %v8967 = vadd.f32 0.0, %v8966
    %v8968 = vpop.f32.mrb[0].mxu0
    %v8969 = vpop.f32.mrb[0].mxu0
    %v8970 = vadd.f32 0.0, %v8969
    %v8971 = vpop.f32.mrb[0].mxu0
    %8972 = vmatprep.mubr.bf16.mxu0 %v8924
    %8973 = vmatmul.mubr.bf16.gmra.mrb[0].mxu0 %v8914
    %v8974 = vpop.f32.mrb[0].mxu0
    %v8975 = vadd.f32 0.0, %v8974
    %v8976 = vpop.f32.mrb[0].mxu0
    %v8977 = vpop.f32.mrb[0].mxu0
    %v8978 = vadd.f32 0.0, %v8977
    %v8979 = vpop.f32.mrb[0].mxu0
    %8980 = vmatprep.mubr.bf16.mxu0 %v8927
    %8981 = vmatmul.mubr.bf16.gmra.mrb[0].mxu0 %v8916
    %v8982 = vpop.f32.mrb[0].mxu0
    %v8983 = vadd.f32 0.0, %v8982
    %v8984 = vpop.f32.mrb[0].mxu0
    %v8985 = vpop.f32.mrb[0].mxu0
    %v8986 = vadd.f32 0.0, %v8985
    %v8987 = vpop.f32.mrb[0].mxu0
    %8988 = vmatprep.mubr.bf16.mxu0 %v8930
    %8989 = vmatmul.mubr.bf16.gmra.mrb[0].mxu0 %v8918
    %v8990 = vpop.f32.mrb[0].mxu0
    %v8991 = vadd.f32 0.0, %v8990
    %v8992 = vpop.f32.mrb[0].mxu0
    %v8993 = vpop.f32.mrb[0].mxu0
    %v8994 = vpop.f32.mrb[0].mxu0
    %8995 = vdwg.mxu0
    %v8996 = vmax.f32 %v7384, %v8967
    %v8997 = vmax.f32 %v7387, %v8970
    %v8998 = vmax.f32 %v7392, %v8975
    %v8999 = vmax.f32 %v7395, %v8978
    %v9000 = vmax.f32 %v7400, %v8983
    %v9001 = vmax.f32 %v7403, %v8986
    %v9002 = vmax.f32 %v7408, %v8991
    %9003 = vrot.lane.b32.xlu0 %v4132, 116
    %v9004 = vpop.permute.xlu0 %9003
    %9005 = vrot.lane.b32.xlu0 %v4171, 116
    %v9006 = vpop.permute.xlu0 %9005
    %9007 = vrot.lane.b32.xlu0 %v4210, 116
    %v9008 = vpop.permute.xlu0 %9007
    %9009 = vrot.lane.b32.xlu0 %v4249, 116
    %v9010 = vpop.permute.xlu0 %9009
    %9011 = vrot.lane.b32.xlu0 %v4288, 116
    %v9012 = vpop.permute.xlu0 %9011
    %9013 = vrot.lane.b32.xlu0 %v4327, 116
    %v9014 = vpop.permute.xlu0 %9013
    %9015 = vrot.lane.b32.xlu0 %v4366, 116
    %v9016 = vpop.permute.xlu0 %9015
    %9017 = vrot.lane.b32.xlu0 %v4405, 116
    %v9018 = vpop.permute.xlu0 %9017
    %9019 = vrot.lane.b32.xlu0 %v4444, 116
    %v9020 = vpop.permute.xlu0 %9019
    %9021 = vrot.lane.b32.xlu0 %v4483, 116
    %v9022 = vpop.permute.xlu0 %9021
    %9043 = vrot.lane.b32.xlu0 %v4964, 12
    %v9044 = vpop.permute.xlu0 %9043
    %9045 = vrot.lane.b32.xlu0 %v4995, 12
    %v9046 = vpop.permute.xlu0 %9045
    %9047 = vrot.lane.b32.xlu0 %v5026, 12
    %v9048 = vpop.permute.xlu0 %9047
    %9049 = vrot.lane.b32.xlu0 %v5057, 12
    %v9050 = vpop.permute.xlu0 %9049
    %9051 = vrot.lane.b32.xlu0 %v5088, 12
    %v9052 = vpop.permute.xlu0 %9051
    %9053 = vrot.lane.b32.xlu0 %v5119, 12
    %v9054 = vpop.permute.xlu0 %9053
    %9055 = vrot.lane.b32.xlu0 %v5150, 12
    %v9056 = vpop.permute.xlu0 %9055
    %9057 = vrot.lane.b32.xlu0 %v5181, 12
    %v9058 = vpop.permute.xlu0 %9057
    %9059 = vrot.lane.b32.xlu0 %v5212, 12
    %v9060 = vpop.permute.xlu0 %9059
    %9061 = vrot.lane.b32.xlu0 %v5243, 12
    %v9062 = vpop.permute.xlu0 %9061
    %9073 = vrot.lane.b32.xlu0 %v4171, 30
    %v9074 = vpop.permute.xlu0 %9073
    %9075 = vrot.lane.b32.xlu0 %v4210, 30
    %v9076 = vpop.permute.xlu0 %9075
    %9077 = vrot.lane.b32.xlu0 %v4249, 30
    %v9078 = vpop.permute.xlu0 %9077
    %9079 = vrot.lane.b32.xlu0 %v4288, 30
    %v9080 = vpop.permute.xlu0 %9079
    %9081 = vrot.lane.b32.xlu0 %v5412, 30
    %v9082 = vpop.permute.xlu0 %9081
    %9083 = vrot.lane.b32.xlu0 %v4366, 30
    %v9084 = vpop.permute.xlu0 %9083
    %9085 = vrot.lane.b32.xlu0 %v4405, 30
    %v9086 = vpop.permute.xlu0 %9085
    %9087 = vrot.lane.b32.xlu0 %v4444, 30
    %v9088 = vpop.permute.xlu0 %9087
    %9089 = vrot.lane.b32.xlu0 %v4483, 30
    %v9090 = vpop.permute.xlu0 %9089
    %9091 = vrot.lane.b32.xlu0 %v5451, 30
    %v9092 = vpop.permute.xlu0 %9091
    %9103 = vrot.lane.b32.xlu0 %v4581, 42
    %v9104 = vpop.permute.xlu0 %9103
    %9105 = vrot.lane.b32.xlu0 %v4620, 42
    %v9106 = vpop.permute.xlu0 %9105
    %9107 = vrot.lane.b32.xlu0 %v4659, 42
    %v9108 = vpop.permute.xlu0 %9107
    %9109 = vrot.lane.b32.xlu0 %v4698, 42
    %v9110 = vpop.permute.xlu0 %9109
    %9111 = vrot.lane.b32.xlu0 %v5522, 42
    %v9112 = vpop.permute.xlu0 %9111
    %9113 = vrot.lane.b32.xlu0 %v4776, 42
    %v9114 = vpop.permute.xlu0 %9113
    %9115 = vrot.lane.b32.xlu0 %v4815, 42
    %v9116 = vpop.permute.xlu0 %9115
    %9117 = vrot.lane.b32.xlu0 %v4854, 42
    %v9118 = vpop.permute.xlu0 %9117
    %9119 = vrot.lane.b32.xlu0 %v4893, 42
    %v9120 = vpop.permute.xlu0 %9119
    %9121 = vrot.lane.b32.xlu0 %v5561, 42
    %v9122 = vpop.permute.xlu0 %9121
    %9133 = vrot.lane.b32.xlu0 %v4995, 54
    %v9134 = vpop.permute.xlu0 %9133
    %9135 = vrot.lane.b32.xlu0 %v5026, 54
    %v9136 = vpop.permute.xlu0 %9135
    %9137 = vrot.lane.b32.xlu0 %v5057, 54
    %v9138 = vpop.permute.xlu0 %9137
    %9139 = vrot.lane.b32.xlu0 %v5088, 54
    %v9140 = vpop.permute.xlu0 %9139
    %9141 = vrot.lane.b32.xlu0 %v5624, 54
    %v9142 = vpop.permute.xlu0 %9141
    %9143 = vrot.lane.b32.xlu0 %v5150, 54
    %v9144 = vpop.permute.xlu0 %9143
    %9145 = vrot.lane.b32.xlu0 %v5181, 54
    %v9146 = vpop.permute.xlu0 %9145
    %9147 = vrot.lane.b32.xlu0 %v5212, 54
    %v9148 = vpop.permute.xlu0 %9147
    %9149 = vrot.lane.b32.xlu0 %v5243, 54
    %v9150 = vpop.permute.xlu0 %9149
    %9151 = vrot.lane.b32.xlu0 %v5655, 54
    %v9152 = vpop.permute.xlu0 %9151
    %9163 = vrot.lane.b32.xlu0 %v4171, 48
    %v9164 = vpop.permute.xlu0 %9163
    %9165 = vrot.lane.b32.xlu0 %v4210, 48
    %v9166 = vpop.permute.xlu0 %9165
    %9167 = vrot.lane.b32.xlu0 %v4249, 48
    %v9168 = vpop.permute.xlu0 %9167
    %9169 = vrot.lane.b32.xlu0 %v4288, 48
    %v9170 = vpop.permute.xlu0 %9169
    %9171 = vrot.lane.b32.xlu0 %v5412, 48
    %v9172 = vpop.permute.xlu0 %9171
    %9173 = vrot.lane.b32.xlu0 %v4366, 48
    %v9174 = vpop.permute.xlu0 %9173
    %9175 = vrot.lane.b32.xlu0 %v4405, 48
    %v9176 = vpop.permute.xlu0 %9175
    %9177 = vrot.lane.b32.xlu0 %v4444, 48
    %v9178 = vpop.permute.xlu0 %9177
    %9179 = vrot.lane.b32.xlu0 %v4483, 48
    %v9180 = vpop.permute.xlu0 %9179
    %9181 = vrot.lane.b32.xlu0 %v5451, 48
    %v9182 = vpop.permute.xlu0 %9181
    %9193 = vrot.lane.b32.xlu0 %v4581, 60
    %v9194 = vpop.permute.xlu0 %9193
    %9195 = vrot.lane.b32.xlu0 %v4620, 60
    %v9196 = vpop.permute.xlu0 %9195
    %9197 = vrot.lane.b32.xlu0 %v4659, 60
    %v9198 = vpop.permute.xlu0 %9197
    %9199 = vrot.lane.b32.xlu0 %v4698, 60
    %v9200 = vpop.permute.xlu0 %9199
    %9201 = vrot.lane.b32.xlu0 %v5522, 60
    %v9202 = vpop.permute.xlu0 %9201
    %9203 = vrot.lane.b32.xlu0 %v4776, 60
    %v9204 = vpop.permute.xlu0 %9203
    %9205 = vrot.lane.b32.xlu0 %v4815, 60
    %v9206 = vpop.permute.xlu0 %9205
    %9207 = vrot.lane.b32.xlu0 %v4854, 60
    %v9208 = vpop.permute.xlu0 %9207
    %9209 = vrot.lane.b32.xlu0 %v4893, 60
    %v9210 = vpop.permute.xlu0 %9209
    %9211 = vrot.lane.b32.xlu0 %v5561, 60
    %v9212 = vpop.permute.xlu0 %9211
    %9223 = vrot.lane.b32.xlu0 %v4995, 72
    %v9224 = vpop.permute.xlu0 %9223
    %9225 = vrot.lane.b32.xlu0 %v5026, 72
    %v9226 = vpop.permute.xlu0 %9225
    %9227 = vrot.lane.b32.xlu0 %v5057, 72
    %v9228 = vpop.permute.xlu0 %9227
    %9229 = vrot.lane.b32.xlu0 %v5088, 72
    %v9230 = vpop.permute.xlu0 %9229
    %9231 = vrot.lane.b32.xlu0 %v5624, 72
    %v9232 = vpop.permute.xlu0 %9231
    %9233 = vrot.lane.b32.xlu0 %v5150, 72
    %v9234 = vpop.permute.xlu0 %9233
    %9235 = vrot.lane.b32.xlu0 %v5181, 72
    %v9236 = vpop.permute.xlu0 %9235
    %9237 = vrot.lane.b32.xlu0 %v5212, 72
    %v9238 = vpop.permute.xlu0 %9237
    %9239 = vrot.lane.b32.xlu0 %v5243, 72
    %v9240 = vpop.permute.xlu0 %9239
    %9241 = vrot.lane.b32.xlu0 %v5655, 72
    %v9242 = vpop.permute.xlu0 %9241
    %9253 = vrot.lane.b32.xlu0 %v4210, 90
    %v9254 = vpop.permute.xlu0 %9253
    %9255 = vrot.lane.b32.xlu0 %v4249, 90
    %v9256 = vpop.permute.xlu0 %9255
    %9257 = vrot.lane.b32.xlu0 %v4288, 90
    %v9258 = vpop.permute.xlu0 %9257
    %9259 = vrot.lane.b32.xlu0 %v5412, 90
    %v9260 = vpop.permute.xlu0 %9259
    %9261 = vrot.lane.b32.xlu0 %v6019, 90
    %v9262 = vpop.permute.xlu0 %9261
    %9263 = vrot.lane.b32.xlu0 %v4405, 90
    %v9264 = vpop.permute.xlu0 %9263
    %9265 = vrot.lane.b32.xlu0 %v4444, 90
    %v9266 = vpop.permute.xlu0 %9265
    %9267 = vrot.lane.b32.xlu0 %v4483, 90
    %v9268 = vpop.permute.xlu0 %9267
    %9269 = vrot.lane.b32.xlu0 %v5451, 90
    %v9270 = vpop.permute.xlu0 %9269
    %9271 = vrot.lane.b32.xlu0 %v6058, 90
    %v9272 = vpop.permute.xlu0 %9271
    %v9283 = vsel %vm5716, %v9004, %v9004
    %v9284 = vsel %vm5716, %v9006, %v9006
    %v9285 = vsel %vm5716, %v9008, %v9008
    %v9286 = vsel %vm5716, %v9010, %v9010
    %v9287 = vsel %vm5716, %v9012, %v9012
    %v9288 = vsel %vm5716, %v9014, %v9014
    %v9289 = vsel %vm5716, %v9016, %v9016
    %v9290 = vsel %vm5716, %v9018, %v9018
    %v9291 = vsel %vm5716, %v9020, %v9020
    %v9292 = vsel %vm5716, %v9022, %v9022
    %v9293 = vsel %vm5727, %v9283, %v4542
    %v9294 = vsel %vm5727, %v9284, %v4581
    %v9295 = vsel %vm5727, %v9285, %v4620
    %v9296 = vsel %vm5727, %v9286, %v4659
    %v9297 = vsel %vm5727, %v9287, %v4698
    %v9298 = vsel %vm5727, %v9288, %v4737
    %v9299 = vsel %vm5727, %v9289, %v4776
    %v9300 = vsel %vm5727, %v9290, %v4815
    %v9301 = vsel %vm5727, %v9291, %v4854
    %v9302 = vsel %vm5727, %v9292, %v4893
    %v9303 = vsel %vm5738, %v9293, %v4542
    %v9304 = vsel %vm5738, %v9294, %v4581
    %v9305 = vsel %vm5738, %v9295, %v4620
    %v9306 = vsel %vm5738, %v9296, %v4659
    %v9307 = vsel %vm5738, %v9297, %v4698
    %v9308 = vsel %vm5738, %v9298, %v4737
    %v9309 = vsel %vm5738, %v9299, %v4776
    %v9310 = vsel %vm5738, %v9300, %v4815
    %v9311 = vsel %vm5738, %v9301, %v4854
    %v9312 = vsel %vm5738, %v9302, %v4893
    %v9313 = vsel %vm5749, %v9303, %v9044
    %v9314 = vsel %vm5749, %v9304, %v9046
    %v9315 = vsel %vm5749, %v9305, %v9048
    %v9316 = vsel %vm5749, %v9306, %v9050
    %v9317 = vsel %vm5749, %v9307, %v9052
    %v9318 = vsel %vm5749, %v9308, %v9054
    %v9319 = vsel %vm5749, %v9309, %v9056
    %v9320 = vsel %vm5749, %v9310, %v9058
    %v9321 = vsel %vm5749, %v9311, %v9060
    %v9322 = vsel %vm5749, %v9312, %v9062
    %v9323 = vsel %vm5760, %v9313, %v9074
    %v9324 = vsel %vm5760, %v9314, %v9076
    %v9325 = vsel %vm5760, %v9315, %v9078
    %v9326 = vsel %vm5760, %v9316, %v9080
    %v9327 = vsel %vm5760, %v9317, %v9082
    %v9328 = vsel %vm5760, %v9318, %v9084
    %v9329 = vsel %vm5760, %v9319, %v9086
    %v9330 = vsel %vm5760, %v9320, %v9088
    %v9331 = vsel %vm5760, %v9321, %v9090
    %v9332 = vsel %vm5760, %v9322, %v9092
    %v9333 = vsel %vm5771, %v9323, %v9074
    %v9334 = vsel %vm5771, %v9324, %v9076
    %v9335 = vsel %vm5771, %v9325, %v9078
    %v9336 = vsel %vm5771, %v9326, %v9080
    %v9337 = vsel %vm5771, %v9327, %v9082
    %v9338 = vsel %vm5771, %v9328, %v9084
    %v9339 = vsel %vm5771, %v9329, %v9086
    %v9340 = vsel %vm5771, %v9330, %v9088
    %v9341 = vsel %vm5771, %v9331, %v9090
    %v9342 = vsel %vm5771, %v9332, %v9092
    %v9343 = vsel %vm5782, %v9333, %v9104
    %v9344 = vsel %vm5782, %v9334, %v9106
    %v9345 = vsel %vm5782, %v9335, %v9108
    %v9346 = vsel %vm5782, %v9336, %v9110
    %v9347 = vsel %vm5782, %v9337, %v9112
    %v9348 = vsel %vm5782, %v9338, %v9114
    %v9349 = vsel %vm5782, %v9339, %v9116
    %v9350 = vsel %vm5782, %v9340, %v9118
    %v9351 = vsel %vm5782, %v9341, %v9120
    %v9352 = vsel %vm5782, %v9342, %v9122
    %v9353 = vsel %vm5793, %v9343, %v9104
    %v9354 = vsel %vm5793, %v9344, %v9106
    %v9355 = vsel %vm5793, %v9345, %v9108
    %v9356 = vsel %vm5793, %v9346, %v9110
    %v9357 = vsel %vm5793, %v9347, %v9112
    %v9358 = vsel %vm5793, %v9348, %v9114
    %v9359 = vsel %vm5793, %v9349, %v9116
    %v9360 = vsel %vm5793, %v9350, %v9118
    %v9361 = vsel %vm5793, %v9351, %v9120
    %v9362 = vsel %vm5793, %v9352, %v9122
    %v9363 = vsel %vm5804, %v9353, %v9134
    %v9364 = vsel %vm5804, %v9354, %v9136
    %v9365 = vsel %vm5804, %v9355, %v9138
    %v9366 = vsel %vm5804, %v9356, %v9140
    %v9367 = vsel %vm5804, %v9357, %v9142
    %v9368 = vsel %vm5804, %v9358, %v9144
    %v9369 = vsel %vm5804, %v9359, %v9146
    %v9370 = vsel %vm5804, %v9360, %v9148
    %v9371 = vsel %vm5804, %v9361, %v9150
    %v9372 = vsel %vm5804, %v9362, %v9152
    %v9373 = vsel %vm5815, %v9363, %v9164
    %v9374 = vsel %vm5815, %v9364, %v9166
    %v9375 = vsel %vm5815, %v9365, %v9168
    %v9376 = vsel %vm5815, %v9366, %v9170
    %v9377 = vsel %vm5815, %v9367, %v9172
    %v9378 = vsel %vm5815, %v9368, %v9174
    %v9379 = vsel %vm5815, %v9369, %v9176
    %v9380 = vsel %vm5815, %v9370, %v9178
    %v9381 = vsel %vm5815, %v9371, %v9180
    %v9382 = vsel %vm5815, %v9372, %v9182
    %v9383 = vsel %vm5826, %v9373, %v9164
    %v9384 = vsel %vm5826, %v9374, %v9166
    %v9385 = vsel %vm5826, %v9375, %v9168
    %v9386 = vsel %vm5826, %v9376, %v9170
    %v9387 = vsel %vm5826, %v9377, %v9172
    %v9388 = vsel %vm5826, %v9378, %v9174
    %v9389 = vsel %vm5826, %v9379, %v9176
    %v9390 = vsel %vm5826, %v9380, %v9178
    %v9391 = vsel %vm5826, %v9381, %v9180
    %v9392 = vsel %vm5826, %v9382, %v9182
    %v9393 = vsel %vm5837, %v9383, %v9194
    %v9394 = vsel %vm5837, %v9384, %v9196
    %v9395 = vsel %vm5837, %v9385, %v9198
    %v9396 = vsel %vm5837, %v9386, %v9200
    %v9397 = vsel %vm5837, %v9387, %v9202
    %v9398 = vsel %vm5837, %v9388, %v9204
    %v9399 = vsel %vm5837, %v9389, %v9206
    %v9400 = vsel %vm5837, %v9390, %v9208
    %v9401 = vsel %vm5837, %v9391, %v9210
    %v9402 = vsel %vm5837, %v9392, %v9212
    %v9403 = vsel %vm5848, %v9393, %v9194
    %v9404 = vsel %vm5848, %v9394, %v9196
    %v9405 = vsel %vm5848, %v9395, %v9198
    %v9406 = vsel %vm5848, %v9396, %v9200
    %v9407 = vsel %vm5848, %v9397, %v9202
    %v9408 = vsel %vm5848, %v9398, %v9204
    %v9409 = vsel %vm5848, %v9399, %v9206
    %v9410 = vsel %vm5848, %v9400, %v9208
    %v9411 = vsel %vm5848, %v9401, %v9210
    %v9412 = vsel %vm5848, %v9402, %v9212
    %v9413 = vsel %vm5859, %v9403, %v9224
    %v9414 = vsel %vm5859, %v9404, %v9226
    %v9415 = vsel %vm5859, %v9405, %v9228
    %v9416 = vsel %vm5859, %v9406, %v9230
    %v9417 = vsel %vm5859, %v9407, %v9232
    %v9418 = vsel %vm5859, %v9408, %v9234
    %v9419 = vsel %vm5859, %v9409, %v9236
    %v9420 = vsel %vm5859, %v9410, %v9238
    %v9421 = vsel %vm5859, %v9411, %v9240
    %v9422 = vsel %vm5859, %v9412, %v9242
    %v9423 = vsel %vm5870, %v9413, %v9254
    %v9424 = vsel %vm5870, %v9414, %v9256
    %v9425 = vsel %vm5870, %v9415, %v9258
    %v9426 = vsel %vm5870, %v9416, %v9260
    %v9427 = vsel %vm5870, %v9417, %v9262
    %v9428 = vsel %vm5870, %v9418, %v9264
    %v9429 = vsel %vm5870, %v9419, %v9266
    %v9430 = vsel %vm5870, %v9420, %v9268
    %v9431 = vsel %vm5870, %v9421, %v9270
    %v9432 = vsel %vm5870, %v9422, %v9272
    %9433 = vrot.lane.b32.xlu0 %v5412, 122
    %v9434 = vpop.permute.xlu0 %9433
    %9435 = vrot.lane.b32.xlu0 %v6019, 122
    %v9436 = vpop.permute.xlu0 %9435
    %9437 = vrot.lane.b32.xlu0 %v5451, 122
    %v9438 = vpop.permute.xlu0 %9437
    %9439 = vrot.lane.b32.xlu0 %v6058, 122
    %v9440 = vpop.permute.xlu0 %9439
    %9445 = vrot.lane.b32.xlu0 %v5522, 6
    %v9446 = vpop.permute.xlu0 %9445
    %9447 = vrot.lane.b32.xlu0 %v6129, 6
    %v9448 = vpop.permute.xlu0 %9447
    %9449 = vrot.lane.b32.xlu0 %v5561, 6
    %v9450 = vpop.permute.xlu0 %9449
    %9451 = vrot.lane.b32.xlu0 %v6168, 6
    %v9452 = vpop.permute.xlu0 %9451
    %9457 = vrot.lane.b32.xlu0 %v5624, 18
    %v9458 = vpop.permute.xlu0 %9457
    %9459 = vrot.lane.b32.xlu0 %v6231, 18
    %v9460 = vpop.permute.xlu0 %9459
    %9461 = vrot.lane.b32.xlu0 %v5655, 18
    %v9462 = vpop.permute.xlu0 %9461
    %9463 = vrot.lane.b32.xlu0 %v6262, 18
    %v9464 = vpop.permute.xlu0 %9463
    %9469 = vrot.lane.b32.xlu0 %v5412, 12
    %v9470 = vpop.permute.xlu0 %9469
    %9471 = vrot.lane.b32.xlu0 %v6019, 12
    %v9472 = vpop.permute.xlu0 %9471
    %9473 = vrot.lane.b32.xlu0 %v5451, 12
    %v9474 = vpop.permute.xlu0 %9473
    %9475 = vrot.lane.b32.xlu0 %v6058, 12
    %v9476 = vpop.permute.xlu0 %9475
    %9481 = vrot.lane.b32.xlu0 %v5522, 24
    %v9482 = vpop.permute.xlu0 %9481
    %9483 = vrot.lane.b32.xlu0 %v6129, 24
    %v9484 = vpop.permute.xlu0 %9483
    %9485 = vrot.lane.b32.xlu0 %v5561, 24
    %v9486 = vpop.permute.xlu0 %9485
    %9487 = vrot.lane.b32.xlu0 %v6168, 24
    %v9488 = vpop.permute.xlu0 %9487
    %9493 = vrot.lane.b32.xlu0 %v5624, 36
    %v9494 = vpop.permute.xlu0 %9493
    %9495 = vrot.lane.b32.xlu0 %v6231, 36
    %v9496 = vpop.permute.xlu0 %9495
    %9497 = vrot.lane.b32.xlu0 %v5655, 36
    %v9498 = vpop.permute.xlu0 %9497
    %9499 = vrot.lane.b32.xlu0 %v6262, 36
    %v9500 = vpop.permute.xlu0 %9499
    %v9505 = vsel %vm5716, %v9434, %v9446
    %v9506 = vsel %vm5716, %v9436, %v9448
    %v9507 = vsel %vm5716, %v9438, %v9450
    %v9508 = vsel %vm5716, %v9440, %v9452
    %v9509 = vsel %vm5727, %v9505, %v9446
    %v9510 = vsel %vm5727, %v9506, %v9448
    %v9511 = vsel %vm5727, %v9507, %v9450
    %v9512 = vsel %vm5727, %v9508, %v9452
    %v9513 = vsel %vm5738, %v9509, %v9458
    %v9514 = vsel %vm5738, %v9510, %v9460
    %v9515 = vsel %vm5738, %v9511, %v9462
    %v9516 = vsel %vm5738, %v9512, %v9464
    %v9517 = vsel %vm5749, %v7735, %v7508
    %v9518 = vsel %vm5749, %v7736, %v7510
    %v9519 = vsel %vm5749, %v7737, %v7512
    %v9520 = vsel %vm5749, %v9513, %v9470
    %v9521 = vsel %vm5749, %v9514, %v9472
    %v9522 = vsel %vm5749, %v7740, %v7518
    %v9523 = vsel %vm5749, %v7741, %v7520
    %v9524 = vsel %vm5749, %v7742, %v7522
    %v9525 = vsel %vm5749, %v9515, %v9474
    %v9526 = vsel %vm5749, %v9516, %v9476
    %v9527 = vsel %vm5760, %v9517, %v7508
    %v9528 = vsel %vm5760, %v9518, %v7510
    %v9529 = vsel %vm5760, %v9519, %v7512
    %v9530 = vsel %vm5760, %v9520, %v9470
    %v9531 = vsel %vm5760, %v9521, %v9472
    %v9532 = vsel %vm5760, %v9522, %v7518
    %v9533 = vsel %vm5760, %v9523, %v7520
    %v9534 = vsel %vm5760, %v9524, %v7522
    %v9535 = vsel %vm5760, %v9525, %v9474
    %v9536 = vsel %vm5760, %v9526, %v9476
    %v9537 = vsel %vm5771, %v9527, %v7538
    %v9538 = vsel %vm5771, %v9528, %v7540
    %v9539 = vsel %vm5771, %v9529, %v7542
    %v9540 = vsel %vm5771, %v9530, %v9482
    %v9541 = vsel %vm5771, %v9531, %v9484
    %v9542 = vsel %vm5771, %v9532, %v7548
    %v9543 = vsel %vm5771, %v9533, %v7550
    %v9544 = vsel %vm5771, %v9534, %v7552
    %v9545 = vsel %vm5771, %v9535, %v9486
    %v9546 = vsel %vm5771, %v9536, %v9488
    %v9547 = vsel %vm5782, %v9537, %v7538
    %v9548 = vsel %vm5782, %v9538, %v7540
    %v9549 = vsel %vm5782, %v9539, %v7542
    %v9550 = vsel %vm5782, %v9540, %v9482
    %v9551 = vsel %vm5782, %v9541, %v9484
    %v9552 = vsel %vm5782, %v9542, %v7548
    %v9553 = vsel %vm5782, %v9543, %v7550
    %v9554 = vsel %vm5782, %v9544, %v7552
    %v9555 = vsel %vm5782, %v9545, %v9486
    %v9556 = vsel %vm5782, %v9546, %v9488
    %v9557 = vsel %vm5793, %v9547, %v7568
    %v9558 = vsel %vm5793, %v9548, %v7570
    %v9559 = vsel %vm5793, %v9549, %v7572
    %v9560 = vsel %vm5793, %v9550, %v9494
    %v9561 = vsel %vm5793, %v9551, %v9496
    %v9562 = vsel %vm5793, %v9552, %v7578
    %v9563 = vsel %vm5793, %v9553, %v7580
    %v9564 = vsel %vm5793, %v9554, %v7582
    %v9565 = vsel %vm5793, %v9555, %v9498
    %v9566 = vsel %vm5793, %v9556, %v9500
    %9577 = vrot.lane.b32.xlu0 %v9557, 96
    %v9578 = vpop.permute.xlu0 %9577
    %9579 = vrot.lane.b32.xlu0 %v9558, 96
    %v9580 = vpop.permute.xlu0 %9579
    %9581 = vrot.lane.b32.xlu0 %v9559, 96
    %v9582 = vpop.permute.xlu0 %9581
    %9583 = vrot.lane.b32.xlu0 %v9560, 96
    %v9584 = vpop.permute.xlu0 %9583
    %9585 = vrot.lane.b32.xlu0 %v9561, 96
    %v9586 = vpop.permute.xlu0 %9585
    %9587 = vrot.lane.b32.xlu0 %v9562, 96
    %v9588 = vpop.permute.xlu0 %9587
    %9589 = vrot.lane.b32.xlu0 %v9563, 96
    %v9590 = vpop.permute.xlu0 %9589
    %9591 = vrot.lane.b32.xlu0 %v9564, 96
    %v9592 = vpop.permute.xlu0 %9591
    %9593 = vrot.lane.b32.xlu0 %v9565, 96
    %v9594 = vpop.permute.xlu0 %9593
    %9595 = vrot.lane.b32.xlu0 %v9566, 96
    %v9596 = vpop.permute.xlu0 %9595
    %v9607 = vsel %vm6413, %v9423, %v9578
    %v9608 = vsel %vm6413, %v9424, %v9580
    %v9609 = vsel %vm6413, %v9425, %v9582
    %v9610 = vsel %vm6413, %v9426, %v9584
    %v9611 = vsel %vm6413, %v9427, %v9586
    %v9612 = vsel %vm6413, %v9428, %v9588
    %v9613 = vsel %vm6413, %v9429, %v9590
    %v9614 = vsel %vm6413, %v9430, %v9592
    %v9615 = vsel %vm6413, %v9431, %v9594
    %v9616 = vsel %vm6413, %v9432, %v9596
    %v9627 = vcombine.low %v9607, %v9578
    %v9628 = vcombine.high %v9607, %v9578
    %v9630 = vunpack.c.l.s4 1966171168
    %v9631 = vunpack.c.0.s8 %v9630
    %v9632 = vlaneseq
    %v9633 = vshrl.u32 %v9632, 7
    %v9634 = vsub.s32 %v9631, %v9633
    %v9635 = vrot.slane %v9627, %v9634
    %v9637 = vunpack.c.l.s4 1966171168
    %v9638 = vunpack.c.0.s8 %v9637
    %v9639 = vlaneseq
    %v9640 = vshrl.u32 %v9639, 7
    %v9641 = vsub.s32 %v9638, %v9640
    %v9642 = vrot.slane %v9628, %v9641
    %v9643 = vcombine.high %v9635, %v9635
    %v9645 = vunpack.c.l.s4 1966171168
    %v9646 = vunpack.c.0.s8 %v9645
    %v9647 = vlaneseq
    %v9648 = vshrl.u32 %v9647, 7
    %v9649 = vsub.s32 %v9646, %v9648
    %v9650 = vrot.slane %v9635, %v9649
    %v9652 = vunpack.c.l.s4 1966171168
    %v9653 = vunpack.c.0.s8 %v9652
    %v9654 = vlaneseq
    %v9655 = vshrl.u32 %v9654, 7
    %v9656 = vsub.s32 %v9653, %v9655
    %v9657 = vrot.slane %v9642, %v9656
    %v9659 = vunpack.c.l.s4 1966171168
    %v9660 = vunpack.c.0.s8 %v9659
    %v9661 = vlaneseq
    %v9662 = vshrl.u32 %v9661, 7
    %v9663 = vsub.s32 %v9660, %v9662
    %v9664 = vrot.slane %v9643, %v9663
    %v9665 = vcombine.high %v9650, %v9650
    %v9666 = vcombine.high %v9664, %v9664
    %v9667 = vcombine.low %v9608, %v9580
    %v9668 = vcombine.high %v9608, %v9580
    %v9670 = vunpack.c.l.s4 1966171168
    %v9671 = vunpack.c.0.s8 %v9670
    %v9672 = vlaneseq
    %v9673 = vshrl.u32 %v9672, 7
    %v9674 = vsub.s32 %v9671, %v9673
    %v9675 = vrot.slane %v9667, %v9674
    %v9677 = vunpack.c.l.s4 1966171168
    %v9678 = vunpack.c.0.s8 %v9677
    %v9679 = vlaneseq
    %v9680 = vshrl.u32 %v9679, 7
    %v9681 = vsub.s32 %v9678, %v9680
    %v9682 = vrot.slane %v9668, %v9681
    %v9683 = vcombine.high %v9675, %v9675
    %v9685 = vunpack.c.l.s4 1966171168
    %v9686 = vunpack.c.0.s8 %v9685
    %v9687 = vlaneseq
    %v9688 = vshrl.u32 %v9687, 7
    %v9689 = vsub.s32 %v9686, %v9688
    %v9690 = vrot.slane %v9675, %v9689
    %v9692 = vunpack.c.l.s4 1966171168
    %v9693 = vunpack.c.0.s8 %v9692
    %v9694 = vlaneseq
    %v9695 = vshrl.u32 %v9694, 7
    %v9696 = vsub.s32 %v9693, %v9695
    %v9697 = vrot.slane %v9682, %v9696
    %v9699 = vunpack.c.l.s4 1966171168
    %v9700 = vunpack.c.0.s8 %v9699
    %v9701 = vlaneseq
    %v9702 = vshrl.u32 %v9701, 7
    %v9703 = vsub.s32 %v9700, %v9702
    %v9704 = vrot.slane %v9683, %v9703
    %v9705 = vcombine.high %v9690, %v9690
    %v9706 = vcombine.high %v9704, %v9704
    %v9707 = vcombine.low %v9609, %v9582
    %v9708 = vcombine.high %v9609, %v9582
    %v9710 = vunpack.c.l.s4 1966171168
    %v9711 = vunpack.c.0.s8 %v9710
    %v9712 = vlaneseq
    %v9713 = vshrl.u32 %v9712, 7
    %v9714 = vsub.s32 %v9711, %v9713
    %v9715 = vrot.slane %v9707, %v9714
    %v9717 = vunpack.c.l.s4 1966171168
    %v9718 = vunpack.c.0.s8 %v9717
    %v9719 = vlaneseq
    %v9720 = vshrl.u32 %v9719, 7
    %v9721 = vsub.s32 %v9718, %v9720
    %v9722 = vrot.slane %v9708, %v9721
    %v9723 = vcombine.high %v9715, %v9715
    %v9725 = vunpack.c.l.s4 1966171168
    %v9726 = vunpack.c.0.s8 %v9725
    %v9727 = vlaneseq
    %v9728 = vshrl.u32 %v9727, 7
    %v9729 = vsub.s32 %v9726, %v9728
    %v9730 = vrot.slane %v9715, %v9729
    %v9732 = vunpack.c.l.s4 1966171168
    %v9733 = vunpack.c.0.s8 %v9732
    %v9734 = vlaneseq
    %v9735 = vshrl.u32 %v9734, 7
    %v9736 = vsub.s32 %v9733, %v9735
    %v9737 = vrot.slane %v9722, %v9736
    %v9739 = vunpack.c.l.s4 1966171168
    %v9740 = vunpack.c.0.s8 %v9739
    %v9741 = vlaneseq
    %v9742 = vshrl.u32 %v9741, 7
    %v9743 = vsub.s32 %v9740, %v9742
    %v9744 = vrot.slane %v9723, %v9743
    %v9745 = vcombine.high %v9730, %v9730
    %v9746 = vcombine.high %v9744, %v9744
    %v9747 = vcombine.low %v9610, %v9584
    %v9748 = vcombine.high %v9610, %v9584
    %v9750 = vunpack.c.l.s4 1966171168
    %v9751 = vunpack.c.0.s8 %v9750
    %v9752 = vlaneseq
    %v9753 = vshrl.u32 %v9752, 7
    %v9754 = vsub.s32 %v9751, %v9753
    %v9755 = vrot.slane %v9747, %v9754
    %v9757 = vunpack.c.l.s4 1966171168
    %v9758 = vunpack.c.0.s8 %v9757
    %v9759 = vlaneseq
    %v9760 = vshrl.u32 %v9759, 7
    %v9761 = vsub.s32 %v9758, %v9760
    %v9762 = vrot.slane %v9748, %v9761
    %v9763 = vcombine.high %v9755, %v9755
    %v9765 = vunpack.c.l.s4 1966171168
    %v9766 = vunpack.c.0.s8 %v9765
    %v9767 = vlaneseq
    %v9768 = vshrl.u32 %v9767, 7
    %v9769 = vsub.s32 %v9766, %v9768
    %v9770 = vrot.slane %v9755, %v9769
    %v9772 = vunpack.c.l.s4 1966171168
    %v9773 = vunpack.c.0.s8 %v9772
    %v9774 = vlaneseq
    %v9775 = vshrl.u32 %v9774, 7
    %v9776 = vsub.s32 %v9773, %v9775
    %v9777 = vrot.slane %v9762, %v9776
    %v9779 = vunpack.c.l.s4 1966171168
    %v9780 = vunpack.c.0.s8 %v9779
    %v9781 = vlaneseq
    %v9782 = vshrl.u32 %v9781, 7
    %v9783 = vsub.s32 %v9780, %v9782
    %v9784 = vrot.slane %v9763, %v9783
    %v9785 = vcombine.high %v9770, %v9770
    %v9786 = vcombine.high %v9784, %v9784
    %v9787 = vcombine.low %v9611, %v9586
    %v9788 = vcombine.high %v9611, %v9586
    %v9790 = vunpack.c.l.s4 1966171168
    %v9791 = vunpack.c.0.s8 %v9790
    %v9792 = vlaneseq
    %v9793 = vshrl.u32 %v9792, 7
    %v9794 = vsub.s32 %v9791, %v9793
    %v9795 = vrot.slane %v9787, %v9794
    %v9797 = vunpack.c.l.s4 1966171168
    %v9798 = vunpack.c.0.s8 %v9797
    %v9799 = vlaneseq
    %v9800 = vshrl.u32 %v9799, 7
    %v9801 = vsub.s32 %v9798, %v9800
    %v9802 = vrot.slane %v9788, %v9801
    %v9803 = vcombine.high %v9795, %v9795
    %v9805 = vunpack.c.l.s4 1966171168
    %v9806 = vunpack.c.0.s8 %v9805
    %v9807 = vlaneseq
    %v9808 = vshrl.u32 %v9807, 7
    %v9809 = vsub.s32 %v9806, %v9808
    %v9810 = vrot.slane %v9795, %v9809
    %v9812 = vunpack.c.l.s4 1966171168
    %v9813 = vunpack.c.0.s8 %v9812
    %v9814 = vlaneseq
    %v9815 = vshrl.u32 %v9814, 7
    %v9816 = vsub.s32 %v9813, %v9815
    %v9817 = vrot.slane %v9802, %v9816
    %v9819 = vunpack.c.l.s4 1966171168
    %v9820 = vunpack.c.0.s8 %v9819
    %v9821 = vlaneseq
    %v9822 = vshrl.u32 %v9821, 7
    %v9823 = vsub.s32 %v9820, %v9822
    %v9824 = vrot.slane %v9803, %v9823
    %v9825 = vcombine.high %v9810, %v9810
    %v9826 = vcombine.high %v9824, %v9824
    %v9827 = vcombine.low %v9612, %v9588
    %v9828 = vcombine.high %v9612, %v9588
    %v9830 = vunpack.c.l.s4 1966171168
    %v9831 = vunpack.c.0.s8 %v9830
    %v9832 = vlaneseq
    %v9833 = vshrl.u32 %v9832, 7
    %v9834 = vsub.s32 %v9831, %v9833
    %v9835 = vrot.slane %v9827, %v9834
    %v9837 = vunpack.c.l.s4 1966171168
    %v9838 = vunpack.c.0.s8 %v9837
    %v9839 = vlaneseq
    %v9840 = vshrl.u32 %v9839, 7
    %v9841 = vsub.s32 %v9838, %v9840
    %v9842 = vrot.slane %v9828, %v9841
    %v9843 = vcombine.high %v9835, %v9835
    %v9845 = vunpack.c.l.s4 1966171168
    %v9846 = vunpack.c.0.s8 %v9845
    %v9847 = vlaneseq
    %v9848 = vshrl.u32 %v9847, 7
    %v9849 = vsub.s32 %v9846, %v9848
    %v9850 = vrot.slane %v9835, %v9849
    %v9852 = vunpack.c.l.s4 1966171168
    %v9853 = vunpack.c.0.s8 %v9852
    %v9854 = vlaneseq
    %v9855 = vshrl.u32 %v9854, 7
    %v9856 = vsub.s32 %v9853, %v9855
    %v9857 = vrot.slane %v9842, %v9856
    %v9859 = vunpack.c.l.s4 1966171168
    %v9860 = vunpack.c.0.s8 %v9859
    %v9861 = vlaneseq
    %v9862 = vshrl.u32 %v9861, 7
    %v9863 = vsub.s32 %v9860, %v9862
    %v9864 = vrot.slane %v9843, %v9863
    %v9865 = vcombine.high %v9850, %v9850
    %v9866 = vcombine.high %v9864, %v9864
    %v9867 = vcombine.low %v9613, %v9590
    %v9868 = vcombine.high %v9613, %v9590
    %v9870 = vunpack.c.l.s4 1966171168
    %v9871 = vunpack.c.0.s8 %v9870
    %v9872 = vlaneseq
    %v9873 = vshrl.u32 %v9872, 7
    %v9874 = vsub.s32 %v9871, %v9873
    %v9875 = vrot.slane %v9867, %v9874
    %v9877 = vunpack.c.l.s4 1966171168
    %v9878 = vunpack.c.0.s8 %v9877
    %v9879 = vlaneseq
    %v9880 = vshrl.u32 %v9879, 7
    %v9881 = vsub.s32 %v9878, %v9880
    %v9882 = vrot.slane %v9868, %v9881
    %v9883 = vcombine.high %v9875, %v9875
    %v9885 = vunpack.c.l.s4 1966171168
    %v9886 = vunpack.c.0.s8 %v9885
    %v9887 = vlaneseq
    %v9888 = vshrl.u32 %v9887, 7
    %v9889 = vsub.s32 %v9886, %v9888
    %v9890 = vrot.slane %v9875, %v9889
    %v9892 = vunpack.c.l.s4 1966171168
    %v9893 = vunpack.c.0.s8 %v9892
    %v9894 = vlaneseq
    %v9895 = vshrl.u32 %v9894, 7
    %v9896 = vsub.s32 %v9893, %v9895
    %v9897 = vrot.slane %v9882, %v9896
    %v9899 = vunpack.c.l.s4 1966171168
    %v9900 = vunpack.c.0.s8 %v9899
    %v9901 = vlaneseq
    %v9902 = vshrl.u32 %v9901, 7
    %v9903 = vsub.s32 %v9900, %v9902
    %v9904 = vrot.slane %v9883, %v9903
    %v9905 = vcombine.high %v9890, %v9890
    %v9906 = vcombine.high %v9904, %v9904
    %v9907 = vcombine.low %v9614, %v9592
    %v9908 = vcombine.high %v9614, %v9592
    %v9910 = vunpack.c.l.s4 1966171168
    %v9911 = vunpack.c.0.s8 %v9910
    %v9912 = vlaneseq
    %v9913 = vshrl.u32 %v9912, 7
    %v9914 = vsub.s32 %v9911, %v9913
    %v9915 = vrot.slane %v9907, %v9914
    %v9917 = vunpack.c.l.s4 1966171168
    %v9918 = vunpack.c.0.s8 %v9917
    %v9919 = vlaneseq
    %v9920 = vshrl.u32 %v9919, 7
    %v9921 = vsub.s32 %v9918, %v9920
    %v9922 = vrot.slane %v9908, %v9921
    %v9923 = vcombine.high %v9915, %v9915
    %v9925 = vunpack.c.l.s4 1966171168
    %v9926 = vunpack.c.0.s8 %v9925
    %v9927 = vlaneseq
    %v9928 = vshrl.u32 %v9927, 7
    %v9929 = vsub.s32 %v9926, %v9928
    %v9930 = vrot.slane %v9915, %v9929
    %v9932 = vunpack.c.l.s4 1966171168
    %v9933 = vunpack.c.0.s8 %v9932
    %v9934 = vlaneseq
    %v9935 = vshrl.u32 %v9934, 7
    %v9936 = vsub.s32 %v9933, %v9935
    %v9937 = vrot.slane %v9922, %v9936
    %v9939 = vunpack.c.l.s4 1966171168
    %v9940 = vunpack.c.0.s8 %v9939
    %v9941 = vlaneseq
    %v9942 = vshrl.u32 %v9941, 7
    %v9943 = vsub.s32 %v9940, %v9942
    %v9944 = vrot.slane %v9923, %v9943
    %v9945 = vcombine.high %v9930, %v9930
    %v9946 = vcombine.high %v9944, %v9944
    %v9947 = vcombine.low %v9615, %v9594
    %v9948 = vcombine.high %v9615, %v9594
    %v9950 = vunpack.c.l.s4 1966171168
    %v9951 = vunpack.c.0.s8 %v9950
    %v9952 = vlaneseq
    %v9953 = vshrl.u32 %v9952, 7
    %v9954 = vsub.s32 %v9951, %v9953
    %v9955 = vrot.slane %v9947, %v9954
    %v9957 = vunpack.c.l.s4 1966171168
    %v9958 = vunpack.c.0.s8 %v9957
    %v9959 = vlaneseq
    %v9960 = vshrl.u32 %v9959, 7
    %v9961 = vsub.s32 %v9958, %v9960
    %v9962 = vrot.slane %v9948, %v9961
    %v9963 = vcombine.high %v9955, %v9955
    %v9965 = vunpack.c.l.s4 1966171168
    %v9966 = vunpack.c.0.s8 %v9965
    %v9967 = vlaneseq
    %v9968 = vshrl.u32 %v9967, 7
    %v9969 = vsub.s32 %v9966, %v9968
    %v9970 = vrot.slane %v9955, %v9969
    %v9972 = vunpack.c.l.s4 1966171168
    %v9973 = vunpack.c.0.s8 %v9972
    %v9974 = vlaneseq
    %v9975 = vshrl.u32 %v9974, 7
    %v9976 = vsub.s32 %v9973, %v9975
    %v9977 = vrot.slane %v9962, %v9976
    %v9979 = vunpack.c.l.s4 1966171168
    %v9980 = vunpack.c.0.s8 %v9979
    %v9981 = vlaneseq
    %v9982 = vshrl.u32 %v9981, 7
    %v9983 = vsub.s32 %v9980, %v9982
    %v9984 = vrot.slane %v9963, %v9983
    %v9985 = vcombine.high %v9970, %v9970
    %v9986 = vcombine.high %v9984, %v9984
    %v9987 = vcombine.low %v9616, %v9596
    %v9988 = vcombine.high %v9616, %v9596
    %v9990 = vunpack.c.l.s4 1966171168
    %v9991 = vunpack.c.0.s8 %v9990
    %v9992 = vlaneseq
    %v9993 = vshrl.u32 %v9992, 7
    %v9994 = vsub.s32 %v9991, %v9993
    %v9995 = vrot.slane %v9987, %v9994
    %v9997 = vunpack.c.l.s4 1966171168
    %v9998 = vunpack.c.0.s8 %v9997
    %v9999 = vlaneseq
    %v10000 = vshrl.u32 %v9999, 7
    %v10001 = vsub.s32 %v9998, %v10000
    %v10002 = vrot.slane %v9988, %v10001
    %v10003 = vcombine.high %v9995, %v9995
    %v10005 = vunpack.c.l.s4 1966171168
    %v10006 = vunpack.c.0.s8 %v10005
    %v10007 = vlaneseq
    %v10008 = vshrl.u32 %v10007, 7
    %v10009 = vsub.s32 %v10006, %v10008
    %v10010 = vrot.slane %v9995, %v10009
    %v10012 = vunpack.c.l.s4 1966171168
    %v10013 = vunpack.c.0.s8 %v10012
    %v10014 = vlaneseq
    %v10015 = vshrl.u32 %v10014, 7
    %v10016 = vsub.s32 %v10013, %v10015
    %v10017 = vrot.slane %v10002, %v10016
    %v10019 = vunpack.c.l.s4 1966171168
    %v10020 = vunpack.c.0.s8 %v10019
    %v10021 = vlaneseq
    %v10022 = vshrl.u32 %v10021, 7
    %v10023 = vsub.s32 %v10020, %v10022
    %v10024 = vrot.slane %v10003, %v10023
    %v10025 = vcombine.high %v10010, %v10010
    %v10026 = vcombine.high %v10024, %v10024
    %v10027 = vcombine.low %v9650, %v9664
    %v10028 = vcombine.low %v9665, %v9666
    %v10029 = vcombine.low %v9657, %v9690
    %v10030 = vcombine.low %v9704, %v9705
    %v10032 = vunpack.c.l.s4 1966171168
    %v10033 = vunpack.c.0.s8 %v10032
    %v10034 = vlaneseq
    %v10035 = vshrl.u32 %v10034, 7
    %v10036 = vsub.s32 %v10033, %v10035
    %v10037 = vrot.slane %v10027, %v10036
    %v10039 = vunpack.c.l.s4 1966171168
    %v10040 = vunpack.c.0.s8 %v10039
    %v10041 = vlaneseq
    %v10042 = vshrl.u32 %v10041, 7
    %v10043 = vsub.s32 %v10040, %v10042
    %v10044 = vrot.slane %v10028, %v10043
    %v10046 = vunpack.c.l.s4 1966171168
    %v10047 = vunpack.c.0.s8 %v10046
    %v10048 = vlaneseq
    %v10049 = vshrl.u32 %v10048, 7
    %v10050 = vsub.s32 %v10047, %v10049
    %v10051 = vrot.slane %v10029, %v10050
    %v10053 = vunpack.c.l.s4 1966171168
    %v10054 = vunpack.c.0.s8 %v10053
    %v10055 = vlaneseq
    %v10056 = vshrl.u32 %v10055, 7
    %v10057 = vsub.s32 %v10054, %v10056
    %v10058 = vrot.slane %v10030, %v10057
    %v10059 = vcombine.low %v10037, %v10044
    %v10060 = vcombine.high %v10037, %v10044
    %v10061 = vcombine.low %v10051, %v10058
    %v10062 = vcombine.high %v10051, %v10058
    %v10064 = vunpack.c.l.s4 1966171168
    %v10065 = vunpack.c.0.s8 %v10064
    %v10066 = vlaneseq
    %v10067 = vshrl.u32 %v10066, 7
    %v10068 = vsub.s32 %v10065, %v10067
    %v10069 = vrot.slane %v10059, %v10068
    %v10071 = vunpack.c.l.s4 1966171168
    %v10072 = vunpack.c.0.s8 %v10071
    %v10073 = vlaneseq
    %v10074 = vshrl.u32 %v10073, 7
    %v10075 = vsub.s32 %v10072, %v10074
    %v10076 = vrot.slane %v10060, %v10075
    %v10078 = vunpack.c.l.s4 1966171168
    %v10079 = vunpack.c.0.s8 %v10078
    %v10080 = vlaneseq
    %v10081 = vshrl.u32 %v10080, 7
    %v10082 = vsub.s32 %v10079, %v10081
    %v10083 = vrot.slane %v10061, %v10082
    %v10085 = vunpack.c.l.s4 1966171168
    %v10086 = vunpack.c.0.s8 %v10085
    %v10087 = vlaneseq
    %v10088 = vshrl.u32 %v10087, 7
    %v10089 = vsub.s32 %v10086, %v10088
    %v10090 = vrot.slane %v10062, %v10089
    %v10091 = vcombine.low %v10069, %v10083
    %v10092 = vcombine.low %v10076, %v10090
    %v10093 = vcombine.low %v9706, %v9697
    %v10094 = vcombine.low %v9730, %v9744
    %v10095 = vcombine.low %v9745, %v9746
    %v10096 = vcombine.low %v9737, %v9770
    %v10098 = vunpack.c.l.s4 1966171168
    %v10099 = vunpack.c.0.s8 %v10098
    %v10100 = vlaneseq
    %v10101 = vshrl.u32 %v10100, 7
    %v10102 = vsub.s32 %v10099, %v10101
    %v10103 = vrot.slane %v10093, %v10102
    %v10105 = vunpack.c.l.s4 1966171168
    %v10106 = vunpack.c.0.s8 %v10105
    %v10107 = vlaneseq
    %v10108 = vshrl.u32 %v10107, 7
    %v10109 = vsub.s32 %v10106, %v10108
    %v10110 = vrot.slane %v10094, %v10109
    %v10112 = vunpack.c.l.s4 1966171168
    %v10113 = vunpack.c.0.s8 %v10112
    %v10114 = vlaneseq
    %v10115 = vshrl.u32 %v10114, 7
    %v10116 = vsub.s32 %v10113, %v10115
    %v10117 = vrot.slane %v10095, %v10116
    %v10119 = vunpack.c.l.s4 1966171168
    %v10120 = vunpack.c.0.s8 %v10119
    %v10121 = vlaneseq
    %v10122 = vshrl.u32 %v10121, 7
    %v10123 = vsub.s32 %v10120, %v10122
    %v10124 = vrot.slane %v10096, %v10123
    %v10125 = vcombine.low %v10103, %v10110
    %v10126 = vcombine.high %v10103, %v10110
    %v10127 = vcombine.low %v10117, %v10124
    %v10128 = vcombine.high %v10117, %v10124
    %v10130 = vunpack.c.l.s4 1966171168
    %v10131 = vunpack.c.0.s8 %v10130
    %v10132 = vlaneseq
    %v10133 = vshrl.u32 %v10132, 7
    %v10134 = vsub.s32 %v10131, %v10133
    %v10135 = vrot.slane %v10125, %v10134
    %v10137 = vunpack.c.l.s4 1966171168
    %v10138 = vunpack.c.0.s8 %v10137
    %v10139 = vlaneseq
    %v10140 = vshrl.u32 %v10139, 7
    %v10141 = vsub.s32 %v10138, %v10140
    %v10142 = vrot.slane %v10126, %v10141
    %v10144 = vunpack.c.l.s4 1966171168
    %v10145 = vunpack.c.0.s8 %v10144
    %v10146 = vlaneseq
    %v10147 = vshrl.u32 %v10146, 7
    %v10148 = vsub.s32 %v10145, %v10147
    %v10149 = vrot.slane %v10127, %v10148
    %v10151 = vunpack.c.l.s4 1966171168
    %v10152 = vunpack.c.0.s8 %v10151
    %v10153 = vlaneseq
    %v10154 = vshrl.u32 %v10153, 7
    %v10155 = vsub.s32 %v10152, %v10154
    %v10156 = vrot.slane %v10128, %v10155
    %v10157 = vcombine.low %v10135, %v10149
    %v10158 = vcombine.low %v10142, %v10156
    %v10159 = vcombine.low %v9784, %v9785
    %v10160 = vcombine.low %v9786, %v9777
    %v10161 = vcombine.low %v9810, %v9824
    %v10162 = vcombine.low %v9825, %v9826
    %v10164 = vunpack.c.l.s4 1966171168
    %v10165 = vunpack.c.0.s8 %v10164
    %v10166 = vlaneseq
    %v10167 = vshrl.u32 %v10166, 7
    %v10168 = vsub.s32 %v10165, %v10167
    %v10169 = vrot.slane %v10159, %v10168
    %v10171 = vunpack.c.l.s4 1966171168
    %v10172 = vunpack.c.0.s8 %v10171
    %v10173 = vlaneseq
    %v10174 = vshrl.u32 %v10173, 7
    %v10175 = vsub.s32 %v10172, %v10174
    %v10176 = vrot.slane %v10160, %v10175
    %v10178 = vunpack.c.l.s4 1966171168
    %v10179 = vunpack.c.0.s8 %v10178
    %v10180 = vlaneseq
    %v10181 = vshrl.u32 %v10180, 7
    %v10182 = vsub.s32 %v10179, %v10181
    %v10183 = vrot.slane %v10161, %v10182
    %v10185 = vunpack.c.l.s4 1966171168
    %v10186 = vunpack.c.0.s8 %v10185
    %v10187 = vlaneseq
    %v10188 = vshrl.u32 %v10187, 7
    %v10189 = vsub.s32 %v10186, %v10188
    %v10190 = vrot.slane %v10162, %v10189
    %v10191 = vcombine.low %v10169, %v10176
    %v10192 = vcombine.high %v10169, %v10176
    %v10193 = vcombine.low %v10183, %v10190
    %v10194 = vcombine.high %v10183, %v10190
    %v10196 = vunpack.c.l.s4 1966171168
    %v10197 = vunpack.c.0.s8 %v10196
    %v10198 = vlaneseq
    %v10199 = vshrl.u32 %v10198, 7
    %v10200 = vsub.s32 %v10197, %v10199
    %v10201 = vrot.slane %v10191, %v10200
    %v10203 = vunpack.c.l.s4 1966171168
    %v10204 = vunpack.c.0.s8 %v10203
    %v10205 = vlaneseq
    %v10206 = vshrl.u32 %v10205, 7
    %v10207 = vsub.s32 %v10204, %v10206
    %v10208 = vrot.slane %v10192, %v10207
    %v10210 = vunpack.c.l.s4 1966171168
    %v10211 = vunpack.c.0.s8 %v10210
    %v10212 = vlaneseq
    %v10213 = vshrl.u32 %v10212, 7
    %v10214 = vsub.s32 %v10211, %v10213
    %v10215 = vrot.slane %v10193, %v10214
    %v10217 = vunpack.c.l.s4 1966171168
    %v10218 = vunpack.c.0.s8 %v10217
    %v10219 = vlaneseq
    %v10220 = vshrl.u32 %v10219, 7
    %v10221 = vsub.s32 %v10218, %v10220
    %v10222 = vrot.slane %v10194, %v10221
    %v10223 = vcombine.low %v10201, %v10215
    %v10224 = vcombine.low %v10208, %v10222
    %v10225 = vcombine.low %v9817, %v9850
    %v10226 = vcombine.low %v9864, %v9865
    %v10227 = vcombine.low %v9866, %v9857
    %v10228 = vcombine.low %v9890, %v9904
    %v10230 = vunpack.c.l.s4 1966171168
    %v10231 = vunpack.c.0.s8 %v10230
    %v10232 = vlaneseq
    %v10233 = vshrl.u32 %v10232, 7
    %v10234 = vsub.s32 %v10231, %v10233
    %v10235 = vrot.slane %v10225, %v10234
    %v10237 = vunpack.c.l.s4 1966171168
    %v10238 = vunpack.c.0.s8 %v10237
    %v10239 = vlaneseq
    %v10240 = vshrl.u32 %v10239, 7
    %v10241 = vsub.s32 %v10238, %v10240
    %v10242 = vrot.slane %v10226, %v10241
    %v10244 = vunpack.c.l.s4 1966171168
    %v10245 = vunpack.c.0.s8 %v10244
    %v10246 = vlaneseq
    %v10247 = vshrl.u32 %v10246, 7
    %v10248 = vsub.s32 %v10245, %v10247
    %v10249 = vrot.slane %v10227, %v10248
    %v10251 = vunpack.c.l.s4 1966171168
    %v10252 = vunpack.c.0.s8 %v10251
    %v10253 = vlaneseq
    %v10254 = vshrl.u32 %v10253, 7
    %v10255 = vsub.s32 %v10252, %v10254
    %v10256 = vrot.slane %v10228, %v10255
    %v10257 = vcombine.low %v10235, %v10242
    %v10258 = vcombine.high %v10235, %v10242
    %v10259 = vcombine.low %v10249, %v10256
    %v10260 = vcombine.high %v10249, %v10256
    %v10262 = vunpack.c.l.s4 1966171168
    %v10263 = vunpack.c.0.s8 %v10262
    %v10264 = vlaneseq
    %v10265 = vshrl.u32 %v10264, 7
    %v10266 = vsub.s32 %v10263, %v10265
    %v10267 = vrot.slane %v10257, %v10266
    %v10269 = vunpack.c.l.s4 1966171168
    %v10270 = vunpack.c.0.s8 %v10269
    %v10271 = vlaneseq
    %v10272 = vshrl.u32 %v10271, 7
    %v10273 = vsub.s32 %v10270, %v10272
    %v10274 = vrot.slane %v10258, %v10273
    %v10276 = vunpack.c.l.s4 1966171168
    %v10277 = vunpack.c.0.s8 %v10276
    %v10278 = vlaneseq
    %v10279 = vshrl.u32 %v10278, 7
    %v10280 = vsub.s32 %v10277, %v10279
    %v10281 = vrot.slane %v10259, %v10280
    %v10283 = vunpack.c.l.s4 1966171168
    %v10284 = vunpack.c.0.s8 %v10283
    %v10285 = vlaneseq
    %v10286 = vshrl.u32 %v10285, 7
    %v10287 = vsub.s32 %v10284, %v10286
    %v10288 = vrot.slane %v10260, %v10287
    %v10289 = vcombine.low %v10267, %v10281
    %v10290 = vcombine.low %v10274, %v10288
    %v10291 = vcombine.low %v9905, %v9906
    %v10292 = vcombine.low %v9897, %v9930
    %v10293 = vcombine.low %v9944, %v9945
    %v10294 = vcombine.low %v9946, %v9937
    %v10296 = vunpack.c.l.s4 1966171168
    %v10297 = vunpack.c.0.s8 %v10296
    %v10298 = vlaneseq
    %v10299 = vshrl.u32 %v10298, 7
    %v10300 = vsub.s32 %v10297, %v10299
    %v10301 = vrot.slane %v10291, %v10300
    %v10303 = vunpack.c.l.s4 1966171168
    %v10304 = vunpack.c.0.s8 %v10303
    %v10305 = vlaneseq
    %v10306 = vshrl.u32 %v10305, 7
    %v10307 = vsub.s32 %v10304, %v10306
    %v10308 = vrot.slane %v10292, %v10307
    %v10310 = vunpack.c.l.s4 1966171168
    %v10311 = vunpack.c.0.s8 %v10310
    %v10312 = vlaneseq
    %v10313 = vshrl.u32 %v10312, 7
    %v10314 = vsub.s32 %v10311, %v10313
    %v10315 = vrot.slane %v10293, %v10314
    %v10317 = vunpack.c.l.s4 1966171168
    %v10318 = vunpack.c.0.s8 %v10317
    %v10319 = vlaneseq
    %v10320 = vshrl.u32 %v10319, 7
    %v10321 = vsub.s32 %v10318, %v10320
    %v10322 = vrot.slane %v10294, %v10321
    %v10323 = vcombine.low %v10301, %v10308
    %v10324 = vcombine.high %v10301, %v10308
    %v10325 = vcombine.low %v10315, %v10322
    %v10326 = vcombine.high %v10315, %v10322
    %v10328 = vunpack.c.l.s4 1966171168
    %v10329 = vunpack.c.0.s8 %v10328
    %v10330 = vlaneseq
    %v10331 = vshrl.u32 %v10330, 7
    %v10332 = vsub.s32 %v10329, %v10331
    %v10333 = vrot.slane %v10323, %v10332
    %v10335 = vunpack.c.l.s4 1966171168
    %v10336 = vunpack.c.0.s8 %v10335
    %v10337 = vlaneseq
    %v10338 = vshrl.u32 %v10337, 7
    %v10339 = vsub.s32 %v10336, %v10338
    %v10340 = vrot.slane %v10324, %v10339
    %v10342 = vunpack.c.l.s4 1966171168
    %v10343 = vunpack.c.0.s8 %v10342
    %v10344 = vlaneseq
    %v10345 = vshrl.u32 %v10344, 7
    %v10346 = vsub.s32 %v10343, %v10345
    %v10347 = vrot.slane %v10325, %v10346
    %v10349 = vunpack.c.l.s4 1966171168
    %v10350 = vunpack.c.0.s8 %v10349
    %v10351 = vlaneseq
    %v10352 = vshrl.u32 %v10351, 7
    %v10353 = vsub.s32 %v10350, %v10352
    %v10354 = vrot.slane %v10326, %v10353
    %v10355 = vcombine.low %v10333, %v10347
    %v10356 = vcombine.low %v10340, %v10354
    %v10357 = vcombine.low %v9970, %v9984
    %v10358 = vcombine.low %v9985, %v9986
    %v10359 = vcombine.low %v9977, %v10010
    %v10360 = vcombine.low %v10024, %v10025
    %v10362 = vunpack.c.l.s4 1966171168
    %v10363 = vunpack.c.0.s8 %v10362
    %v10364 = vlaneseq
    %v10365 = vshrl.u32 %v10364, 7
    %v10366 = vsub.s32 %v10363, %v10365
    %v10367 = vrot.slane %v10357, %v10366
    %v10369 = vunpack.c.l.s4 1966171168
    %v10370 = vunpack.c.0.s8 %v10369
    %v10371 = vlaneseq
    %v10372 = vshrl.u32 %v10371, 7
    %v10373 = vsub.s32 %v10370, %v10372
    %v10374 = vrot.slane %v10358, %v10373
    %v10376 = vunpack.c.l.s4 1966171168
    %v10377 = vunpack.c.0.s8 %v10376
    %v10378 = vlaneseq
    %v10379 = vshrl.u32 %v10378, 7
    %v10380 = vsub.s32 %v10377, %v10379
    %v10381 = vrot.slane %v10359, %v10380
    %v10383 = vunpack.c.l.s4 1966171168
    %v10384 = vunpack.c.0.s8 %v10383
    %v10385 = vlaneseq
    %v10386 = vshrl.u32 %v10385, 7
    %v10387 = vsub.s32 %v10384, %v10386
    %v10388 = vrot.slane %v10360, %v10387
    %v10389 = vcombine.low %v10367, %v10374
    %v10390 = vcombine.high %v10367, %v10374
    %v10391 = vcombine.low %v10381, %v10388
    %v10392 = vcombine.high %v10381, %v10388
    %v10394 = vunpack.c.l.s4 1966171168
    %v10395 = vunpack.c.0.s8 %v10394
    %v10396 = vlaneseq
    %v10397 = vshrl.u32 %v10396, 7
    %v10398 = vsub.s32 %v10395, %v10397
    %v10399 = vrot.slane %v10389, %v10398
    %v10401 = vunpack.c.l.s4 1966171168
    %v10402 = vunpack.c.0.s8 %v10401
    %v10403 = vlaneseq
    %v10404 = vshrl.u32 %v10403, 7
    %v10405 = vsub.s32 %v10402, %v10404
    %v10406 = vrot.slane %v10390, %v10405
    %v10408 = vunpack.c.l.s4 1966171168
    %v10409 = vunpack.c.0.s8 %v10408
    %v10410 = vlaneseq
    %v10411 = vshrl.u32 %v10410, 7
    %v10412 = vsub.s32 %v10409, %v10411
    %v10413 = vrot.slane %v10391, %v10412
    %v10415 = vunpack.c.l.s4 1966171168
    %v10416 = vunpack.c.0.s8 %v10415
    %v10417 = vlaneseq
    %v10418 = vshrl.u32 %v10417, 7
    %v10419 = vsub.s32 %v10416, %v10418
    %v10420 = vrot.slane %v10392, %v10419
    %v10421 = vcombine.low %v10399, %v10413
    %v10422 = vcombine.low %v10406, %v10420
    %v10423 = vcombine.low %v10026, %v10017
    %v10425 = vunpack.c.l.s4 1966171168
    %v10426 = vunpack.c.0.s8 %v10425
    %v10427 = vlaneseq
    %v10428 = vshrl.u32 %v10427, 7
    %v10429 = vsub.s32 %v10426, %v10428
    %v10430 = vrot.slane %v10423, %v10429
    %v10431 = vcombine.high %v10430, %v10430
    %v10433 = vunpack.c.l.s4 1966171168
    %v10434 = vunpack.c.0.s8 %v10433
    %v10435 = vlaneseq
    %v10436 = vshrl.u32 %v10435, 7
    %v10437 = vsub.s32 %v10434, %v10436
    %v10438 = vrot.slane %v10430, %v10437
    %v10440 = vunpack.c.l.s4 1966171168
    %v10441 = vunpack.c.0.s8 %v10440
    %v10442 = vlaneseq
    %v10443 = vshrl.u32 %v10442, 7
    %v10444 = vsub.s32 %v10441, %v10443
    %v10445 = vrot.slane %v10431, %v10444
    %v10460 = vpack.c.bf16 %v10157, %v10091
    %v10461 = vpack.c.bf16 %v10158, %v10092
    %v10462 = vpack.c.bf16 %v10289, %v10223
    %v10463 = vpack.c.bf16 %v10290, %v10224
    %v10464 = vpack.c.bf16 %v10421, %v10355
    %v10465 = vpack.c.bf16 %v10422, %v10356
    %v10466 = vpack.c.bf16 %v10438, %v10438
    %v10467 = vpack.c.bf16 %v10445, %v10445
    %v10469 = vsel %vm7332, %v10461, 0
    %v10472 = vsel %vm7332, %v10463, 0
    %v10475 = vsel %vm7332, %v10465, 0
    %v10478 = vsel %vm7332, %v10467, 0
    %10480 = vmatprep.subr.bf16.mxu0 0
    %10481 = vmatpush1.bf16.msra.mxu0 %v7313
    %10482 = vmatprep.subr.bf16.mxu0 0
    %10483 = vmatpush1.bf16.msra.mxu0 %v7314
    %10484 = vmatprep.subr.bf16.mxu0 0
    %10485 = vmatpush1.bf16.msra.mxu0 %v7315
    %10486 = vmatprep.subr.bf16.mxu0 0
    %10487 = vmatpush1.bf16.msra.mxu0 %v7316
    %10488 = vmatprep.subr.bf16.mxu0 0
    %10489 = vmatpush1.bf16.msra.mxu0 %v7317
    %10490 = vmatprep.subr.bf16.mxu0 0
    %10491 = vmatpush1.bf16.msra.mxu0 %v7318
    %10492 = vmatprep.subr.bf16.mxu0 0
    %10493 = vmatpush1.bf16.msra.mxu0 %v7319
    %10494 = vmatprep.subr.bf16.mxu0 0
    %10495 = vmatpush1.bf16.msra.mxu0 %v7320
    %10496 = vmatprep.subr.bf16.mxu0 0
    %10497 = vmatpush1.bf16.msra.mxu0 %v7321
    %10498 = vmatprep.subr.bf16.mxu0 0
    %10499 = vmatpush1.bf16.msra.mxu0 %v7347
    %10500 = vmatprep.subr.bf16.mxu0 0
    %10501 = vmatpush1.bf16.msra.mxu0 0
    %10502 = vmatprep.subr.bf16.mxu0 0
    %10503 = vmatpush1.bf16.msra.mxu0 0
    %10504 = vmatprep.subr.bf16.mxu0 0
    %10505 = vmatpush1.bf16.msra.mxu0 0
    %10506 = vmatprep.subr.bf16.mxu0 0
    %10507 = vmatpush1.bf16.msra.mxu0 0
    %10508 = vmatprep.subr.bf16.mxu0 0
    %10509 = vmatpush1.bf16.msra.mxu0 0
    %10510 = vmatprep.subr.bf16.mxu0 0
    %10511 = vmatpush1.bf16.msra.mxu0 0
    %10512 = vmatprep.mubr.bf16.mxu0 %v10469
    %10513 = vmatmul.mubr.bf16.gmra.mrb[0].mxu0 %v10460
    %v10514 = vpop.f32.mrb[0].mxu0
    %v10515 = vadd.f32 0.0, %v10514
    %v10516 = vpop.f32.mrb[0].mxu0
    %v10517 = vpop.f32.mrb[0].mxu0
    %v10518 = vadd.f32 0.0, %v10517
    %v10519 = vpop.f32.mrb[0].mxu0
    %10520 = vmatprep.mubr.bf16.mxu0 %v10472
    %10521 = vmatmul.mubr.bf16.gmra.mrb[0].mxu0 %v10462
    %v10522 = vpop.f32.mrb[0].mxu0
    %v10523 = vadd.f32 0.0, %v10522
    %v10524 = vpop.f32.mrb[0].mxu0
    %v10525 = vpop.f32.mrb[0].mxu0
    %v10526 = vadd.f32 0.0, %v10525
    %v10527 = vpop.f32.mrb[0].mxu0
    %10528 = vmatprep.mubr.bf16.mxu0 %v10475
    %10529 = vmatmul.mubr.bf16.gmra.mrb[0].mxu0 %v10464
    %v10530 = vpop.f32.mrb[0].mxu0
    %v10531 = vadd.f32 0.0, %v10530
    %v10532 = vpop.f32.mrb[0].mxu0
    %v10533 = vpop.f32.mrb[0].mxu0
    %v10534 = vadd.f32 0.0, %v10533
    %v10535 = vpop.f32.mrb[0].mxu0
    %10536 = vmatprep.mubr.bf16.mxu0 %v10478
    %10537 = vmatmul.mubr.bf16.gmra.mrb[0].mxu0 %v10466
    %v10538 = vpop.f32.mrb[0].mxu0
    %v10539 = vadd.f32 0.0, %v10538
    %v10540 = vpop.f32.mrb[0].mxu0
    %v10541 = vpop.f32.mrb[0].mxu0
    %v10542 = vpop.f32.mrb[0].mxu0
    %10543 = vdwg.mxu0
    %v10544 = vmax.f32 %v8996, %v10515
    %v10545 = vmax.f32 %v8997, %v10518
    %v10546 = vmax.f32 %v8998, %v10523
    %v10547 = vmax.f32 %v8999, %v10526
    %v10548 = vmax.f32 %v9000, %v10531
    %v10549 = vmax.f32 %v9001, %v10534
    %v10550 = vmax.f32 %v9002, %v10539
    %10551 = vrot.lane.b32.xlu0 %v4132, 110
    %v10552 = vpop.permute.xlu0 %10551
    %10553 = vrot.lane.b32.xlu0 %v4327, 110
    %v10554 = vpop.permute.xlu0 %10553
    %10557 = vrot.lane.b32.xlu0 %v4542, 122
    %v10558 = vpop.permute.xlu0 %10557
    %10559 = vrot.lane.b32.xlu0 %v4737, 122
    %v10560 = vpop.permute.xlu0 %10559
    %10563 = vrot.lane.b32.xlu0 %v4964, 6
    %v10564 = vpop.permute.xlu0 %10563
    %10565 = vrot.lane.b32.xlu0 %v5119, 6
    %v10566 = vpop.permute.xlu0 %10565
    %10569 = vrot.lane.b32.xlu0 %v4171, 24
    %v10570 = vpop.permute.xlu0 %10569
    %10571 = vrot.lane.b32.xlu0 %v4366, 24
    %v10572 = vpop.permute.xlu0 %10571
    %10575 = vrot.lane.b32.xlu0 %v4581, 36
    %v10576 = vpop.permute.xlu0 %10575
    %10577 = vrot.lane.b32.xlu0 %v4776, 36
    %v10578 = vpop.permute.xlu0 %10577
    %10581 = vrot.lane.b32.xlu0 %v4995, 48
    %v10582 = vpop.permute.xlu0 %10581
    %10583 = vrot.lane.b32.xlu0 %v5150, 48
    %v10584 = vpop.permute.xlu0 %10583
    %10587 = vrot.lane.b32.xlu0 %v4171, 42
    %v10588 = vpop.permute.xlu0 %10587
    %10589 = vrot.lane.b32.xlu0 %v4210, 42
    %v10590 = vpop.permute.xlu0 %10589
    %10591 = vrot.lane.b32.xlu0 %v4249, 42
    %v10592 = vpop.permute.xlu0 %10591
    %10593 = vrot.lane.b32.xlu0 %v4288, 42
    %v10594 = vpop.permute.xlu0 %10593
    %10595 = vrot.lane.b32.xlu0 %v5412, 42
    %v10596 = vpop.permute.xlu0 %10595
    %10597 = vrot.lane.b32.xlu0 %v4366, 42
    %v10598 = vpop.permute.xlu0 %10597
    %10599 = vrot.lane.b32.xlu0 %v4405, 42
    %v10600 = vpop.permute.xlu0 %10599
    %10601 = vrot.lane.b32.xlu0 %v4444, 42
    %v10602 = vpop.permute.xlu0 %10601
    %10603 = vrot.lane.b32.xlu0 %v4483, 42
    %v10604 = vpop.permute.xlu0 %10603
    %10605 = vrot.lane.b32.xlu0 %v5451, 42
    %v10606 = vpop.permute.xlu0 %10605
    %10617 = vrot.lane.b32.xlu0 %v4581, 54
    %v10618 = vpop.permute.xlu0 %10617
    %10619 = vrot.lane.b32.xlu0 %v4620, 54
    %v10620 = vpop.permute.xlu0 %10619
    %10621 = vrot.lane.b32.xlu0 %v4659, 54
    %v10622 = vpop.permute.xlu0 %10621
    %10623 = vrot.lane.b32.xlu0 %v4698, 54
    %v10624 = vpop.permute.xlu0 %10623
    %10625 = vrot.lane.b32.xlu0 %v5522, 54
    %v10626 = vpop.permute.xlu0 %10625
    %10627 = vrot.lane.b32.xlu0 %v4776, 54
    %v10628 = vpop.permute.xlu0 %10627
    %10629 = vrot.lane.b32.xlu0 %v4815, 54
    %v10630 = vpop.permute.xlu0 %10629
    %10631 = vrot.lane.b32.xlu0 %v4854, 54
    %v10632 = vpop.permute.xlu0 %10631
    %10633 = vrot.lane.b32.xlu0 %v4893, 54
    %v10634 = vpop.permute.xlu0 %10633
    %10635 = vrot.lane.b32.xlu0 %v5561, 54
    %v10636 = vpop.permute.xlu0 %10635
    %10647 = vrot.lane.b32.xlu0 %v4995, 66
    %v10648 = vpop.permute.xlu0 %10647
    %10649 = vrot.lane.b32.xlu0 %v5026, 66
    %v10650 = vpop.permute.xlu0 %10649
    %10651 = vrot.lane.b32.xlu0 %v5057, 66
    %v10652 = vpop.permute.xlu0 %10651
    %10653 = vrot.lane.b32.xlu0 %v5088, 66
    %v10654 = vpop.permute.xlu0 %10653
    %10655 = vrot.lane.b32.xlu0 %v5624, 66
    %v10656 = vpop.permute.xlu0 %10655
    %10657 = vrot.lane.b32.xlu0 %v5150, 66
    %v10658 = vpop.permute.xlu0 %10657
    %10659 = vrot.lane.b32.xlu0 %v5181, 66
    %v10660 = vpop.permute.xlu0 %10659
    %10661 = vrot.lane.b32.xlu0 %v5212, 66
    %v10662 = vpop.permute.xlu0 %10661
    %10663 = vrot.lane.b32.xlu0 %v5243, 66
    %v10664 = vpop.permute.xlu0 %10663
    %10665 = vrot.lane.b32.xlu0 %v5655, 66
    %v10666 = vpop.permute.xlu0 %10665
    %10677 = vrot.lane.b32.xlu0 %v4210, 84
    %v10678 = vpop.permute.xlu0 %10677
    %10679 = vrot.lane.b32.xlu0 %v4249, 84
    %v10680 = vpop.permute.xlu0 %10679
    %10681 = vrot.lane.b32.xlu0 %v4288, 84
    %v10682 = vpop.permute.xlu0 %10681
    %10683 = vrot.lane.b32.xlu0 %v5412, 84
    %v10684 = vpop.permute.xlu0 %10683
    %10685 = vrot.lane.b32.xlu0 %v6019, 84
    %v10686 = vpop.permute.xlu0 %10685
    %10687 = vrot.lane.b32.xlu0 %v4405, 84
    %v10688 = vpop.permute.xlu0 %10687
    %10689 = vrot.lane.b32.xlu0 %v4444, 84
    %v10690 = vpop.permute.xlu0 %10689
    %10691 = vrot.lane.b32.xlu0 %v4483, 84
    %v10692 = vpop.permute.xlu0 %10691
    %10693 = vrot.lane.b32.xlu0 %v5451, 84
    %v10694 = vpop.permute.xlu0 %10693
    %10695 = vrot.lane.b32.xlu0 %v6058, 84
    %v10696 = vpop.permute.xlu0 %10695
    %v10707 = vsel %vm5716, %v10552, %v10558
    %v10708 = vsel %vm5716, %v10554, %v10560
    %v10709 = vsel %vm5727, %v10707, %v10558
    %v10710 = vsel %vm5727, %v10708, %v10560
    %v10711 = vsel %vm5738, %v10709, %v10564
    %v10712 = vsel %vm5738, %v10710, %v10566
    %v10713 = vsel %vm5749, %v10711, %v10564
    %v10714 = vsel %vm5749, %v6313, %v5942
    %v10715 = vsel %vm5749, %v6314, %v5944
    %v10716 = vsel %vm5749, %v6315, %v5946
    %v10717 = vsel %vm5749, %v6316, %v5948
    %v10718 = vsel %vm5749, %v10712, %v10566
    %v10719 = vsel %vm5749, %v6318, %v5952
    %v10720 = vsel %vm5749, %v6319, %v5954
    %v10721 = vsel %vm5749, %v6320, %v5956
    %v10722 = vsel %vm5749, %v6321, %v5958
    %v10723 = vsel %vm5760, %v10713, %v10570
    %v10724 = vsel %vm5760, %v10714, %v6060
    %v10725 = vsel %vm5760, %v10715, %v6062
    %v10726 = vsel %vm5760, %v10716, %v6064
    %v10727 = vsel %vm5760, %v10717, %v6066
    %v10728 = vsel %vm5760, %v10718, %v10572
    %v10729 = vsel %vm5760, %v10719, %v6070
    %v10730 = vsel %vm5760, %v10720, %v6072
    %v10731 = vsel %vm5760, %v10721, %v6074
    %v10732 = vsel %vm5760, %v10722, %v6076
    %v10733 = vsel %vm5771, %v10723, %v10576
    %v10734 = vsel %vm5771, %v10724, %v6170
    %v10735 = vsel %vm5771, %v10725, %v6172
    %v10736 = vsel %vm5771, %v10726, %v6174
    %v10737 = vsel %vm5771, %v10727, %v6176
    %v10738 = vsel %vm5771, %v10728, %v10578
    %v10739 = vsel %vm5771, %v10729, %v6180
    %v10740 = vsel %vm5771, %v10730, %v6182
    %v10741 = vsel %vm5771, %v10731, %v6184
    %v10742 = vsel %vm5771, %v10732, %v6186
    %v10743 = vsel %vm5782, %v10733, %v10576
    %v10744 = vsel %vm5782, %v10734, %v6170
    %v10745 = vsel %vm5782, %v10735, %v6172
    %v10746 = vsel %vm5782, %v10736, %v6174
    %v10747 = vsel %vm5782, %v10737, %v6176
    %v10748 = vsel %vm5782, %v10738, %v10578
    %v10749 = vsel %vm5782, %v10739, %v6180
    %v10750 = vsel %vm5782, %v10740, %v6182
    %v10751 = vsel %vm5782, %v10741, %v6184
    %v10752 = vsel %vm5782, %v10742, %v6186
    %v10753 = vsel %vm5793, %v10743, %v10582
    %v10754 = vsel %vm5793, %v10744, %v6264
    %v10755 = vsel %vm5793, %v10745, %v6266
    %v10756 = vsel %vm5793, %v10746, %v6268
    %v10757 = vsel %vm5793, %v10747, %v6270
    %v10758 = vsel %vm5793, %v10748, %v10584
    %v10759 = vsel %vm5793, %v10749, %v6274
    %v10760 = vsel %vm5793, %v10750, %v6276
    %v10761 = vsel %vm5793, %v10751, %v6278
    %v10762 = vsel %vm5793, %v10752, %v6280
    %v10763 = vsel %vm5804, %v10753, %v10582
    %v10764 = vsel %vm5804, %v10754, %v6264
    %v10765 = vsel %vm5804, %v10755, %v6266
    %v10766 = vsel %vm5804, %v10756, %v6268
    %v10767 = vsel %vm5804, %v10757, %v6270
    %v10768 = vsel %vm5804, %v10758, %v10584
    %v10769 = vsel %vm5804, %v10759, %v6274
    %v10770 = vsel %vm5804, %v10760, %v6276
    %v10771 = vsel %vm5804, %v10761, %v6278
    %v10772 = vsel %vm5804, %v10762, %v6280
    %v10773 = vsel %vm5815, %v10763, %v10588
    %v10774 = vsel %vm5815, %v10764, %v10590
    %v10775 = vsel %vm5815, %v10765, %v10592
    %v10776 = vsel %vm5815, %v10766, %v10594
    %v10777 = vsel %vm5815, %v10767, %v10596
    %v10778 = vsel %vm5815, %v10768, %v10598
    %v10779 = vsel %vm5815, %v10769, %v10600
    %v10780 = vsel %vm5815, %v10770, %v10602
    %v10781 = vsel %vm5815, %v10771, %v10604
    %v10782 = vsel %vm5815, %v10772, %v10606
    %v10783 = vsel %vm5826, %v10773, %v10618
    %v10784 = vsel %vm5826, %v10774, %v10620
    %v10785 = vsel %vm5826, %v10775, %v10622
    %v10786 = vsel %vm5826, %v10776, %v10624
    %v10787 = vsel %vm5826, %v10777, %v10626
    %v10788 = vsel %vm5826, %v10778, %v10628
    %v10789 = vsel %vm5826, %v10779, %v10630
    %v10790 = vsel %vm5826, %v10780, %v10632
    %v10791 = vsel %vm5826, %v10781, %v10634
    %v10792 = vsel %vm5826, %v10782, %v10636
    %v10793 = vsel %vm5837, %v10783, %v10618
    %v10794 = vsel %vm5837, %v10784, %v10620
    %v10795 = vsel %vm5837, %v10785, %v10622
    %v10796 = vsel %vm5837, %v10786, %v10624
    %v10797 = vsel %vm5837, %v10787, %v10626
    %v10798 = vsel %vm5837, %v10788, %v10628
    %v10799 = vsel %vm5837, %v10789, %v10630
    %v10800 = vsel %vm5837, %v10790, %v10632
    %v10801 = vsel %vm5837, %v10791, %v10634
    %v10802 = vsel %vm5837, %v10792, %v10636
    %v10803 = vsel %vm5848, %v10793, %v10648
    %v10804 = vsel %vm5848, %v10794, %v10650
    %v10805 = vsel %vm5848, %v10795, %v10652
    %v10806 = vsel %vm5848, %v10796, %v10654
    %v10807 = vsel %vm5848, %v10797, %v10656
    %v10808 = vsel %vm5848, %v10798, %v10658
    %v10809 = vsel %vm5848, %v10799, %v10660
    %v10810 = vsel %vm5848, %v10800, %v10662
    %v10811 = vsel %vm5848, %v10801, %v10664
    %v10812 = vsel %vm5848, %v10802, %v10666
    %v10813 = vsel %vm5859, %v10803, %v10648
    %v10814 = vsel %vm5859, %v10804, %v10650
    %v10815 = vsel %vm5859, %v10805, %v10652
    %v10816 = vsel %vm5859, %v10806, %v10654
    %v10817 = vsel %vm5859, %v10807, %v10656
    %v10818 = vsel %vm5859, %v10808, %v10658
    %v10819 = vsel %vm5859, %v10809, %v10660
    %v10820 = vsel %vm5859, %v10810, %v10662
    %v10821 = vsel %vm5859, %v10811, %v10664
    %v10822 = vsel %vm5859, %v10812, %v10666
    %v10823 = vsel %vm5870, %v10813, %v10678
    %v10824 = vsel %vm5870, %v10814, %v10680
    %v10825 = vsel %vm5870, %v10815, %v10682
    %v10826 = vsel %vm5870, %v10816, %v10684
    %v10827 = vsel %vm5870, %v10817, %v10686
    %v10828 = vsel %vm5870, %v10818, %v10688
    %v10829 = vsel %vm5870, %v10819, %v10690
    %v10830 = vsel %vm5870, %v10820, %v10692
    %v10831 = vsel %vm5870, %v10821, %v10694
    %v10832 = vsel %vm5870, %v10822, %v10696
    %10837 = vrot.lane.b32.xlu0 %v5624, 12
    %v10838 = vpop.permute.xlu0 %10837
    %10839 = vrot.lane.b32.xlu0 %v6231, 12
    %v10840 = vpop.permute.xlu0 %10839
    %10841 = vrot.lane.b32.xlu0 %v5655, 12
    %v10842 = vpop.permute.xlu0 %10841
    %10843 = vrot.lane.b32.xlu0 %v6262, 12
    %v10844 = vpop.permute.xlu0 %10843
    %10849 = vrot.lane.b32.xlu0 %v4210, 6
    %v10850 = vpop.permute.xlu0 %10849
    %10851 = vrot.lane.b32.xlu0 %v4249, 6
    %v10852 = vpop.permute.xlu0 %10851
    %10853 = vrot.lane.b32.xlu0 %v4288, 6
    %v10854 = vpop.permute.xlu0 %10853
    %10855 = vrot.lane.b32.xlu0 %v5412, 6
    %v10856 = vpop.permute.xlu0 %10855
    %10857 = vrot.lane.b32.xlu0 %v6019, 6
    %v10858 = vpop.permute.xlu0 %10857
    %10859 = vrot.lane.b32.xlu0 %v4405, 6
    %v10860 = vpop.permute.xlu0 %10859
    %10861 = vrot.lane.b32.xlu0 %v4444, 6
    %v10862 = vpop.permute.xlu0 %10861
    %10863 = vrot.lane.b32.xlu0 %v4483, 6
    %v10864 = vpop.permute.xlu0 %10863
    %10865 = vrot.lane.b32.xlu0 %v5451, 6
    %v10866 = vpop.permute.xlu0 %10865
    %10867 = vrot.lane.b32.xlu0 %v6058, 6
    %v10868 = vpop.permute.xlu0 %10867
    %10879 = vrot.lane.b32.xlu0 %v4620, 18
    %v10880 = vpop.permute.xlu0 %10879
    %10881 = vrot.lane.b32.xlu0 %v4659, 18
    %v10882 = vpop.permute.xlu0 %10881
    %10883 = vrot.lane.b32.xlu0 %v4698, 18
    %v10884 = vpop.permute.xlu0 %10883
    %10885 = vrot.lane.b32.xlu0 %v5522, 18
    %v10886 = vpop.permute.xlu0 %10885
    %10887 = vrot.lane.b32.xlu0 %v6129, 18
    %v10888 = vpop.permute.xlu0 %10887
    %10889 = vrot.lane.b32.xlu0 %v4815, 18
    %v10890 = vpop.permute.xlu0 %10889
    %10891 = vrot.lane.b32.xlu0 %v4854, 18
    %v10892 = vpop.permute.xlu0 %10891
    %10893 = vrot.lane.b32.xlu0 %v4893, 18
    %v10894 = vpop.permute.xlu0 %10893
    %10895 = vrot.lane.b32.xlu0 %v5561, 18
    %v10896 = vpop.permute.xlu0 %10895
    %10897 = vrot.lane.b32.xlu0 %v6168, 18
    %v10898 = vpop.permute.xlu0 %10897
    %10909 = vrot.lane.b32.xlu0 %v5026, 30
    %v10910 = vpop.permute.xlu0 %10909
    %10911 = vrot.lane.b32.xlu0 %v5057, 30
    %v10912 = vpop.permute.xlu0 %10911
    %10913 = vrot.lane.b32.xlu0 %v5088, 30
    %v10914 = vpop.permute.xlu0 %10913
    %10915 = vrot.lane.b32.xlu0 %v5624, 30
    %v10916 = vpop.permute.xlu0 %10915
    %10917 = vrot.lane.b32.xlu0 %v6231, 30
    %v10918 = vpop.permute.xlu0 %10917
    %10919 = vrot.lane.b32.xlu0 %v5181, 30
    %v10920 = vpop.permute.xlu0 %10919
    %10921 = vrot.lane.b32.xlu0 %v5212, 30
    %v10922 = vpop.permute.xlu0 %10921
    %10923 = vrot.lane.b32.xlu0 %v5243, 30
    %v10924 = vpop.permute.xlu0 %10923
    %10925 = vrot.lane.b32.xlu0 %v5655, 30
    %v10926 = vpop.permute.xlu0 %10925
    %10927 = vrot.lane.b32.xlu0 %v6262, 30
    %v10928 = vpop.permute.xlu0 %10927
    %v10939 = vsel %vm5716, %v4620, %v4620
    %v10940 = vsel %vm5716, %v4659, %v4659
    %v10941 = vsel %vm5716, %v4698, %v4698
    %v10942 = vsel %vm5716, %v5522, %v5522
    %v10943 = vsel %vm5716, %v6129, %v6129
    %v10944 = vsel %vm5716, %v4815, %v4815
    %v10945 = vsel %vm5716, %v4854, %v4854
    %v10946 = vsel %vm5716, %v4893, %v4893
    %v10947 = vsel %vm5716, %v5561, %v5561
    %v10948 = vsel %vm5716, %v6168, %v6168
    %v10949 = vsel %vm5727, %v10939, %v9048
    %v10950 = vsel %vm5727, %v10940, %v9050
    %v10951 = vsel %vm5727, %v10941, %v9052
    %v10952 = vsel %vm5727, %v10942, %v10838
    %v10953 = vsel %vm5727, %v10943, %v10840
    %v10954 = vsel %vm5727, %v10944, %v9058
    %v10955 = vsel %vm5727, %v10945, %v9060
    %v10956 = vsel %vm5727, %v10946, %v9062
    %v10957 = vsel %vm5727, %v10947, %v10842
    %v10958 = vsel %vm5727, %v10948, %v10844
    %v10959 = vsel %vm5738, %v10949, %v9048
    %v10960 = vsel %vm5738, %v10950, %v9050
    %v10961 = vsel %vm5738, %v10951, %v9052
    %v10962 = vsel %vm5738, %v10952, %v10838
    %v10963 = vsel %vm5738, %v10953, %v10840
    %v10964 = vsel %vm5738, %v10954, %v9058
    %v10965 = vsel %vm5738, %v10955, %v9060
    %v10966 = vsel %vm5738, %v10956, %v9062
    %v10967 = vsel %vm5738, %v10957, %v10842
    %v10968 = vsel %vm5738, %v10958, %v10844
    %v10969 = vsel %vm5749, %v10959, %v10850
    %v10970 = vsel %vm5749, %v10960, %v10852
    %v10971 = vsel %vm5749, %v10961, %v10854
    %v10972 = vsel %vm5749, %v10962, %v10856
    %v10973 = vsel %vm5749, %v10963, %v10858
    %v10974 = vsel %vm5749, %v10964, %v10860
    %v10975 = vsel %vm5749, %v10965, %v10862
    %v10976 = vsel %vm5749, %v10966, %v10864
    %v10977 = vsel %vm5749, %v10967, %v10866
    %v10978 = vsel %vm5749, %v10968, %v10868
    %v10979 = vsel %vm5760, %v10969, %v10880
    %v10980 = vsel %vm5760, %v10970, %v10882
    %v10981 = vsel %vm5760, %v10971, %v10884
    %v10982 = vsel %vm5760, %v10972, %v10886
    %v10983 = vsel %vm5760, %v10973, %v10888
    %v10984 = vsel %vm5760, %v10974, %v10890
    %v10985 = vsel %vm5760, %v10975, %v10892
    %v10986 = vsel %vm5760, %v10976, %v10894
    %v10987 = vsel %vm5760, %v10977, %v10896
    %v10988 = vsel %vm5760, %v10978, %v10898
    %v10989 = vsel %vm5771, %v10979, %v10880
    %v10990 = vsel %vm5771, %v10980, %v10882
    %v10991 = vsel %vm5771, %v10981, %v10884
    %v10992 = vsel %vm5771, %v10982, %v10886
    %v10993 = vsel %vm5771, %v10983, %v10888
    %v10994 = vsel %vm5771, %v10984, %v10890
    %v10995 = vsel %vm5771, %v10985, %v10892
    %v10996 = vsel %vm5771, %v10986, %v10894
    %v10997 = vsel %vm5771, %v10987, %v10896
    %v10998 = vsel %vm5771, %v10988, %v10898
    %v10999 = vsel %vm5782, %v10989, %v10910
    %v11000 = vsel %vm5782, %v10990, %v10912
    %v11001 = vsel %vm5782, %v10991, %v10914
    %v11002 = vsel %vm5782, %v10992, %v10916
    %v11003 = vsel %vm5782, %v10993, %v10918
    %v11004 = vsel %vm5782, %v10994, %v10920
    %v11005 = vsel %vm5782, %v10995, %v10922
    %v11006 = vsel %vm5782, %v10996, %v10924
    %v11007 = vsel %vm5782, %v10997, %v10926
    %v11008 = vsel %vm5782, %v10998, %v10928
    %v11009 = vsel %vm5793, %v10999, %v10910
    %v11010 = vsel %vm5793, %v11000, %v10912
    %v11011 = vsel %vm5793, %v11001, %v10914
    %v11012 = vsel %vm5793, %v11002, %v10916
    %v11013 = vsel %vm5793, %v11003, %v10918
    %v11014 = vsel %vm5793, %v11004, %v10920
    %v11015 = vsel %vm5793, %v11005, %v10922
    %v11016 = vsel %vm5793, %v11006, %v10924
    %v11017 = vsel %vm5793, %v11007, %v10926
    %v11018 = vsel %vm5793, %v11008, %v10928
    %11029 = vrot.lane.b32.xlu0 %v11009, 96
    %v11030 = vpop.permute.xlu0 %11029
    %11031 = vrot.lane.b32.xlu0 %v11010, 96
    %v11032 = vpop.permute.xlu0 %11031
    %11033 = vrot.lane.b32.xlu0 %v11011, 96
    %v11034 = vpop.permute.xlu0 %11033
    %11035 = vrot.lane.b32.xlu0 %v11012, 96
    %v11036 = vpop.permute.xlu0 %11035
    %11037 = vrot.lane.b32.xlu0 %v11013, 96
    %v11038 = vpop.permute.xlu0 %11037
    %11039 = vrot.lane.b32.xlu0 %v11014, 96
    %v11040 = vpop.permute.xlu0 %11039
    %11041 = vrot.lane.b32.xlu0 %v11015, 96
    %v11042 = vpop.permute.xlu0 %11041
    %11043 = vrot.lane.b32.xlu0 %v11016, 96
    %v11044 = vpop.permute.xlu0 %11043
    %11045 = vrot.lane.b32.xlu0 %v11017, 96
    %v11046 = vpop.permute.xlu0 %11045
    %11047 = vrot.lane.b32.xlu0 %v11018, 96
    %v11048 = vpop.permute.xlu0 %11047
    %v11059 = vsel %vm6413, %v10823, %v11030
    %v11060 = vsel %vm6413, %v10824, %v11032
    %v11061 = vsel %vm6413, %v10825, %v11034
    %v11062 = vsel %vm6413, %v10826, %v11036
    %v11063 = vsel %vm6413, %v10827, %v11038
    %v11064 = vsel %vm6413, %v10828, %v11040
    %v11065 = vsel %vm6413, %v10829, %v11042
    %v11066 = vsel %vm6413, %v10830, %v11044
    %v11067 = vsel %vm6413, %v10831, %v11046
    %v11068 = vsel %vm6413, %v10832, %v11048
    %v11079 = vcombine.low %v11059, %v11030
    %v11080 = vcombine.high %v11059, %v11030
    %v11082 = vunpack.c.l.s4 1966171168
    %v11083 = vunpack.c.0.s8 %v11082
    %v11084 = vlaneseq
    %v11085 = vshrl.u32 %v11084, 7
    %v11086 = vsub.s32 %v11083, %v11085
    %v11087 = vrot.slane %v11079, %v11086
    %v11089 = vunpack.c.l.s4 1966171168
    %v11090 = vunpack.c.0.s8 %v11089
    %v11091 = vlaneseq
    %v11092 = vshrl.u32 %v11091, 7
    %v11093 = vsub.s32 %v11090, %v11092
    %v11094 = vrot.slane %v11080, %v11093
    %v11095 = vcombine.high %v11087, %v11087
    %v11097 = vunpack.c.l.s4 1966171168
    %v11098 = vunpack.c.0.s8 %v11097
    %v11099 = vlaneseq
    %v11100 = vshrl.u32 %v11099, 7
    %v11101 = vsub.s32 %v11098, %v11100
    %v11102 = vrot.slane %v11087, %v11101
    %v11104 = vunpack.c.l.s4 1966171168
    %v11105 = vunpack.c.0.s8 %v11104
    %v11106 = vlaneseq
    %v11107 = vshrl.u32 %v11106, 7
    %v11108 = vsub.s32 %v11105, %v11107
    %v11109 = vrot.slane %v11094, %v11108
    %v11111 = vunpack.c.l.s4 1966171168
    %v11112 = vunpack.c.0.s8 %v11111
    %v11113 = vlaneseq
    %v11114 = vshrl.u32 %v11113, 7
    %v11115 = vsub.s32 %v11112, %v11114
    %v11116 = vrot.slane %v11095, %v11115
    %v11117 = vcombine.high %v11102, %v11102
    %v11118 = vcombine.high %v11116, %v11116
    %v11119 = vcombine.low %v11060, %v11032
    %v11120 = vcombine.high %v11060, %v11032
    %v11122 = vunpack.c.l.s4 1966171168
    %v11123 = vunpack.c.0.s8 %v11122
    %v11124 = vlaneseq
    %v11125 = vshrl.u32 %v11124, 7
    %v11126 = vsub.s32 %v11123, %v11125
    %v11127 = vrot.slane %v11119, %v11126
    %v11129 = vunpack.c.l.s4 1966171168
    %v11130 = vunpack.c.0.s8 %v11129
    %v11131 = vlaneseq
    %v11132 = vshrl.u32 %v11131, 7
    %v11133 = vsub.s32 %v11130, %v11132
    %v11134 = vrot.slane %v11120, %v11133
    %v11135 = vcombine.high %v11127, %v11127
    %v11137 = vunpack.c.l.s4 1966171168
    %v11138 = vunpack.c.0.s8 %v11137
    %v11139 = vlaneseq
    %v11140 = vshrl.u32 %v11139, 7
    %v11141 = vsub.s32 %v11138, %v11140
    %v11142 = vrot.slane %v11127, %v11141
    %v11144 = vunpack.c.l.s4 1966171168
    %v11145 = vunpack.c.0.s8 %v11144
    %v11146 = vlaneseq
    %v11147 = vshrl.u32 %v11146, 7
    %v11148 = vsub.s32 %v11145, %v11147
    %v11149 = vrot.slane %v11134, %v11148
    %v11151 = vunpack.c.l.s4 1966171168
    %v11152 = vunpack.c.0.s8 %v11151
    %v11153 = vlaneseq
    %v11154 = vshrl.u32 %v11153, 7
    %v11155 = vsub.s32 %v11152, %v11154
    %v11156 = vrot.slane %v11135, %v11155
    %v11157 = vcombine.high %v11142, %v11142
    %v11158 = vcombine.high %v11156, %v11156
    %v11159 = vcombine.low %v11061, %v11034
    %v11160 = vcombine.high %v11061, %v11034
    %v11162 = vunpack.c.l.s4 1966171168
    %v11163 = vunpack.c.0.s8 %v11162
    %v11164 = vlaneseq
    %v11165 = vshrl.u32 %v11164, 7
    %v11166 = vsub.s32 %v11163, %v11165
    %v11167 = vrot.slane %v11159, %v11166
    %v11169 = vunpack.c.l.s4 1966171168
    %v11170 = vunpack.c.0.s8 %v11169
    %v11171 = vlaneseq
    %v11172 = vshrl.u32 %v11171, 7
    %v11173 = vsub.s32 %v11170, %v11172
    %v11174 = vrot.slane %v11160, %v11173
    %v11175 = vcombine.high %v11167, %v11167
    %v11177 = vunpack.c.l.s4 1966171168
    %v11178 = vunpack.c.0.s8 %v11177
    %v11179 = vlaneseq
    %v11180 = vshrl.u32 %v11179, 7
    %v11181 = vsub.s32 %v11178, %v11180
    %v11182 = vrot.slane %v11167, %v11181
    %v11184 = vunpack.c.l.s4 1966171168
    %v11185 = vunpack.c.0.s8 %v11184
    %v11186 = vlaneseq
    %v11187 = vshrl.u32 %v11186, 7
    %v11188 = vsub.s32 %v11185, %v11187
    %v11189 = vrot.slane %v11174, %v11188
    %v11191 = vunpack.c.l.s4 1966171168
    %v11192 = vunpack.c.0.s8 %v11191
    %v11193 = vlaneseq
    %v11194 = vshrl.u32 %v11193, 7
    %v11195 = vsub.s32 %v11192, %v11194
    %v11196 = vrot.slane %v11175, %v11195
    %v11197 = vcombine.high %v11182, %v11182
    %v11198 = vcombine.high %v11196, %v11196
    %v11199 = vcombine.low %v11062, %v11036
    %v11200 = vcombine.high %v11062, %v11036
    %v11202 = vunpack.c.l.s4 1966171168
    %v11203 = vunpack.c.0.s8 %v11202
    %v11204 = vlaneseq
    %v11205 = vshrl.u32 %v11204, 7
    %v11206 = vsub.s32 %v11203, %v11205
    %v11207 = vrot.slane %v11199, %v11206
    %v11209 = vunpack.c.l.s4 1966171168
    %v11210 = vunpack.c.0.s8 %v11209
    %v11211 = vlaneseq
    %v11212 = vshrl.u32 %v11211, 7
    %v11213 = vsub.s32 %v11210, %v11212
    %v11214 = vrot.slane %v11200, %v11213
    %v11215 = vcombine.high %v11207, %v11207
    %v11217 = vunpack.c.l.s4 1966171168
    %v11218 = vunpack.c.0.s8 %v11217
    %v11219 = vlaneseq
    %v11220 = vshrl.u32 %v11219, 7
    %v11221 = vsub.s32 %v11218, %v11220
    %v11222 = vrot.slane %v11207, %v11221
    %v11224 = vunpack.c.l.s4 1966171168
    %v11225 = vunpack.c.0.s8 %v11224
    %v11226 = vlaneseq
    %v11227 = vshrl.u32 %v11226, 7
    %v11228 = vsub.s32 %v11225, %v11227
    %v11229 = vrot.slane %v11214, %v11228
    %v11231 = vunpack.c.l.s4 1966171168
    %v11232 = vunpack.c.0.s8 %v11231
    %v11233 = vlaneseq
    %v11234 = vshrl.u32 %v11233, 7
    %v11235 = vsub.s32 %v11232, %v11234
    %v11236 = vrot.slane %v11215, %v11235
    %v11237 = vcombine.high %v11222, %v11222
    %v11238 = vcombine.high %v11236, %v11236
    %v11239 = vcombine.low %v11063, %v11038
    %v11240 = vcombine.high %v11063, %v11038
    %v11242 = vunpack.c.l.s4 1966171168
    %v11243 = vunpack.c.0.s8 %v11242
    %v11244 = vlaneseq
    %v11245 = vshrl.u32 %v11244, 7
    %v11246 = vsub.s32 %v11243, %v11245
    %v11247 = vrot.slane %v11239, %v11246
    %v11249 = vunpack.c.l.s4 1966171168
    %v11250 = vunpack.c.0.s8 %v11249
    %v11251 = vlaneseq
    %v11252 = vshrl.u32 %v11251, 7
    %v11253 = vsub.s32 %v11250, %v11252
    %v11254 = vrot.slane %v11240, %v11253
    %v11255 = vcombine.high %v11247, %v11247
    %v11257 = vunpack.c.l.s4 1966171168
    %v11258 = vunpack.c.0.s8 %v11257
    %v11259 = vlaneseq
    %v11260 = vshrl.u32 %v11259, 7
    %v11261 = vsub.s32 %v11258, %v11260
    %v11262 = vrot.slane %v11247, %v11261
    %v11264 = vunpack.c.l.s4 1966171168
    %v11265 = vunpack.c.0.s8 %v11264
    %v11266 = vlaneseq
    %v11267 = vshrl.u32 %v11266, 7
    %v11268 = vsub.s32 %v11265, %v11267
    %v11269 = vrot.slane %v11254, %v11268
    %v11271 = vunpack.c.l.s4 1966171168
    %v11272 = vunpack.c.0.s8 %v11271
    %v11273 = vlaneseq
    %v11274 = vshrl.u32 %v11273, 7
    %v11275 = vsub.s32 %v11272, %v11274
    %v11276 = vrot.slane %v11255, %v11275
    %v11277 = vcombine.high %v11262, %v11262
    %v11278 = vcombine.high %v11276, %v11276
    %v11279 = vcombine.low %v11064, %v11040
    %v11280 = vcombine.high %v11064, %v11040
    %v11282 = vunpack.c.l.s4 1966171168
    %v11283 = vunpack.c.0.s8 %v11282
    %v11284 = vlaneseq
    %v11285 = vshrl.u32 %v11284, 7
    %v11286 = vsub.s32 %v11283, %v11285
    %v11287 = vrot.slane %v11279, %v11286
    %v11289 = vunpack.c.l.s4 1966171168
    %v11290 = vunpack.c.0.s8 %v11289
    %v11291 = vlaneseq
    %v11292 = vshrl.u32 %v11291, 7
    %v11293 = vsub.s32 %v11290, %v11292
    %v11294 = vrot.slane %v11280, %v11293
    %v11295 = vcombine.high %v11287, %v11287
    %v11297 = vunpack.c.l.s4 1966171168
    %v11298 = vunpack.c.0.s8 %v11297
    %v11299 = vlaneseq
    %v11300 = vshrl.u32 %v11299, 7
    %v11301 = vsub.s32 %v11298, %v11300
    %v11302 = vrot.slane %v11287, %v11301
    %v11304 = vunpack.c.l.s4 1966171168
    %v11305 = vunpack.c.0.s8 %v11304
    %v11306 = vlaneseq
    %v11307 = vshrl.u32 %v11306, 7
    %v11308 = vsub.s32 %v11305, %v11307
    %v11309 = vrot.slane %v11294, %v11308
    %v11311 = vunpack.c.l.s4 1966171168
    %v11312 = vunpack.c.0.s8 %v11311
    %v11313 = vlaneseq
    %v11314 = vshrl.u32 %v11313, 7
    %v11315 = vsub.s32 %v11312, %v11314
    %v11316 = vrot.slane %v11295, %v11315
    %v11317 = vcombine.high %v11302, %v11302
    %v11318 = vcombine.high %v11316, %v11316
    %v11319 = vcombine.low %v11065, %v11042
    %v11320 = vcombine.high %v11065, %v11042
    %v11322 = vunpack.c.l.s4 1966171168
    %v11323 = vunpack.c.0.s8 %v11322
    %v11324 = vlaneseq
    %v11325 = vshrl.u32 %v11324, 7
    %v11326 = vsub.s32 %v11323, %v11325
    %v11327 = vrot.slane %v11319, %v11326
    %v11329 = vunpack.c.l.s4 1966171168
    %v11330 = vunpack.c.0.s8 %v11329
    %v11331 = vlaneseq
    %v11332 = vshrl.u32 %v11331, 7
    %v11333 = vsub.s32 %v11330, %v11332
    %v11334 = vrot.slane %v11320, %v11333
    %v11335 = vcombine.high %v11327, %v11327
    %v11337 = vunpack.c.l.s4 1966171168
    %v11338 = vunpack.c.0.s8 %v11337
    %v11339 = vlaneseq
    %v11340 = vshrl.u32 %v11339, 7
    %v11341 = vsub.s32 %v11338, %v11340
    %v11342 = vrot.slane %v11327, %v11341
    %v11344 = vunpack.c.l.s4 1966171168
    %v11345 = vunpack.c.0.s8 %v11344
    %v11346 = vlaneseq
    %v11347 = vshrl.u32 %v11346, 7
    %v11348 = vsub.s32 %v11345, %v11347
    %v11349 = vrot.slane %v11334, %v11348
    %v11351 = vunpack.c.l.s4 1966171168
    %v11352 = vunpack.c.0.s8 %v11351
    %v11353 = vlaneseq
    %v11354 = vshrl.u32 %v11353, 7
    %v11355 = vsub.s32 %v11352, %v11354
    %v11356 = vrot.slane %v11335, %v11355
    %v11357 = vcombine.high %v11342, %v11342
    %v11358 = vcombine.high %v11356, %v11356
    %v11359 = vcombine.low %v11066, %v11044
    %v11360 = vcombine.high %v11066, %v11044
    %v11362 = vunpack.c.l.s4 1966171168
    %v11363 = vunpack.c.0.s8 %v11362
    %v11364 = vlaneseq
    %v11365 = vshrl.u32 %v11364, 7
    %v11366 = vsub.s32 %v11363, %v11365
    %v11367 = vrot.slane %v11359, %v11366
    %v11369 = vunpack.c.l.s4 1966171168
    %v11370 = vunpack.c.0.s8 %v11369
    %v11371 = vlaneseq
    %v11372 = vshrl.u32 %v11371, 7
    %v11373 = vsub.s32 %v11370, %v11372
    %v11374 = vrot.slane %v11360, %v11373
    %v11375 = vcombine.high %v11367, %v11367
    %v11377 = vunpack.c.l.s4 1966171168
    %v11378 = vunpack.c.0.s8 %v11377
    %v11379 = vlaneseq
    %v11380 = vshrl.u32 %v11379, 7
    %v11381 = vsub.s32 %v11378, %v11380
    %v11382 = vrot.slane %v11367, %v11381
    %v11384 = vunpack.c.l.s4 1966171168
    %v11385 = vunpack.c.0.s8 %v11384
    %v11386 = vlaneseq
    %v11387 = vshrl.u32 %v11386, 7
    %v11388 = vsub.s32 %v11385, %v11387
    %v11389 = vrot.slane %v11374, %v11388
    %v11391 = vunpack.c.l.s4 1966171168
    %v11392 = vunpack.c.0.s8 %v11391
    %v11393 = vlaneseq
    %v11394 = vshrl.u32 %v11393, 7
    %v11395 = vsub.s32 %v11392, %v11394
    %v11396 = vrot.slane %v11375, %v11395
    %v11397 = vcombine.high %v11382, %v11382
    %v11398 = vcombine.high %v11396, %v11396
    %v11399 = vcombine.low %v11067, %v11046
    %v11400 = vcombine.high %v11067, %v11046
    %v11402 = vunpack.c.l.s4 1966171168
    %v11403 = vunpack.c.0.s8 %v11402
    %v11404 = vlaneseq
    %v11405 = vshrl.u32 %v11404, 7
    %v11406 = vsub.s32 %v11403, %v11405
    %v11407 = vrot.slane %v11399, %v11406
    %v11409 = vunpack.c.l.s4 1966171168
    %v11410 = vunpack.c.0.s8 %v11409
    %v11411 = vlaneseq
    %v11412 = vshrl.u32 %v11411, 7
    %v11413 = vsub.s32 %v11410, %v11412
    %v11414 = vrot.slane %v11400, %v11413
    %v11415 = vcombine.high %v11407, %v11407
    %v11417 = vunpack.c.l.s4 1966171168
    %v11418 = vunpack.c.0.s8 %v11417
    %v11419 = vlaneseq
    %v11420 = vshrl.u32 %v11419, 7
    %v11421 = vsub.s32 %v11418, %v11420
    %v11422 = vrot.slane %v11407, %v11421
    %v11424 = vunpack.c.l.s4 1966171168
    %v11425 = vunpack.c.0.s8 %v11424
    %v11426 = vlaneseq
    %v11427 = vshrl.u32 %v11426, 7
    %v11428 = vsub.s32 %v11425, %v11427
    %v11429 = vrot.slane %v11414, %v11428
    %v11431 = vunpack.c.l.s4 1966171168
    %v11432 = vunpack.c.0.s8 %v11431
    %v11433 = vlaneseq
    %v11434 = vshrl.u32 %v11433, 7
    %v11435 = vsub.s32 %v11432, %v11434
    %v11436 = vrot.slane %v11415, %v11435
    %v11437 = vcombine.high %v11422, %v11422
    %v11438 = vcombine.high %v11436, %v11436
    %v11439 = vcombine.low %v11068, %v11048
    %v11440 = vcombine.high %v11068, %v11048
    %v11442 = vunpack.c.l.s4 1966171168
    %v11443 = vunpack.c.0.s8 %v11442
    %v11444 = vlaneseq
    %v11445 = vshrl.u32 %v11444, 7
    %v11446 = vsub.s32 %v11443, %v11445
    %v11447 = vrot.slane %v11439, %v11446
    %v11449 = vunpack.c.l.s4 1966171168
    %v11450 = vunpack.c.0.s8 %v11449
    %v11451 = vlaneseq
    %v11452 = vshrl.u32 %v11451, 7
    %v11453 = vsub.s32 %v11450, %v11452
    %v11454 = vrot.slane %v11440, %v11453
    %v11455 = vcombine.high %v11447, %v11447
    %v11457 = vunpack.c.l.s4 1966171168
    %v11458 = vunpack.c.0.s8 %v11457
    %v11459 = vlaneseq
    %v11460 = vshrl.u32 %v11459, 7
    %v11461 = vsub.s32 %v11458, %v11460
    %v11462 = vrot.slane %v11447, %v11461
    %v11464 = vunpack.c.l.s4 1966171168
    %v11465 = vunpack.c.0.s8 %v11464
    %v11466 = vlaneseq
    %v11467 = vshrl.u32 %v11466, 7
    %v11468 = vsub.s32 %v11465, %v11467
    %v11469 = vrot.slane %v11454, %v11468
    %v11471 = vunpack.c.l.s4 1966171168
    %v11472 = vunpack.c.0.s8 %v11471
    %v11473 = vlaneseq
    %v11474 = vshrl.u32 %v11473, 7
    %v11475 = vsub.s32 %v11472, %v11474
    %v11476 = vrot.slane %v11455, %v11475
    %v11477 = vcombine.high %v11462, %v11462
    %v11478 = vcombine.high %v11476, %v11476
    %v11479 = vcombine.low %v11102, %v11116
    %v11480 = vcombine.low %v11117, %v11118
    %v11481 = vcombine.low %v11109, %v11142
    %v11482 = vcombine.low %v11156, %v11157
    %v11484 = vunpack.c.l.s4 1966171168
    %v11485 = vunpack.c.0.s8 %v11484
    %v11486 = vlaneseq
    %v11487 = vshrl.u32 %v11486, 7
    %v11488 = vsub.s32 %v11485, %v11487
    %v11489 = vrot.slane %v11479, %v11488
    %v11491 = vunpack.c.l.s4 1966171168
    %v11492 = vunpack.c.0.s8 %v11491
    %v11493 = vlaneseq
    %v11494 = vshrl.u32 %v11493, 7
    %v11495 = vsub.s32 %v11492, %v11494
    %v11496 = vrot.slane %v11480, %v11495
    %v11498 = vunpack.c.l.s4 1966171168
    %v11499 = vunpack.c.0.s8 %v11498
    %v11500 = vlaneseq
    %v11501 = vshrl.u32 %v11500, 7
    %v11502 = vsub.s32 %v11499, %v11501
    %v11503 = vrot.slane %v11481, %v11502
    %v11505 = vunpack.c.l.s4 1966171168
    %v11506 = vunpack.c.0.s8 %v11505
    %v11507 = vlaneseq
    %v11508 = vshrl.u32 %v11507, 7
    %v11509 = vsub.s32 %v11506, %v11508
    %v11510 = vrot.slane %v11482, %v11509
    %v11511 = vcombine.low %v11489, %v11496
    %v11512 = vcombine.high %v11489, %v11496
    %v11513 = vcombine.low %v11503, %v11510
    %v11514 = vcombine.high %v11503, %v11510
    %v11516 = vunpack.c.l.s4 1966171168
    %v11517 = vunpack.c.0.s8 %v11516
    %v11518 = vlaneseq
    %v11519 = vshrl.u32 %v11518, 7
    %v11520 = vsub.s32 %v11517, %v11519
    %v11521 = vrot.slane %v11511, %v11520
    %v11523 = vunpack.c.l.s4 1966171168
    %v11524 = vunpack.c.0.s8 %v11523
    %v11525 = vlaneseq
    %v11526 = vshrl.u32 %v11525, 7
    %v11527 = vsub.s32 %v11524, %v11526
    %v11528 = vrot.slane %v11512, %v11527
    %v11530 = vunpack.c.l.s4 1966171168
    %v11531 = vunpack.c.0.s8 %v11530
    %v11532 = vlaneseq
    %v11533 = vshrl.u32 %v11532, 7
    %v11534 = vsub.s32 %v11531, %v11533
    %v11535 = vrot.slane %v11513, %v11534
    %v11537 = vunpack.c.l.s4 1966171168
    %v11538 = vunpack.c.0.s8 %v11537
    %v11539 = vlaneseq
    %v11540 = vshrl.u32 %v11539, 7
    %v11541 = vsub.s32 %v11538, %v11540
    %v11542 = vrot.slane %v11514, %v11541
    %v11543 = vcombine.low %v11521, %v11535
    %v11544 = vcombine.low %v11528, %v11542
    %v11545 = vcombine.low %v11158, %v11149
    %v11546 = vcombine.low %v11182, %v11196
    %v11547 = vcombine.low %v11197, %v11198
    %v11548 = vcombine.low %v11189, %v11222
    %v11550 = vunpack.c.l.s4 1966171168
    %v11551 = vunpack.c.0.s8 %v11550
    %v11552 = vlaneseq
    %v11553 = vshrl.u32 %v11552, 7
    %v11554 = vsub.s32 %v11551, %v11553
    %v11555 = vrot.slane %v11545, %v11554
    %v11557 = vunpack.c.l.s4 1966171168
    %v11558 = vunpack.c.0.s8 %v11557
    %v11559 = vlaneseq
    %v11560 = vshrl.u32 %v11559, 7
    %v11561 = vsub.s32 %v11558, %v11560
    %v11562 = vrot.slane %v11546, %v11561
    %v11564 = vunpack.c.l.s4 1966171168
    %v11565 = vunpack.c.0.s8 %v11564
    %v11566 = vlaneseq
    %v11567 = vshrl.u32 %v11566, 7
    %v11568 = vsub.s32 %v11565, %v11567
    %v11569 = vrot.slane %v11547, %v11568
    %v11571 = vunpack.c.l.s4 1966171168
    %v11572 = vunpack.c.0.s8 %v11571
    %v11573 = vlaneseq
    %v11574 = vshrl.u32 %v11573, 7
    %v11575 = vsub.s32 %v11572, %v11574
    %v11576 = vrot.slane %v11548, %v11575
    %v11577 = vcombine.low %v11555, %v11562
    %v11578 = vcombine.high %v11555, %v11562
    %v11579 = vcombine.low %v11569, %v11576
    %v11580 = vcombine.high %v11569, %v11576
    %v11582 = vunpack.c.l.s4 1966171168
    %v11583 = vunpack.c.0.s8 %v11582
    %v11584 = vlaneseq
    %v11585 = vshrl.u32 %v11584, 7
    %v11586 = vsub.s32 %v11583, %v11585
    %v11587 = vrot.slane %v11577, %v11586
    %v11589 = vunpack.c.l.s4 1966171168
    %v11590 = vunpack.c.0.s8 %v11589
    %v11591 = vlaneseq
    %v11592 = vshrl.u32 %v11591, 7
    %v11593 = vsub.s32 %v11590, %v11592
    %v11594 = vrot.slane %v11578, %v11593
    %v11596 = vunpack.c.l.s4 1966171168
    %v11597 = vunpack.c.0.s8 %v11596
    %v11598 = vlaneseq
    %v11599 = vshrl.u32 %v11598, 7
    %v11600 = vsub.s32 %v11597, %v11599
    %v11601 = vrot.slane %v11579, %v11600
    %v11603 = vunpack.c.l.s4 1966171168
    %v11604 = vunpack.c.0.s8 %v11603
    %v11605 = vlaneseq
    %v11606 = vshrl.u32 %v11605, 7
    %v11607 = vsub.s32 %v11604, %v11606
    %v11608 = vrot.slane %v11580, %v11607
    %v11609 = vcombine.low %v11587, %v11601
    %v11610 = vcombine.low %v11594, %v11608
    %v11611 = vcombine.low %v11236, %v11237
    %v11612 = vcombine.low %v11238, %v11229
    %v11613 = vcombine.low %v11262, %v11276
    %v11614 = vcombine.low %v11277, %v11278
    %v11616 = vunpack.c.l.s4 1966171168
    %v11617 = vunpack.c.0.s8 %v11616
    %v11618 = vlaneseq
    %v11619 = vshrl.u32 %v11618, 7
    %v11620 = vsub.s32 %v11617, %v11619
    %v11621 = vrot.slane %v11611, %v11620
    %v11623 = vunpack.c.l.s4 1966171168
    %v11624 = vunpack.c.0.s8 %v11623
    %v11625 = vlaneseq
    %v11626 = vshrl.u32 %v11625, 7
    %v11627 = vsub.s32 %v11624, %v11626
    %v11628 = vrot.slane %v11612, %v11627
    %v11630 = vunpack.c.l.s4 1966171168
    %v11631 = vunpack.c.0.s8 %v11630
    %v11632 = vlaneseq
    %v11633 = vshrl.u32 %v11632, 7
    %v11634 = vsub.s32 %v11631, %v11633
    %v11635 = vrot.slane %v11613, %v11634
    %v11637 = vunpack.c.l.s4 1966171168
    %v11638 = vunpack.c.0.s8 %v11637
    %v11639 = vlaneseq
    %v11640 = vshrl.u32 %v11639, 7
    %v11641 = vsub.s32 %v11638, %v11640
    %v11642 = vrot.slane %v11614, %v11641
    %v11643 = vcombine.low %v11621, %v11628
    %v11644 = vcombine.high %v11621, %v11628
    %v11645 = vcombine.low %v11635, %v11642
    %v11646 = vcombine.high %v11635, %v11642
    %v11648 = vunpack.c.l.s4 1966171168
    %v11649 = vunpack.c.0.s8 %v11648
    %v11650 = vlaneseq
    %v11651 = vshrl.u32 %v11650, 7
    %v11652 = vsub.s32 %v11649, %v11651
    %v11653 = vrot.slane %v11643, %v11652
    %v11655 = vunpack.c.l.s4 1966171168
    %v11656 = vunpack.c.0.s8 %v11655
    %v11657 = vlaneseq
    %v11658 = vshrl.u32 %v11657, 7
    %v11659 = vsub.s32 %v11656, %v11658
    %v11660 = vrot.slane %v11644, %v11659
    %v11662 = vunpack.c.l.s4 1966171168
    %v11663 = vunpack.c.0.s8 %v11662
    %v11664 = vlaneseq
    %v11665 = vshrl.u32 %v11664, 7
    %v11666 = vsub.s32 %v11663, %v11665
    %v11667 = vrot.slane %v11645, %v11666
    %v11669 = vunpack.c.l.s4 1966171168
    %v11670 = vunpack.c.0.s8 %v11669
    %v11671 = vlaneseq
    %v11672 = vshrl.u32 %v11671, 7
    %v11673 = vsub.s32 %v11670, %v11672
    %v11674 = vrot.slane %v11646, %v11673
    %v11675 = vcombine.low %v11653, %v11667
    %v11676 = vcombine.low %v11660, %v11674
    %v11677 = vcombine.low %v11269, %v11302
    %v11678 = vcombine.low %v11316, %v11317
    %v11679 = vcombine.low %v11318, %v11309
    %v11680 = vcombine.low %v11342, %v11356
    %v11682 = vunpack.c.l.s4 1966171168
    %v11683 = vunpack.c.0.s8 %v11682
    %v11684 = vlaneseq
    %v11685 = vshrl.u32 %v11684, 7
    %v11686 = vsub.s32 %v11683, %v11685
    %v11687 = vrot.slane %v11677, %v11686
    %v11689 = vunpack.c.l.s4 1966171168
    %v11690 = vunpack.c.0.s8 %v11689
    %v11691 = vlaneseq
    %v11692 = vshrl.u32 %v11691, 7
    %v11693 = vsub.s32 %v11690, %v11692
    %v11694 = vrot.slane %v11678, %v11693
    %v11696 = vunpack.c.l.s4 1966171168
    %v11697 = vunpack.c.0.s8 %v11696
    %v11698 = vlaneseq
    %v11699 = vshrl.u32 %v11698, 7
    %v11700 = vsub.s32 %v11697, %v11699
    %v11701 = vrot.slane %v11679, %v11700
    %v11703 = vunpack.c.l.s4 1966171168
    %v11704 = vunpack.c.0.s8 %v11703
    %v11705 = vlaneseq
    %v11706 = vshrl.u32 %v11705, 7
    %v11707 = vsub.s32 %v11704, %v11706
    %v11708 = vrot.slane %v11680, %v11707
    %v11709 = vcombine.low %v11687, %v11694
    %v11710 = vcombine.high %v11687, %v11694
    %v11711 = vcombine.low %v11701, %v11708
    %v11712 = vcombine.high %v11701, %v11708
    %v11714 = vunpack.c.l.s4 1966171168
    %v11715 = vunpack.c.0.s8 %v11714
    %v11716 = vlaneseq
    %v11717 = vshrl.u32 %v11716, 7
    %v11718 = vsub.s32 %v11715, %v11717
    %v11719 = vrot.slane %v11709, %v11718
    %v11721 = vunpack.c.l.s4 1966171168
    %v11722 = vunpack.c.0.s8 %v11721
    %v11723 = vlaneseq
    %v11724 = vshrl.u32 %v11723, 7
    %v11725 = vsub.s32 %v11722, %v11724
    %v11726 = vrot.slane %v11710, %v11725
    %v11728 = vunpack.c.l.s4 1966171168
    %v11729 = vunpack.c.0.s8 %v11728
    %v11730 = vlaneseq
    %v11731 = vshrl.u32 %v11730, 7
    %v11732 = vsub.s32 %v11729, %v11731
    %v11733 = vrot.slane %v11711, %v11732
    %v11735 = vunpack.c.l.s4 1966171168
    %v11736 = vunpack.c.0.s8 %v11735
    %v11737 = vlaneseq
    %v11738 = vshrl.u32 %v11737, 7
    %v11739 = vsub.s32 %v11736, %v11738
    %v11740 = vrot.slane %v11712, %v11739
    %v11741 = vcombine.low %v11719, %v11733
    %v11742 = vcombine.low %v11726, %v11740
    %v11743 = vcombine.low %v11357, %v11358
    %v11744 = vcombine.low %v11349, %v11382
    %v11745 = vcombine.low %v11396, %v11397
    %v11746 = vcombine.low %v11398, %v11389
    %v11748 = vunpack.c.l.s4 1966171168
    %v11749 = vunpack.c.0.s8 %v11748
    %v11750 = vlaneseq
    %v11751 = vshrl.u32 %v11750, 7
    %v11752 = vsub.s32 %v11749, %v11751
    %v11753 = vrot.slane %v11743, %v11752
    %v11755 = vunpack.c.l.s4 1966171168
    %v11756 = vunpack.c.0.s8 %v11755
    %v11757 = vlaneseq
    %v11758 = vshrl.u32 %v11757, 7
    %v11759 = vsub.s32 %v11756, %v11758
    %v11760 = vrot.slane %v11744, %v11759
    %v11762 = vunpack.c.l.s4 1966171168
    %v11763 = vunpack.c.0.s8 %v11762
    %v11764 = vlaneseq
    %v11765 = vshrl.u32 %v11764, 7
    %v11766 = vsub.s32 %v11763, %v11765
    %v11767 = vrot.slane %v11745, %v11766
    %v11769 = vunpack.c.l.s4 1966171168
    %v11770 = vunpack.c.0.s8 %v11769
    %v11771 = vlaneseq
    %v11772 = vshrl.u32 %v11771, 7
    %v11773 = vsub.s32 %v11770, %v11772
    %v11774 = vrot.slane %v11746, %v11773
    %v11775 = vcombine.low %v11753, %v11760
    %v11776 = vcombine.high %v11753, %v11760
    %v11777 = vcombine.low %v11767, %v11774
    %v11778 = vcombine.high %v11767, %v11774
    %v11780 = vunpack.c.l.s4 1966171168
    %v11781 = vunpack.c.0.s8 %v11780
    %v11782 = vlaneseq
    %v11783 = vshrl.u32 %v11782, 7
    %v11784 = vsub.s32 %v11781, %v11783
    %v11785 = vrot.slane %v11775, %v11784
    %v11787 = vunpack.c.l.s4 1966171168
    %v11788 = vunpack.c.0.s8 %v11787
    %v11789 = vlaneseq
    %v11790 = vshrl.u32 %v11789, 7
    %v11791 = vsub.s32 %v11788, %v11790
    %v11792 = vrot.slane %v11776, %v11791
    %v11794 = vunpack.c.l.s4 1966171168
    %v11795 = vunpack.c.0.s8 %v11794
    %v11796 = vlaneseq
    %v11797 = vshrl.u32 %v11796, 7
    %v11798 = vsub.s32 %v11795, %v11797
    %v11799 = vrot.slane %v11777, %v11798
    %v11801 = vunpack.c.l.s4 1966171168
    %v11802 = vunpack.c.0.s8 %v11801
    %v11803 = vlaneseq
    %v11804 = vshrl.u32 %v11803, 7
    %v11805 = vsub.s32 %v11802, %v11804
    %v11806 = vrot.slane %v11778, %v11805
    %v11807 = vcombine.low %v11785, %v11799
    %v11808 = vcombine.low %v11792, %v11806
    %v11809 = vcombine.low %v11422, %v11436
    %v11810 = vcombine.low %v11437, %v11438
    %v11811 = vcombine.low %v11429, %v11462
    %v11812 = vcombine.low %v11476, %v11477
    %v11814 = vunpack.c.l.s4 1966171168
    %v11815 = vunpack.c.0.s8 %v11814
    %v11816 = vlaneseq
    %v11817 = vshrl.u32 %v11816, 7
    %v11818 = vsub.s32 %v11815, %v11817
    %v11819 = vrot.slane %v11809, %v11818
    %v11821 = vunpack.c.l.s4 1966171168
    %v11822 = vunpack.c.0.s8 %v11821
    %v11823 = vlaneseq
    %v11824 = vshrl.u32 %v11823, 7
    %v11825 = vsub.s32 %v11822, %v11824
    %v11826 = vrot.slane %v11810, %v11825
    %v11828 = vunpack.c.l.s4 1966171168
    %v11829 = vunpack.c.0.s8 %v11828
    %v11830 = vlaneseq
    %v11831 = vshrl.u32 %v11830, 7
    %v11832 = vsub.s32 %v11829, %v11831
    %v11833 = vrot.slane %v11811, %v11832
    %v11835 = vunpack.c.l.s4 1966171168
    %v11836 = vunpack.c.0.s8 %v11835
    %v11837 = vlaneseq
    %v11838 = vshrl.u32 %v11837, 7
    %v11839 = vsub.s32 %v11836, %v11838
    %v11840 = vrot.slane %v11812, %v11839
    %v11841 = vcombine.low %v11819, %v11826
    %v11842 = vcombine.high %v11819, %v11826
    %v11843 = vcombine.low %v11833, %v11840
    %v11844 = vcombine.high %v11833, %v11840
    %v11846 = vunpack.c.l.s4 1966171168
    %v11847 = vunpack.c.0.s8 %v11846
    %v11848 = vlaneseq
    %v11849 = vshrl.u32 %v11848, 7
    %v11850 = vsub.s32 %v11847, %v11849
    %v11851 = vrot.slane %v11841, %v11850
    %v11853 = vunpack.c.l.s4 1966171168
    %v11854 = vunpack.c.0.s8 %v11853
    %v11855 = vlaneseq
    %v11856 = vshrl.u32 %v11855, 7
    %v11857 = vsub.s32 %v11854, %v11856
    %v11858 = vrot.slane %v11842, %v11857
    %v11860 = vunpack.c.l.s4 1966171168
    %v11861 = vunpack.c.0.s8 %v11860
    %v11862 = vlaneseq
    %v11863 = vshrl.u32 %v11862, 7
    %v11864 = vsub.s32 %v11861, %v11863
    %v11865 = vrot.slane %v11843, %v11864
    %v11867 = vunpack.c.l.s4 1966171168
    %v11868 = vunpack.c.0.s8 %v11867
    %v11869 = vlaneseq
    %v11870 = vshrl.u32 %v11869, 7
    %v11871 = vsub.s32 %v11868, %v11870
    %v11872 = vrot.slane %v11844, %v11871
    %v11873 = vcombine.low %v11851, %v11865
    %v11874 = vcombine.low %v11858, %v11872
    %v11875 = vcombine.low %v11478, %v11469
    %v11877 = vunpack.c.l.s4 1966171168
    %v11878 = vunpack.c.0.s8 %v11877
    %v11879 = vlaneseq
    %v11880 = vshrl.u32 %v11879, 7
    %v11881 = vsub.s32 %v11878, %v11880
    %v11882 = vrot.slane %v11875, %v11881
    %v11883 = vcombine.high %v11882, %v11882
    %v11885 = vunpack.c.l.s4 1966171168
    %v11886 = vunpack.c.0.s8 %v11885
    %v11887 = vlaneseq
    %v11888 = vshrl.u32 %v11887, 7
    %v11889 = vsub.s32 %v11886, %v11888
    %v11890 = vrot.slane %v11882, %v11889
    %v11892 = vunpack.c.l.s4 1966171168
    %v11893 = vunpack.c.0.s8 %v11892
    %v11894 = vlaneseq
    %v11895 = vshrl.u32 %v11894, 7
    %v11896 = vsub.s32 %v11893, %v11895
    %v11897 = vrot.slane %v11883, %v11896
    %v11912 = vpack.c.bf16 %v11609, %v11543
    %v11913 = vpack.c.bf16 %v11610, %v11544
    %v11914 = vpack.c.bf16 %v11741, %v11675
    %v11915 = vpack.c.bf16 %v11742, %v11676
    %v11916 = vpack.c.bf16 %v11873, %v11807
    %v11917 = vpack.c.bf16 %v11874, %v11808
    %v11918 = vpack.c.bf16 %v11890, %v11890
    %v11919 = vpack.c.bf16 %v11897, %v11897
    %v11921 = vsel %vm7332, %v11913, 0
    %v11924 = vsel %vm7332, %v11915, 0
    %v11927 = vsel %vm7332, %v11917, 0
    %v11930 = vsel %vm7332, %v11919, 0
    %11932 = vmatprep.subr.bf16.mxu0 0
    %11933 = vmatpush1.bf16.msra.mxu0 %v7313
    %11934 = vmatprep.subr.bf16.mxu0 0
    %11935 = vmatpush1.bf16.msra.mxu0 %v7314
    %11936 = vmatprep.subr.bf16.mxu0 0
    %11937 = vmatpush1.bf16.msra.mxu0 %v7315
    %11938 = vmatprep.subr.bf16.mxu0 0
    %11939 = vmatpush1.bf16.msra.mxu0 %v7316
    %11940 = vmatprep.subr.bf16.mxu0 0
    %11941 = vmatpush1.bf16.msra.mxu0 %v7317
    %11942 = vmatprep.subr.bf16.mxu0 0
    %11943 = vmatpush1.bf16.msra.mxu0 %v7318
    %11944 = vmatprep.subr.bf16.mxu0 0
    %11945 = vmatpush1.bf16.msra.mxu0 %v7319
    %11946 = vmatprep.subr.bf16.mxu0 0
    %11947 = vmatpush1.bf16.msra.mxu0 %v7320
    %11948 = vmatprep.subr.bf16.mxu0 0
    %11949 = vmatpush1.bf16.msra.mxu0 %v7321
    %11950 = vmatprep.subr.bf16.mxu0 0
    %11951 = vmatpush1.bf16.msra.mxu0 %v7347
    %11952 = vmatprep.subr.bf16.mxu0 0
    %11953 = vmatpush1.bf16.msra.mxu0 0
    %11954 = vmatprep.subr.bf16.mxu0 0
    %11955 = vmatpush1.bf16.msra.mxu0 0
    %11956 = vmatprep.subr.bf16.mxu0 0
    %11957 = vmatpush1.bf16.msra.mxu0 0
    %11958 = vmatprep.subr.bf16.mxu0 0
    %11959 = vmatpush1.bf16.msra.mxu0 0
    %11960 = vmatprep.subr.bf16.mxu0 0
    %11961 = vmatpush1.bf16.msra.mxu0 0
    %11962 = vmatprep.subr.bf16.mxu0 0
    %11963 = vmatpush1.bf16.msra.mxu0 0
    %11964 = vmatprep.mubr.bf16.mxu0 %v11921
    %11965 = vmatmul.mubr.bf16.gmra.mrb[0].mxu0 %v11912
    %v11966 = vpop.f32.mrb[0].mxu0
    %v11967 = vadd.f32 0.0, %v11966
    %v11968 = vpop.f32.mrb[0].mxu0
    %v11969 = vpop.f32.mrb[0].mxu0
    %v11970 = vadd.f32 0.0, %v11969
    %v11971 = vpop.f32.mrb[0].mxu0
    %11972 = vmatprep.mubr.bf16.mxu0 %v11924
    %11973 = vmatmul.mubr.bf16.gmra.mrb[0].mxu0 %v11914
    %v11974 = vpop.f32.mrb[0].mxu0
    %v11975 = vadd.f32 0.0, %v11974
    %v11976 = vpop.f32.mrb[0].mxu0
    %v11977 = vpop.f32.mrb[0].mxu0
    %v11978 = vadd.f32 0.0, %v11977
    %v11979 = vpop.f32.mrb[0].mxu0
    %11980 = vmatprep.mubr.bf16.mxu0 %v11927
    %11981 = vmatmul.mubr.bf16.gmra.mrb[0].mxu0 %v11916
    %v11982 = vpop.f32.mrb[0].mxu0
    %v11983 = vadd.f32 0.0, %v11982
    %v11984 = vpop.f32.mrb[0].mxu0
    %v11985 = vpop.f32.mrb[0].mxu0
    %v11986 = vadd.f32 0.0, %v11985
    %v11987 = vpop.f32.mrb[0].mxu0
    %11988 = vmatprep.mubr.bf16.mxu0 %v11930
    %11989 = vmatmul.mubr.bf16.gmra.mrb[0].mxu0 %v11918
    %v11990 = vpop.f32.mrb[0].mxu0
    %v11991 = vadd.f32 0.0, %v11990
    %v11992 = vpop.f32.mrb[0].mxu0
    %v11993 = vpop.f32.mrb[0].mxu0
    %v11994 = vpop.f32.mrb[0].mxu0
    %11995 = vdwg.mxu0
    %v11996 = vmax.f32 %v10544, %v11967
    %v11997 = vmax.f32 %v10545, %v11970
    %v11998 = vmax.f32 %v10546, %v11975
    %v11999 = vmax.f32 %v10547, %v11978
    %v12000 = vmax.f32 %v10548, %v11983
    %v12001 = vmax.f32 %v10549, %v11986
    %v12002 = vmax.f32 %v10550, %v11991
    %v12003 = vlaneseq
    %v12004 = vshrl.u32 %v12003, 7
    %v12005 = vsub.s32 0, %v12004
    %v12006 = vrot.slane %v125, %v12005
    %v12007 = vadd.f32 %v11996, %v12006
    %v12008 = vadd.f32 %v11997, %v12006
    %v12009 = vadd.f32 %v11998, %v12006
    %v12010 = vadd.f32 %v11999, %v12006
    %v12011 = vadd.f32 %v12000, %v12006
    %v12012 = vadd.f32 %v12001, %v12006
    %v12013 = vadd.f32 %v12002, %v12006
    %v12014 = vmax.f32 %v12007, 0.0
    %v12015 = vmax.f32 %v12008, 0.0
    %v12016 = vmax.f32 %v12009, 0.0
    %v12017 = vmax.f32 %v12010, 0.0
    %v12018 = vmax.f32 %v12011, 0.0
    %v12019 = vmax.f32 %v12012, 0.0
    %v12020 = vmax.f32 %v12013, 0.0
    %v12028 = vcombine.high %v12014, %v12014
    %v12030 = vunpack.c.l.s4 1966171168
    %v12031 = vunpack.c.0.s8 %v12030
    %v12032 = vlaneseq
    %v12033 = vshrl.u32 %v12032, 7
    %v12034 = vsub.s32 %v12031, %v12033
    %v12035 = vrot.slane %v12014, %v12034
    %v12037 = vunpack.c.l.s4 1966171168
    %v12038 = vunpack.c.0.s8 %v12037
    %v12039 = vlaneseq
    %v12040 = vshrl.u32 %v12039, 7
    %v12041 = vsub.s32 %v12038, %v12040
    %v12042 = vrot.slane %v12028, %v12041
    %v12043 = vcombine.high %v12035, %v12035
    %v12044 = vcombine.high %v12042, %v12042
    %v12046 = vunpack.c.l.s4 1966171168
    %v12047 = vunpack.c.0.s8 %v12046
    %v12048 = vlaneseq
    %v12049 = vshrl.u32 %v12048, 7
    %v12050 = vsub.s32 %v12047, %v12049
    %v12051 = vrot.slane %v12035, %v12050
    %v12053 = vunpack.c.l.s4 1966171168
    %v12054 = vunpack.c.0.s8 %v12053
    %v12055 = vlaneseq
    %v12056 = vshrl.u32 %v12055, 7
    %v12057 = vsub.s32 %v12054, %v12056
    %v12058 = vrot.slane %v12042, %v12057
    %v12060 = vunpack.c.l.s4 1966171168
    %v12061 = vunpack.c.0.s8 %v12060
    %v12062 = vlaneseq
    %v12063 = vshrl.u32 %v12062, 7
    %v12064 = vsub.s32 %v12061, %v12063
    %v12065 = vrot.slane %v12043, %v12064
    %v12067 = vunpack.c.l.s4 1966171168
    %v12068 = vunpack.c.0.s8 %v12067
    %v12069 = vlaneseq
    %v12070 = vshrl.u32 %v12069, 7
    %v12071 = vsub.s32 %v12068, %v12070
    %v12072 = vrot.slane %v12044, %v12071
    %v12073 = vcombine.high %v12051, %v12051
    %v12074 = vcombine.high %v12058, %v12058
    %v12075 = vcombine.high %v12065, %v12065
    %v12076 = vcombine.high %v12072, %v12072
    %v12077 = vcombine.high %v12015, %v12015
    %v12079 = vunpack.c.l.s4 1966171168
    %v12080 = vunpack.c.0.s8 %v12079
    %v12081 = vlaneseq
    %v12082 = vshrl.u32 %v12081, 7
    %v12083 = vsub.s32 %v12080, %v12082
    %v12084 = vrot.slane %v12015, %v12083
    %v12086 = vunpack.c.l.s4 1966171168
    %v12087 = vunpack.c.0.s8 %v12086
    %v12088 = vlaneseq
    %v12089 = vshrl.u32 %v12088, 7
    %v12090 = vsub.s32 %v12087, %v12089
    %v12091 = vrot.slane %v12077, %v12090
    %v12092 = vcombine.high %v12084, %v12084
    %v12093 = vcombine.high %v12091, %v12091
    %v12095 = vunpack.c.l.s4 1966171168
    %v12096 = vunpack.c.0.s8 %v12095
    %v12097 = vlaneseq
    %v12098 = vshrl.u32 %v12097, 7
    %v12099 = vsub.s32 %v12096, %v12098
    %v12100 = vrot.slane %v12084, %v12099
    %v12102 = vunpack.c.l.s4 1966171168
    %v12103 = vunpack.c.0.s8 %v12102
    %v12104 = vlaneseq
    %v12105 = vshrl.u32 %v12104, 7
    %v12106 = vsub.s32 %v12103, %v12105
    %v12107 = vrot.slane %v12091, %v12106
    %v12109 = vunpack.c.l.s4 1966171168
    %v12110 = vunpack.c.0.s8 %v12109
    %v12111 = vlaneseq
    %v12112 = vshrl.u32 %v12111, 7
    %v12113 = vsub.s32 %v12110, %v12112
    %v12114 = vrot.slane %v12092, %v12113
    %v12116 = vunpack.c.l.s4 1966171168
    %v12117 = vunpack.c.0.s8 %v12116
    %v12118 = vlaneseq
    %v12119 = vshrl.u32 %v12118, 7
    %v12120 = vsub.s32 %v12117, %v12119
    %v12121 = vrot.slane %v12093, %v12120
    %v12122 = vcombine.high %v12100, %v12100
    %v12123 = vcombine.high %v12107, %v12107
    %v12124 = vcombine.high %v12114, %v12114
    %v12125 = vcombine.high %v12121, %v12121
    %v12126 = vcombine.high %v12016, %v12016
    %v12128 = vunpack.c.l.s4 1966171168
    %v12129 = vunpack.c.0.s8 %v12128
    %v12130 = vlaneseq
    %v12131 = vshrl.u32 %v12130, 7
    %v12132 = vsub.s32 %v12129, %v12131
    %v12133 = vrot.slane %v12016, %v12132
    %v12135 = vunpack.c.l.s4 1966171168
    %v12136 = vunpack.c.0.s8 %v12135
    %v12137 = vlaneseq
    %v12138 = vshrl.u32 %v12137, 7
    %v12139 = vsub.s32 %v12136, %v12138
    %v12140 = vrot.slane %v12126, %v12139
    %v12141 = vcombine.high %v12133, %v12133
    %v12142 = vcombine.high %v12140, %v12140
    %v12144 = vunpack.c.l.s4 1966171168
    %v12145 = vunpack.c.0.s8 %v12144
    %v12146 = vlaneseq
    %v12147 = vshrl.u32 %v12146, 7
    %v12148 = vsub.s32 %v12145, %v12147
    %v12149 = vrot.slane %v12133, %v12148
    %v12151 = vunpack.c.l.s4 1966171168
    %v12152 = vunpack.c.0.s8 %v12151
    %v12153 = vlaneseq
    %v12154 = vshrl.u32 %v12153, 7
    %v12155 = vsub.s32 %v12152, %v12154
    %v12156 = vrot.slane %v12140, %v12155
    %v12158 = vunpack.c.l.s4 1966171168
    %v12159 = vunpack.c.0.s8 %v12158
    %v12160 = vlaneseq
    %v12161 = vshrl.u32 %v12160, 7
    %v12162 = vsub.s32 %v12159, %v12161
    %v12163 = vrot.slane %v12141, %v12162
    %v12165 = vunpack.c.l.s4 1966171168
    %v12166 = vunpack.c.0.s8 %v12165
    %v12167 = vlaneseq
    %v12168 = vshrl.u32 %v12167, 7
    %v12169 = vsub.s32 %v12166, %v12168
    %v12170 = vrot.slane %v12142, %v12169
    %v12171 = vcombine.high %v12149, %v12149
    %v12172 = vcombine.high %v12156, %v12156
    %v12173 = vcombine.high %v12163, %v12163
    %v12174 = vcombine.high %v12170, %v12170
    %v12175 = vcombine.high %v12017, %v12017
    %v12177 = vunpack.c.l.s4 1966171168
    %v12178 = vunpack.c.0.s8 %v12177
    %v12179 = vlaneseq
    %v12180 = vshrl.u32 %v12179, 7
    %v12181 = vsub.s32 %v12178, %v12180
    %v12182 = vrot.slane %v12017, %v12181
    %v12184 = vunpack.c.l.s4 1966171168
    %v12185 = vunpack.c.0.s8 %v12184
    %v12186 = vlaneseq
    %v12187 = vshrl.u32 %v12186, 7
    %v12188 = vsub.s32 %v12185, %v12187
    %v12189 = vrot.slane %v12175, %v12188
    %v12190 = vcombine.high %v12182, %v12182
    %v12191 = vcombine.high %v12189, %v12189
    %v12193 = vunpack.c.l.s4 1966171168
    %v12194 = vunpack.c.0.s8 %v12193
    %v12195 = vlaneseq
    %v12196 = vshrl.u32 %v12195, 7
    %v12197 = vsub.s32 %v12194, %v12196
    %v12198 = vrot.slane %v12182, %v12197
    %v12200 = vunpack.c.l.s4 1966171168
    %v12201 = vunpack.c.0.s8 %v12200
    %v12202 = vlaneseq
    %v12203 = vshrl.u32 %v12202, 7
    %v12204 = vsub.s32 %v12201, %v12203
    %v12205 = vrot.slane %v12189, %v12204
    %v12207 = vunpack.c.l.s4 1966171168
    %v12208 = vunpack.c.0.s8 %v12207
    %v12209 = vlaneseq
    %v12210 = vshrl.u32 %v12209, 7
    %v12211 = vsub.s32 %v12208, %v12210
    %v12212 = vrot.slane %v12190, %v12211
    %v12214 = vunpack.c.l.s4 1966171168
    %v12215 = vunpack.c.0.s8 %v12214
    %v12216 = vlaneseq
    %v12217 = vshrl.u32 %v12216, 7
    %v12218 = vsub.s32 %v12215, %v12217
    %v12219 = vrot.slane %v12191, %v12218
    %v12220 = vcombine.high %v12198, %v12198
    %v12221 = vcombine.high %v12205, %v12205
    %v12222 = vcombine.high %v12212, %v12212
    %v12223 = vcombine.high %v12219, %v12219
    %v12224 = vcombine.high %v12018, %v12018
    %v12226 = vunpack.c.l.s4 1966171168
    %v12227 = vunpack.c.0.s8 %v12226
    %v12228 = vlaneseq
    %v12229 = vshrl.u32 %v12228, 7
    %v12230 = vsub.s32 %v12227, %v12229
    %v12231 = vrot.slane %v12018, %v12230
    %v12233 = vunpack.c.l.s4 1966171168
    %v12234 = vunpack.c.0.s8 %v12233
    %v12235 = vlaneseq
    %v12236 = vshrl.u32 %v12235, 7
    %v12237 = vsub.s32 %v12234, %v12236
    %v12238 = vrot.slane %v12224, %v12237
    %v12239 = vcombine.high %v12231, %v12231
    %v12240 = vcombine.high %v12238, %v12238
    %v12242 = vunpack.c.l.s4 1966171168
    %v12243 = vunpack.c.0.s8 %v12242
    %v12244 = vlaneseq
    %v12245 = vshrl.u32 %v12244, 7
    %v12246 = vsub.s32 %v12243, %v12245
    %v12247 = vrot.slane %v12231, %v12246
    %v12249 = vunpack.c.l.s4 1966171168
    %v12250 = vunpack.c.0.s8 %v12249
    %v12251 = vlaneseq
    %v12252 = vshrl.u32 %v12251, 7
    %v12253 = vsub.s32 %v12250, %v12252
    %v12254 = vrot.slane %v12238, %v12253
    %v12256 = vunpack.c.l.s4 1966171168
    %v12257 = vunpack.c.0.s8 %v12256
    %v12258 = vlaneseq
    %v12259 = vshrl.u32 %v12258, 7
    %v12260 = vsub.s32 %v12257, %v12259
    %v12261 = vrot.slane %v12239, %v12260
    %v12263 = vunpack.c.l.s4 1966171168
    %v12264 = vunpack.c.0.s8 %v12263
    %v12265 = vlaneseq
    %v12266 = vshrl.u32 %v12265, 7
    %v12267 = vsub.s32 %v12264, %v12266
    %v12268 = vrot.slane %v12240, %v12267
    %v12269 = vcombine.high %v12247, %v12247
    %v12270 = vcombine.high %v12254, %v12254
    %v12271 = vcombine.high %v12261, %v12261
    %v12272 = vcombine.high %v12268, %v12268
    %v12273 = vcombine.high %v12019, %v12019
    %v12275 = vunpack.c.l.s4 1966171168
    %v12276 = vunpack.c.0.s8 %v12275
    %v12277 = vlaneseq
    %v12278 = vshrl.u32 %v12277, 7
    %v12279 = vsub.s32 %v12276, %v12278
    %v12280 = vrot.slane %v12019, %v12279
    %v12282 = vunpack.c.l.s4 1966171168
    %v12283 = vunpack.c.0.s8 %v12282
    %v12284 = vlaneseq
    %v12285 = vshrl.u32 %v12284, 7
    %v12286 = vsub.s32 %v12283, %v12285
    %v12287 = vrot.slane %v12273, %v12286
    %v12288 = vcombine.high %v12280, %v12280
    %v12289 = vcombine.high %v12287, %v12287
    %v12291 = vunpack.c.l.s4 1966171168
    %v12292 = vunpack.c.0.s8 %v12291
    %v12293 = vlaneseq
    %v12294 = vshrl.u32 %v12293, 7
    %v12295 = vsub.s32 %v12292, %v12294
    %v12296 = vrot.slane %v12280, %v12295
    %v12298 = vunpack.c.l.s4 1966171168
    %v12299 = vunpack.c.0.s8 %v12298
    %v12300 = vlaneseq
    %v12301 = vshrl.u32 %v12300, 7
    %v12302 = vsub.s32 %v12299, %v12301
    %v12303 = vrot.slane %v12287, %v12302
    %v12305 = vunpack.c.l.s4 1966171168
    %v12306 = vunpack.c.0.s8 %v12305
    %v12307 = vlaneseq
    %v12308 = vshrl.u32 %v12307, 7
    %v12309 = vsub.s32 %v12306, %v12308
    %v12310 = vrot.slane %v12288, %v12309
    %v12312 = vunpack.c.l.s4 1966171168
    %v12313 = vunpack.c.0.s8 %v12312
    %v12314 = vlaneseq
    %v12315 = vshrl.u32 %v12314, 7
    %v12316 = vsub.s32 %v12313, %v12315
    %v12317 = vrot.slane %v12289, %v12316
    %v12318 = vcombine.high %v12296, %v12296
    %v12319 = vcombine.high %v12303, %v12303
    %v12320 = vcombine.high %v12310, %v12310
    %v12321 = vcombine.high %v12317, %v12317
    %v12323 = vunpack.c.l.s4 1966171168
    %v12324 = vunpack.c.0.s8 %v12323
    %v12325 = vlaneseq
    %v12326 = vshrl.u32 %v12325, 7
    %v12327 = vsub.s32 %v12324, %v12326
    %v12328 = vrot.slane %v12020, %v12327
    %v12329 = vcombine.high %v12328, %v12328
    %v12331 = vunpack.c.l.s4 1966171168
    %v12332 = vunpack.c.0.s8 %v12331
    %v12333 = vlaneseq
    %v12334 = vshrl.u32 %v12333, 7
    %v12335 = vsub.s32 %v12332, %v12334
    %v12336 = vrot.slane %v12328, %v12335
    %v12338 = vunpack.c.l.s4 1966171168
    %v12339 = vunpack.c.0.s8 %v12338
    %v12340 = vlaneseq
    %v12341 = vshrl.u32 %v12340, 7
    %v12342 = vsub.s32 %v12339, %v12341
    %v12343 = vrot.slane %v12329, %v12342
    %v12344 = vcombine.low %v12051, %v12212
    %v12346 = vunpack.c.l.s4 1966171168
    %v12347 = vunpack.c.0.s8 %v12346
    %v12348 = vlaneseq
    %v12349 = vshrl.u32 %v12348, 7
    %v12350 = vsub.s32 %v12347, %v12349
    %v12351 = vrot.slane %v12344, %v12350
    %v12353 = vunpack.c.l.s4 1966171168
    %v12354 = vunpack.c.0.s8 %v12353
    %v12355 = vlaneseq
    %v12356 = vshrl.u32 %v12355, 7
    %v12357 = vsub.s32 %v12354, %v12356
    %v12358 = vrot.slane %v12351, %v12357
    %v12360 = vcombine.low %v12065, %v12220
    %v12362 = vunpack.c.l.s4 1966171168
    %v12363 = vunpack.c.0.s8 %v12362
    %v12364 = vlaneseq
    %v12365 = vshrl.u32 %v12364, 7
    %v12366 = vsub.s32 %v12363, %v12365
    %v12367 = vrot.slane %v12360, %v12366
    %v12369 = vunpack.c.l.s4 1966171168
    %v12370 = vunpack.c.0.s8 %v12369
    %v12371 = vlaneseq
    %v12372 = vshrl.u32 %v12371, 7
    %v12373 = vsub.s32 %v12370, %v12372
    %v12374 = vrot.slane %v12367, %v12373
    %12375 = vrot.lane.b32.xlu0 %v12374, 16
    %v12376 = vpop.permute.xlu0 %12375
    %v12378 = vcombine.low %v12073, %v12222
    %v12380 = vunpack.c.l.s4 1966171168
    %v12381 = vunpack.c.0.s8 %v12380
    %v12382 = vlaneseq
    %v12383 = vshrl.u32 %v12382, 7
    %v12384 = vsub.s32 %v12381, %v12383
    %v12385 = vrot.slane %v12378, %v12384
    %v12387 = vunpack.c.l.s4 1966171168
    %v12388 = vunpack.c.0.s8 %v12387
    %v12389 = vlaneseq
    %v12390 = vshrl.u32 %v12389, 7
    %v12391 = vsub.s32 %v12388, %v12390
    %v12392 = vrot.slane %v12385, %v12391
    %12393 = vrot.lane.b32.xlu0 %v12392, 32
    %v12394 = vpop.permute.xlu0 %12393
    %v12396 = vcombine.low %v12075, %v12205
    %v12398 = vunpack.c.l.s4 1966171168
    %v12399 = vunpack.c.0.s8 %v12398
    %v12400 = vlaneseq
    %v12401 = vshrl.u32 %v12400, 7
    %v12402 = vsub.s32 %v12399, %v12401
    %v12403 = vrot.slane %v12396, %v12402
    %v12405 = vunpack.c.l.s4 1966171168
    %v12406 = vunpack.c.0.s8 %v12405
    %v12407 = vlaneseq
    %v12408 = vshrl.u32 %v12407, 7
    %v12409 = vsub.s32 %v12406, %v12408
    %v12410 = vrot.slane %v12403, %v12409
    %12411 = vrot.lane.b32.xlu0 %v12410, 48
    %v12412 = vpop.permute.xlu0 %12411
    %v12414 = vcombine.low %v12058, %v12219
    %v12416 = vunpack.c.l.s4 1966171168
    %v12417 = vunpack.c.0.s8 %v12416
    %v12418 = vlaneseq
    %v12419 = vshrl.u32 %v12418, 7
    %v12420 = vsub.s32 %v12417, %v12419
    %v12421 = vrot.slane %v12414, %v12420
    %v12423 = vunpack.c.l.s4 1966171168
    %v12424 = vunpack.c.0.s8 %v12423
    %v12425 = vlaneseq
    %v12426 = vshrl.u32 %v12425, 7
    %v12427 = vsub.s32 %v12424, %v12426
    %v12428 = vrot.slane %v12421, %v12427
    %12429 = vrot.lane.b32.xlu0 %v12428, 64
    %v12430 = vpop.permute.xlu0 %12429
    %v12432 = vcombine.low %v12072, %v12221
    %v12434 = vunpack.c.l.s4 1966171168
    %v12435 = vunpack.c.0.s8 %v12434
    %v12436 = vlaneseq
    %v12437 = vshrl.u32 %v12436, 7
    %v12438 = vsub.s32 %v12435, %v12437
    %v12439 = vrot.slane %v12432, %v12438
    %v12441 = vunpack.c.l.s4 1966171168
    %v12442 = vunpack.c.0.s8 %v12441
    %v12443 = vlaneseq
    %v12444 = vshrl.u32 %v12443, 7
    %v12445 = vsub.s32 %v12442, %v12444
    %v12446 = vrot.slane %v12439, %v12445
    %12447 = vrot.lane.b32.xlu0 %v12446, 80
    %v12448 = vpop.permute.xlu0 %12447
    %v12450 = vcombine.low %v12074, %v12223
    %v12452 = vunpack.c.l.s4 1966171168
    %v12453 = vunpack.c.0.s8 %v12452
    %v12454 = vlaneseq
    %v12455 = vshrl.u32 %v12454, 7
    %v12456 = vsub.s32 %v12453, %v12455
    %v12457 = vrot.slane %v12450, %v12456
    %v12459 = vunpack.c.l.s4 1966171168
    %v12460 = vunpack.c.0.s8 %v12459
    %v12461 = vlaneseq
    %v12462 = vshrl.u32 %v12461, 7
    %v12463 = vsub.s32 %v12460, %v12462
    %v12464 = vrot.slane %v12457, %v12463
    %12465 = vrot.lane.b32.xlu0 %v12464, 96
    %v12466 = vpop.permute.xlu0 %12465
    %v12468 = vcombine.low %v12076, %v12247
    %v12470 = vunpack.c.l.s4 1966171168
    %v12471 = vunpack.c.0.s8 %v12470
    %v12472 = vlaneseq
    %v12473 = vshrl.u32 %v12472, 7
    %v12474 = vsub.s32 %v12471, %v12473
    %v12475 = vrot.slane %v12468, %v12474
    %v12477 = vunpack.c.l.s4 1966171168
    %v12478 = vunpack.c.0.s8 %v12477
    %v12479 = vlaneseq
    %v12480 = vshrl.u32 %v12479, 7
    %v12481 = vsub.s32 %v12478, %v12480
    %v12482 = vrot.slane %v12475, %v12481
    %12483 = vrot.lane.b32.xlu0 %v12482, 112
    %v12484 = vpop.permute.xlu0 %12483
    %v12486 = vcombine.low %v12100, %v12261
    %v12488 = vunpack.c.l.s4 1966171168
    %v12489 = vunpack.c.0.s8 %v12488
    %v12490 = vlaneseq
    %v12491 = vshrl.u32 %v12490, 7
    %v12492 = vsub.s32 %v12489, %v12491
    %v12493 = vrot.slane %v12486, %v12492
    %v12495 = vunpack.c.l.s4 1966171168
    %v12496 = vunpack.c.0.s8 %v12495
    %v12497 = vlaneseq
    %v12498 = vshrl.u32 %v12497, 7
    %v12499 = vsub.s32 %v12496, %v12498
    %v12500 = vrot.slane %v12493, %v12499
    %v12502 = vcombine.low %v12114, %v12269
    %v12504 = vunpack.c.l.s4 1966171168
    %v12505 = vunpack.c.0.s8 %v12504
    %v12506 = vlaneseq
    %v12507 = vshrl.u32 %v12506, 7
    %v12508 = vsub.s32 %v12505, %v12507
    %v12509 = vrot.slane %v12502, %v12508
    %v12511 = vunpack.c.l.s4 1966171168
    %v12512 = vunpack.c.0.s8 %v12511
    %v12513 = vlaneseq
    %v12514 = vshrl.u32 %v12513, 7
    %v12515 = vsub.s32 %v12512, %v12514
    %v12516 = vrot.slane %v12509, %v12515
    %12517 = vrot.lane.b32.xlu0 %v12516, 16
    %v12518 = vpop.permute.xlu0 %12517
    %v12520 = vcombine.low %v12122, %v12271
    %v12522 = vunpack.c.l.s4 1966171168
    %v12523 = vunpack.c.0.s8 %v12522
    %v12524 = vlaneseq
    %v12525 = vshrl.u32 %v12524, 7
    %v12526 = vsub.s32 %v12523, %v12525
    %v12527 = vrot.slane %v12520, %v12526
    %v12529 = vunpack.c.l.s4 1966171168
    %v12530 = vunpack.c.0.s8 %v12529
    %v12531 = vlaneseq
    %v12532 = vshrl.u32 %v12531, 7
    %v12533 = vsub.s32 %v12530, %v12532
    %v12534 = vrot.slane %v12527, %v12533
    %12535 = vrot.lane.b32.xlu0 %v12534, 32
    %v12536 = vpop.permute.xlu0 %12535
    %v12538 = vcombine.low %v12124, %v12254
    %v12540 = vunpack.c.l.s4 1966171168
    %v12541 = vunpack.c.0.s8 %v12540
    %v12542 = vlaneseq
    %v12543 = vshrl.u32 %v12542, 7
    %v12544 = vsub.s32 %v12541, %v12543
    %v12545 = vrot.slane %v12538, %v12544
    %v12547 = vunpack.c.l.s4 1966171168
    %v12548 = vunpack.c.0.s8 %v12547
    %v12549 = vlaneseq
    %v12550 = vshrl.u32 %v12549, 7
    %v12551 = vsub.s32 %v12548, %v12550
    %v12552 = vrot.slane %v12545, %v12551
    %12553 = vrot.lane.b32.xlu0 %v12552, 48
    %v12554 = vpop.permute.xlu0 %12553
    %v12556 = vcombine.low %v12107, %v12268
    %v12558 = vunpack.c.l.s4 1966171168
    %v12559 = vunpack.c.0.s8 %v12558
    %v12560 = vlaneseq
    %v12561 = vshrl.u32 %v12560, 7
    %v12562 = vsub.s32 %v12559, %v12561
    %v12563 = vrot.slane %v12556, %v12562
    %v12565 = vunpack.c.l.s4 1966171168
    %v12566 = vunpack.c.0.s8 %v12565
    %v12567 = vlaneseq
    %v12568 = vshrl.u32 %v12567, 7
    %v12569 = vsub.s32 %v12566, %v12568
    %v12570 = vrot.slane %v12563, %v12569
    %12571 = vrot.lane.b32.xlu0 %v12570, 64
    %v12572 = vpop.permute.xlu0 %12571
    %v12574 = vcombine.low %v12121, %v12270
    %v12576 = vunpack.c.l.s4 1966171168
    %v12577 = vunpack.c.0.s8 %v12576
    %v12578 = vlaneseq
    %v12579 = vshrl.u32 %v12578, 7
    %v12580 = vsub.s32 %v12577, %v12579
    %v12581 = vrot.slane %v12574, %v12580
    %v12583 = vunpack.c.l.s4 1966171168
    %v12584 = vunpack.c.0.s8 %v12583
    %v12585 = vlaneseq
    %v12586 = vshrl.u32 %v12585, 7
    %v12587 = vsub.s32 %v12584, %v12586
    %v12588 = vrot.slane %v12581, %v12587
    %12589 = vrot.lane.b32.xlu0 %v12588, 80
    %v12590 = vpop.permute.xlu0 %12589
    %v12592 = vcombine.low %v12123, %v12272
    %v12594 = vunpack.c.l.s4 1966171168
    %v12595 = vunpack.c.0.s8 %v12594
    %v12596 = vlaneseq
    %v12597 = vshrl.u32 %v12596, 7
    %v12598 = vsub.s32 %v12595, %v12597
    %v12599 = vrot.slane %v12592, %v12598
    %v12601 = vunpack.c.l.s4 1966171168
    %v12602 = vunpack.c.0.s8 %v12601
    %v12603 = vlaneseq
    %v12604 = vshrl.u32 %v12603, 7
    %v12605 = vsub.s32 %v12602, %v12604
    %v12606 = vrot.slane %v12599, %v12605
    %12607 = vrot.lane.b32.xlu0 %v12606, 96
    %v12608 = vpop.permute.xlu0 %12607
    %v12610 = vcombine.low %v12125, %v12296
    %v12612 = vunpack.c.l.s4 1966171168
    %v12613 = vunpack.c.0.s8 %v12612
    %v12614 = vlaneseq
    %v12615 = vshrl.u32 %v12614, 7
    %v12616 = vsub.s32 %v12613, %v12615
    %v12617 = vrot.slane %v12610, %v12616
    %v12619 = vunpack.c.l.s4 1966171168
    %v12620 = vunpack.c.0.s8 %v12619
    %v12621 = vlaneseq
    %v12622 = vshrl.u32 %v12621, 7
    %v12623 = vsub.s32 %v12620, %v12622
    %v12624 = vrot.slane %v12617, %v12623
    %12625 = vrot.lane.b32.xlu0 %v12624, 112
    %v12626 = vpop.permute.xlu0 %12625
    %vm12628 = vcmask 130048
    %v12629 = vsel %vm12628, %v12358, %v12376
    %vm12630 = vcmask 261120
    %v12631 = vsel %vm12630, %v12629, %v12394
    %v12632 = vsel %vm5793, %v12631, %v12412
    %vm12633 = vcmask 523264
    %v12634 = vsel %vm12633, %v12632, %v12430
    %vm12635 = vcmask 654336
    %v12636 = vsel %vm12635, %v12634, %v12448
    %v12637 = vsel %vm6413, %v12636, %v12466
    %vm12638 = vcmask 916480
    %v12639 = vsel %vm12638, %v12637, %v12484
    %v12640 = vsel %vm12628, %v12500, %v12518
    %v12641 = vsel %vm12630, %v12640, %v12536
    %v12642 = vsel %vm5793, %v12641, %v12554
    %v12643 = vsel %vm12633, %v12642, %v12572
    %v12644 = vsel %vm12635, %v12643, %v12590
    %v12645 = vsel %vm6413, %v12644, %v12608
    %v12646 = vsel %vm12638, %v12645, %v12626
    %v12647 = vcombine.low %v12149, %v12310
    %v12649 = vunpack.c.l.s4 1966171168
    %v12650 = vunpack.c.0.s8 %v12649
    %v12651 = vlaneseq
    %v12652 = vshrl.u32 %v12651, 7
    %v12653 = vsub.s32 %v12650, %v12652
    %v12654 = vrot.slane %v12647, %v12653
    %v12656 = vunpack.c.l.s4 1966171168
    %v12657 = vunpack.c.0.s8 %v12656
    %v12658 = vlaneseq
    %v12659 = vshrl.u32 %v12658, 7
    %v12660 = vsub.s32 %v12657, %v12659
    %v12661 = vrot.slane %v12654, %v12660
    %v12663 = vcombine.low %v12163, %v12318
    %v12665 = vunpack.c.l.s4 1966171168
    %v12666 = vunpack.c.0.s8 %v12665
    %v12667 = vlaneseq
    %v12668 = vshrl.u32 %v12667, 7
    %v12669 = vsub.s32 %v12666, %v12668
    %v12670 = vrot.slane %v12663, %v12669
    %v12672 = vunpack.c.l.s4 1966171168
    %v12673 = vunpack.c.0.s8 %v12672
    %v12674 = vlaneseq
    %v12675 = vshrl.u32 %v12674, 7
    %v12676 = vsub.s32 %v12673, %v12675
    %v12677 = vrot.slane %v12670, %v12676
    %12678 = vrot.lane.b32.xlu0 %v12677, 16
    %v12679 = vpop.permute.xlu0 %12678
    %v12681 = vcombine.low %v12171, %v12320
    %v12683 = vunpack.c.l.s4 1966171168
    %v12684 = vunpack.c.0.s8 %v12683
    %v12685 = vlaneseq
    %v12686 = vshrl.u32 %v12685, 7
    %v12687 = vsub.s32 %v12684, %v12686
    %v12688 = vrot.slane %v12681, %v12687
    %v12690 = vunpack.c.l.s4 1966171168
    %v12691 = vunpack.c.0.s8 %v12690
    %v12692 = vlaneseq
    %v12693 = vshrl.u32 %v12692, 7
    %v12694 = vsub.s32 %v12691, %v12693
    %v12695 = vrot.slane %v12688, %v12694
    %12696 = vrot.lane.b32.xlu0 %v12695, 32
    %v12697 = vpop.permute.xlu0 %12696
    %v12699 = vcombine.low %v12173, %v12303
    %v12701 = vunpack.c.l.s4 1966171168
    %v12702 = vunpack.c.0.s8 %v12701
    %v12703 = vlaneseq
    %v12704 = vshrl.u32 %v12703, 7
    %v12705 = vsub.s32 %v12702, %v12704
    %v12706 = vrot.slane %v12699, %v12705
    %v12708 = vunpack.c.l.s4 1966171168
    %v12709 = vunpack.c.0.s8 %v12708
    %v12710 = vlaneseq
    %v12711 = vshrl.u32 %v12710, 7
    %v12712 = vsub.s32 %v12709, %v12711
    %v12713 = vrot.slane %v12706, %v12712
    %12714 = vrot.lane.b32.xlu0 %v12713, 48
    %v12715 = vpop.permute.xlu0 %12714
    %v12717 = vcombine.low %v12156, %v12317
    %v12719 = vunpack.c.l.s4 1966171168
    %v12720 = vunpack.c.0.s8 %v12719
    %v12721 = vlaneseq
    %v12722 = vshrl.u32 %v12721, 7
    %v12723 = vsub.s32 %v12720, %v12722
    %v12724 = vrot.slane %v12717, %v12723
    %v12726 = vunpack.c.l.s4 1966171168
    %v12727 = vunpack.c.0.s8 %v12726
    %v12728 = vlaneseq
    %v12729 = vshrl.u32 %v12728, 7
    %v12730 = vsub.s32 %v12727, %v12729
    %v12731 = vrot.slane %v12724, %v12730
    %12732 = vrot.lane.b32.xlu0 %v12731, 64
    %v12733 = vpop.permute.xlu0 %12732
    %v12735 = vcombine.low %v12170, %v12319
    %v12737 = vunpack.c.l.s4 1966171168
    %v12738 = vunpack.c.0.s8 %v12737
    %v12739 = vlaneseq
    %v12740 = vshrl.u32 %v12739, 7
    %v12741 = vsub.s32 %v12738, %v12740
    %v12742 = vrot.slane %v12735, %v12741
    %v12744 = vunpack.c.l.s4 1966171168
    %v12745 = vunpack.c.0.s8 %v12744
    %v12746 = vlaneseq
    %v12747 = vshrl.u32 %v12746, 7
    %v12748 = vsub.s32 %v12745, %v12747
    %v12749 = vrot.slane %v12742, %v12748
    %12750 = vrot.lane.b32.xlu0 %v12749, 80
    %v12751 = vpop.permute.xlu0 %12750
    %v12753 = vcombine.low %v12172, %v12321
    %v12755 = vunpack.c.l.s4 1966171168
    %v12756 = vunpack.c.0.s8 %v12755
    %v12757 = vlaneseq
    %v12758 = vshrl.u32 %v12757, 7
    %v12759 = vsub.s32 %v12756, %v12758
    %v12760 = vrot.slane %v12753, %v12759
    %v12762 = vunpack.c.l.s4 1966171168
    %v12763 = vunpack.c.0.s8 %v12762
    %v12764 = vlaneseq
    %v12765 = vshrl.u32 %v12764, 7
    %v12766 = vsub.s32 %v12763, %v12765
    %v12767 = vrot.slane %v12760, %v12766
    %12768 = vrot.lane.b32.xlu0 %v12767, 96
    %v12769 = vpop.permute.xlu0 %12768
    %v12771 = vcombine.low %v12174, %v12336
    %v12773 = vunpack.c.l.s4 1966171168
    %v12774 = vunpack.c.0.s8 %v12773
    %v12775 = vlaneseq
    %v12776 = vshrl.u32 %v12775, 7
    %v12777 = vsub.s32 %v12774, %v12776
    %v12778 = vrot.slane %v12771, %v12777
    %v12780 = vunpack.c.l.s4 1966171168
    %v12781 = vunpack.c.0.s8 %v12780
    %v12782 = vlaneseq
    %v12783 = vshrl.u32 %v12782, 7
    %v12784 = vsub.s32 %v12781, %v12783
    %v12785 = vrot.slane %v12778, %v12784
    %12786 = vrot.lane.b32.xlu0 %v12785, 112
    %v12787 = vpop.permute.xlu0 %12786
    %v12789 = vcombine.low %v12198, %v12343
    %v12791 = vunpack.c.l.s4 1966171168
    %v12792 = vunpack.c.0.s8 %v12791
    %v12793 = vlaneseq
    %v12794 = vshrl.u32 %v12793, 7
    %v12795 = vsub.s32 %v12792, %v12794
    %v12796 = vrot.slane %v12789, %v12795
    %v12798 = vunpack.c.l.s4 1966171168
    %v12799 = vunpack.c.0.s8 %v12798
    %v12800 = vlaneseq
    %v12801 = vshrl.u32 %v12800, 7
    %v12802 = vsub.s32 %v12799, %v12801
    %v12803 = vrot.slane %v12796, %v12802
    %v12805 = vsel %vm12628, %v12661, %v12679
    %v12806 = vsel %vm12630, %v12805, %v12697
    %v12807 = vsel %vm5793, %v12806, %v12715
    %v12808 = vsel %vm12633, %v12807, %v12733
    %v12809 = vsel %vm12635, %v12808, %v12751
    %v12810 = vsel %vm6413, %v12809, %v12769
    %v12811 = vsel %vm12638, %v12810, %v12787
    %v12812 = vpack.c.bf16 %v12639, %v12639
    %v12813 = vpack.c.bf16 %v12646, %v12646
    %v12814 = vpack.c.bf16 %v12811, %v12811
    %v12815 = vpack.c.bf16 %v12803, %v12803
    %v12816 = vlaneseq
    %v12817 = vshrl.u32 %v12816, 7
    %v12818 = vsub.s32 0, %v12817
    %v12819 = vrot.slane %v126, %v12818
    %v12870 = vunpack.c.l.b16 %v48
    %v12871 = vunpack.c.l.b16 %v49
    %v12872 = vunpack.c.l.b16 %v50
    %v12873 = vunpack.c.l.b16 %v51
    %v12874 = vunpack.c.l.b16 %v52
    %v12875 = vunpack.c.l.b16 %v53
    %v12876 = vunpack.c.l.b16 %v54
    %v12877 = vunpack.c.l.b16 %v55
    %v12878 = vunpack.c.l.b16 %v56
    %v12879 = vunpack.c.l.b16 %v57
    %v12880 = vunpack.c.l.b16 %v58
    %v12881 = vunpack.c.l.b16 %v59
    %v12882 = vunpack.c.l.b16 %v60
    %v12883 = vunpack.c.l.b16 %v61
    %v12884 = vunpack.c.l.b16 %v62
    %v12885 = vunpack.c.l.b16 %v63
    %v12886 = vunpack.c.l.b16 %v64
    %v12887 = vunpack.c.l.b16 %v65
    %v12888 = vunpack.c.l.b16 %v66
    %v12889 = vunpack.c.l.b16 %v67
    %v12890 = vunpack.c.l.b16 %v68
    %v12891 = vunpack.c.l.b16 %v69
    %v12892 = vunpack.c.l.b16 %v70
    %v12893 = vunpack.c.l.b16 %v71
    %v12894 = vunpack.c.l.b16 %v72
    %v12895 = vunpack.c.l.b16 %v73
    %v12896 = vunpack.c.l.b16 %v74
    %v12897 = vunpack.c.l.b16 %v75
    %v12898 = vunpack.c.l.b16 %v76
    %v12899 = vunpack.c.l.b16 %v77
    %v12900 = vunpack.c.l.b16 %v78
    %v12901 = vunpack.c.l.b16 %v79
    %v12902 = vunpack.c.l.b16 %v80
    %v12903 = vunpack.c.l.b16 %v81
    %v12904 = vunpack.c.l.b16 %v82
    %v12905 = vunpack.c.l.b16 %v83
    %v12906 = vunpack.c.l.b16 %v84
    %v12907 = vunpack.c.l.b16 %v85
    %v12908 = vunpack.c.l.b16 %v86
    %v12909 = vunpack.c.l.b16 %v87
    %v12910 = vunpack.c.l.b16 %v88
    %v12911 = vunpack.c.l.b16 %v89
    %v12912 = vunpack.c.l.b16 %v90
    %v12913 = vunpack.c.l.b16 %v91
    %v12914 = vunpack.c.l.b16 %v92
    %v12915 = vunpack.c.l.b16 %v93
    %v12916 = vunpack.c.l.b16 %v94
    %v12917 = vunpack.c.l.b16 %v95
    %v12918 = vunpack.c.l.b16 %v96
    %v12919 = vunpack.c.l.b16 %v97
    %v12920 = vpack.c.b16 %v12871, %v12870
    %v12921 = vpack.c.b16 %v12873, %v12872
    %v12922 = vpack.c.b16 %v12875, %v12874
    %v12923 = vpack.c.b16 %v12877, %v12876
    %v12924 = vpack.c.b16 %v12879, %v12878
    %v12925 = vpack.c.b16 %v12881, %v12880
    %v12926 = vpack.c.b16 %v12883, %v12882
    %v12927 = vpack.c.b16 %v12885, %v12884
    %v12928 = vpack.c.b16 %v12887, %v12886
    %v12929 = vpack.c.b16 %v12889, %v12888
    %v12930 = vpack.c.b16 %v12891, %v12890
    %v12931 = vpack.c.b16 %v12893, %v12892
    %v12932 = vpack.c.b16 %v12895, %v12894
    %v12933 = vpack.c.b16 %v12897, %v12896
    %v12934 = vpack.c.b16 %v12899, %v12898
    %v12935 = vpack.c.b16 %v12901, %v12900
    %v12936 = vpack.c.b16 %v12903, %v12902
    %v12937 = vpack.c.b16 %v12905, %v12904
    %v12938 = vpack.c.b16 %v12907, %v12906
    %v12939 = vpack.c.b16 %v12909, %v12908
    %v12940 = vpack.c.b16 %v12911, %v12910
    %v12941 = vpack.c.b16 %v12913, %v12912
    %v12942 = vpack.c.b16 %v12915, %v12914
    %v12943 = vpack.c.b16 %v12917, %v12916
    %v12944 = vpack.c.b16 %v12919, %v12918
    %v12971 = vsel %vm12628, %v12815, 0
    %12973 = vmatprep.subr.bf16.mxu0 0
    %12974 = vmatpush1.bf16.msra.mxu0 %v12920
    %12975 = vmatprep.subr.bf16.mxu0 0
    %12976 = vmatpush1.bf16.msra.mxu0 %v12921
    %12977 = vmatprep.subr.bf16.mxu0 0
    %12978 = vmatpush1.bf16.msra.mxu0 %v12922
    %12979 = vmatprep.subr.bf16.mxu0 0
    %12980 = vmatpush1.bf16.msra.mxu0 %v12923
    %12981 = vmatprep.subr.bf16.mxu0 0
    %12982 = vmatpush1.bf16.msra.mxu0 %v12924
    %12983 = vmatprep.subr.bf16.mxu0 0
    %12984 = vmatpush1.bf16.msra.mxu0 %v12925
    %12985 = vmatprep.subr.bf16.mxu0 0
    %12986 = vmatpush1.bf16.msra.mxu0 %v12926
    %12987 = vmatprep.subr.bf16.mxu0 0
    %12988 = vmatpush1.bf16.msra.mxu0 %v12927
    %12989 = vmatprep.subr.bf16.mxu0 0
    %12990 = vmatpush1.bf16.msra.mxu0 %v12928
    %12991 = vmatprep.subr.bf16.mxu0 0
    %12992 = vmatpush1.bf16.msra.mxu0 %v12929
    %12993 = vmatprep.subr.bf16.mxu0 0
    %12994 = vmatpush1.bf16.msra.mxu0 %v12930
    %12995 = vmatprep.subr.bf16.mxu0 0
    %12996 = vmatpush1.bf16.msra.mxu0 %v12931
    %12997 = vmatprep.subr.bf16.mxu0 0
    %12998 = vmatpush1.bf16.msra.mxu0 %v12932
    %12999 = vmatprep.subr.bf16.mxu0 0
    %13000 = vmatpush1.bf16.msra.mxu0 %v12933
    %13001 = vmatprep.subr.bf16.mxu0 0
    %13002 = vmatpush1.bf16.msra.mxu0 %v12934
    %13003 = vmatprep.subr.bf16.mxu0 0
    %13004 = vmatpush1.bf16.msra.mxu0 %v12935
    %13005 = vmatprep.mubr.bf16.mxu0 %v12813
    %13006 = vmatmul.mubr.bf16.gmra.mrb[0].mxu0 %v12812
    %v13007 = vpop.f32.mrb[0].mxu0
    %v13008 = vadd.f32 %v12819, %v13007
    %v13009 = vpop.f32.mrb[0].mxu0
    %v13010 = vpop.f32.mrb[0].mxu0
    %v13011 = vpop.f32.mrb[0].mxu0
    %13012 = vdwg.mxu0
    %13013 = vmatprep.subr.bf16.mxu0 0
    %13014 = vmatpush1.bf16.msra.mxu0 %v12936
    %13015 = vmatprep.subr.bf16.mxu0 0
    %13016 = vmatpush1.bf16.msra.mxu0 %v12937
    %13017 = vmatprep.subr.bf16.mxu0 0
    %13018 = vmatpush1.bf16.msra.mxu0 %v12938
    %13019 = vmatprep.subr.bf16.mxu0 0
    %13020 = vmatpush1.bf16.msra.mxu0 %v12939
    %13021 = vmatprep.subr.bf16.mxu0 0
    %13022 = vmatpush1.bf16.msra.mxu0 %v12940
    %13023 = vmatprep.subr.bf16.mxu0 0
    %13024 = vmatpush1.bf16.msra.mxu0 %v12941
    %13025 = vmatprep.subr.bf16.mxu0 0
    %13026 = vmatpush1.bf16.msra.mxu0 %v12942
    %13027 = vmatprep.subr.bf16.mxu0 0
    %13028 = vmatpush1.bf16.msra.mxu0 %v12943
    %13029 = vmatprep.subr.bf16.mxu0 0
    %13030 = vmatpush1.bf16.msra.mxu0 %v12944
    %13031 = vmatprep.subr.bf16.mxu0 0
    %13032 = vmatpush1.bf16.msra.mxu0 0
    %13033 = vmatprep.subr.bf16.mxu0 0
    %13034 = vmatpush1.bf16.msra.mxu0 0
    %13035 = vmatprep.subr.bf16.mxu0 0
    %13036 = vmatpush1.bf16.msra.mxu0 0
    %13037 = vmatprep.subr.bf16.mxu0 0
    %13038 = vmatpush1.bf16.msra.mxu0 0
    %13039 = vmatprep.subr.bf16.mxu0 0
    %13040 = vmatpush1.bf16.msra.mxu0 0
    %13041 = vmatprep.subr.bf16.mxu0 0
    %13042 = vmatpush1.bf16.msra.mxu0 0
    %13043 = vmatprep.subr.bf16.mxu0 0
    %13044 = vmatpush1.bf16.msra.mxu0 0
    %13045 = vmatprep.mubr.bf16.mxu0 %v12971
    %13046 = vmatmul.mubr.bf16.gmra.mrb[0].mxu0 %v12814
    %v13047 = vpop.f32.mrb[0].mxu0
    %v13048 = vadd.f32 %v13008, %v13047
    %v13049 = vpop.f32.mrb[0].mxu0
    %v13050 = vpop.f32.mrb[0].mxu0
    %v13051 = vpop.f32.mrb[0].mxu0
    %13052 = vdwg.mxu0
    %v13053 = vmax.f32 %v13048, 0.0
    %v13054 = vpack.c.bf16 %v13053, %v13053
    %v13055 = vlaneseq
    %v13056 = vshrl.u32 %v13055, 7
    %v13057 = vsub.s32 0, %v13056
    %v13058 = vrot.slane %v127, %v13057
    %v13074 = vunpack.c.l.b16 %v98
    %v13075 = vunpack.c.l.b16 %v99
    %v13076 = vunpack.c.l.b16 %v100
    %v13077 = vunpack.c.l.b16 %v101
    %v13078 = vunpack.c.l.b16 %v102
    %v13079 = vunpack.c.l.b16 %v103
    %v13080 = vunpack.c.l.b16 %v104
    %v13081 = vunpack.c.l.b16 %v105
    %v13082 = vunpack.c.l.b16 %v106
    %v13083 = vunpack.c.l.b16 %v107
    %v13084 = vunpack.c.l.b16 %v108
    %v13085 = vunpack.c.l.b16 %v109
    %v13086 = vunpack.c.l.b16 %v110
    %v13087 = vunpack.c.l.b16 %v111
    %v13088 = vunpack.c.l.b16 %v112
    %v13089 = vpack.c.b16 %v13075, %v13074
    %v13090 = vpack.c.b16 %v13077, %v13076
    %v13091 = vpack.c.b16 %v13079, %v13078
    %v13092 = vpack.c.b16 %v13081, %v13080
    %v13093 = vpack.c.b16 %v13083, %v13082
    %v13094 = vpack.c.b16 %v13085, %v13084
    %v13095 = vpack.c.b16 %v13087, %v13086
    %v13096 = vpack.c.b16 %v13088, %v13088
    %vm13104 = vcmask 982016
    %v13106 = vsel %vm13104, %v13054, 0
    %vm13108 = vcmask 1043456
    %v13110 = vsel %vm13108, %v13096, 0
    %13112 = vmatprep.subr.bf16.mxu0 0
    %13113 = vmatpush1.bf16.msra.mxu0 %v13089
    %13114 = vmatprep.subr.bf16.mxu0 0
    %13115 = vmatpush1.bf16.msra.mxu0 %v13090
    %13116 = vmatprep.subr.bf16.mxu0 0
    %13117 = vmatpush1.bf16.msra.mxu0 %v13091
    %13118 = vmatprep.subr.bf16.mxu0 0
    %13119 = vmatpush1.bf16.msra.mxu0 %v13092
    %13120 = vmatprep.subr.bf16.mxu0 0
    %13121 = vmatpush1.bf16.msra.mxu0 %v13093
    %13122 = vmatprep.subr.bf16.mxu0 0
    %13123 = vmatpush1.bf16.msra.mxu0 %v13094
    %13124 = vmatprep.subr.bf16.mxu0 0
    %13125 = vmatpush1.bf16.msra.mxu0 %v13095
    %13126 = vmatprep.subr.bf16.mxu0 0
    %13127 = vmatpush1.bf16.msra.mxu0 %v13110
    %13128 = vmatprep.subr.bf16.mxu0 0
    %13129 = vmatpush1.bf16.msra.mxu0 0
    %13130 = vmatprep.subr.bf16.mxu0 0
    %13131 = vmatpush1.bf16.msra.mxu0 0
    %13132 = vmatprep.subr.bf16.mxu0 0
    %13133 = vmatpush1.bf16.msra.mxu0 0
    %13134 = vmatprep.subr.bf16.mxu0 0
    %13135 = vmatpush1.bf16.msra.mxu0 0
    %13136 = vmatprep.subr.bf16.mxu0 0
    %13137 = vmatpush1.bf16.msra.mxu0 0
    %13138 = vmatprep.subr.bf16.mxu0 0
    %13139 = vmatpush1.bf16.msra.mxu0 0
    %13140 = vmatprep.subr.bf16.mxu0 0
    %13141 = vmatpush1.bf16.msra.mxu0 0
    %13142 = vmatprep.subr.bf16.mxu0 0
    %13143 = vmatpush1.bf16.msra.mxu0 0
    %13144 = vmatprep.mubr.bf16.mxu0 0
    %13145 = vmatmul.mubr.bf16.gmra.mrb[0].mxu0 %v13106
    %v13146 = vpop.f32.mrb[0].mxu0
    %v13147 = vadd.f32 %v13058, %v13146
    %v13148 = vpop.f32.mrb[0].mxu0
    %v13149 = vpop.f32.mrb[0].mxu0
    %v13150 = vpop.f32.mrb[0].mxu0
    %13151 = vdwg.mxu0
    %v13152 = vmax.f32 %v13147, 0.0
    %v13153 = vpack.c.bf16 %v13152, %v13152
    %v13154 = vlaneseq
    %v13155 = vshrl.u32 %v13154, 7
    %v13156 = vsub.s32 0, %v13155
    %v13157 = vrot.slane %v128, %v13156
    %v13169 = vunpack.c.l.b16 %v113
    %v13170 = vunpack.c.l.b16 %v114
    %v13171 = vunpack.c.l.b16 %v115
    %v13172 = vunpack.c.l.b16 %v116
    %v13173 = vunpack.c.l.b16 %v117
    %v13174 = vunpack.c.l.b16 %v118
    %v13175 = vunpack.c.l.b16 %v119
    %v13176 = vunpack.c.l.b16 %v120
    %v13177 = vunpack.c.l.b16 %v121
    %v13178 = vunpack.c.l.b16 %v122
    %v13179 = vunpack.c.l.b16 %v123
    %v13180 = vpack.c.b16 %v13170, %v13169
    %v13181 = vpack.c.b16 %v13172, %v13171
    %v13182 = vpack.c.b16 %v13174, %v13173
    %v13183 = vpack.c.b16 %v13176, %v13175
    %v13184 = vpack.c.b16 %v13178, %v13177
    %v13185 = vpack.c.b16 %v13179, %v13179
    %v13192 = vsel %vm5859, %v13153, 0
    %v13195 = vsel %vm416, %v13185, 0
    %13197 = vmatprep.subr.bf16.mxu0 0
    %13198 = vmatpush1.bf16.msra.mxu0 %v13180
    %13199 = vmatprep.subr.bf16.mxu0 0
    %13200 = vmatpush1.bf16.msra.mxu0 %v13181
    %13201 = vmatprep.subr.bf16.mxu0 0
    %13202 = vmatpush1.bf16.msra.mxu0 %v13182
    %13203 = vmatprep.subr.bf16.mxu0 0
    %13204 = vmatpush1.bf16.msra.mxu0 %v13183
    %13205 = vmatprep.subr.bf16.mxu0 0
    %13206 = vmatpush1.bf16.msra.mxu0 %v13184
    %13207 = vmatprep.subr.bf16.mxu0 0
    %13208 = vmatpush1.bf16.msra.mxu0 %v13195
    %13209 = vmatprep.subr.bf16.mxu0 0
    %13210 = vmatpush1.bf16.msra.mxu0 0
    %13211 = vmatprep.subr.bf16.mxu0 0
    %13212 = vmatpush1.bf16.msra.mxu0 0
    %13213 = vmatprep.subr.bf16.mxu0 0
    %13214 = vmatpush1.bf16.msra.mxu0 0
    %13215 = vmatprep.subr.bf16.mxu0 0
    %13216 = vmatpush1.bf16.msra.mxu0 0
    %13217 = vmatprep.subr.bf16.mxu0 0
    %13218 = vmatpush1.bf16.msra.mxu0 0
    %13219 = vmatprep.subr.bf16.mxu0 0
    %13220 = vmatpush1.bf16.msra.mxu0 0
    %13221 = vmatprep.subr.bf16.mxu0 0
    %13222 = vmatpush1.bf16.msra.mxu0 0
    %13223 = vmatprep.subr.bf16.mxu0 0
    %13224 = vmatpush1.bf16.msra.mxu0 0
    %13225 = vmatprep.subr.bf16.mxu0 0
    %13226 = vmatpush1.bf16.msra.mxu0 0
    %13227 = vmatprep.subr.bf16.mxu0 0
    %13228 = vmatpush1.bf16.msra.mxu0 0
    %13229 = vmatprep.mubr.bf16.mxu0 0
    %13230 = vmatmul.mubr.bf16.gmra.mrb[0].mxu0 %v13192
    %v13231 = vpop.f32.mrb[0].mxu0
    %v13232 = vadd.f32 %v13157, %v13231
    %v13233 = vpop.f32.mrb[0].mxu0
    %v13234 = vpop.f32.mrb[0].mxu0
    %v13235 = vpop.f32.mrb[0].mxu0
    %13236 = vdwg.mxu0
    %13237 = vst [vmem:[#allocation2] sm:$0x3] %v13232
    // Predicated region
    $region14: #{net_forward.1} parent=1 // pred_check
      _
    $region15: #{net_forward.1} parent=1 // pred_check_branch
      %13239 = sbr.rel (0) target = $region17
    $region16: #{net_forward.1} parent=1 // pred_region
      %s13241 = ssub.s32 32, 32
      %13242 = vsyncadd [#allocation3], %s13241
      %s13244 = sshll.u32 [#allocation2], 4
      %s13245 = int_to_ptr.vmem [resolvable:$true] %s13244
      %13247 = dma.vmem_to_hbm [thread:$0]  %s13245, 32, %s3, [#allocation3]
    $region17: #{net_forward.1} parent=1 // pred_fallthru
      _
    // Predicated region
    $region18: #{net_forward.1} parent=1 // pred_check
      _
    $region19: #{net_forward.1} parent=1 // pred_check_branch
      %13249 = sbr.rel (0) target = $region21
    $region20: #{net_forward.1} parent=1 // pred_region
      %13250 = dma.done [#allocation3], 32
    $region21: #{net_forward.1} parent=1 // pred_fallthru
      _
    %13251 = vsyncpa [#allocation3], 1

</llo_original>
